<compile_context>
chip_gen: v6e
topology: v6e:2x2x1
jax: 0.10.0
libtpu: 0.0.40
codegen_flags: <defaults>
</compile_context>

<pallas_src>
import math
import functools

import jax
import jax.numpy as jnp
from jax import lax
from jax.experimental import pallas as pl
from jax.experimental.pallas import tpu as pltpu

EPS = 1e-5  # torch LayerNorm default eps


# --------------------------------------------------------------------------
# in-kernel helpers
# --------------------------------------------------------------------------
def _layernorm(x, w, b):
    mu = jnp.mean(x, axis=-1, keepdims=True)
    xc = x - mu
    var = jnp.mean(xc * xc, axis=-1, keepdims=True)
    return xc * lax.rsqrt(var + EPS) * w + b


# --------------------------------------------------------------------------
# fused kernel
# --------------------------------------------------------------------------
def fused_transformer_kernel(nhead, num_layers, B, S, D, F,
                             ids_ref,                       # SMEM scalar prefetch (B*S,)
                             mask_ref, emb_ref,
                             win_ref, wo_ref, wff1_ref, wff2_ref,
                             vd_ref, vf_ref, rw1_ref, rw2_ref,
                             o_ref, xbuf_ref):
    hd = D // nhead

    # ---- embedding gather: ids in SMEM, (vocab, D) table resident in VMEM ----
    for t in range(B * S):                                  # static unroll, B*S tiny
        idx = ids_ref[t]
        xbuf_ref[pl.ds(t, 1), :] = emb_ref[pl.ds(idx, 1), :]
    x = xbuf_ref[...]                                       # (B*S, D) f32

    # ---- additive key-padding bias built in-kernel from the raw mask ----
    mask = mask_ref[...]                                    # (B, S)
    kbias = jnp.where(mask > 0.0, 0.0, -1e9)[:, None, :]    # (B, 1, S), hoisted

    for l in range(num_layers):                             # static unroll; weights in VMEM
        vd = vd_ref[l]                                      # (9, D): bq bk bv ob b2 ln1w ln1b ln2w ln2b
        # single full-width in-projection; 1/sqrt(hd) pre-folded into Q block
        qkv = jnp.dot(x, win_ref[l], preferred_element_type=jnp.float32)   # (B*S, 3D)
        q = (qkv[:, 0:D] + vd[0:1, :]).reshape(B, S, D)
        k = (qkv[:, D:2 * D] + vd[1:2, :]).reshape(B, S, D)
        v = (qkv[:, 2 * D:3 * D] + vd[2:3, :]).reshape(B, S, D)

        ctx_heads = []
        for h in range(nhead):                              # static per-head loop, batched over B
            sl = slice(h * hd, (h + 1) * hd)
            s = jnp.einsum('bqe,bke->bqk', q[:, :, sl], k[:, :, sl],
                           preferred_element_type=jnp.float32)             # (B, S, S)
            s = s + kbias
            m = jnp.max(s, axis=-1, keepdims=True)
            e = jnp.exp(s - m)
            p = e * pl.reciprocal(jnp.sum(e, axis=-1, keepdims=True), approx=True)
            ctx_heads.append(jnp.einsum('bqk,bke->bqe', p, v[:, :, sl],
                                        preferred_element_type=jnp.float32))
        # head merge along lanes, then ONE (D, D) output projection
        ctx = jnp.concatenate(ctx_heads, axis=-1).reshape(B * S, D)
        attn = jnp.dot(ctx, wo_ref[l], preferred_element_type=jnp.float32) + vd[3:4, :]

        # residual + post-norm, FFN (relu) + residual + post-norm
        x = _layernorm(x + attn, vd[5:6, :], vd[6:7, :])
        h1 = jnp.maximum(
            jnp.dot(x, wff1_ref[l], preferred_element_type=jnp.float32) + vf_ref[l], 0.0)
        ff = jnp.dot(h1, wff2_ref[l], preferred_element_type=jnp.float32) + vd[4:5, :]
        x = _layernorm(x + ff, vd[7:8, :], vd[8:9, :])

    # ---- masked mean pool (in-kernel weights) + regression head ----
    cnt = jnp.sum(mask, axis=1, keepdims=True)              # (B, 1); 0/0 NaN matches ref
    w = mask / cnt                                          # (B, S)
    pooled = jnp.sum(x.reshape(B, S, D) * w[:, :, None], axis=1)           # (B, D)

    rw1 = rw1_ref[...]                                      # (D+1, F): [w1; b1]
    rw2 = rw2_ref[...]                                      # (F+1, 1): [w2; b2]
    hreg = jnp.maximum(
        jnp.dot(pooled, rw1[0:D, :], preferred_element_type=jnp.float32) + rw1[D:D + 1, :],
        0.0)
    o_ref[...] = jnp.dot(hreg, rw2[0:F, :],
                         preferred_element_type=jnp.float32) + rw2[F:F + 1, :]


def _full_spec(shape):
    zeros = (0,) * len(shape)
    return pl.BlockSpec(shape, lambda *_: zeros)            # ignores grid idx + prefetch ref


# --------------------------------------------------------------------------
# wrapper: only trivial reshapes/casts outside the kernel
# --------------------------------------------------------------------------
def transformer_forward(kparams, x_ids, attention_mask, nhead, num_layers):
    B, S = x_ids.shape
    emb = kparams["embedding"]
    D = emb.shape[1]
    F = kparams["wff1"].shape[-1]

    if attention_mask is None:
        mask = jnp.ones((B, S), jnp.float32)
    else:
        mask = attention_mask.astype(jnp.float32)

    ids_flat = x_ids.reshape(-1).astype(jnp.int32)          # (B*S,) scalar-prefetch vector

    operands = [
        mask, emb,
        kparams["win"], kparams["wo"], kparams["wff1"], kparams["wff2"],
        kparams["vd"], kparams["vf"], kparams["rw1b"], kparams["rw2b"],
    ]

    out = pl.pallas_call(
        functools.partial(fused_transformer_kernel, nhead, num_layers, B, S, D, F),
        out_shape=jax.ShapeDtypeStruct((B, 1), jnp.float32),
        grid_spec=pltpu.PrefetchScalarGridSpec(
            num_scalar_prefetch=1,
            grid=(1,),
            in_specs=[_full_spec(op.shape) for op in operands],
            out_specs=_full_spec((B, 1)),
            scratch_shapes=[pltpu.VMEM((B * S, D), jnp.float32)],
        ),
        compiler_params=pltpu.CompilerParams(
            dimension_semantics=("arbitrary",)),
    )(ids_flat, *operands)
    return out[:, 0]                                        # squeeze(-1) -> (B,)


# --------------------------------------------------------------------------
# parameter init (deterministic, torch-like but pre-transposed layout)
# --------------------------------------------------------------------------
def init_params(key, vocab, D, F, num_layers):
    keys = jax.random.split(key, 2 + num_layers)
    params = {"embedding": jax.random.normal(keys[0], (vocab, D), jnp.float32) * 0.02}

    layers = []
    for i in range(num_layers):
        ks = jax.random.split(keys[1 + i], 6)
        layers.append(dict(
            in_wT=jax.random.normal(ks[0], (D, 3 * D), jnp.float32) * 0.02,
            in_b=jax.random.normal(ks[1], (1, 3 * D), jnp.float32) * 0.02,
            out_wT=jax.random.normal(ks[2], (D, D), jnp.float32) * 0.02,
            out_b=jax.random.normal(ks[3], (1, D), jnp.float32) * 0.02,
            ln1_w=jnp.ones((1, D), jnp.float32),
            ln1_b=jnp.zeros((1, D), jnp.float32),
            w1T=jax.random.normal(ks[4], (D, F), jnp.float32) * 0.02,
            b1=jnp.zeros((1, F), jnp.float32),
            w2T=jax.random.normal(ks[5], (F, D), jnp.float32) * 0.02,
            b2=jnp.zeros((1, D), jnp.float32),
            ln2_w=jnp.ones((1, D), jnp.float32),
            ln2_b=jnp.zeros((1, D), jnp.float32),
        ))
    params["layers"] = layers

    kr = jax.random.split(keys[-1], 2)
    params["reg"] = dict(
        w1T=jax.random.normal(kr[0], (D, F), jnp.float32) * 0.02,
        b1=jnp.zeros((1, F), jnp.float32),
        w2T=jax.random.normal(kr[1], (F, 1), jnp.float32) * 0.02,
        b2=jnp.zeros((1, 1), jnp.float32),
    )
    return params


def prepare_kernel_params(params, nhead):
    """Pack per-layer weights into a few stacked slabs for the fused kernel.

    win  (L, D, 3D)  in-projection, 1/sqrt(hd) folded into the Q columns
    wo   (L, D, D)   output projection (applied to lane-concatenated heads)
    wff1 (L, D, F) / wff2 (L, F, D)   FFN
    vd   (L, 9, D)   [bq, bk, bv, out_b, ffn_b2, ln1w, ln1b, ln2w, ln2b]
    vf   (L, 1, F)   [ffn_b1]
    rw1b (D+1, F) / rw2b (F+1, 1)   regression head [W; b]
    """
    D = params["embedding"].shape[1]
    hd = D // nhead
    scale = 1.0 / math.sqrt(hd)

    wins, wos, wff1s, wff2s, vds, vfs = [], [], [], [], [], []
    for p in params["layers"]:
        win = p["in_wT"].at[:, 0:D].multiply(scale)          # fold scale into Q weights
        in_b = p["in_b"][0]
        bq = in_b[0:D] * scale                               # fold scale into Q bias
        bk = in_b[D:2 * D]
        bv = in_b[2 * D:3 * D]
        wins.append(win)
        wos.append(p["out_wT"])
        wff1s.append(p["w1T"])
        wff2s.append(p["w2T"])
        vds.append(jnp.stack([bq, bk, bv,
                              p["out_b"][0], p["b2"][0],
                              p["ln1_w"][0], p["ln1_b"][0],
                              p["ln2_w"][0], p["ln2_b"][0]]))
        vfs.append(p["b1"])

    return dict(
        embedding=params["embedding"],
        win=jnp.stack(wins), wo=jnp.stack(wos),
        wff1=jnp.stack(wff1s), wff2=jnp.stack(wff2s),
        vd=jnp.stack(vds), vf=jnp.stack(vfs),
        rw1b=jnp.concatenate([params["reg"]["w1T"], params["reg"]["b1"]], axis=0),
        rw2b=jnp.concatenate([params["reg"]["w2T"], params["reg"]["b2"]], axis=0),
    )


if __name__ == "__main__":
    vocab_size, embedding_dim, hidden_dim = 50, 32, 32
    nhead, num_layers = 8, 2
    B, S = 2, 8

    key = jax.random.PRNGKey(0)
    kx, kp = jax.random.split(key)
    x = jax.random.randint(kx, (B, S), 0, vocab_size, dtype=jnp.int32)
    attention_mask = jnp.array([[1] * S, [1] * 5 + [0] * (S - 5)], jnp.float32)

    raw = init_params(kp, vocab_size, embedding_dim, hidden_dim, num_layers)
    kparams = prepare_kernel_params(raw, nhead)

    fwd = jax.jit(functools.partial(transformer_forward, kparams,
                                    nhead=nhead, num_layers=num_layers))
    out = fwd(x, attention_mask)
    jax.block_until_ready(out)
    assert out.shape == (B,) and out.dtype == jnp.float32
    print("KERNEL_OK")
</pallas_src>

<mosaic_0001>
module attributes {stable_mosaic.version = 11 : i64} {
  func.func @fused_transformer_kernel(%arg0: i32, %arg1: memref<16xi32, #tpu.memory_space<smem>>, %arg2: memref<2x8xf32, #tpu.memory_space<vmem>>, %arg3: memref<50x32xf32, #tpu.memory_space<vmem>>, %arg4: memref<2x32x96xf32, #tpu.memory_space<vmem>>, %arg5: memref<2x32x32xf32, #tpu.memory_space<vmem>>, %arg6: memref<2x32x32xf32, #tpu.memory_space<vmem>>, %arg7: memref<2x32x32xf32, #tpu.memory_space<vmem>>, %arg8: memref<2x9x32xf32, #tpu.memory_space<vmem>>, %arg9: memref<2x1x32xf32, #tpu.memory_space<vmem>>, %arg10: memref<33x32xf32, #tpu.memory_space<vmem>>, %arg11: memref<33x1xf32, #tpu.memory_space<vmem>>, %arg12: memref<2x1xf32, #tpu.memory_space<vmem>>, %arg13: memref<16x32xf32, #tpu.memory_space<vmem>>) attributes {dimension_semantics = [#tpu.dimension_semantics<arbitrary>], iteration_bounds = array<i64: 1>, scalar_prefetch = 1 : i64, scratch_operands = 1 : i64, tpu.core_type = #tpu.core_type<tc>, window_params = [{pipeline_mode = #tpu.pipeline_mode<synchronous>, transform_indices = @transform_0, window_bounds = array<i64: 2, 8>}, {pipeline_mode = #tpu.pipeline_mode<synchronous>, transform_indices = @transform_1, window_bounds = array<i64: 50, 32>}, {pipeline_mode = #tpu.pipeline_mode<synchronous>, transform_indices = @transform_2, window_bounds = array<i64: 2, 32, 96>}, {pipeline_mode = #tpu.pipeline_mode<synchronous>, transform_indices = @transform_3, window_bounds = array<i64: 2, 32, 32>}, {pipeline_mode = #tpu.pipeline_mode<synchronous>, transform_indices = @transform_4, window_bounds = array<i64: 2, 32, 32>}, {pipeline_mode = #tpu.pipeline_mode<synchronous>, transform_indices = @transform_5, window_bounds = array<i64: 2, 32, 32>}, {pipeline_mode = #tpu.pipeline_mode<synchronous>, transform_indices = @transform_6, window_bounds = array<i64: 2, 9, 32>}, {pipeline_mode = #tpu.pipeline_mode<synchronous>, transform_indices = @transform_7, window_bounds = array<i64: 2, 1, 32>}, {pipeline_mode = #tpu.pipeline_mode<synchronous>, transform_indices = @transform_8, window_bounds = array<i64: 33, 32>}, {pipeline_mode = #tpu.pipeline_mode<synchronous>, transform_indices = @transform_9, window_bounds = array<i64: 33, 1>}, {pipeline_mode = #tpu.pipeline_mode<synchronous>, transform_indices = @transform_10, window_bounds = array<i64: 2, 1>}]} {
    %c0 = arith.constant 0 : index
    %0 = memref.load %arg1[%c0] : memref<16xi32, #tpu.memory_space<smem>>
    %1 = arith.index_cast %0 : i32 to index
    %c0_0 = arith.constant 0 : index
    %2 = vector.load %arg3[%1, %c0_0] : memref<50x32xf32, #tpu.memory_space<vmem>>, vector<1x32xf32>
    %c0_1 = arith.constant 0 : index
    %c0_2 = arith.constant 0 : index
    %3 = vector.load %arg13[%c0_1, %c0_2] : memref<16x32xf32, #tpu.memory_space<vmem>>, vector<1x32xf32>
    tpu.vector_store %arg13[%c0_1, %c0_2], %2 {strides = array<i32>} : memref<16x32xf32, #tpu.memory_space<vmem>>, vector<1x32xf32>,
    %c1 = arith.constant 1 : index
    %4 = memref.load %arg1[%c1] : memref<16xi32, #tpu.memory_space<smem>>
    %5 = arith.index_cast %4 : i32 to index
    %c0_3 = arith.constant 0 : index
    %6 = vector.load %arg3[%5, %c0_3] : memref<50x32xf32, #tpu.memory_space<vmem>>, vector<1x32xf32>
    %c1_4 = arith.constant 1 : index
    %c0_5 = arith.constant 0 : index
    %7 = vector.load %arg13[%c1_4, %c0_5] : memref<16x32xf32, #tpu.memory_space<vmem>>, vector<1x32xf32>
    tpu.vector_store %arg13[%c1_4, %c0_5], %6 {strides = array<i32>} : memref<16x32xf32, #tpu.memory_space<vmem>>, vector<1x32xf32>,
    %c2 = arith.constant 2 : index
    %8 = memref.load %arg1[%c2] : memref<16xi32, #tpu.memory_space<smem>>
    %9 = arith.index_cast %8 : i32 to index
    %c0_6 = arith.constant 0 : index
    %10 = vector.load %arg3[%9, %c0_6] : memref<50x32xf32, #tpu.memory_space<vmem>>, vector<1x32xf32>
    %c2_7 = arith.constant 2 : index
    %c0_8 = arith.constant 0 : index
    %11 = vector.load %arg13[%c2_7, %c0_8] : memref<16x32xf32, #tpu.memory_space<vmem>>, vector<1x32xf32>
    tpu.vector_store %arg13[%c2_7, %c0_8], %10 {strides = array<i32>} : memref<16x32xf32, #tpu.memory_space<vmem>>, vector<1x32xf32>,
    %c3 = arith.constant 3 : index
    %12 = memref.load %arg1[%c3] : memref<16xi32, #tpu.memory_space<smem>>
    %13 = arith.index_cast %12 : i32 to index
    %c0_9 = arith.constant 0 : index
    %14 = vector.load %arg3[%13, %c0_9] : memref<50x32xf32, #tpu.memory_space<vmem>>, vector<1x32xf32>
    %c3_10 = arith.constant 3 : index
    %c0_11 = arith.constant 0 : index
    %15 = vector.load %arg13[%c3_10, %c0_11] : memref<16x32xf32, #tpu.memory_space<vmem>>, vector<1x32xf32>
    tpu.vector_store %arg13[%c3_10, %c0_11], %14 {strides = array<i32>} : memref<16x32xf32, #tpu.memory_space<vmem>>, vector<1x32xf32>,
    %c4 = arith.constant 4 : index
    %16 = memref.load %arg1[%c4] : memref<16xi32, #tpu.memory_space<smem>>
    %17 = arith.index_cast %16 : i32 to index
    %c0_12 = arith.constant 0 : index
    %18 = vector.load %arg3[%17, %c0_12] : memref<50x32xf32, #tpu.memory_space<vmem>>, vector<1x32xf32>
    %c4_13 = arith.constant 4 : index
    %c0_14 = arith.constant 0 : index
    %19 = vector.load %arg13[%c4_13, %c0_14] : memref<16x32xf32, #tpu.memory_space<vmem>>, vector<1x32xf32>
    tpu.vector_store %arg13[%c4_13, %c0_14], %18 {strides = array<i32>} : memref<16x32xf32, #tpu.memory_space<vmem>>, vector<1x32xf32>,
    %c5 = arith.constant 5 : index
    %20 = memref.load %arg1[%c5] : memref<16xi32, #tpu.memory_space<smem>>
    %21 = arith.index_cast %20 : i32 to index
    %c0_15 = arith.constant 0 : index
    %22 = vector.load %arg3[%21, %c0_15] : memref<50x32xf32, #tpu.memory_space<vmem>>, vector<1x32xf32>
    %c5_16 = arith.constant 5 : index
    %c0_17 = arith.constant 0 : index
    %23 = vector.load %arg13[%c5_16, %c0_17] : memref<16x32xf32, #tpu.memory_space<vmem>>, vector<1x32xf32>
    tpu.vector_store %arg13[%c5_16, %c0_17], %22 {strides = array<i32>} : memref<16x32xf32, #tpu.memory_space<vmem>>, vector<1x32xf32>,
    %c6 = arith.constant 6 : index
    %24 = memref.load %arg1[%c6] : memref<16xi32, #tpu.memory_space<smem>>
    %25 = arith.index_cast %24 : i32 to index
    %c0_18 = arith.constant 0 : index
    %26 = vector.load %arg3[%25, %c0_18] : memref<50x32xf32, #tpu.memory_space<vmem>>, vector<1x32xf32>
    %c6_19 = arith.constant 6 : index
    %c0_20 = arith.constant 0 : index
    %27 = vector.load %arg13[%c6_19, %c0_20] : memref<16x32xf32, #tpu.memory_space<vmem>>, vector<1x32xf32>
    tpu.vector_store %arg13[%c6_19, %c0_20], %26 {strides = array<i32>} : memref<16x32xf32, #tpu.memory_space<vmem>>, vector<1x32xf32>,
    %c7 = arith.constant 7 : index
    %28 = memref.load %arg1[%c7] : memref<16xi32, #tpu.memory_space<smem>>
    %29 = arith.index_cast %28 : i32 to index
    %c0_21 = arith.constant 0 : index
    %30 = vector.load %arg3[%29, %c0_21] : memref<50x32xf32, #tpu.memory_space<vmem>>, vector<1x32xf32>
    %c7_22 = arith.constant 7 : index
    %c0_23 = arith.constant 0 : index
    %31 = vector.load %arg13[%c7_22, %c0_23] : memref<16x32xf32, #tpu.memory_space<vmem>>, vector<1x32xf32>
    tpu.vector_store %arg13[%c7_22, %c0_23], %30 {strides = array<i32>} : memref<16x32xf32, #tpu.memory_space<vmem>>, vector<1x32xf32>,
    %c8 = arith.constant 8 : index
    %32 = memref.load %arg1[%c8] : memref<16xi32, #tpu.memory_space<smem>>
    %33 = arith.index_cast %32 : i32 to index
    %c0_24 = arith.constant 0 : index
    %34 = vector.load %arg3[%33, %c0_24] : memref<50x32xf32, #tpu.memory_space<vmem>>, vector<1x32xf32>
    %c8_25 = arith.constant 8 : index
    %c0_26 = arith.constant 0 : index
    %35 = vector.load %arg13[%c8_25, %c0_26] : memref<16x32xf32, #tpu.memory_space<vmem>>, vector<1x32xf32>
    tpu.vector_store %arg13[%c8_25, %c0_26], %34 {strides = array<i32>} : memref<16x32xf32, #tpu.memory_space<vmem>>, vector<1x32xf32>,
    %c9 = arith.constant 9 : index
    %36 = memref.load %arg1[%c9] : memref<16xi32, #tpu.memory_space<smem>>
    %37 = arith.index_cast %36 : i32 to index
    %c0_27 = arith.constant 0 : index
    %38 = vector.load %arg3[%37, %c0_27] : memref<50x32xf32, #tpu.memory_space<vmem>>, vector<1x32xf32>
    %c9_28 = arith.constant 9 : index
    %c0_29 = arith.constant 0 : index
    %39 = vector.load %arg13[%c9_28, %c0_29] : memref<16x32xf32, #tpu.memory_space<vmem>>, vector<1x32xf32>
    tpu.vector_store %arg13[%c9_28, %c0_29], %38 {strides = array<i32>} : memref<16x32xf32, #tpu.memory_space<vmem>>, vector<1x32xf32>,
    %c10 = arith.constant 10 : index
    %40 = memref.load %arg1[%c10] : memref<16xi32, #tpu.memory_space<smem>>
    %41 = arith.index_cast %40 : i32 to index
    %c0_30 = arith.constant 0 : index
    %42 = vector.load %arg3[%41, %c0_30] : memref<50x32xf32, #tpu.memory_space<vmem>>, vector<1x32xf32>
    %c10_31 = arith.constant 10 : index
    %c0_32 = arith.constant 0 : index
    %43 = vector.load %arg13[%c10_31, %c0_32] : memref<16x32xf32, #tpu.memory_space<vmem>>, vector<1x32xf32>
    tpu.vector_store %arg13[%c10_31, %c0_32], %42 {strides = array<i32>} : memref<16x32xf32, #tpu.memory_space<vmem>>, vector<1x32xf32>,
    %c11 = arith.constant 11 : index
    %44 = memref.load %arg1[%c11] : memref<16xi32, #tpu.memory_space<smem>>
    %45 = arith.index_cast %44 : i32 to index
    %c0_33 = arith.constant 0 : index
    %46 = vector.load %arg3[%45, %c0_33] : memref<50x32xf32, #tpu.memory_space<vmem>>, vector<1x32xf32>
    %c11_34 = arith.constant 11 : index
    %c0_35 = arith.constant 0 : index
    %47 = vector.load %arg13[%c11_34, %c0_35] : memref<16x32xf32, #tpu.memory_space<vmem>>, vector<1x32xf32>
    tpu.vector_store %arg13[%c11_34, %c0_35], %46 {strides = array<i32>} : memref<16x32xf32, #tpu.memory_space<vmem>>, vector<1x32xf32>,
    %c12 = arith.constant 12 : index
    %48 = memref.load %arg1[%c12] : memref<16xi32, #tpu.memory_space<smem>>
    %49 = arith.index_cast %48 : i32 to index
    %c0_36 = arith.constant 0 : index
    %50 = vector.load %arg3[%49, %c0_36] : memref<50x32xf32, #tpu.memory_space<vmem>>, vector<1x32xf32>
    %c12_37 = arith.constant 12 : index
    %c0_38 = arith.constant 0 : index
    %51 = vector.load %arg13[%c12_37, %c0_38] : memref<16x32xf32, #tpu.memory_space<vmem>>, vector<1x32xf32>
    tpu.vector_store %arg13[%c12_37, %c0_38], %50 {strides = array<i32>} : memref<16x32xf32, #tpu.memory_space<vmem>>, vector<1x32xf32>,
    %c13 = arith.constant 13 : index
    %52 = memref.load %arg1[%c13] : memref<16xi32, #tpu.memory_space<smem>>
    %53 = arith.index_cast %52 : i32 to index
    %c0_39 = arith.constant 0 : index
    %54 = vector.load %arg3[%53, %c0_39] : memref<50x32xf32, #tpu.memory_space<vmem>>, vector<1x32xf32>
    %c13_40 = arith.constant 13 : index
    %c0_41 = arith.constant 0 : index
    %55 = vector.load %arg13[%c13_40, %c0_41] : memref<16x32xf32, #tpu.memory_space<vmem>>, vector<1x32xf32>
    tpu.vector_store %arg13[%c13_40, %c0_41], %54 {strides = array<i32>} : memref<16x32xf32, #tpu.memory_space<vmem>>, vector<1x32xf32>,
    %c14 = arith.constant 14 : index
    %56 = memref.load %arg1[%c14] : memref<16xi32, #tpu.memory_space<smem>>
    %57 = arith.index_cast %56 : i32 to index
    %c0_42 = arith.constant 0 : index
    %58 = vector.load %arg3[%57, %c0_42] : memref<50x32xf32, #tpu.memory_space<vmem>>, vector<1x32xf32>
    %c14_43 = arith.constant 14 : index
    %c0_44 = arith.constant 0 : index
    %59 = vector.load %arg13[%c14_43, %c0_44] : memref<16x32xf32, #tpu.memory_space<vmem>>, vector<1x32xf32>
    tpu.vector_store %arg13[%c14_43, %c0_44], %58 {strides = array<i32>} : memref<16x32xf32, #tpu.memory_space<vmem>>, vector<1x32xf32>,
    %c15 = arith.constant 15 : index
    %60 = memref.load %arg1[%c15] : memref<16xi32, #tpu.memory_space<smem>>
    %61 = arith.index_cast %60 : i32 to index
    %c0_45 = arith.constant 0 : index
    %62 = vector.load %arg3[%61, %c0_45] : memref<50x32xf32, #tpu.memory_space<vmem>>, vector<1x32xf32>
    %c15_46 = arith.constant 15 : index
    %c0_47 = arith.constant 0 : index
    %63 = vector.load %arg13[%c15_46, %c0_47] : memref<16x32xf32, #tpu.memory_space<vmem>>, vector<1x32xf32>
    tpu.vector_store %arg13[%c15_46, %c0_47], %62 {strides = array<i32>} : memref<16x32xf32, #tpu.memory_space<vmem>>, vector<1x32xf32>,
    %c0_48 = arith.constant 0 : index
    %c0_49 = arith.constant 0 : index
    %64 = vector.load %arg13[%c0_48, %c0_49] : memref<16x32xf32, #tpu.memory_space<vmem>>, vector<16x32xf32>
    %c0_50 = arith.constant 0 : index
    %c0_51 = arith.constant 0 : index
    %65 = vector.load %arg2[%c0_50, %c0_51] : memref<2x8xf32, #tpu.memory_space<vmem>>, vector<2x8xf32>
    %cst = arith.constant 0.000000e+00 : f32
    %66 = vector.broadcast %cst : f32 to vector<2x8xf32>
    %67 = arith.cmpf ogt, %65, %66 : vector<2x8xf32>
    %cst_52 = arith.constant 0.000000e+00 : f32
    %cst_53 = arith.constant -1.000000e+09 : f32
    %68 = vector.broadcast %cst_52 : f32 to vector<2x8xf32>
    %69 = vector.broadcast %cst_53 : f32 to vector<2x8xf32>
    %70 = arith.select %67, %68, %69 : vector<2x8xi1>, vector<2x8xf32>
    %71 = vector.shape_cast %70 : vector<2x8xf32> to vector<2x1x8xf32>
    %c0_54 = arith.constant 0 : index
    %c0_55 = arith.constant 0 : index
    %c0_56 = arith.constant 0 : index
    %72 = vector.load %arg8[%c0_54, %c0_55, %c0_56] : memref<2x9x32xf32, #tpu.memory_space<vmem>>, vector<1x9x32xf32>
    %73 = vector.shape_cast %72 : vector<1x9x32xf32> to vector<9x32xf32>
    %c0_57 = arith.constant 0 : index
    %c0_58 = arith.constant 0 : index
    %c0_59 = arith.constant 0 : index
    %74 = vector.load %arg4[%c0_57, %c0_58, %c0_59] : memref<2x32x96xf32, #tpu.memory_space<vmem>>, vector<1x32x96xf32>
    %75 = vector.shape_cast %74 : vector<1x32x96xf32> to vector<32x96xf32>
    %cst_60 = arith.constant dense<0.000000e+00> : vector<16x96xf32>
    %76 = tpu.matmul %64, %75, %cst_60 {dimension_numbers = #tpu.dot_dimension_numbers<[1], [0], [0], [1], [0, 0, 1, 1], [], []>} : vector<16x32xf32>, vector<32x96xf32>, vector<16x96xf32> -> vector<16x96xf32>
    %77 = vector.extract_strided_slice %76 {offsets = [0, 0], sizes = [16, 32], strides = [1, 1]} : vector<16x96xf32> to vector<16x32xf32>
    %78 = vector.extract_strided_slice %73 {offsets = [0, 0], sizes = [1, 32], strides = [1, 1]} : vector<9x32xf32> to vector<1x32xf32>
    %79 = vector.broadcast %78 : vector<1x32xf32> to vector<16x32xf32>
    %80 = arith.addf %77, %79 : vector<16x32xf32>
    %81 = vector.shape_cast %80 : vector<16x32xf32> to vector<2x8x32xf32>
    %82 = vector.extract_strided_slice %76 {offsets = [0, 32], sizes = [16, 32], strides = [1, 1]} : vector<16x96xf32> to vector<16x32xf32>
    %83 = vector.extract_strided_slice %73 {offsets = [1, 0], sizes = [1, 32], strides = [1, 1]} : vector<9x32xf32> to vector<1x32xf32>
    %84 = vector.broadcast %83 : vector<1x32xf32> to vector<16x32xf32>
    %85 = arith.addf %82, %84 : vector<16x32xf32>
    %86 = vector.shape_cast %85 : vector<16x32xf32> to vector<2x8x32xf32>
    %87 = vector.extract_strided_slice %76 {offsets = [0, 64], sizes = [16, 32], strides = [1, 1]} : vector<16x96xf32> to vector<16x32xf32>
    %88 = vector.extract_strided_slice %73 {offsets = [2, 0], sizes = [1, 32], strides = [1, 1]} : vector<9x32xf32> to vector<1x32xf32>
    %89 = vector.broadcast %88 : vector<1x32xf32> to vector<16x32xf32>
    %90 = arith.addf %87, %89 : vector<16x32xf32>
    %91 = vector.shape_cast %90 : vector<16x32xf32> to vector<2x8x32xf32>
    %92 = vector.extract_strided_slice %81 {offsets = [0, 0, 0], sizes = [2, 8, 4], strides = [1, 1, 1]} : vector<2x8x32xf32> to vector<2x8x4xf32>
    %93 = vector.extract_strided_slice %86 {offsets = [0, 0, 0], sizes = [2, 8, 4], strides = [1, 1, 1]} : vector<2x8x32xf32> to vector<2x8x4xf32>
    "tpu.trace_start"() <{level = 10 : i32, message = "bqe,bke->bqk"}> : () -> ()
    %cst_61 = arith.constant dense<0.000000e+00> : vector<2x8x8xf32>
    %94 = tpu.matmul %92, %93, %cst_61 {dimension_numbers = #tpu.dot_dimension_numbers<[2], [2], [1], [1], [0, 0, 0, 1, 1, 1], [0], [0]>} : vector<2x8x4xf32>, vector<2x8x4xf32>, vector<2x8x8xf32> -> vector<2x8x8xf32>
    "tpu.trace_stop"() : () -> ()
    %95 = vector.broadcast %71 : vector<2x1x8xf32> to vector<2x8x8xf32>
    %96 = arith.addf %94, %95 : vector<2x8x8xf32>
    %cst_62 = arith.constant dense<0xFF800000> : vector<2x8xf32>
    %97 = vector.multi_reduction <maximumf>, %96, %cst_62 [2] : vector<2x8x8xf32> to vector<2x8xf32>
    %98 = vector.shape_cast %97 : vector<2x8xf32> to vector<2x8x1xf32>
    %99 = vector.broadcast %98 : vector<2x8x1xf32> to vector<2x8x8xf32>
    %100 = arith.subf %96, %99 : vector<2x8x8xf32>
    %101 = math.exp %100 : vector<2x8x8xf32>
    %cst_63 = arith.constant dense<0.000000e+00> : vector<2x8xf32>
    %102 = vector.multi_reduction <add>, %101, %cst_63 [2] : vector<2x8x8xf32> to vector<2x8xf32>
    %103 = vector.shape_cast %102 : vector<2x8xf32> to vector<2x8x1xf32>
    %104 = tpu.reciprocal %103 {approx = true} : vector<2x8x1xf32> -> vector<2x8x1xf32>
    %105 = vector.broadcast %104 : vector<2x8x1xf32> to vector<2x8x8xf32>
    %106 = arith.mulf %101, %105 : vector<2x8x8xf32>
    %107 = vector.extract_strided_slice %91 {offsets = [0, 0, 0], sizes = [2, 8, 4], strides = [1, 1, 1]} : vector<2x8x32xf32> to vector<2x8x4xf32>
    "tpu.trace_start"() <{level = 10 : i32, message = "bqk,bke->bqe"}> : () -> ()
    %cst_64 = arith.constant dense<0.000000e+00> : vector<2x8x4xf32>
    %108 = tpu.matmul %106, %107, %cst_64 {dimension_numbers = #tpu.dot_dimension_numbers<[2], [1], [1], [2], [0, 0, 0, 1, 1, 2], [0], [0]>} : vector<2x8x8xf32>, vector<2x8x4xf32>, vector<2x8x4xf32> -> vector<2x8x4xf32>
    "tpu.trace_stop"() : () -> ()
    %109 = vector.extract_strided_slice %81 {offsets = [0, 0, 4], sizes = [2, 8, 4], strides = [1, 1, 1]} : vector<2x8x32xf32> to vector<2x8x4xf32>
    %110 = vector.extract_strided_slice %86 {offsets = [0, 0, 4], sizes = [2, 8, 4], strides = [1, 1, 1]} : vector<2x8x32xf32> to vector<2x8x4xf32>
    "tpu.trace_start"() <{level = 10 : i32, message = "bqe,bke->bqk"}> : () -> ()
    %cst_65 = arith.constant dense<0.000000e+00> : vector<2x8x8xf32>
    %111 = tpu.matmul %109, %110, %cst_65 {dimension_numbers = #tpu.dot_dimension_numbers<[2], [2], [1], [1], [0, 0, 0, 1, 1, 1], [0], [0]>} : vector<2x8x4xf32>, vector<2x8x4xf32>, vector<2x8x8xf32> -> vector<2x8x8xf32>
    "tpu.trace_stop"() : () -> ()
    %112 = vector.broadcast %71 : vector<2x1x8xf32> to vector<2x8x8xf32>
    %113 = arith.addf %111, %112 : vector<2x8x8xf32>
    %cst_66 = arith.constant dense<0xFF800000> : vector<2x8xf32>
    %114 = vector.multi_reduction <maximumf>, %113, %cst_66 [2] : vector<2x8x8xf32> to vector<2x8xf32>
    %115 = vector.shape_cast %114 : vector<2x8xf32> to vector<2x8x1xf32>
    %116 = vector.broadcast %115 : vector<2x8x1xf32> to vector<2x8x8xf32>
    %117 = arith.subf %113, %116 : vector<2x8x8xf32>
    %118 = math.exp %117 : vector<2x8x8xf32>
    %cst_67 = arith.constant dense<0.000000e+00> : vector<2x8xf32>
    %119 = vector.multi_reduction <add>, %118, %cst_67 [2] : vector<2x8x8xf32> to vector<2x8xf32>
    %120 = vector.shape_cast %119 : vector<2x8xf32> to vector<2x8x1xf32>
    %121 = tpu.reciprocal %120 {approx = true} : vector<2x8x1xf32> -> vector<2x8x1xf32>
    %122 = vector.broadcast %121 : vector<2x8x1xf32> to vector<2x8x8xf32>
    %123 = arith.mulf %118, %122 : vector<2x8x8xf32>
    %124 = vector.extract_strided_slice %91 {offsets = [0, 0, 4], sizes = [2, 8, 4], strides = [1, 1, 1]} : vector<2x8x32xf32> to vector<2x8x4xf32>
    "tpu.trace_start"() <{level = 10 : i32, message = "bqk,bke->bqe"}> : () -> ()
    %cst_68 = arith.constant dense<0.000000e+00> : vector<2x8x4xf32>
    %125 = tpu.matmul %123, %124, %cst_68 {dimension_numbers = #tpu.dot_dimension_numbers<[2], [1], [1], [2], [0, 0, 0, 1, 1, 2], [0], [0]>} : vector<2x8x8xf32>, vector<2x8x4xf32>, vector<2x8x4xf32> -> vector<2x8x4xf32>
    "tpu.trace_stop"() : () -> ()
    %126 = vector.extract_strided_slice %81 {offsets = [0, 0, 8], sizes = [2, 8, 4], strides = [1, 1, 1]} : vector<2x8x32xf32> to vector<2x8x4xf32>
    %127 = vector.extract_strided_slice %86 {offsets = [0, 0, 8], sizes = [2, 8, 4], strides = [1, 1, 1]} : vector<2x8x32xf32> to vector<2x8x4xf32>
    "tpu.trace_start"() <{level = 10 : i32, message = "bqe,bke->bqk"}> : () -> ()
    %cst_69 = arith.constant dense<0.000000e+00> : vector<2x8x8xf32>
    %128 = tpu.matmul %126, %127, %cst_69 {dimension_numbers = #tpu.dot_dimension_numbers<[2], [2], [1], [1], [0, 0, 0, 1, 1, 1], [0], [0]>} : vector<2x8x4xf32>, vector<2x8x4xf32>, vector<2x8x8xf32> -> vector<2x8x8xf32>
    "tpu.trace_stop"() : () -> ()
    %129 = vector.broadcast %71 : vector<2x1x8xf32> to vector<2x8x8xf32>
    %130 = arith.addf %128, %129 : vector<2x8x8xf32>
    %cst_70 = arith.constant dense<0xFF800000> : vector<2x8xf32>
    %131 = vector.multi_reduction <maximumf>, %130, %cst_70 [2] : vector<2x8x8xf32> to vector<2x8xf32>
    %132 = vector.shape_cast %131 : vector<2x8xf32> to vector<2x8x1xf32>
    %133 = vector.broadcast %132 : vector<2x8x1xf32> to vector<2x8x8xf32>
    %134 = arith.subf %130, %133 : vector<2x8x8xf32>
    %135 = math.exp %134 : vector<2x8x8xf32>
    %cst_71 = arith.constant dense<0.000000e+00> : vector<2x8xf32>
    %136 = vector.multi_reduction <add>, %135, %cst_71 [2] : vector<2x8x8xf32> to vector<2x8xf32>
    %137 = vector.shape_cast %136 : vector<2x8xf32> to vector<2x8x1xf32>
    %138 = tpu.reciprocal %137 {approx = true} : vector<2x8x1xf32> -> vector<2x8x1xf32>
    %139 = vector.broadcast %138 : vector<2x8x1xf32> to vector<2x8x8xf32>
    %140 = arith.mulf %135, %139 : vector<2x8x8xf32>
    %141 = vector.extract_strided_slice %91 {offsets = [0, 0, 8], sizes = [2, 8, 4], strides = [1, 1, 1]} : vector<2x8x32xf32> to vector<2x8x4xf32>
    "tpu.trace_start"() <{level = 10 : i32, message = "bqk,bke->bqe"}> : () -> ()
    %cst_72 = arith.constant dense<0.000000e+00> : vector<2x8x4xf32>
    %142 = tpu.matmul %140, %141, %cst_72 {dimension_numbers = #tpu.dot_dimension_numbers<[2], [1], [1], [2], [0, 0, 0, 1, 1, 2], [0], [0]>} : vector<2x8x8xf32>, vector<2x8x4xf32>, vector<2x8x4xf32> -> vector<2x8x4xf32>
    "tpu.trace_stop"() : () -> ()
    %143 = vector.extract_strided_slice %81 {offsets = [0, 0, 12], sizes = [2, 8, 4], strides = [1, 1, 1]} : vector<2x8x32xf32> to vector<2x8x4xf32>
    %144 = vector.extract_strided_slice %86 {offsets = [0, 0, 12], sizes = [2, 8, 4], strides = [1, 1, 1]} : vector<2x8x32xf32> to vector<2x8x4xf32>
    "tpu.trace_start"() <{level = 10 : i32, message = "bqe,bke->bqk"}> : () -> ()
    %cst_73 = arith.constant dense<0.000000e+00> : vector<2x8x8xf32>
    %145 = tpu.matmul %143, %144, %cst_73 {dimension_numbers = #tpu.dot_dimension_numbers<[2], [2], [1], [1], [0, 0, 0, 1, 1, 1], [0], [0]>} : vector<2x8x4xf32>, vector<2x8x4xf32>, vector<2x8x8xf32> -> vector<2x8x8xf32>
    "tpu.trace_stop"() : () -> ()
    %146 = vector.broadcast %71 : vector<2x1x8xf32> to vector<2x8x8xf32>
    %147 = arith.addf %145, %146 : vector<2x8x8xf32>
    %cst_74 = arith.constant dense<0xFF800000> : vector<2x8xf32>
    %148 = vector.multi_reduction <maximumf>, %147, %cst_74 [2] : vector<2x8x8xf32> to vector<2x8xf32>
    %149 = vector.shape_cast %148 : vector<2x8xf32> to vector<2x8x1xf32>
    %150 = vector.broadcast %149 : vector<2x8x1xf32> to vector<2x8x8xf32>
    %151 = arith.subf %147, %150 : vector<2x8x8xf32>
    %152 = math.exp %151 : vector<2x8x8xf32>
    %cst_75 = arith.constant dense<0.000000e+00> : vector<2x8xf32>
    %153 = vector.multi_reduction <add>, %152, %cst_75 [2] : vector<2x8x8xf32> to vector<2x8xf32>
    %154 = vector.shape_cast %153 : vector<2x8xf32> to vector<2x8x1xf32>
    %155 = tpu.reciprocal %154 {approx = true} : vector<2x8x1xf32> -> vector<2x8x1xf32>
    %156 = vector.broadcast %155 : vector<2x8x1xf32> to vector<2x8x8xf32>
    %157 = arith.mulf %152, %156 : vector<2x8x8xf32>
    %158 = vector.extract_strided_slice %91 {offsets = [0, 0, 12], sizes = [2, 8, 4], strides = [1, 1, 1]} : vector<2x8x32xf32> to vector<2x8x4xf32>
    "tpu.trace_start"() <{level = 10 : i32, message = "bqk,bke->bqe"}> : () -> ()
    %cst_76 = arith.constant dense<0.000000e+00> : vector<2x8x4xf32>
    %159 = tpu.matmul %157, %158, %cst_76 {dimension_numbers = #tpu.dot_dimension_numbers<[2], [1], [1], [2], [0, 0, 0, 1, 1, 2], [0], [0]>} : vector<2x8x8xf32>, vector<2x8x4xf32>, vector<2x8x4xf32> -> vector<2x8x4xf32>
    "tpu.trace_stop"() : () -> ()
    %160 = vector.extract_strided_slice %81 {offsets = [0, 0, 16], sizes = [2, 8, 4], strides = [1, 1, 1]} : vector<2x8x32xf32> to vector<2x8x4xf32>
    %161 = vector.extract_strided_slice %86 {offsets = [0, 0, 16], sizes = [2, 8, 4], strides = [1, 1, 1]} : vector<2x8x32xf32> to vector<2x8x4xf32>
    "tpu.trace_start"() <{level = 10 : i32, message = "bqe,bke->bqk"}> : () -> ()
    %cst_77 = arith.constant dense<0.000000e+00> : vector<2x8x8xf32>
    %162 = tpu.matmul %160, %161, %cst_77 {dimension_numbers = #tpu.dot_dimension_numbers<[2], [2], [1], [1], [0, 0, 0, 1, 1, 1], [0], [0]>} : vector<2x8x4xf32>, vector<2x8x4xf32>, vector<2x8x8xf32> -> vector<2x8x8xf32>
    "tpu.trace_stop"() : () -> ()
    %163 = vector.broadcast %71 : vector<2x1x8xf32> to vector<2x8x8xf32>
    %164 = arith.addf %162, %163 : vector<2x8x8xf32>
    %cst_78 = arith.constant dense<0xFF800000> : vector<2x8xf32>
    %165 = vector.multi_reduction <maximumf>, %164, %cst_78 [2] : vector<2x8x8xf32> to vector<2x8xf32>
    %166 = vector.shape_cast %165 : vector<2x8xf32> to vector<2x8x1xf32>
    %167 = vector.broadcast %166 : vector<2x8x1xf32> to vector<2x8x8xf32>
    %168 = arith.subf %164, %167 : vector<2x8x8xf32>
    %169 = math.exp %168 : vector<2x8x8xf32>
    %cst_79 = arith.constant dense<0.000000e+00> : vector<2x8xf32>
    %170 = vector.multi_reduction <add>, %169, %cst_79 [2] : vector<2x8x8xf32> to vector<2x8xf32>
    %171 = vector.shape_cast %170 : vector<2x8xf32> to vector<2x8x1xf32>
    %172 = tpu.reciprocal %171 {approx = true} : vector<2x8x1xf32> -> vector<2x8x1xf32>
    %173 = vector.broadcast %172 : vector<2x8x1xf32> to vector<2x8x8xf32>
    %174 = arith.mulf %169, %173 : vector<2x8x8xf32>
    %175 = vector.extract_strided_slice %91 {offsets = [0, 0, 16], sizes = [2, 8, 4], strides = [1, 1, 1]} : vector<2x8x32xf32> to vector<2x8x4xf32>
    "tpu.trace_start"() <{level = 10 : i32, message = "bqk,bke->bqe"}> : () -> ()
    %cst_80 = arith.constant dense<0.000000e+00> : vector<2x8x4xf32>
    %176 = tpu.matmul %174, %175, %cst_80 {dimension_numbers = #tpu.dot_dimension_numbers<[2], [1], [1], [2], [0, 0, 0, 1, 1, 2], [0], [0]>} : vector<2x8x8xf32>, vector<2x8x4xf32>, vector<2x8x4xf32> -> vector<2x8x4xf32>
    "tpu.trace_stop"() : () -> ()
    %177 = vector.extract_strided_slice %81 {offsets = [0, 0, 20], sizes = [2, 8, 4], strides = [1, 1, 1]} : vector<2x8x32xf32> to vector<2x8x4xf32>
    %178 = vector.extract_strided_slice %86 {offsets = [0, 0, 20], sizes = [2, 8, 4], strides = [1, 1, 1]} : vector<2x8x32xf32> to vector<2x8x4xf32>
    "tpu.trace_start"() <{level = 10 : i32, message = "bqe,bke->bqk"}> : () -> ()
    %cst_81 = arith.constant dense<0.000000e+00> : vector<2x8x8xf32>
    %179 = tpu.matmul %177, %178, %cst_81 {dimension_numbers = #tpu.dot_dimension_numbers<[2], [2], [1], [1], [0, 0, 0, 1, 1, 1], [0], [0]>} : vector<2x8x4xf32>, vector<2x8x4xf32>, vector<2x8x8xf32> -> vector<2x8x8xf32>
    "tpu.trace_stop"() : () -> ()
    %180 = vector.broadcast %71 : vector<2x1x8xf32> to vector<2x8x8xf32>
    %181 = arith.addf %179, %180 : vector<2x8x8xf32>
    %cst_82 = arith.constant dense<0xFF800000> : vector<2x8xf32>
    %182 = vector.multi_reduction <maximumf>, %181, %cst_82 [2] : vector<2x8x8xf32> to vector<2x8xf32>
    %183 = vector.shape_cast %182 : vector<2x8xf32> to vector<2x8x1xf32>
    %184 = vector.broadcast %183 : vector<2x8x1xf32> to vector<2x8x8xf32>
    %185 = arith.subf %181, %184 : vector<2x8x8xf32>
    %186 = math.exp %185 : vector<2x8x8xf32>
    %cst_83 = arith.constant dense<0.000000e+00> : vector<2x8xf32>
    %187 = vector.multi_reduction <add>, %186, %cst_83 [2] : vector<2x8x8xf32> to vector<2x8xf32>
    %188 = vector.shape_cast %187 : vector<2x8xf32> to vector<2x8x1xf32>
    %189 = tpu.reciprocal %188 {approx = true} : vector<2x8x1xf32> -> vector<2x8x1xf32>
    %190 = vector.broadcast %189 : vector<2x8x1xf32> to vector<2x8x8xf32>
    %191 = arith.mulf %186, %190 : vector<2x8x8xf32>
    %192 = vector.extract_strided_slice %91 {offsets = [0, 0, 20], sizes = [2, 8, 4], strides = [1, 1, 1]} : vector<2x8x32xf32> to vector<2x8x4xf32>
    "tpu.trace_start"() <{level = 10 : i32, message = "bqk,bke->bqe"}> : () -> ()
    %cst_84 = arith.constant dense<0.000000e+00> : vector<2x8x4xf32>
    %193 = tpu.matmul %191, %192, %cst_84 {dimension_numbers = #tpu.dot_dimension_numbers<[2], [1], [1], [2], [0, 0, 0, 1, 1, 2], [0], [0]>} : vector<2x8x8xf32>, vector<2x8x4xf32>, vector<2x8x4xf32> -> vector<2x8x4xf32>
    "tpu.trace_stop"() : () -> ()
    %194 = vector.extract_strided_slice %81 {offsets = [0, 0, 24], sizes = [2, 8, 4], strides = [1, 1, 1]} : vector<2x8x32xf32> to vector<2x8x4xf32>
    %195 = vector.extract_strided_slice %86 {offsets = [0, 0, 24], sizes = [2, 8, 4], strides = [1, 1, 1]} : vector<2x8x32xf32> to vector<2x8x4xf32>
    "tpu.trace_start"() <{level = 10 : i32, message = "bqe,bke->bqk"}> : () -> ()
    %cst_85 = arith.constant dense<0.000000e+00> : vector<2x8x8xf32>
    %196 = tpu.matmul %194, %195, %cst_85 {dimension_numbers = #tpu.dot_dimension_numbers<[2], [2], [1], [1], [0, 0, 0, 1, 1, 1], [0], [0]>} : vector<2x8x4xf32>, vector<2x8x4xf32>, vector<2x8x8xf32> -> vector<2x8x8xf32>
    "tpu.trace_stop"() : () -> ()
    %197 = vector.broadcast %71 : vector<2x1x8xf32> to vector<2x8x8xf32>
    %198 = arith.addf %196, %197 : vector<2x8x8xf32>
    %cst_86 = arith.constant dense<0xFF800000> : vector<2x8xf32>
    %199 = vector.multi_reduction <maximumf>, %198, %cst_86 [2] : vector<2x8x8xf32> to vector<2x8xf32>
    %200 = vector.shape_cast %199 : vector<2x8xf32> to vector<2x8x1xf32>
    %201 = vector.broadcast %200 : vector<2x8x1xf32> to vector<2x8x8xf32>
    %202 = arith.subf %198, %201 : vector<2x8x8xf32>
    %203 = math.exp %202 : vector<2x8x8xf32>
    %cst_87 = arith.constant dense<0.000000e+00> : vector<2x8xf32>
    %204 = vector.multi_reduction <add>, %203, %cst_87 [2] : vector<2x8x8xf32> to vector<2x8xf32>
    %205 = vector.shape_cast %204 : vector<2x8xf32> to vector<2x8x1xf32>
    %206 = tpu.reciprocal %205 {approx = true} : vector<2x8x1xf32> -> vector<2x8x1xf32>
    %207 = vector.broadcast %206 : vector<2x8x1xf32> to vector<2x8x8xf32>
    %208 = arith.mulf %203, %207 : vector<2x8x8xf32>
    %209 = vector.extract_strided_slice %91 {offsets = [0, 0, 24], sizes = [2, 8, 4], strides = [1, 1, 1]} : vector<2x8x32xf32> to vector<2x8x4xf32>
    "tpu.trace_start"() <{level = 10 : i32, message = "bqk,bke->bqe"}> : () -> ()
    %cst_88 = arith.constant dense<0.000000e+00> : vector<2x8x4xf32>
    %210 = tpu.matmul %208, %209, %cst_88 {dimension_numbers = #tpu.dot_dimension_numbers<[2], [1], [1], [2], [0, 0, 0, 1, 1, 2], [0], [0]>} : vector<2x8x8xf32>, vector<2x8x4xf32>, vector<2x8x4xf32> -> vector<2x8x4xf32>
    "tpu.trace_stop"() : () -> ()
    %211 = vector.extract_strided_slice %81 {offsets = [0, 0, 28], sizes = [2, 8, 4], strides = [1, 1, 1]} : vector<2x8x32xf32> to vector<2x8x4xf32>
    %212 = vector.extract_strided_slice %86 {offsets = [0, 0, 28], sizes = [2, 8, 4], strides = [1, 1, 1]} : vector<2x8x32xf32> to vector<2x8x4xf32>
    "tpu.trace_start"() <{level = 10 : i32, message = "bqe,bke->bqk"}> : () -> ()
    %cst_89 = arith.constant dense<0.000000e+00> : vector<2x8x8xf32>
    %213 = tpu.matmul %211, %212, %cst_89 {dimension_numbers = #tpu.dot_dimension_numbers<[2], [2], [1], [1], [0, 0, 0, 1, 1, 1], [0], [0]>} : vector<2x8x4xf32>, vector<2x8x4xf32>, vector<2x8x8xf32> -> vector<2x8x8xf32>
    "tpu.trace_stop"() : () -> ()
    %214 = vector.broadcast %71 : vector<2x1x8xf32> to vector<2x8x8xf32>
    %215 = arith.addf %213, %214 : vector<2x8x8xf32>
    %cst_90 = arith.constant dense<0xFF800000> : vector<2x8xf32>
    %216 = vector.multi_reduction <maximumf>, %215, %cst_90 [2] : vector<2x8x8xf32> to vector<2x8xf32>
    %217 = vector.shape_cast %216 : vector<2x8xf32> to vector<2x8x1xf32>
    %218 = vector.broadcast %217 : vector<2x8x1xf32> to vector<2x8x8xf32>
    %219 = arith.subf %215, %218 : vector<2x8x8xf32>
    %220 = math.exp %219 : vector<2x8x8xf32>
    %cst_91 = arith.constant dense<0.000000e+00> : vector<2x8xf32>
    %221 = vector.multi_reduction <add>, %220, %cst_91 [2] : vector<2x8x8xf32> to vector<2x8xf32>
    %222 = vector.shape_cast %221 : vector<2x8xf32> to vector<2x8x1xf32>
    %223 = tpu.reciprocal %222 {approx = true} : vector<2x8x1xf32> -> vector<2x8x1xf32>
    %224 = vector.broadcast %223 : vector<2x8x1xf32> to vector<2x8x8xf32>
    %225 = arith.mulf %220, %224 : vector<2x8x8xf32>
    %226 = vector.extract_strided_slice %91 {offsets = [0, 0, 28], sizes = [2, 8, 4], strides = [1, 1, 1]} : vector<2x8x32xf32> to vector<2x8x4xf32>
    "tpu.trace_start"() <{level = 10 : i32, message = "bqk,bke->bqe"}> : () -> ()
    %cst_92 = arith.constant dense<0.000000e+00> : vector<2x8x4xf32>
    %227 = tpu.matmul %225, %226, %cst_92 {dimension_numbers = #tpu.dot_dimension_numbers<[2], [1], [1], [2], [0, 0, 0, 1, 1, 2], [0], [0]>} : vector<2x8x8xf32>, vector<2x8x4xf32>, vector<2x8x4xf32> -> vector<2x8x4xf32>
    "tpu.trace_stop"() : () -> ()
    %228 = tpu.concatenate %108, %125, %142, %159, %176, %193, %210, %227 in 2 : vector<2x8x4xf32>, vector<2x8x4xf32>, vector<2x8x4xf32>, vector<2x8x4xf32>, vector<2x8x4xf32>, vector<2x8x4xf32>, vector<2x8x4xf32>, vector<2x8x4xf32> -> vector<2x8x32xf32>
    %229 = vector.shape_cast %228 : vector<2x8x32xf32> to vector<16x32xf32>
    %c0_93 = arith.constant 0 : index
    %c0_94 = arith.constant 0 : index
    %c0_95 = arith.constant 0 : index
    %230 = vector.load %arg5[%c0_93, %c0_94, %c0_95] : memref<2x32x32xf32, #tpu.memory_space<vmem>>, vector<1x32x32xf32>
    %231 = vector.shape_cast %230 : vector<1x32x32xf32> to vector<32x32xf32>
    %cst_96 = arith.constant dense<0.000000e+00> : vector<16x32xf32>
    %232 = tpu.matmul %229, %231, %cst_96 {dimension_numbers = #tpu.dot_dimension_numbers<[1], [0], [0], [1], [0, 0, 1, 1], [], []>} : vector<16x32xf32>, vector<32x32xf32>, vector<16x32xf32> -> vector<16x32xf32>
    %233 = vector.extract_strided_slice %73 {offsets = [3, 0], sizes = [1, 32], strides = [1, 1]} : vector<9x32xf32> to vector<1x32xf32>
    %234 = vector.broadcast %233 : vector<1x32xf32> to vector<16x32xf32>
    %235 = arith.addf %232, %234 : vector<16x32xf32>
    %236 = arith.addf %64, %235 : vector<16x32xf32>
    %237 = vector.extract_strided_slice %73 {offsets = [5, 0], sizes = [1, 32], strides = [1, 1]} : vector<9x32xf32> to vector<1x32xf32>
    %238 = vector.extract_strided_slice %73 {offsets = [6, 0], sizes = [1, 32], strides = [1, 1]} : vector<9x32xf32> to vector<1x32xf32>
    %cst_97 = arith.constant dense<0.000000e+00> : vector<16xf32>
    %239 = vector.multi_reduction <add>, %236, %cst_97 [1] : vector<16x32xf32> to vector<16xf32>
    %240 = vector.shape_cast %239 : vector<16xf32> to vector<16x1xf32>
    %cst_98 = arith.constant 3.200000e+01 : f32
    %241 = vector.broadcast %cst_98 : f32 to vector<16x1xf32>
    %242 = arith.divf %240, %241 : vector<16x1xf32>
    %243 = vector.broadcast %242 : vector<16x1xf32> to vector<16x32xf32>
    %244 = arith.subf %236, %243 : vector<16x32xf32>
    %245 = arith.mulf %244, %244 : vector<16x32xf32>
    %cst_99 = arith.constant dense<0.000000e+00> : vector<16xf32>
    %246 = vector.multi_reduction <add>, %245, %cst_99 [1] : vector<16x32xf32> to vector<16xf32>
    %247 = vector.shape_cast %246 : vector<16xf32> to vector<16x1xf32>
    %cst_100 = arith.constant 3.200000e+01 : f32
    %248 = vector.broadcast %cst_100 : f32 to vector<16x1xf32>
    %249 = arith.divf %247, %248 : vector<16x1xf32>
    %cst_101 = arith.constant 9.99999974E-6 : f32
    %250 = vector.broadcast %cst_101 : f32 to vector<16x1xf32>
    %251 = arith.addf %249, %250 : vector<16x1xf32>
    %252 = math.rsqrt %251 : vector<16x1xf32>
    %253 = vector.broadcast %252 : vector<16x1xf32> to vector<16x32xf32>
    %254 = arith.mulf %244, %253 : vector<16x32xf32>
    %255 = vector.broadcast %237 : vector<1x32xf32> to vector<16x32xf32>
    %256 = arith.mulf %254, %255 : vector<16x32xf32>
    %257 = vector.broadcast %238 : vector<1x32xf32> to vector<16x32xf32>
    %258 = arith.addf %256, %257 : vector<16x32xf32>
    %c0_102 = arith.constant 0 : index
    %c0_103 = arith.constant 0 : index
    %c0_104 = arith.constant 0 : index
    %259 = vector.load %arg6[%c0_102, %c0_103, %c0_104] : memref<2x32x32xf32, #tpu.memory_space<vmem>>, vector<1x32x32xf32>
    %260 = vector.shape_cast %259 : vector<1x32x32xf32> to vector<32x32xf32>
    %cst_105 = arith.constant dense<0.000000e+00> : vector<16x32xf32>
    %261 = tpu.matmul %258, %260, %cst_105 {dimension_numbers = #tpu.dot_dimension_numbers<[1], [0], [0], [1], [0, 0, 1, 1], [], []>} : vector<16x32xf32>, vector<32x32xf32>, vector<16x32xf32> -> vector<16x32xf32>
    %c0_106 = arith.constant 0 : index
    %c0_107 = arith.constant 0 : index
    %c0_108 = arith.constant 0 : index
    %262 = vector.load %arg9[%c0_106, %c0_107, %c0_108] : memref<2x1x32xf32, #tpu.memory_space<vmem>>, vector<1x1x32xf32>
    %263 = vector.shape_cast %262 : vector<1x1x32xf32> to vector<1x32xf32>
    %264 = vector.broadcast %263 : vector<1x32xf32> to vector<16x32xf32>
    %265 = arith.addf %261, %264 : vector<16x32xf32>
    %cst_109 = arith.constant 0.000000e+00 : f32
    %266 = vector.broadcast %cst_109 : f32 to vector<16x32xf32>
    %267 = arith.maximumf %265, %266 : vector<16x32xf32>
    %c0_110 = arith.constant 0 : index
    %c0_111 = arith.constant 0 : index
    %c0_112 = arith.constant 0 : index
    %268 = vector.load %arg7[%c0_110, %c0_111, %c0_112] : memref<2x32x32xf32, #tpu.memory_space<vmem>>, vector<1x32x32xf32>
    %269 = vector.shape_cast %268 : vector<1x32x32xf32> to vector<32x32xf32>
    %cst_113 = arith.constant dense<0.000000e+00> : vector<16x32xf32>
    %270 = tpu.matmul %267, %269, %cst_113 {dimension_numbers = #tpu.dot_dimension_numbers<[1], [0], [0], [1], [0, 0, 1, 1], [], []>} : vector<16x32xf32>, vector<32x32xf32>, vector<16x32xf32> -> vector<16x32xf32>
    %271 = vector.extract_strided_slice %73 {offsets = [4, 0], sizes = [1, 32], strides = [1, 1]} : vector<9x32xf32> to vector<1x32xf32>
    %272 = vector.broadcast %271 : vector<1x32xf32> to vector<16x32xf32>
    %273 = arith.addf %270, %272 : vector<16x32xf32>
    %274 = arith.addf %258, %273 : vector<16x32xf32>
    %275 = vector.extract_strided_slice %73 {offsets = [7, 0], sizes = [1, 32], strides = [1, 1]} : vector<9x32xf32> to vector<1x32xf32>
    %276 = vector.extract_strided_slice %73 {offsets = [8, 0], sizes = [1, 32], strides = [1, 1]} : vector<9x32xf32> to vector<1x32xf32>
    %cst_114 = arith.constant dense<0.000000e+00> : vector<16xf32>
    %277 = vector.multi_reduction <add>, %274, %cst_114 [1] : vector<16x32xf32> to vector<16xf32>
    %278 = vector.shape_cast %277 : vector<16xf32> to vector<16x1xf32>
    %cst_115 = arith.constant 3.200000e+01 : f32
    %279 = vector.broadcast %cst_115 : f32 to vector<16x1xf32>
    %280 = arith.divf %278, %279 : vector<16x1xf32>
    %281 = vector.broadcast %280 : vector<16x1xf32> to vector<16x32xf32>
    %282 = arith.subf %274, %281 : vector<16x32xf32>
    %283 = arith.mulf %282, %282 : vector<16x32xf32>
    %cst_116 = arith.constant dense<0.000000e+00> : vector<16xf32>
    %284 = vector.multi_reduction <add>, %283, %cst_116 [1] : vector<16x32xf32> to vector<16xf32>
    %285 = vector.shape_cast %284 : vector<16xf32> to vector<16x1xf32>
    %cst_117 = arith.constant 3.200000e+01 : f32
    %286 = vector.broadcast %cst_117 : f32 to vector<16x1xf32>
    %287 = arith.divf %285, %286 : vector<16x1xf32>
    %cst_118 = arith.constant 9.99999974E-6 : f32
    %288 = vector.broadcast %cst_118 : f32 to vector<16x1xf32>
    %289 = arith.addf %287, %288 : vector<16x1xf32>
    %290 = math.rsqrt %289 : vector<16x1xf32>
    %291 = vector.broadcast %290 : vector<16x1xf32> to vector<16x32xf32>
    %292 = arith.mulf %282, %291 : vector<16x32xf32>
    %293 = vector.broadcast %275 : vector<1x32xf32> to vector<16x32xf32>
    %294 = arith.mulf %292, %293 : vector<16x32xf32>
    %295 = vector.broadcast %276 : vector<1x32xf32> to vector<16x32xf32>
    %296 = arith.addf %294, %295 : vector<16x32xf32>
    %c1_119 = arith.constant 1 : index
    %c0_120 = arith.constant 0 : index
    %c0_121 = arith.constant 0 : index
    %297 = vector.load %arg8[%c1_119, %c0_120, %c0_121] : memref<2x9x32xf32, #tpu.memory_space<vmem>>, vector<1x9x32xf32>
    %298 = vector.shape_cast %297 : vector<1x9x32xf32> to vector<9x32xf32>
    %c1_122 = arith.constant 1 : index
    %c0_123 = arith.constant 0 : index
    %c0_124 = arith.constant 0 : index
    %299 = vector.load %arg4[%c1_122, %c0_123, %c0_124] : memref<2x32x96xf32, #tpu.memory_space<vmem>>, vector<1x32x96xf32>
    %300 = vector.shape_cast %299 : vector<1x32x96xf32> to vector<32x96xf32>
    %cst_125 = arith.constant dense<0.000000e+00> : vector<16x96xf32>
    %301 = tpu.matmul %296, %300, %cst_125 {dimension_numbers = #tpu.dot_dimension_numbers<[1], [0], [0], [1], [0, 0, 1, 1], [], []>} : vector<16x32xf32>, vector<32x96xf32>, vector<16x96xf32> -> vector<16x96xf32>
    %302 = vector.extract_strided_slice %301 {offsets = [0, 0], sizes = [16, 32], strides = [1, 1]} : vector<16x96xf32> to vector<16x32xf32>
    %303 = vector.extract_strided_slice %298 {offsets = [0, 0], sizes = [1, 32], strides = [1, 1]} : vector<9x32xf32> to vector<1x32xf32>
    %304 = vector.broadcast %303 : vector<1x32xf32> to vector<16x32xf32>
    %305 = arith.addf %302, %304 : vector<16x32xf32>
    %306 = vector.shape_cast %305 : vector<16x32xf32> to vector<2x8x32xf32>
    %307 = vector.extract_strided_slice %301 {offsets = [0, 32], sizes = [16, 32], strides = [1, 1]} : vector<16x96xf32> to vector<16x32xf32>
    %308 = vector.extract_strided_slice %298 {offsets = [1, 0], sizes = [1, 32], strides = [1, 1]} : vector<9x32xf32> to vector<1x32xf32>
    %309 = vector.broadcast %308 : vector<1x32xf32> to vector<16x32xf32>
    %310 = arith.addf %307, %309 : vector<16x32xf32>
    %311 = vector.shape_cast %310 : vector<16x32xf32> to vector<2x8x32xf32>
    %312 = vector.extract_strided_slice %301 {offsets = [0, 64], sizes = [16, 32], strides = [1, 1]} : vector<16x96xf32> to vector<16x32xf32>
    %313 = vector.extract_strided_slice %298 {offsets = [2, 0], sizes = [1, 32], strides = [1, 1]} : vector<9x32xf32> to vector<1x32xf32>
    %314 = vector.broadcast %313 : vector<1x32xf32> to vector<16x32xf32>
    %315 = arith.addf %312, %314 : vector<16x32xf32>
    %316 = vector.shape_cast %315 : vector<16x32xf32> to vector<2x8x32xf32>
    %317 = vector.extract_strided_slice %306 {offsets = [0, 0, 0], sizes = [2, 8, 4], strides = [1, 1, 1]} : vector<2x8x32xf32> to vector<2x8x4xf32>
    %318 = vector.extract_strided_slice %311 {offsets = [0, 0, 0], sizes = [2, 8, 4], strides = [1, 1, 1]} : vector<2x8x32xf32> to vector<2x8x4xf32>
    "tpu.trace_start"() <{level = 10 : i32, message = "bqe,bke->bqk"}> : () -> ()
    %cst_126 = arith.constant dense<0.000000e+00> : vector<2x8x8xf32>
    %319 = tpu.matmul %317, %318, %cst_126 {dimension_numbers = #tpu.dot_dimension_numbers<[2], [2], [1], [1], [0, 0, 0, 1, 1, 1], [0], [0]>} : vector<2x8x4xf32>, vector<2x8x4xf32>, vector<2x8x8xf32> -> vector<2x8x8xf32>
    "tpu.trace_stop"() : () -> ()
    %320 = vector.broadcast %71 : vector<2x1x8xf32> to vector<2x8x8xf32>
    %321 = arith.addf %319, %320 : vector<2x8x8xf32>
    %cst_127 = arith.constant dense<0xFF800000> : vector<2x8xf32>
    %322 = vector.multi_reduction <maximumf>, %321, %cst_127 [2] : vector<2x8x8xf32> to vector<2x8xf32>
    %323 = vector.shape_cast %322 : vector<2x8xf32> to vector<2x8x1xf32>
    %324 = vector.broadcast %323 : vector<2x8x1xf32> to vector<2x8x8xf32>
    %325 = arith.subf %321, %324 : vector<2x8x8xf32>
    %326 = math.exp %325 : vector<2x8x8xf32>
    %cst_128 = arith.constant dense<0.000000e+00> : vector<2x8xf32>
    %327 = vector.multi_reduction <add>, %326, %cst_128 [2] : vector<2x8x8xf32> to vector<2x8xf32>
    %328 = vector.shape_cast %327 : vector<2x8xf32> to vector<2x8x1xf32>
    %329 = tpu.reciprocal %328 {approx = true} : vector<2x8x1xf32> -> vector<2x8x1xf32>
    %330 = vector.broadcast %329 : vector<2x8x1xf32> to vector<2x8x8xf32>
    %331 = arith.mulf %326, %330 : vector<2x8x8xf32>
    %332 = vector.extract_strided_slice %316 {offsets = [0, 0, 0], sizes = [2, 8, 4], strides = [1, 1, 1]} : vector<2x8x32xf32> to vector<2x8x4xf32>
    "tpu.trace_start"() <{level = 10 : i32, message = "bqk,bke->bqe"}> : () -> ()
    %cst_129 = arith.constant dense<0.000000e+00> : vector<2x8x4xf32>
    %333 = tpu.matmul %331, %332, %cst_129 {dimension_numbers = #tpu.dot_dimension_numbers<[2], [1], [1], [2], [0, 0, 0, 1, 1, 2], [0], [0]>} : vector<2x8x8xf32>, vector<2x8x4xf32>, vector<2x8x4xf32> -> vector<2x8x4xf32>
    "tpu.trace_stop"() : () -> ()
    %334 = vector.extract_strided_slice %306 {offsets = [0, 0, 4], sizes = [2, 8, 4], strides = [1, 1, 1]} : vector<2x8x32xf32> to vector<2x8x4xf32>
    %335 = vector.extract_strided_slice %311 {offsets = [0, 0, 4], sizes = [2, 8, 4], strides = [1, 1, 1]} : vector<2x8x32xf32> to vector<2x8x4xf32>
    "tpu.trace_start"() <{level = 10 : i32, message = "bqe,bke->bqk"}> : () -> ()
    %cst_130 = arith.constant dense<0.000000e+00> : vector<2x8x8xf32>
    %336 = tpu.matmul %334, %335, %cst_130 {dimension_numbers = #tpu.dot_dimension_numbers<[2], [2], [1], [1], [0, 0, 0, 1, 1, 1], [0], [0]>} : vector<2x8x4xf32>, vector<2x8x4xf32>, vector<2x8x8xf32> -> vector<2x8x8xf32>
    "tpu.trace_stop"() : () -> ()
    %337 = vector.broadcast %71 : vector<2x1x8xf32> to vector<2x8x8xf32>
    %338 = arith.addf %336, %337 : vector<2x8x8xf32>
    %cst_131 = arith.constant dense<0xFF800000> : vector<2x8xf32>
    %339 = vector.multi_reduction <maximumf>, %338, %cst_131 [2] : vector<2x8x8xf32> to vector<2x8xf32>
    %340 = vector.shape_cast %339 : vector<2x8xf32> to vector<2x8x1xf32>
    %341 = vector.broadcast %340 : vector<2x8x1xf32> to vector<2x8x8xf32>
    %342 = arith.subf %338, %341 : vector<2x8x8xf32>
    %343 = math.exp %342 : vector<2x8x8xf32>
    %cst_132 = arith.constant dense<0.000000e+00> : vector<2x8xf32>
    %344 = vector.multi_reduction <add>, %343, %cst_132 [2] : vector<2x8x8xf32> to vector<2x8xf32>
    %345 = vector.shape_cast %344 : vector<2x8xf32> to vector<2x8x1xf32>
    %346 = tpu.reciprocal %345 {approx = true} : vector<2x8x1xf32> -> vector<2x8x1xf32>
    %347 = vector.broadcast %346 : vector<2x8x1xf32> to vector<2x8x8xf32>
    %348 = arith.mulf %343, %347 : vector<2x8x8xf32>
    %349 = vector.extract_strided_slice %316 {offsets = [0, 0, 4], sizes = [2, 8, 4], strides = [1, 1, 1]} : vector<2x8x32xf32> to vector<2x8x4xf32>
    "tpu.trace_start"() <{level = 10 : i32, message = "bqk,bke->bqe"}> : () -> ()
    %cst_133 = arith.constant dense<0.000000e+00> : vector<2x8x4xf32>
    %350 = tpu.matmul %348, %349, %cst_133 {dimension_numbers = #tpu.dot_dimension_numbers<[2], [1], [1], [2], [0, 0, 0, 1, 1, 2], [0], [0]>} : vector<2x8x8xf32>, vector<2x8x4xf32>, vector<2x8x4xf32> -> vector<2x8x4xf32>
    "tpu.trace_stop"() : () -> ()
    %351 = vector.extract_strided_slice %306 {offsets = [0, 0, 8], sizes = [2, 8, 4], strides = [1, 1, 1]} : vector<2x8x32xf32> to vector<2x8x4xf32>
    %352 = vector.extract_strided_slice %311 {offsets = [0, 0, 8], sizes = [2, 8, 4], strides = [1, 1, 1]} : vector<2x8x32xf32> to vector<2x8x4xf32>
    "tpu.trace_start"() <{level = 10 : i32, message = "bqe,bke->bqk"}> : () -> ()
    %cst_134 = arith.constant dense<0.000000e+00> : vector<2x8x8xf32>
    %353 = tpu.matmul %351, %352, %cst_134 {dimension_numbers = #tpu.dot_dimension_numbers<[2], [2], [1], [1], [0, 0, 0, 1, 1, 1], [0], [0]>} : vector<2x8x4xf32>, vector<2x8x4xf32>, vector<2x8x8xf32> -> vector<2x8x8xf32>
    "tpu.trace_stop"() : () -> ()
    %354 = vector.broadcast %71 : vector<2x1x8xf32> to vector<2x8x8xf32>
    %355 = arith.addf %353, %354 : vector<2x8x8xf32>
    %cst_135 = arith.constant dense<0xFF800000> : vector<2x8xf32>
    %356 = vector.multi_reduction <maximumf>, %355, %cst_135 [2] : vector<2x8x8xf32> to vector<2x8xf32>
    %357 = vector.shape_cast %356 : vector<2x8xf32> to vector<2x8x1xf32>
    %358 = vector.broadcast %357 : vector<2x8x1xf32> to vector<2x8x8xf32>
    %359 = arith.subf %355, %358 : vector<2x8x8xf32>
    %360 = math.exp %359 : vector<2x8x8xf32>
    %cst_136 = arith.constant dense<0.000000e+00> : vector<2x8xf32>
    %361 = vector.multi_reduction <add>, %360, %cst_136 [2] : vector<2x8x8xf32> to vector<2x8xf32>
    %362 = vector.shape_cast %361 : vector<2x8xf32> to vector<2x8x1xf32>
    %363 = tpu.reciprocal %362 {approx = true} : vector<2x8x1xf32> -> vector<2x8x1xf32>
    %364 = vector.broadcast %363 : vector<2x8x1xf32> to vector<2x8x8xf32>
    %365 = arith.mulf %360, %364 : vector<2x8x8xf32>
    %366 = vector.extract_strided_slice %316 {offsets = [0, 0, 8], sizes = [2, 8, 4], strides = [1, 1, 1]} : vector<2x8x32xf32> to vector<2x8x4xf32>
    "tpu.trace_start"() <{level = 10 : i32, message = "bqk,bke->bqe"}> : () -> ()
    %cst_137 = arith.constant dense<0.000000e+00> : vector<2x8x4xf32>
    %367 = tpu.matmul %365, %366, %cst_137 {dimension_numbers = #tpu.dot_dimension_numbers<[2], [1], [1], [2], [0, 0, 0, 1, 1, 2], [0], [0]>} : vector<2x8x8xf32>, vector<2x8x4xf32>, vector<2x8x4xf32> -> vector<2x8x4xf32>
    "tpu.trace_stop"() : () -> ()
    %368 = vector.extract_strided_slice %306 {offsets = [0, 0, 12], sizes = [2, 8, 4], strides = [1, 1, 1]} : vector<2x8x32xf32> to vector<2x8x4xf32>
    %369 = vector.extract_strided_slice %311 {offsets = [0, 0, 12], sizes = [2, 8, 4], strides = [1, 1, 1]} : vector<2x8x32xf32> to vector<2x8x4xf32>
    "tpu.trace_start"() <{level = 10 : i32, message = "bqe,bke->bqk"}> : () -> ()
    %cst_138 = arith.constant dense<0.000000e+00> : vector<2x8x8xf32>
    %370 = tpu.matmul %368, %369, %cst_138 {dimension_numbers = #tpu.dot_dimension_numbers<[2], [2], [1], [1], [0, 0, 0, 1, 1, 1], [0], [0]>} : vector<2x8x4xf32>, vector<2x8x4xf32>, vector<2x8x8xf32> -> vector<2x8x8xf32>
    "tpu.trace_stop"() : () -> ()
    %371 = vector.broadcast %71 : vector<2x1x8xf32> to vector<2x8x8xf32>
    %372 = arith.addf %370, %371 : vector<2x8x8xf32>
    %cst_139 = arith.constant dense<0xFF800000> : vector<2x8xf32>
    %373 = vector.multi_reduction <maximumf>, %372, %cst_139 [2] : vector<2x8x8xf32> to vector<2x8xf32>
    %374 = vector.shape_cast %373 : vector<2x8xf32> to vector<2x8x1xf32>
    %375 = vector.broadcast %374 : vector<2x8x1xf32> to vector<2x8x8xf32>
    %376 = arith.subf %372, %375 : vector<2x8x8xf32>
    %377 = math.exp %376 : vector<2x8x8xf32>
    %cst_140 = arith.constant dense<0.000000e+00> : vector<2x8xf32>
    %378 = vector.multi_reduction <add>, %377, %cst_140 [2] : vector<2x8x8xf32> to vector<2x8xf32>
    %379 = vector.shape_cast %378 : vector<2x8xf32> to vector<2x8x1xf32>
    %380 = tpu.reciprocal %379 {approx = true} : vector<2x8x1xf32> -> vector<2x8x1xf32>
    %381 = vector.broadcast %380 : vector<2x8x1xf32> to vector<2x8x8xf32>
    %382 = arith.mulf %377, %381 : vector<2x8x8xf32>
    %383 = vector.extract_strided_slice %316 {offsets = [0, 0, 12], sizes = [2, 8, 4], strides = [1, 1, 1]} : vector<2x8x32xf32> to vector<2x8x4xf32>
    "tpu.trace_start"() <{level = 10 : i32, message = "bqk,bke->bqe"}> : () -> ()
    %cst_141 = arith.constant dense<0.000000e+00> : vector<2x8x4xf32>
    %384 = tpu.matmul %382, %383, %cst_141 {dimension_numbers = #tpu.dot_dimension_numbers<[2], [1], [1], [2], [0, 0, 0, 1, 1, 2], [0], [0]>} : vector<2x8x8xf32>, vector<2x8x4xf32>, vector<2x8x4xf32> -> vector<2x8x4xf32>
    "tpu.trace_stop"() : () -> ()
    %385 = vector.extract_strided_slice %306 {offsets = [0, 0, 16], sizes = [2, 8, 4], strides = [1, 1, 1]} : vector<2x8x32xf32> to vector<2x8x4xf32>
    %386 = vector.extract_strided_slice %311 {offsets = [0, 0, 16], sizes = [2, 8, 4], strides = [1, 1, 1]} : vector<2x8x32xf32> to vector<2x8x4xf32>
    "tpu.trace_start"() <{level = 10 : i32, message = "bqe,bke->bqk"}> : () -> ()
    %cst_142 = arith.constant dense<0.000000e+00> : vector<2x8x8xf32>
    %387 = tpu.matmul %385, %386, %cst_142 {dimension_numbers = #tpu.dot_dimension_numbers<[2], [2], [1], [1], [0, 0, 0, 1, 1, 1], [0], [0]>} : vector<2x8x4xf32>, vector<2x8x4xf32>, vector<2x8x8xf32> -> vector<2x8x8xf32>
    "tpu.trace_stop"() : () -> ()
    %388 = vector.broadcast %71 : vector<2x1x8xf32> to vector<2x8x8xf32>
    %389 = arith.addf %387, %388 : vector<2x8x8xf32>
    %cst_143 = arith.constant dense<0xFF800000> : vector<2x8xf32>
    %390 = vector.multi_reduction <maximumf>, %389, %cst_143 [2] : vector<2x8x8xf32> to vector<2x8xf32>
    %391 = vector.shape_cast %390 : vector<2x8xf32> to vector<2x8x1xf32>
    %392 = vector.broadcast %391 : vector<2x8x1xf32> to vector<2x8x8xf32>
    %393 = arith.subf %389, %392 : vector<2x8x8xf32>
    %394 = math.exp %393 : vector<2x8x8xf32>
    %cst_144 = arith.constant dense<0.000000e+00> : vector<2x8xf32>
    %395 = vector.multi_reduction <add>, %394, %cst_144 [2] : vector<2x8x8xf32> to vector<2x8xf32>
    %396 = vector.shape_cast %395 : vector<2x8xf32> to vector<2x8x1xf32>
    %397 = tpu.reciprocal %396 {approx = true} : vector<2x8x1xf32> -> vector<2x8x1xf32>
    %398 = vector.broadcast %397 : vector<2x8x1xf32> to vector<2x8x8xf32>
    %399 = arith.mulf %394, %398 : vector<2x8x8xf32>
    %400 = vector.extract_strided_slice %316 {offsets = [0, 0, 16], sizes = [2, 8, 4], strides = [1, 1, 1]} : vector<2x8x32xf32> to vector<2x8x4xf32>
    "tpu.trace_start"() <{level = 10 : i32, message = "bqk,bke->bqe"}> : () -> ()
    %cst_145 = arith.constant dense<0.000000e+00> : vector<2x8x4xf32>
    %401 = tpu.matmul %399, %400, %cst_145 {dimension_numbers = #tpu.dot_dimension_numbers<[2], [1], [1], [2], [0, 0, 0, 1, 1, 2], [0], [0]>} : vector<2x8x8xf32>, vector<2x8x4xf32>, vector<2x8x4xf32> -> vector<2x8x4xf32>
    "tpu.trace_stop"() : () -> ()
    %402 = vector.extract_strided_slice %306 {offsets = [0, 0, 20], sizes = [2, 8, 4], strides = [1, 1, 1]} : vector<2x8x32xf32> to vector<2x8x4xf32>
    %403 = vector.extract_strided_slice %311 {offsets = [0, 0, 20], sizes = [2, 8, 4], strides = [1, 1, 1]} : vector<2x8x32xf32> to vector<2x8x4xf32>
    "tpu.trace_start"() <{level = 10 : i32, message = "bqe,bke->bqk"}> : () -> ()
    %cst_146 = arith.constant dense<0.000000e+00> : vector<2x8x8xf32>
    %404 = tpu.matmul %402, %403, %cst_146 {dimension_numbers = #tpu.dot_dimension_numbers<[2], [2], [1], [1], [0, 0, 0, 1, 1, 1], [0], [0]>} : vector<2x8x4xf32>, vector<2x8x4xf32>, vector<2x8x8xf32> -> vector<2x8x8xf32>
    "tpu.trace_stop"() : () -> ()
    %405 = vector.broadcast %71 : vector<2x1x8xf32> to vector<2x8x8xf32>
    %406 = arith.addf %404, %405 : vector<2x8x8xf32>
    %cst_147 = arith.constant dense<0xFF800000> : vector<2x8xf32>
    %407 = vector.multi_reduction <maximumf>, %406, %cst_147 [2] : vector<2x8x8xf32> to vector<2x8xf32>
    %408 = vector.shape_cast %407 : vector<2x8xf32> to vector<2x8x1xf32>
    %409 = vector.broadcast %408 : vector<2x8x1xf32> to vector<2x8x8xf32>
    %410 = arith.subf %406, %409 : vector<2x8x8xf32>
    %411 = math.exp %410 : vector<2x8x8xf32>
    %cst_148 = arith.constant dense<0.000000e+00> : vector<2x8xf32>
    %412 = vector.multi_reduction <add>, %411, %cst_148 [2] : vector<2x8x8xf32> to vector<2x8xf32>
    %413 = vector.shape_cast %412 : vector<2x8xf32> to vector<2x8x1xf32>
    %414 = tpu.reciprocal %413 {approx = true} : vector<2x8x1xf32> -> vector<2x8x1xf32>
    %415 = vector.broadcast %414 : vector<2x8x1xf32> to vector<2x8x8xf32>
    %416 = arith.mulf %411, %415 : vector<2x8x8xf32>
    %417 = vector.extract_strided_slice %316 {offsets = [0, 0, 20], sizes = [2, 8, 4], strides = [1, 1, 1]} : vector<2x8x32xf32> to vector<2x8x4xf32>
    "tpu.trace_start"() <{level = 10 : i32, message = "bqk,bke->bqe"}> : () -> ()
    %cst_149 = arith.constant dense<0.000000e+00> : vector<2x8x4xf32>
    %418 = tpu.matmul %416, %417, %cst_149 {dimension_numbers = #tpu.dot_dimension_numbers<[2], [1], [1], [2], [0, 0, 0, 1, 1, 2], [0], [0]>} : vector<2x8x8xf32>, vector<2x8x4xf32>, vector<2x8x4xf32> -> vector<2x8x4xf32>
    "tpu.trace_stop"() : () -> ()
    %419 = vector.extract_strided_slice %306 {offsets = [0, 0, 24], sizes = [2, 8, 4], strides = [1, 1, 1]} : vector<2x8x32xf32> to vector<2x8x4xf32>
    %420 = vector.extract_strided_slice %311 {offsets = [0, 0, 24], sizes = [2, 8, 4], strides = [1, 1, 1]} : vector<2x8x32xf32> to vector<2x8x4xf32>
    "tpu.trace_start"() <{level = 10 : i32, message = "bqe,bke->bqk"}> : () -> ()
    %cst_150 = arith.constant dense<0.000000e+00> : vector<2x8x8xf32>
    %421 = tpu.matmul %419, %420, %cst_150 {dimension_numbers = #tpu.dot_dimension_numbers<[2], [2], [1], [1], [0, 0, 0, 1, 1, 1], [0], [0]>} : vector<2x8x4xf32>, vector<2x8x4xf32>, vector<2x8x8xf32> -> vector<2x8x8xf32>
    "tpu.trace_stop"() : () -> ()
    %422 = vector.broadcast %71 : vector<2x1x8xf32> to vector<2x8x8xf32>
    %423 = arith.addf %421, %422 : vector<2x8x8xf32>
    %cst_151 = arith.constant dense<0xFF800000> : vector<2x8xf32>
    %424 = vector.multi_reduction <maximumf>, %423, %cst_151 [2] : vector<2x8x8xf32> to vector<2x8xf32>
    %425 = vector.shape_cast %424 : vector<2x8xf32> to vector<2x8x1xf32>
    %426 = vector.broadcast %425 : vector<2x8x1xf32> to vector<2x8x8xf32>
    %427 = arith.subf %423, %426 : vector<2x8x8xf32>
    %428 = math.exp %427 : vector<2x8x8xf32>
    %cst_152 = arith.constant dense<0.000000e+00> : vector<2x8xf32>
    %429 = vector.multi_reduction <add>, %428, %cst_152 [2] : vector<2x8x8xf32> to vector<2x8xf32>
    %430 = vector.shape_cast %429 : vector<2x8xf32> to vector<2x8x1xf32>
    %431 = tpu.reciprocal %430 {approx = true} : vector<2x8x1xf32> -> vector<2x8x1xf32>
    %432 = vector.broadcast %431 : vector<2x8x1xf32> to vector<2x8x8xf32>
    %433 = arith.mulf %428, %432 : vector<2x8x8xf32>
    %434 = vector.extract_strided_slice %316 {offsets = [0, 0, 24], sizes = [2, 8, 4], strides = [1, 1, 1]} : vector<2x8x32xf32> to vector<2x8x4xf32>
    "tpu.trace_start"() <{level = 10 : i32, message = "bqk,bke->bqe"}> : () -> ()
    %cst_153 = arith.constant dense<0.000000e+00> : vector<2x8x4xf32>
    %435 = tpu.matmul %433, %434, %cst_153 {dimension_numbers = #tpu.dot_dimension_numbers<[2], [1], [1], [2], [0, 0, 0, 1, 1, 2], [0], [0]>} : vector<2x8x8xf32>, vector<2x8x4xf32>, vector<2x8x4xf32> -> vector<2x8x4xf32>
    "tpu.trace_stop"() : () -> ()
    %436 = vector.extract_strided_slice %306 {offsets = [0, 0, 28], sizes = [2, 8, 4], strides = [1, 1, 1]} : vector<2x8x32xf32> to vector<2x8x4xf32>
    %437 = vector.extract_strided_slice %311 {offsets = [0, 0, 28], sizes = [2, 8, 4], strides = [1, 1, 1]} : vector<2x8x32xf32> to vector<2x8x4xf32>
    "tpu.trace_start"() <{level = 10 : i32, message = "bqe,bke->bqk"}> : () -> ()
    %cst_154 = arith.constant dense<0.000000e+00> : vector<2x8x8xf32>
    %438 = tpu.matmul %436, %437, %cst_154 {dimension_numbers = #tpu.dot_dimension_numbers<[2], [2], [1], [1], [0, 0, 0, 1, 1, 1], [0], [0]>} : vector<2x8x4xf32>, vector<2x8x4xf32>, vector<2x8x8xf32> -> vector<2x8x8xf32>
    "tpu.trace_stop"() : () -> ()
    %439 = vector.broadcast %71 : vector<2x1x8xf32> to vector<2x8x8xf32>
    %440 = arith.addf %438, %439 : vector<2x8x8xf32>
    %cst_155 = arith.constant dense<0xFF800000> : vector<2x8xf32>
    %441 = vector.multi_reduction <maximumf>, %440, %cst_155 [2] : vector<2x8x8xf32> to vector<2x8xf32>
    %442 = vector.shape_cast %441 : vector<2x8xf32> to vector<2x8x1xf32>
    %443 = vector.broadcast %442 : vector<2x8x1xf32> to vector<2x8x8xf32>
    %444 = arith.subf %440, %443 : vector<2x8x8xf32>
    %445 = math.exp %444 : vector<2x8x8xf32>
    %cst_156 = arith.constant dense<0.000000e+00> : vector<2x8xf32>
    %446 = vector.multi_reduction <add>, %445, %cst_156 [2] : vector<2x8x8xf32> to vector<2x8xf32>
    %447 = vector.shape_cast %446 : vector<2x8xf32> to vector<2x8x1xf32>
    %448 = tpu.reciprocal %447 {approx = true} : vector<2x8x1xf32> -> vector<2x8x1xf32>
    %449 = vector.broadcast %448 : vector<2x8x1xf32> to vector<2x8x8xf32>
    %450 = arith.mulf %445, %449 : vector<2x8x8xf32>
    %451 = vector.extract_strided_slice %316 {offsets = [0, 0, 28], sizes = [2, 8, 4], strides = [1, 1, 1]} : vector<2x8x32xf32> to vector<2x8x4xf32>
    "tpu.trace_start"() <{level = 10 : i32, message = "bqk,bke->bqe"}> : () -> ()
    %cst_157 = arith.constant dense<0.000000e+00> : vector<2x8x4xf32>
    %452 = tpu.matmul %450, %451, %cst_157 {dimension_numbers = #tpu.dot_dimension_numbers<[2], [1], [1], [2], [0, 0, 0, 1, 1, 2], [0], [0]>} : vector<2x8x8xf32>, vector<2x8x4xf32>, vector<2x8x4xf32> -> vector<2x8x4xf32>
    "tpu.trace_stop"() : () -> ()
    %453 = tpu.concatenate %333, %350, %367, %384, %401, %418, %435, %452 in 2 : vector<2x8x4xf32>, vector<2x8x4xf32>, vector<2x8x4xf32>, vector<2x8x4xf32>, vector<2x8x4xf32>, vector<2x8x4xf32>, vector<2x8x4xf32>, vector<2x8x4xf32> -> vector<2x8x32xf32>
    %454 = vector.shape_cast %453 : vector<2x8x32xf32> to vector<16x32xf32>
    %c1_158 = arith.constant 1 : index
    %c0_159 = arith.constant 0 : index
    %c0_160 = arith.constant 0 : index
    %455 = vector.load %arg5[%c1_158, %c0_159, %c0_160] : memref<2x32x32xf32, #tpu.memory_space<vmem>>, vector<1x32x32xf32>
    %456 = vector.shape_cast %455 : vector<1x32x32xf32> to vector<32x32xf32>
    %cst_161 = arith.constant dense<0.000000e+00> : vector<16x32xf32>
    %457 = tpu.matmul %454, %456, %cst_161 {dimension_numbers = #tpu.dot_dimension_numbers<[1], [0], [0], [1], [0, 0, 1, 1], [], []>} : vector<16x32xf32>, vector<32x32xf32>, vector<16x32xf32> -> vector<16x32xf32>
    %458 = vector.extract_strided_slice %298 {offsets = [3, 0], sizes = [1, 32], strides = [1, 1]} : vector<9x32xf32> to vector<1x32xf32>
    %459 = vector.broadcast %458 : vector<1x32xf32> to vector<16x32xf32>
    %460 = arith.addf %457, %459 : vector<16x32xf32>
    %461 = arith.addf %296, %460 : vector<16x32xf32>
    %462 = vector.extract_strided_slice %298 {offsets = [5, 0], sizes = [1, 32], strides = [1, 1]} : vector<9x32xf32> to vector<1x32xf32>
    %463 = vector.extract_strided_slice %298 {offsets = [6, 0], sizes = [1, 32], strides = [1, 1]} : vector<9x32xf32> to vector<1x32xf32>
    %cst_162 = arith.constant dense<0.000000e+00> : vector<16xf32>
    %464 = vector.multi_reduction <add>, %461, %cst_162 [1] : vector<16x32xf32> to vector<16xf32>
    %465 = vector.shape_cast %464 : vector<16xf32> to vector<16x1xf32>
    %cst_163 = arith.constant 3.200000e+01 : f32
    %466 = vector.broadcast %cst_163 : f32 to vector<16x1xf32>
    %467 = arith.divf %465, %466 : vector<16x1xf32>
    %468 = vector.broadcast %467 : vector<16x1xf32> to vector<16x32xf32>
    %469 = arith.subf %461, %468 : vector<16x32xf32>
    %470 = arith.mulf %469, %469 : vector<16x32xf32>
    %cst_164 = arith.constant dense<0.000000e+00> : vector<16xf32>
    %471 = vector.multi_reduction <add>, %470, %cst_164 [1] : vector<16x32xf32> to vector<16xf32>
    %472 = vector.shape_cast %471 : vector<16xf32> to vector<16x1xf32>
    %cst_165 = arith.constant 3.200000e+01 : f32
    %473 = vector.broadcast %cst_165 : f32 to vector<16x1xf32>
    %474 = arith.divf %472, %473 : vector<16x1xf32>
    %cst_166 = arith.constant 9.99999974E-6 : f32
    %475 = vector.broadcast %cst_166 : f32 to vector<16x1xf32>
    %476 = arith.addf %474, %475 : vector<16x1xf32>
    %477 = math.rsqrt %476 : vector<16x1xf32>
    %478 = vector.broadcast %477 : vector<16x1xf32> to vector<16x32xf32>
    %479 = arith.mulf %469, %478 : vector<16x32xf32>
    %480 = vector.broadcast %462 : vector<1x32xf32> to vector<16x32xf32>
    %481 = arith.mulf %479, %480 : vector<16x32xf32>
    %482 = vector.broadcast %463 : vector<1x32xf32> to vector<16x32xf32>
    %483 = arith.addf %481, %482 : vector<16x32xf32>
    %c1_167 = arith.constant 1 : index
    %c0_168 = arith.constant 0 : index
    %c0_169 = arith.constant 0 : index
    %484 = vector.load %arg6[%c1_167, %c0_168, %c0_169] : memref<2x32x32xf32, #tpu.memory_space<vmem>>, vector<1x32x32xf32>
    %485 = vector.shape_cast %484 : vector<1x32x32xf32> to vector<32x32xf32>
    %cst_170 = arith.constant dense<0.000000e+00> : vector<16x32xf32>
    %486 = tpu.matmul %483, %485, %cst_170 {dimension_numbers = #tpu.dot_dimension_numbers<[1], [0], [0], [1], [0, 0, 1, 1], [], []>} : vector<16x32xf32>, vector<32x32xf32>, vector<16x32xf32> -> vector<16x32xf32>
    %c1_171 = arith.constant 1 : index
    %c0_172 = arith.constant 0 : index
    %c0_173 = arith.constant 0 : index
    %487 = vector.load %arg9[%c1_171, %c0_172, %c0_173] : memref<2x1x32xf32, #tpu.memory_space<vmem>>, vector<1x1x32xf32>
    %488 = vector.shape_cast %487 : vector<1x1x32xf32> to vector<1x32xf32>
    %489 = vector.broadcast %488 : vector<1x32xf32> to vector<16x32xf32>
    %490 = arith.addf %486, %489 : vector<16x32xf32>
    %cst_174 = arith.constant 0.000000e+00 : f32
    %491 = vector.broadcast %cst_174 : f32 to vector<16x32xf32>
    %492 = arith.maximumf %490, %491 : vector<16x32xf32>
    %c1_175 = arith.constant 1 : index
    %c0_176 = arith.constant 0 : index
    %c0_177 = arith.constant 0 : index
    %493 = vector.load %arg7[%c1_175, %c0_176, %c0_177] : memref<2x32x32xf32, #tpu.memory_space<vmem>>, vector<1x32x32xf32>
    %494 = vector.shape_cast %493 : vector<1x32x32xf32> to vector<32x32xf32>
    %cst_178 = arith.constant dense<0.000000e+00> : vector<16x32xf32>
    %495 = tpu.matmul %492, %494, %cst_178 {dimension_numbers = #tpu.dot_dimension_numbers<[1], [0], [0], [1], [0, 0, 1, 1], [], []>} : vector<16x32xf32>, vector<32x32xf32>, vector<16x32xf32> -> vector<16x32xf32>
    %496 = vector.extract_strided_slice %298 {offsets = [4, 0], sizes = [1, 32], strides = [1, 1]} : vector<9x32xf32> to vector<1x32xf32>
    %497 = vector.broadcast %496 : vector<1x32xf32> to vector<16x32xf32>
    %498 = arith.addf %495, %497 : vector<16x32xf32>
    %499 = arith.addf %483, %498 : vector<16x32xf32>
    %500 = vector.extract_strided_slice %298 {offsets = [7, 0], sizes = [1, 32], strides = [1, 1]} : vector<9x32xf32> to vector<1x32xf32>
    %501 = vector.extract_strided_slice %298 {offsets = [8, 0], sizes = [1, 32], strides = [1, 1]} : vector<9x32xf32> to vector<1x32xf32>
    %cst_179 = arith.constant dense<0.000000e+00> : vector<16xf32>
    %502 = vector.multi_reduction <add>, %499, %cst_179 [1] : vector<16x32xf32> to vector<16xf32>
    %503 = vector.shape_cast %502 : vector<16xf32> to vector<16x1xf32>
    %cst_180 = arith.constant 3.200000e+01 : f32
    %504 = vector.broadcast %cst_180 : f32 to vector<16x1xf32>
    %505 = arith.divf %503, %504 : vector<16x1xf32>
    %506 = vector.broadcast %505 : vector<16x1xf32> to vector<16x32xf32>
    %507 = arith.subf %499, %506 : vector<16x32xf32>
    %508 = arith.mulf %507, %507 : vector<16x32xf32>
    %cst_181 = arith.constant dense<0.000000e+00> : vector<16xf32>
    %509 = vector.multi_reduction <add>, %508, %cst_181 [1] : vector<16x32xf32> to vector<16xf32>
    %510 = vector.shape_cast %509 : vector<16xf32> to vector<16x1xf32>
    %cst_182 = arith.constant 3.200000e+01 : f32
    %511 = vector.broadcast %cst_182 : f32 to vector<16x1xf32>
    %512 = arith.divf %510, %511 : vector<16x1xf32>
    %cst_183 = arith.constant 9.99999974E-6 : f32
    %513 = vector.broadcast %cst_183 : f32 to vector<16x1xf32>
    %514 = arith.addf %512, %513 : vector<16x1xf32>
    %515 = math.rsqrt %514 : vector<16x1xf32>
    %516 = vector.broadcast %515 : vector<16x1xf32> to vector<16x32xf32>
    %517 = arith.mulf %507, %516 : vector<16x32xf32>
    %518 = vector.broadcast %500 : vector<1x32xf32> to vector<16x32xf32>
    %519 = arith.mulf %517, %518 : vector<16x32xf32>
    %520 = vector.broadcast %501 : vector<1x32xf32> to vector<16x32xf32>
    %521 = arith.addf %519, %520 : vector<16x32xf32>
    %cst_184 = arith.constant dense<0.000000e+00> : vector<2xf32>
    %522 = vector.multi_reduction <add>, %65, %cst_184 [1] : vector<2x8xf32> to vector<2xf32>
    %523 = vector.shape_cast %522 : vector<2xf32> to vector<2x1xf32>
    %524 = vector.broadcast %523 : vector<2x1xf32> to vector<2x8xf32>
    %525 = arith.divf %65, %524 : vector<2x8xf32>
    %526 = vector.shape_cast %521 : vector<16x32xf32> to vector<2x8x32xf32>
    %527 = vector.shape_cast %525 : vector<2x8xf32> to vector<2x8x1xf32>
    %528 = vector.broadcast %527 : vector<2x8x1xf32> to vector<2x8x32xf32>
    %529 = arith.mulf %526, %528 : vector<2x8x32xf32>
    %cst_185 = arith.constant dense<0.000000e+00> : vector<2x32xf32>
    %530 = vector.multi_reduction <add>, %529, %cst_185 [1] : vector<2x8x32xf32> to vector<2x32xf32>
    %c0_186 = arith.constant 0 : index
    %c0_187 = arith.constant 0 : index
    %531 = vector.load %arg10[%c0_186, %c0_187] : memref<33x32xf32, #tpu.memory_space<vmem>>, vector<33x32xf32>
    %c0_188 = arith.constant 0 : index
    %c0_189 = arith.constant 0 : index
    %532 = vector.load %arg11[%c0_188, %c0_189] : memref<33x1xf32, #tpu.memory_space<vmem>>, vector<33x1xf32>
    %533 = vector.extract_strided_slice %531 {offsets = [0, 0], sizes = [32, 32], strides = [1, 1]} : vector<33x32xf32> to vector<32x32xf32>
    %cst_190 = arith.constant dense<0.000000e+00> : vector<2x32xf32>
    %534 = tpu.matmul %530, %533, %cst_190 {dimension_numbers = #tpu.dot_dimension_numbers<[1], [0], [0], [1], [0, 0, 1, 1], [], []>} : vector<2x32xf32>, vector<32x32xf32>, vector<2x32xf32> -> vector<2x32xf32>
    %535 = vector.extract_strided_slice %531 {offsets = [32, 0], sizes = [1, 32], strides = [1, 1]} : vector<33x32xf32> to vector<1x32xf32>
    %536 = vector.broadcast %535 : vector<1x32xf32> to vector<2x32xf32>
    %537 = arith.addf %534, %536 : vector<2x32xf32>
    %cst_191 = arith.constant 0.000000e+00 : f32
    %538 = vector.broadcast %cst_191 : f32 to vector<2x32xf32>
    %539 = arith.maximumf %537, %538 : vector<2x32xf32>
    %540 = vector.extract_strided_slice %532 {offsets = [0, 0], sizes = [32, 1], strides = [1, 1]} : vector<33x1xf32> to vector<32x1xf32>
    %cst_192 = arith.constant dense<0.000000e+00> : vector<2x1xf32>
    %541 = tpu.matmul %539, %540, %cst_192 {dimension_numbers = #tpu.dot_dimension_numbers<[1], [0], [0], [1], [0, 0, 1, 1], [], []>} : vector<2x32xf32>, vector<32x1xf32>, vector<2x1xf32> -> vector<2x1xf32>
    %542 = vector.extract_strided_slice %532 {offsets = [32, 0], sizes = [1, 1], strides = [1, 1]} : vector<33x1xf32> to vector<1x1xf32>
    %543 = vector.broadcast %542 : vector<1x1xf32> to vector<2x1xf32>
    %544 = arith.addf %541, %543 : vector<2x1xf32>
    %c0_193 = arith.constant 0 : index
    %c0_194 = arith.constant 0 : index
    %545 = vector.load %arg12[%c0_193, %c0_194] : memref<2x1xf32, #tpu.memory_space<vmem>>, vector<2x1xf32>
    tpu.vector_store %arg12[%c0_193, %c0_194], %544 {strides = array<i32>} : memref<2x1xf32, #tpu.memory_space<vmem>>, vector<2x1xf32>,
    return
  }
  func.func @transform_0(%arg0: i32, %arg1: memref<16xi32, #tpu.memory_space<smem>>) -> (i32, i32) {
    %c0_i32 = arith.constant 0 : i32
    %c0_i32_0 = arith.constant 0 : i32
    %c0_i32_1 = arith.constant 0 : i32
    return %c0_i32, %c0_i32_0 : i32, i32
  }
  func.func @transform_1(%arg0: i32, %arg1: memref<16xi32, #tpu.memory_space<smem>>) -> (i32, i32) {
    %c0_i32 = arith.constant 0 : i32
    %c0_i32_0 = arith.constant 0 : i32
    %c0_i32_1 = arith.constant 0 : i32
    return %c0_i32, %c0_i32_0 : i32, i32
  }
  func.func @transform_2(%arg0: i32, %arg1: memref<16xi32, #tpu.memory_space<smem>>) -> (i32, i32, i32) {
    %c0_i32 = arith.constant 0 : i32
    %c0_i32_0 = arith.constant 0 : i32
    %c0_i32_1 = arith.constant 0 : i32
    %c0_i32_2 = arith.constant 0 : i32
    return %c0_i32, %c0_i32_0, %c0_i32_1 : i32, i32, i32
  }
  func.func @transform_3(%arg0: i32, %arg1: memref<16xi32, #tpu.memory_space<smem>>) -> (i32, i32, i32) {
    %c0_i32 = arith.constant 0 : i32
    %c0_i32_0 = arith.constant 0 : i32
    %c0_i32_1 = arith.constant 0 : i32
    %c0_i32_2 = arith.constant 0 : i32
    return %c0_i32, %c0_i32_0, %c0_i32_1 : i32, i32, i32
  }
  func.func @transform_4(%arg0: i32, %arg1: memref<16xi32, #tpu.memory_space<smem>>) -> (i32, i32, i32) {
    %c0_i32 = arith.constant 0 : i32
    %c0_i32_0 = arith.constant 0 : i32
    %c0_i32_1 = arith.constant 0 : i32
    %c0_i32_2 = arith.constant 0 : i32
    return %c0_i32, %c0_i32_0, %c0_i32_1 : i32, i32, i32
  }
  func.func @transform_5(%arg0: i32, %arg1: memref<16xi32, #tpu.memory_space<smem>>) -> (i32, i32, i32) {
    %c0_i32 = arith.constant 0 : i32
    %c0_i32_0 = arith.constant 0 : i32
    %c0_i32_1 = arith.constant 0 : i32
    %c0_i32_2 = arith.constant 0 : i32
    return %c0_i32, %c0_i32_0, %c0_i32_1 : i32, i32, i32
  }
  func.func @transform_6(%arg0: i32, %arg1: memref<16xi32, #tpu.memory_space<smem>>) -> (i32, i32, i32) {
    %c0_i32 = arith.constant 0 : i32
    %c0_i32_0 = arith.constant 0 : i32
    %c0_i32_1 = arith.constant 0 : i32
    %c0_i32_2 = arith.constant 0 : i32
    return %c0_i32, %c0_i32_0, %c0_i32_1 : i32, i32, i32
  }
  func.func @transform_7(%arg0: i32, %arg1: memref<16xi32, #tpu.memory_space<smem>>) -> (i32, i32, i32) {
    %c0_i32 = arith.constant 0 : i32
    %c0_i32_0 = arith.constant 0 : i32
    %c0_i32_1 = arith.constant 0 : i32
    %c0_i32_2 = arith.constant 0 : i32
    return %c0_i32, %c0_i32_0, %c0_i32_1 : i32, i32, i32
  }
  func.func @transform_8(%arg0: i32, %arg1: memref<16xi32, #tpu.memory_space<smem>>) -> (i32, i32) {
    %c0_i32 = arith.constant 0 : i32
    %c0_i32_0 = arith.constant 0 : i32
    %c0_i32_1 = arith.constant 0 : i32
    return %c0_i32, %c0_i32_0 : i32, i32
  }
  func.func @transform_9(%arg0: i32, %arg1: memref<16xi32, #tpu.memory_space<smem>>) -> (i32, i32) {
    %c0_i32 = arith.constant 0 : i32
    %c0_i32_0 = arith.constant 0 : i32
    %c0_i32_1 = arith.constant 0 : i32
    return %c0_i32, %c0_i32_0 : i32, i32
  }
  func.func @transform_10(%arg0: i32, %arg1: memref<16xi32, #tpu.memory_space<smem>>) -> (i32, i32) {
    %c0_i32 = arith.constant 0 : i32
    %c0_i32_0 = arith.constant 0 : i32
    %c0_i32_1 = arith.constant 0 : i32
    return %c0_i32, %c0_i32_0 : i32, i32
  }
}

</mosaic_0001>

<llo_original>
// kernel: transformer_forward.1
$region0: #{transformer_forward.1}
  #allocation0 [shape = 'u32[]', space=smem, size = 0x4, offset = 0x4, fixed_abs, tag = 'smem constant byte address 0x4 - core index']
  #allocation1 [shape = 'u32[144,128]{1,0:T(1,128)}', space=vmem, size = 0x12000, scoped, tag = 'internal scratch']
  #allocation2 [shape = 'f32[16,32]{1,0:T(8,128)}', space=vmem, size = 0x2000, scoped, tag = 'scratch operand']
  #allocation3 [shape = 's32[1]{0}', space=sflag, size = 0x4, scoped, tag = 'scoped memory for transformer_forward.1']
  #allocation4 [shape = 'u8[512]{0}', space=smem, size = 0x200, scoped, tag = 'prefetched SMEM operand 0']
  %s0 = inlined_call_operand.vmem [shape: s32[16], index: 0, kind: input, shape index: {}]
  %s1 = inlined_call_operand.vmem [shape: f32[2,8], index: 1, kind: input, shape index: {}]
  %s2 = inlined_call_operand.hbm [shape: f32[50,32], index: 2, kind: input, shape index: {}]
  %s3 = inlined_call_operand.hbm [shape: f32[2,32,96], index: 3, kind: input, shape index: {}]
  %s4 = inlined_call_operand.hbm [shape: f32[2,32,32], index: 4, kind: input, shape index: {}]
  %s5 = inlined_call_operand.hbm [shape: f32[2,32,32], index: 5, kind: input, shape index: {}]
  %s6 = inlined_call_operand.hbm [shape: f32[2,32,32], index: 6, kind: input, shape index: {}]
  %s7 = inlined_call_operand.hbm [shape: f32[2,9,32], index: 7, kind: input, shape index: {}]
  %s8 = inlined_call_operand.vmem [shape: f32[2,1,32], index: 8, kind: input, shape index: {}]
  %s9 = inlined_call_operand.hbm [shape: f32[33,32], index: 9, kind: input, shape index: {}]
  %s10 = inlined_call_operand.hbm [shape: f32[33,1], index: 10, kind: input, shape index: {}]
  %s11 = inlined_call_operand.vmem [shape: f32[2,1], index: 11, kind: output, shape index: {}]
  %s12 = sld [smem:[#allocation0]]
  $region82: #{transformer_forward.1} parent=0
    _
  %s14 = ssub.s32 1, %s12
  %s15 = scalar_select 0, %s14, %s12
  %s16 = sshll.u32 %s0, 4
  %s17 = int_to_ptr.vmem [resolvable:$true] %s16
  %19 = dma.vmem_to_smem %s17, 16, [#allocation4], [#allocation3]
  %20 = dma.done [#allocation3], 16
  %21 = sfence
  $region1: #{transformer_forward.1} parent=0
    #allocation5 [shape = 'u8[28672]{0}', space=vmem, size = 0x7000, scoped, tag = 'input window, operand 2, single buffered']
    #allocation6 [shape = 's32[1]{0}', space=sflag, size = 0x4, scoped, tag = 'scoped memory for transformer_forward.1']
    #allocation7 [shape = 'u8[32768]{0}', space=vmem, size = 0x8000, scoped, tag = 'input window, operand 3, single buffered']
    #allocation8 [shape = 's32[1]{0}', space=sflag, size = 0x4, scoped, tag = 'scoped memory for transformer_forward.1']
    #allocation9 [shape = 'u8[32768]{0}', space=vmem, size = 0x8000, scoped, tag = 'input window, operand 4, single buffered']
    #allocation10 [shape = 'u8[32768]{0}', space=vmem, size = 0x8000, scoped, tag = 'input window, operand 5, single buffered']
    #allocation11 [shape = 's32[1]{0}', space=sflag, size = 0x4, scoped, tag = 'scoped memory for transformer_forward.1']
    #allocation12 [shape = 'u8[32768]{0}', space=vmem, size = 0x8000, scoped, tag = 'input window, operand 6, single buffered']
    #allocation13 [shape = 'u8[16384]{0}', space=vmem, size = 0x4000, scoped, tag = 'input window, operand 7, single buffered']
    #allocation14 [shape = 's32[1]{0}', space=sflag, size = 0x4, scoped, tag = 'scoped memory for transformer_forward.1']
    #allocation15 [shape = 'u8[20480]{0}', space=vmem, size = 0x5000, scoped, tag = 'input window, operand 9, single buffered']
    #allocation16 [shape = 'u8[20480]{0}', space=vmem, size = 0x5000, scoped, tag = 'input window, operand 10, single buffered']
    #allocation17 [shape = 's32[1]{0}', space=sflag, size = 0x4, scoped, tag = 'scoped memory for transformer_forward.1']
    %22 = vsyncpa [#allocation6], 0
    %23 = vsyncpa [#allocation8], 0
    %24 = vsyncpa [#allocation11], 0
    %25 = vsyncpa [#allocation14], 0
    %26 = vsyncpa [#allocation17], 0
    // Predicated region
    $region2: #{transformer_forward.1} parent=1 // pred_check
      _
    $region3: #{transformer_forward.1} parent=1 // pred_check_branch
      %28 = sbr.rel (0) target = $region5
    $region4: #{transformer_forward.1} parent=1 // pred_region
      _
    $region5: #{transformer_forward.1} parent=1 // pred_fallthru
      _
    // Predicated region
    $region6: #{transformer_forward.1} parent=1 // pred_check
      _
    $region7: #{transformer_forward.1} parent=1 // pred_check_branch
      %30 = sbr.rel (0) target = $region9
    $region8: #{transformer_forward.1} parent=1 // pred_region
      %s32 = ssub.s32 896, 896
      %33 = vsyncadd [#allocation6], %s32
      %s34 = sshll.u32 [#allocation5], 4
      %s35 = int_to_ptr.vmem [resolvable:$true] %s34
      %40 = dma.hbm_to_vmem [thread:$0]  %s2, 896, %s35, [#allocation6], 128, 128, 8
    $region9: #{transformer_forward.1} parent=1 // pred_fallthru
      _
    // Predicated region
    $region10: #{transformer_forward.1} parent=1 // pred_check
      _
    $region11: #{transformer_forward.1} parent=1 // pred_check_branch
      %42 = sbr.rel (0) target = $region13
    $region12: #{transformer_forward.1} parent=1 // pred_region
      %s44 = ssub.s32 1024, 1024
      %45 = vsyncadd [#allocation8], %s44
      %s46 = sshll.u32 [#allocation7], 4
      %s47 = int_to_ptr.vmem [resolvable:$true] %s46
      %52 = dma.hbm_to_vmem [thread:$0]  %s3, 1024, %s47, [#allocation8], 128, 128, 8
    $region13: #{transformer_forward.1} parent=1 // pred_fallthru
      _
    // Predicated region
    $region14: #{transformer_forward.1} parent=1 // pred_check
      _
    $region15: #{transformer_forward.1} parent=1 // pred_check_branch
      %54 = sbr.rel (0) target = $region17
    $region16: #{transformer_forward.1} parent=1 // pred_region
      %s56 = ssub.s32 1024, 1024
      %57 = vsyncadd [#allocation8], %s56
      %s58 = sshll.u32 [#allocation9], 4
      %s59 = int_to_ptr.vmem [resolvable:$true] %s58
      %64 = dma.hbm_to_vmem [thread:$0]  %s4, 1024, %s59, [#allocation8], 128, 128, 8
    $region17: #{transformer_forward.1} parent=1 // pred_fallthru
      _
    // Predicated region
    $region18: #{transformer_forward.1} parent=1 // pred_check
      _
    $region19: #{transformer_forward.1} parent=1 // pred_check_branch
      %66 = sbr.rel (0) target = $region21
    $region20: #{transformer_forward.1} parent=1 // pred_region
      %s68 = ssub.s32 1024, 1024
      %69 = vsyncadd [#allocation11], %s68
      %s70 = sshll.u32 [#allocation10], 4
      %s71 = int_to_ptr.vmem [resolvable:$true] %s70
      %76 = dma.hbm_to_vmem [thread:$0]  %s5, 1024, %s71, [#allocation11], 128, 128, 8
    $region21: #{transformer_forward.1} parent=1 // pred_fallthru
      _
    // Predicated region
    $region22: #{transformer_forward.1} parent=1 // pred_check
      _
    $region23: #{transformer_forward.1} parent=1 // pred_check_branch
      %78 = sbr.rel (0) target = $region25
    $region24: #{transformer_forward.1} parent=1 // pred_region
      %s80 = ssub.s32 1024, 1024
      %81 = vsyncadd [#allocation11], %s80
      %s82 = sshll.u32 [#allocation12], 4
      %s83 = int_to_ptr.vmem [resolvable:$true] %s82
      %88 = dma.hbm_to_vmem [thread:$0]  %s6, 1024, %s83, [#allocation11], 128, 128, 8
    $region25: #{transformer_forward.1} parent=1 // pred_fallthru
      _
    // Predicated region
    $region26: #{transformer_forward.1} parent=1 // pred_check
      _
    $region27: #{transformer_forward.1} parent=1 // pred_check_branch
      %90 = sbr.rel (0) target = $region29
    $region28: #{transformer_forward.1} parent=1 // pred_region
      %s92 = ssub.s32 512, 512
      %93 = vsyncadd [#allocation14], %s92
      %s94 = sshll.u32 [#allocation13], 4
      %s95 = int_to_ptr.vmem [resolvable:$true] %s94
      %100 = dma.hbm_to_vmem [thread:$0]  %s7, 512, %s95, [#allocation14], 128, 128, 8
    $region29: #{transformer_forward.1} parent=1 // pred_fallthru
      _
    // Predicated region
    $region30: #{transformer_forward.1} parent=1 // pred_check
      _
    $region31: #{transformer_forward.1} parent=1 // pred_check_branch
      %102 = sbr.rel (0) target = $region33
    $region32: #{transformer_forward.1} parent=1 // pred_region
      _
    $region33: #{transformer_forward.1} parent=1 // pred_fallthru
      _
    // Predicated region
    $region34: #{transformer_forward.1} parent=1 // pred_check
      _
    $region35: #{transformer_forward.1} parent=1 // pred_check_branch
      %104 = sbr.rel (0) target = $region37
    $region36: #{transformer_forward.1} parent=1 // pred_region
      %s106 = ssub.s32 640, 640
      %107 = vsyncadd [#allocation14], %s106
      %s108 = sshll.u32 [#allocation15], 4
      %s109 = int_to_ptr.vmem [resolvable:$true] %s108
      %114 = dma.hbm_to_vmem [thread:$0]  %s9, 640, %s109, [#allocation14], 128, 128, 8
    $region37: #{transformer_forward.1} parent=1 // pred_fallthru
      _
    // Predicated region
    $region38: #{transformer_forward.1} parent=1 // pred_check
      _
    $region39: #{transformer_forward.1} parent=1 // pred_check_branch
      %116 = sbr.rel (0) target = $region41
    $region40: #{transformer_forward.1} parent=1 // pred_region
      %s118 = ssub.s32 640, 640
      %119 = vsyncadd [#allocation17], %s118
      %s120 = sshll.u32 [#allocation16], 4
      %s121 = int_to_ptr.vmem [resolvable:$true] %s120
      %126 = dma.hbm_to_vmem [thread:$0]  %s10, 640, %s121, [#allocation17], 128, 128, 8
    $region41: #{transformer_forward.1} parent=1 // pred_fallthru
      _
    // Predicated region
    $region42: #{transformer_forward.1} parent=1 // pred_check
      _
    $region43: #{transformer_forward.1} parent=1 // pred_check_branch
      %128 = sbr.rel (0) target = $region45
    $region44: #{transformer_forward.1} parent=1 // pred_region
      %129 = dma.done [#allocation6], 896
    $region45: #{transformer_forward.1} parent=1 // pred_fallthru
      _
    // Predicated region
    $region46: #{transformer_forward.1} parent=1 // pred_check
      _
    $region47: #{transformer_forward.1} parent=1 // pred_check_branch
      %131 = sbr.rel (0) target = $region49
    $region48: #{transformer_forward.1} parent=1 // pred_region
      %132 = dma.done [#allocation8], 1024
    $region49: #{transformer_forward.1} parent=1 // pred_fallthru
      _
    // Predicated region
    $region50: #{transformer_forward.1} parent=1 // pred_check
      _
    $region51: #{transformer_forward.1} parent=1 // pred_check_branch
      %134 = sbr.rel (0) target = $region53
    $region52: #{transformer_forward.1} parent=1 // pred_region
      %135 = dma.done [#allocation8], 1024
    $region53: #{transformer_forward.1} parent=1 // pred_fallthru
      _
    // Predicated region
    $region54: #{transformer_forward.1} parent=1 // pred_check
      _
    $region55: #{transformer_forward.1} parent=1 // pred_check_branch
      %137 = sbr.rel (0) target = $region57
    $region56: #{transformer_forward.1} parent=1 // pred_region
      %138 = dma.done [#allocation11], 1024
    $region57: #{transformer_forward.1} parent=1 // pred_fallthru
      _
    // Predicated region
    $region58: #{transformer_forward.1} parent=1 // pred_check
      _
    $region59: #{transformer_forward.1} parent=1 // pred_check_branch
      %140 = sbr.rel (0) target = $region61
    $region60: #{transformer_forward.1} parent=1 // pred_region
      %141 = dma.done [#allocation11], 1024
    $region61: #{transformer_forward.1} parent=1 // pred_fallthru
      _
    // Predicated region
    $region62: #{transformer_forward.1} parent=1 // pred_check
      _
    $region63: #{transformer_forward.1} parent=1 // pred_check_branch
      %143 = sbr.rel (0) target = $region65
    $region64: #{transformer_forward.1} parent=1 // pred_region
      %144 = dma.done [#allocation14], 512
    $region65: #{transformer_forward.1} parent=1 // pred_fallthru
      _
    // Predicated region
    $region66: #{transformer_forward.1} parent=1 // pred_check
      _
    $region67: #{transformer_forward.1} parent=1 // pred_check_branch
      %146 = sbr.rel (0) target = $region69
    $region68: #{transformer_forward.1} parent=1 // pred_region
      %147 = dma.done [#allocation14], 640
    $region69: #{transformer_forward.1} parent=1 // pred_fallthru
      _
    // Predicated region
    $region70: #{transformer_forward.1} parent=1 // pred_check
      _
    $region71: #{transformer_forward.1} parent=1 // pred_check_branch
      %149 = sbr.rel (0) target = $region73
    $region72: #{transformer_forward.1} parent=1 // pred_region
      %150 = dma.done [#allocation17], 640
    $region73: #{transformer_forward.1} parent=1 // pred_fallthru
      _
    %s151 = sld [smem:[#allocation4]]
    %s152 = scalar_lea.vmem [#allocation5], %s151
    %v153 = vld [vmem:[%s152] sm:$0x1]
    %vm154 = vcmask 253952
    %155 = vst.msk [vmem:[#allocation2] sm:$0x1] %vm154, %v153
    %s156 = sld [smem:[#allocation4 + $0x1]]
    %s157 = scalar_lea.vmem [#allocation5], %s156
    %v158 = vld [vmem:[%s157] sm:$0x1]
    %159 = vst.msk [vmem:[#allocation2 + $0x1] sm:$0x1] %vm154, %v158
    %s160 = sld [smem:[#allocation4 + $0x2]]
    %s161 = scalar_lea.vmem [#allocation5], %s160
    %v162 = vld [vmem:[%s161] sm:$0x1]
    %163 = vst.msk [vmem:[#allocation2 + $0x2] sm:$0x1] %vm154, %v162
    %s164 = sld [smem:[#allocation4 + $0x3]]
    %s165 = scalar_lea.vmem [#allocation5], %s164
    %v166 = vld [vmem:[%s165] sm:$0x1]
    %167 = vst.msk [vmem:[#allocation2 + $0x3] sm:$0x1] %vm154, %v166
    %s168 = sld [smem:[#allocation4 + $0x4]]
    %s169 = scalar_lea.vmem [#allocation5], %s168
    %v170 = vld [vmem:[%s169] sm:$0x1]
    %171 = vst.msk [vmem:[#allocation2 + $0x4] sm:$0x1] %vm154, %v170
    %s172 = sld [smem:[#allocation4 + $0x5]]
    %s173 = scalar_lea.vmem [#allocation5], %s172
    %v174 = vld [vmem:[%s173] sm:$0x1]
    %175 = vst.msk [vmem:[#allocation2 + $0x5] sm:$0x1] %vm154, %v174
    %s176 = sld [smem:[#allocation4 + $0x6]]
    %s177 = scalar_lea.vmem [#allocation5], %s176
    %v178 = vld [vmem:[%s177] sm:$0x1]
    %179 = vst.msk [vmem:[#allocation2 + $0x6] sm:$0x1] %vm154, %v178
    %s180 = sld [smem:[#allocation4 + $0x7]]
    %s181 = scalar_lea.vmem [#allocation5], %s180
    %v182 = vld [vmem:[%s181] sm:$0x1]
    %183 = vst.msk [vmem:[#allocation2 + $0x7] sm:$0x1] %vm154, %v182
    %s184 = sld [smem:[#allocation4 + $0x8]]
    %s185 = scalar_lea.vmem [#allocation5], %s184
    %v186 = vld [vmem:[%s185] sm:$0x1]
    %187 = vst.msk [vmem:[#allocation2 + $0x8] sm:$0x1] %vm154, %v186
    %s188 = sld [smem:[#allocation4 + $0x9]]
    %s189 = scalar_lea.vmem [#allocation5], %s188
    %v190 = vld [vmem:[%s189] sm:$0x1]
    %191 = vst.msk [vmem:[#allocation2 + $0x9] sm:$0x1] %vm154, %v190
    %s192 = sld [smem:[#allocation4 + $0xa]]
    %s193 = scalar_lea.vmem [#allocation5], %s192
    %v194 = vld [vmem:[%s193] sm:$0x1]
    %195 = vst.msk [vmem:[#allocation2 + $0xa] sm:$0x1] %vm154, %v194
    %s196 = sld [smem:[#allocation4 + $0xb]]
    %s197 = scalar_lea.vmem [#allocation5], %s196
    %v198 = vld [vmem:[%s197] sm:$0x1]
    %199 = vst.msk [vmem:[#allocation2 + $0xb] sm:$0x1] %vm154, %v198
    %s200 = sld [smem:[#allocation4 + $0xc]]
    %s201 = scalar_lea.vmem [#allocation5], %s200
    %v202 = vld [vmem:[%s201] sm:$0x1]
    %203 = vst.msk [vmem:[#allocation2 + $0xc] sm:$0x1] %vm154, %v202
    %s204 = sld [smem:[#allocation4 + $0xd]]
    %s205 = scalar_lea.vmem [#allocation5], %s204
    %v206 = vld [vmem:[%s205] sm:$0x1]
    %207 = vst.msk [vmem:[#allocation2 + $0xd] sm:$0x1] %vm154, %v206
    %s208 = sld [smem:[#allocation4 + $0xe]]
    %s209 = scalar_lea.vmem [#allocation5], %s208
    %v210 = vld [vmem:[%s209] sm:$0x1]
    %211 = vst.msk [vmem:[#allocation2 + $0xe] sm:$0x1] %vm154, %v210
    %s212 = sld [smem:[#allocation4 + $0xf]]
    %s213 = scalar_lea.vmem [#allocation5], %s212
    %v214 = vld [vmem:[%s213] sm:$0x1]
    %215 = vst.msk [vmem:[#allocation2 + $0xf] sm:$0x1] %vm154, %v214
    %v216 = vld [vmem:[#allocation2] sm:$0xff]
    %v217 = vld [vmem:[#allocation2 + $0x8] sm:$0xff]
    %v218 = vld [vmem:[%s1] sm:$0x3]
    %vm219 = vcmp.gt.f32.partialorder %v218, 0.0
    %v220 = vsel %vm219, 0.0, -1e+09
    %v223 = vunpack.c.l.s4 1966171168
    %v224 = vunpack.c.0.s8 %v223
    %v225 = vlaneseq
    %v226 = vshrl.u32 %v225, 7
    %v227 = vsub.s32 %v224, %v226
    %v228 = vrot.slane %v220, %v227
    %v229 = vcombine.high %v228, %v228
    %v231 = vunpack.c.l.s4 1966171168
    %v232 = vunpack.c.0.s8 %v231
    %v233 = vlaneseq
    %v234 = vshrl.u32 %v233, 7
    %v235 = vsub.s32 %v232, %v234
    %v236 = vrot.slane %v228, %v235
    %v238 = vunpack.c.l.s4 1966171168
    %v239 = vunpack.c.0.s8 %v238
    %v240 = vlaneseq
    %v241 = vshrl.u32 %v240, 7
    %v242 = vsub.s32 %v239, %v241
    %v243 = vrot.slane %v229, %v242
    %v244 = vld [vmem:[#allocation13] sm:$0xff]
    %v245 = vld [vmem:[#allocation13 + $0x8] sm:$0x1]
    %v246 = vld [vmem:[#allocation7] sm:$0xff]
    %v247 = vld [vmem:[#allocation7 + $0x8] sm:$0xff]
    %v248 = vld [vmem:[#allocation7 + $0x10] sm:$0xff]
    %v249 = vld [vmem:[#allocation7 + $0x18] sm:$0xff]
    %vm250 = vcmask 261120
    %v252 = vsel %vm250, %v216, 0
    %v255 = vsel %vm250, %v217, 0
    %257 = vmatprep.subr.mxu0 0.0
    %258 = vmatpush1.msra.mxu0 0.0
    %259 = vmatprep.subr.mxu0 0.0
    %260 = vmatpush1.msra.mxu0 0.0
    %261 = vmatprep.subr.mxu0 0.0
    %262 = vmatpush1.msra.mxu0 0.0
    %263 = vmatprep.subr.mxu0 0.0
    %264 = vmatpush1.msra.mxu0 0.0
    %265 = vmatprep.subr.mxu0 0.0
    %266 = vmatpush1.msra.mxu0 0.0
    %267 = vmatprep.subr.mxu0 0.0
    %268 = vmatpush1.msra.mxu0 0.0
    %269 = vmatprep.subr.mxu0 0.0
    %270 = vmatpush1.msra.mxu0 0.0
    %271 = vmatprep.subr.mxu0 0.0
    %272 = vmatpush1.msra.mxu0 0.0
    %273 = vmatprep.subr.mxu0 0.0
    %274 = vmatpush1.msra.mxu0 0.0
    %275 = vmatprep.subr.mxu0 0.0
    %276 = vmatpush1.msra.mxu0 0.0
    %277 = vmatprep.subr.mxu0 0.0
    %278 = vmatpush1.msra.mxu0 0.0
    %279 = vmatprep.subr.mxu0 0.0
    %280 = vmatpush1.msra.mxu0 0.0
    %281 = vmatprep.subr.mxu0 0.0
    %282 = vmatpush1.msra.mxu0 %v249
    %283 = vmatprep.subr.mxu0 0.0
    %284 = vmatpush1.msra.mxu0 %v248
    %285 = vmatprep.subr.mxu0 0.0
    %286 = vmatpush1.msra.mxu0 %v247
    %287 = vmatprep.subr.mxu0 0.0
    %288 = vmatpush1.msra.mxu0 %v246
    %289 = vmatprep.subr.mxu0 0.0
    %290 = vmatpush2.msra.mxu0 0.0
    %291 = vmatprep.subr.mxu0 0.0
    %292 = vmatpush2.msra.mxu0 0.0
    %293 = vmatprep.subr.mxu0 0.0
    %294 = vmatpush2.msra.mxu0 0.0
    %295 = vmatprep.subr.mxu0 0.0
    %296 = vmatpush2.msra.mxu0 0.0
    %297 = vmatprep.subr.mxu0 0.0
    %298 = vmatpush2.msra.mxu0 0.0
    %299 = vmatprep.subr.mxu0 0.0
    %300 = vmatpush2.msra.mxu0 0.0
    %301 = vmatprep.subr.mxu0 0.0
    %302 = vmatpush2.msra.mxu0 0.0
    %303 = vmatprep.subr.mxu0 0.0
    %304 = vmatpush2.msra.mxu0 0.0
    %305 = vmatprep.subr.mxu0 0.0
    %306 = vmatpush2.msra.mxu0 0.0
    %307 = vmatprep.subr.mxu0 0.0
    %308 = vmatpush2.msra.mxu0 0.0
    %309 = vmatprep.subr.mxu0 0.0
    %310 = vmatpush2.msra.mxu0 0.0
    %311 = vmatprep.subr.mxu0 0.0
    %312 = vmatpush2.msra.mxu0 0.0
    %313 = vmatprep.subr.mxu0 0.0
    %314 = vmatpush2.msra.mxu0 0.0
    %315 = vmatprep.subr.mxu0 0.0
    %316 = vmatpush2.msra.mxu0 0.0
    %317 = vmatprep.subr.mxu0 0.0
    %318 = vmatpush2.msra.mxu0 0.0
    %319 = vmatprep.subr.mxu0 0.0
    %320 = vmatpush2.msra.mxu0 0.0
    %321 = vmatprep.mubr.f32.mxu0 0.0
    %322 = vmatmul.mubr.f32.gmra.mxu0 %v252
    %v323 = vpop.f32.mrf.mxu0
    %v324 = vadd.f32 0.0, %v323
    %v325 = vpop.f32.mrf.mxu0
    %326 = vmatprep.mubr.f32.mxu0 0.0
    %327 = vmatmul.mubr.f32.gmra.mxu0 %v255
    %v328 = vpop.f32.mrf.mxu0
    %v329 = vadd.f32 0.0, %v328
    %v330 = vpop.f32.mrf.mxu0
    %331 = vdwg.mxu0
    %v332 = vlaneseq
    %v333 = vshrl.u32 %v332, 7
    %v334 = vsub.s32 0, %v333
    %v335 = vrot.slane %v244, %v334
    %v336 = vadd.f32 %v324, %v335
    %v337 = vadd.f32 %v329, %v335
    %v338 = vlaneseq
    %v339 = vshrl.u32 %v338, 7
    %v340 = vsub.s32 1, %v339
    %v341 = vrot.slane %v244, %v340
    %343 = vrot.lane.b32.xlu0 %v341, 32
    %v344 = vpop.permute.xlu0 %343
    %v346 = vadd.f32 %v324, %v344
    %v347 = vadd.f32 %v329, %v344
    %v348 = vlaneseq
    %v349 = vshrl.u32 %v348, 7
    %v350 = vsub.s32 2, %v349
    %v351 = vrot.slane %v244, %v350
    %353 = vrot.lane.b32.xlu0 %v351, 64
    %v354 = vpop.permute.xlu0 %353
    %v356 = vadd.f32 %v324, %v354
    %v357 = vadd.f32 %v329, %v354
    %v358 = vlaneseq
    %v359 = vshrl.u32 %v358, 7
    %v360 = vsub.s32 0, %v359
    %v361 = vrot.slane %v236, %v360
    %v362 = vlaneseq
    %v363 = vshrl.u32 %v362, 7
    %v364 = vsub.s32 0, %v363
    %v365 = vrot.slane %v243, %v364
    %369 = vrot.lane.b32.xlu0 %v346, 96
    %v370 = vpop.permute.xlu0 %369
    %vm371 = vcmask 31744
    %v373 = vsel %vm371, %v336, 0
    %v375 = vsel %vm371, %v370, 0
    %377 = vmatprep.subr.mxu0 0.0
    %378 = vmatpush1.xpose.msra.mxu0 0.0
    %379 = vmatprep.subr.mxu0 0.0
    %380 = vmatpush1.xpose.msra.mxu0 0.0
    %381 = vmatprep.subr.mxu0 0.0
    %382 = vmatpush1.xpose.msra.mxu0 0.0
    %383 = vmatprep.subr.mxu0 0.0
    %384 = vmatpush1.xpose.msra.mxu0 0.0
    %385 = vmatprep.subr.mxu0 0.0
    %386 = vmatpush1.xpose.msra.mxu0 0.0
    %387 = vmatprep.subr.mxu0 0.0
    %388 = vmatpush1.xpose.msra.mxu0 0.0
    %389 = vmatprep.subr.mxu0 0.0
    %390 = vmatpush1.xpose.msra.mxu0 0.0
    %391 = vmatprep.subr.mxu0 0.0
    %392 = vmatpush1.xpose.msra.mxu0 0.0
    %393 = vmatprep.subr.mxu0 0.0
    %394 = vmatpush1.xpose.msra.mxu0 0.0
    %395 = vmatprep.subr.mxu0 0.0
    %396 = vmatpush1.xpose.msra.mxu0 0.0
    %397 = vmatprep.subr.mxu0 0.0
    %398 = vmatpush1.xpose.msra.mxu0 0.0
    %399 = vmatprep.subr.mxu0 0.0
    %400 = vmatpush1.xpose.msra.mxu0 0.0
    %401 = vmatprep.subr.mxu0 0.0
    %402 = vmatpush1.xpose.msra.mxu0 0.0
    %403 = vmatprep.subr.mxu0 0.0
    %404 = vmatpush1.xpose.msra.mxu0 0.0
    %405 = vmatprep.subr.mxu0 0.0
    %406 = vmatpush1.xpose.msra.mxu0 0.0
    %407 = vmatprep.subr.mxu0 0.0
    %408 = vmatpush1.xpose.msra.mxu0 %v375
    %409 = vmatprep.subr.mxu0 0.0
    %410 = vmatpush2.xpose.msra.mxu0 0.0
    %411 = vmatprep.subr.mxu0 0.0
    %412 = vmatpush2.xpose.msra.mxu0 0.0
    %413 = vmatprep.subr.mxu0 0.0
    %414 = vmatpush2.xpose.msra.mxu0 0.0
    %415 = vmatprep.subr.mxu0 0.0
    %416 = vmatpush2.xpose.msra.mxu0 0.0
    %417 = vmatprep.subr.mxu0 0.0
    %418 = vmatpush2.xpose.msra.mxu0 0.0
    %419 = vmatprep.subr.mxu0 0.0
    %420 = vmatpush2.xpose.msra.mxu0 0.0
    %421 = vmatprep.subr.mxu0 0.0
    %422 = vmatpush2.xpose.msra.mxu0 0.0
    %423 = vmatprep.subr.mxu0 0.0
    %424 = vmatpush2.xpose.msra.mxu0 0.0
    %425 = vmatprep.subr.mxu0 0.0
    %426 = vmatpush2.xpose.msra.mxu0 0.0
    %427 = vmatprep.subr.mxu0 0.0
    %428 = vmatpush2.xpose.msra.mxu0 0.0
    %429 = vmatprep.subr.mxu0 0.0
    %430 = vmatpush2.xpose.msra.mxu0 0.0
    %431 = vmatprep.subr.mxu0 0.0
    %432 = vmatpush2.xpose.msra.mxu0 0.0
    %433 = vmatprep.subr.mxu0 0.0
    %434 = vmatpush2.xpose.msra.mxu0 0.0
    %435 = vmatprep.subr.mxu0 0.0
    %436 = vmatpush2.xpose.msra.mxu0 0.0
    %437 = vmatprep.subr.mxu0 0.0
    %438 = vmatpush2.xpose.msra.mxu0 0.0
    %439 = vmatprep.subr.mxu0 0.0
    %440 = vmatpush2.xpose.msra.mxu0 0.0
    %441 = vmatprep.mubr.f32.mxu0 0.0
    %442 = vmatmul.mubr.f32.gmra.mxu0 %v373
    %v443 = vpop.f32.mrf.mxu0
    %v444 = vadd.f32 %v361, %v443
    %v445 = vpop.f32.mrf.mxu0
    %446 = vdwg.mxu0
    %448 = vrot.lane.b32.xlu0 %v347, 96
    %v449 = vpop.permute.xlu0 %448
    %v451 = vsel %vm371, %v337, 0
    %v453 = vsel %vm371, %v449, 0
    %455 = vmatprep.subr.mxu0 0.0
    %456 = vmatpush1.xpose.msra.mxu0 0.0
    %457 = vmatprep.subr.mxu0 0.0
    %458 = vmatpush1.xpose.msra.mxu0 0.0
    %459 = vmatprep.subr.mxu0 0.0
    %460 = vmatpush1.xpose.msra.mxu0 0.0
    %461 = vmatprep.subr.mxu0 0.0
    %462 = vmatpush1.xpose.msra.mxu0 0.0
    %463 = vmatprep.subr.mxu0 0.0
    %464 = vmatpush1.xpose.msra.mxu0 0.0
    %465 = vmatprep.subr.mxu0 0.0
    %466 = vmatpush1.xpose.msra.mxu0 0.0
    %467 = vmatprep.subr.mxu0 0.0
    %468 = vmatpush1.xpose.msra.mxu0 0.0
    %469 = vmatprep.subr.mxu0 0.0
    %470 = vmatpush1.xpose.msra.mxu0 0.0
    %471 = vmatprep.subr.mxu0 0.0
    %472 = vmatpush1.xpose.msra.mxu0 0.0
    %473 = vmatprep.subr.mxu0 0.0
    %474 = vmatpush1.xpose.msra.mxu0 0.0
    %475 = vmatprep.subr.mxu0 0.0
    %476 = vmatpush1.xpose.msra.mxu0 0.0
    %477 = vmatprep.subr.mxu0 0.0
    %478 = vmatpush1.xpose.msra.mxu0 0.0
    %479 = vmatprep.subr.mxu0 0.0
    %480 = vmatpush1.xpose.msra.mxu0 0.0
    %481 = vmatprep.subr.mxu0 0.0
    %482 = vmatpush1.xpose.msra.mxu0 0.0
    %483 = vmatprep.subr.mxu0 0.0
    %484 = vmatpush1.xpose.msra.mxu0 0.0
    %485 = vmatprep.subr.mxu0 0.0
    %486 = vmatpush1.xpose.msra.mxu0 %v453
    %487 = vmatprep.subr.mxu0 0.0
    %488 = vmatpush2.xpose.msra.mxu0 0.0
    %489 = vmatprep.subr.mxu0 0.0
    %490 = vmatpush2.xpose.msra.mxu0 0.0
    %491 = vmatprep.subr.mxu0 0.0
    %492 = vmatpush2.xpose.msra.mxu0 0.0
    %493 = vmatprep.subr.mxu0 0.0
    %494 = vmatpush2.xpose.msra.mxu0 0.0
    %495 = vmatprep.subr.mxu0 0.0
    %496 = vmatpush2.xpose.msra.mxu0 0.0
    %497 = vmatprep.subr.mxu0 0.0
    %498 = vmatpush2.xpose.msra.mxu0 0.0
    %499 = vmatprep.subr.mxu0 0.0
    %500 = vmatpush2.xpose.msra.mxu0 0.0
    %501 = vmatprep.subr.mxu0 0.0
    %502 = vmatpush2.xpose.msra.mxu0 0.0
    %503 = vmatprep.subr.mxu0 0.0
    %504 = vmatpush2.xpose.msra.mxu0 0.0
    %505 = vmatprep.subr.mxu0 0.0
    %506 = vmatpush2.xpose.msra.mxu0 0.0
    %507 = vmatprep.subr.mxu0 0.0
    %508 = vmatpush2.xpose.msra.mxu0 0.0
    %509 = vmatprep.subr.mxu0 0.0
    %510 = vmatpush2.xpose.msra.mxu0 0.0
    %511 = vmatprep.subr.mxu0 0.0
    %512 = vmatpush2.xpose.msra.mxu0 0.0
    %513 = vmatprep.subr.mxu0 0.0
    %514 = vmatpush2.xpose.msra.mxu0 0.0
    %515 = vmatprep.subr.mxu0 0.0
    %516 = vmatpush2.xpose.msra.mxu0 0.0
    %517 = vmatprep.subr.mxu0 0.0
    %518 = vmatpush2.xpose.msra.mxu0 0.0
    %519 = vmatprep.mubr.f32.mxu0 0.0
    %520 = vmatmul.mubr.f32.gmra.mxu0 %v451
    %v521 = vpop.f32.mrf.mxu0
    %v522 = vadd.f32 %v365, %v521
    %v523 = vpop.f32.mrf.mxu0
    %524 = vdwg.mxu0
    %vm525 = vcmask 64512
    %v526 = vsel %vm525, %v444, -inf
    %527 = vmax.xlane.f32.xlu0 %v526
    %v528 = vpop.xlane.xlu0 %527
    %v529 = vsel %vm525, %v522, -inf
    %530 = vmax.xlane.f32.xlu0 %v529
    %v531 = vpop.xlane.xlu0 %530
    %v532 = vsub.f32 %v444, %v528
    %v533 = vsub.f32 %v522, %v531
    %v534 = vmul.f32 %v532, 1.442695
    %v535 = vpow.pop %v534
    %v536 = vmul.f32 %v533, 1.442695
    %v537 = vpow.pop %v536
    %v538 = vsel %vm525, %v535, 0.0
    %539 = vadd.xlane.f32.xlu0 %v538
    %v540 = vpop.xlane.xlu0 %539
    %v541 = vsel %vm525, %v537, 0.0
    %542 = vadd.xlane.f32.xlu0 %v541
    %v543 = vpop.xlane.xlu0 %542
    %v544 = vrcp.pop %v540
    %v545 = vrcp.pop %v543
    %v546 = vmul.f32 %v535, %v544
    %v547 = vmul.f32 %v537, %v545
    %549 = vrot.lane.b32.xlu0 %v356, 64
    %v550 = vpop.permute.xlu0 %549
    %v553 = vsel %vm525, %v546, 0
    %555 = vmatprep.subr.mxu0 0.0
    %556 = vmatpush1.msra.mxu0 0.0
    %557 = vmatprep.subr.mxu0 0.0
    %558 = vmatpush1.msra.mxu0 0.0
    %559 = vmatprep.subr.mxu0 0.0
    %560 = vmatpush1.msra.mxu0 0.0
    %561 = vmatprep.subr.mxu0 0.0
    %562 = vmatpush1.msra.mxu0 0.0
    %563 = vmatprep.subr.mxu0 0.0
    %564 = vmatpush1.msra.mxu0 0.0
    %565 = vmatprep.subr.mxu0 0.0
    %566 = vmatpush1.msra.mxu0 0.0
    %567 = vmatprep.subr.mxu0 0.0
    %568 = vmatpush1.msra.mxu0 0.0
    %569 = vmatprep.subr.mxu0 0.0
    %570 = vmatpush1.msra.mxu0 0.0
    %571 = vmatprep.subr.mxu0 0.0
    %572 = vmatpush1.msra.mxu0 0.0
    %573 = vmatprep.subr.mxu0 0.0
    %574 = vmatpush1.msra.mxu0 0.0
    %575 = vmatprep.subr.mxu0 0.0
    %576 = vmatpush1.msra.mxu0 0.0
    %577 = vmatprep.subr.mxu0 0.0
    %578 = vmatpush1.msra.mxu0 0.0
    %579 = vmatprep.subr.mxu0 0.0
    %580 = vmatpush1.msra.mxu0 0.0
    %581 = vmatprep.subr.mxu0 0.0
    %582 = vmatpush1.msra.mxu0 0.0
    %583 = vmatprep.subr.mxu0 0.0
    %584 = vmatpush1.msra.mxu0 0.0
    %585 = vmatprep.subr.mxu0 0.0
    %586 = vmatpush1.msra.mxu0 %v550
    %587 = vmatprep.subr.mxu0 0.0
    %588 = vmatpush2.msra.mxu0 0.0
    %589 = vmatprep.subr.mxu0 0.0
    %590 = vmatpush2.msra.mxu0 0.0
    %591 = vmatprep.subr.mxu0 0.0
    %592 = vmatpush2.msra.mxu0 0.0
    %593 = vmatprep.subr.mxu0 0.0
    %594 = vmatpush2.msra.mxu0 0.0
    %595 = vmatprep.subr.mxu0 0.0
    %596 = vmatpush2.msra.mxu0 0.0
    %597 = vmatprep.subr.mxu0 0.0
    %598 = vmatpush2.msra.mxu0 0.0
    %599 = vmatprep.subr.mxu0 0.0
    %600 = vmatpush2.msra.mxu0 0.0
    %601 = vmatprep.subr.mxu0 0.0
    %602 = vmatpush2.msra.mxu0 0.0
    %603 = vmatprep.subr.mxu0 0.0
    %604 = vmatpush2.msra.mxu0 0.0
    %605 = vmatprep.subr.mxu0 0.0
    %606 = vmatpush2.msra.mxu0 0.0
    %607 = vmatprep.subr.mxu0 0.0
    %608 = vmatpush2.msra.mxu0 0.0
    %609 = vmatprep.subr.mxu0 0.0
    %610 = vmatpush2.msra.mxu0 0.0
    %611 = vmatprep.subr.mxu0 0.0
    %612 = vmatpush2.msra.mxu0 0.0
    %613 = vmatprep.subr.mxu0 0.0
    %614 = vmatpush2.msra.mxu0 0.0
    %615 = vmatprep.subr.mxu0 0.0
    %616 = vmatpush2.msra.mxu0 0.0
    %617 = vmatprep.subr.mxu0 0.0
    %618 = vmatpush2.msra.mxu0 0.0
    %619 = vmatprep.mubr.f32.mxu0 0.0
    %620 = vmatmul.mubr.f32.gmra.mxu0 %v553
    %v621 = vpop.f32.mrf.mxu0
    %v622 = vadd.f32 0.0, %v621
    %v623 = vpop.f32.mrf.mxu0
    %624 = vdwg.mxu0
    %626 = vrot.lane.b32.xlu0 %v357, 64
    %v627 = vpop.permute.xlu0 %626
    %v630 = vsel %vm525, %v547, 0
    %632 = vmatprep.subr.mxu0 0.0
    %633 = vmatpush1.msra.mxu0 0.0
    %634 = vmatprep.subr.mxu0 0.0
    %635 = vmatpush1.msra.mxu0 0.0
    %636 = vmatprep.subr.mxu0 0.0
    %637 = vmatpush1.msra.mxu0 0.0
    %638 = vmatprep.subr.mxu0 0.0
    %639 = vmatpush1.msra.mxu0 0.0
    %640 = vmatprep.subr.mxu0 0.0
    %641 = vmatpush1.msra.mxu0 0.0
    %642 = vmatprep.subr.mxu0 0.0
    %643 = vmatpush1.msra.mxu0 0.0
    %644 = vmatprep.subr.mxu0 0.0
    %645 = vmatpush1.msra.mxu0 0.0
    %646 = vmatprep.subr.mxu0 0.0
    %647 = vmatpush1.msra.mxu0 0.0
    %648 = vmatprep.subr.mxu0 0.0
    %649 = vmatpush1.msra.mxu0 0.0
    %650 = vmatprep.subr.mxu0 0.0
    %651 = vmatpush1.msra.mxu0 0.0
    %652 = vmatprep.subr.mxu0 0.0
    %653 = vmatpush1.msra.mxu0 0.0
    %654 = vmatprep.subr.mxu0 0.0
    %655 = vmatpush1.msra.mxu0 0.0
    %656 = vmatprep.subr.mxu0 0.0
    %657 = vmatpush1.msra.mxu0 0.0
    %658 = vmatprep.subr.mxu0 0.0
    %659 = vmatpush1.msra.mxu0 0.0
    %660 = vmatprep.subr.mxu0 0.0
    %661 = vmatpush1.msra.mxu0 0.0
    %662 = vmatprep.subr.mxu0 0.0
    %663 = vmatpush1.msra.mxu0 %v627
    %664 = vmatprep.subr.mxu0 0.0
    %665 = vmatpush2.msra.mxu0 0.0
    %666 = vmatprep.subr.mxu0 0.0
    %667 = vmatpush2.msra.mxu0 0.0
    %668 = vmatprep.subr.mxu0 0.0
    %669 = vmatpush2.msra.mxu0 0.0
    %670 = vmatprep.subr.mxu0 0.0
    %671 = vmatpush2.msra.mxu0 0.0
    %672 = vmatprep.subr.mxu0 0.0
    %673 = vmatpush2.msra.mxu0 0.0
    %674 = vmatprep.subr.mxu0 0.0
    %675 = vmatpush2.msra.mxu0 0.0
    %676 = vmatprep.subr.mxu0 0.0
    %677 = vmatpush2.msra.mxu0 0.0
    %678 = vmatprep.subr.mxu0 0.0
    %679 = vmatpush2.msra.mxu0 0.0
    %680 = vmatprep.subr.mxu0 0.0
    %681 = vmatpush2.msra.mxu0 0.0
    %682 = vmatprep.subr.mxu0 0.0
    %683 = vmatpush2.msra.mxu0 0.0
    %684 = vmatprep.subr.mxu0 0.0
    %685 = vmatpush2.msra.mxu0 0.0
    %686 = vmatprep.subr.mxu0 0.0
    %687 = vmatpush2.msra.mxu0 0.0
    %688 = vmatprep.subr.mxu0 0.0
    %689 = vmatpush2.msra.mxu0 0.0
    %690 = vmatprep.subr.mxu0 0.0
    %691 = vmatpush2.msra.mxu0 0.0
    %692 = vmatprep.subr.mxu0 0.0
    %693 = vmatpush2.msra.mxu0 0.0
    %694 = vmatprep.subr.mxu0 0.0
    %695 = vmatpush2.msra.mxu0 0.0
    %696 = vmatprep.mubr.f32.mxu0 0.0
    %697 = vmatmul.mubr.f32.gmra.mxu0 %v630
    %v698 = vpop.f32.mrf.mxu0
    %v699 = vadd.f32 0.0, %v698
    %v700 = vpop.f32.mrf.mxu0
    %701 = vdwg.mxu0
    %702 = vrot.lane.b32.xlu0 %v336, 124
    %v703 = vpop.permute.xlu0 %702
    %704 = vrot.lane.b32.xlu0 %v346, 92
    %v705 = vpop.permute.xlu0 %704
    %v706 = vsel %vm371, %v703, 0
    %v708 = vsel %vm371, %v705, 0
    %710 = vmatprep.subr.mxu0 0.0
    %711 = vmatpush1.xpose.msra.mxu0 0.0
    %712 = vmatprep.subr.mxu0 0.0
    %713 = vmatpush1.xpose.msra.mxu0 0.0
    %714 = vmatprep.subr.mxu0 0.0
    %715 = vmatpush1.xpose.msra.mxu0 0.0
    %716 = vmatprep.subr.mxu0 0.0
    %717 = vmatpush1.xpose.msra.mxu0 0.0
    %718 = vmatprep.subr.mxu0 0.0
    %719 = vmatpush1.xpose.msra.mxu0 0.0
    %720 = vmatprep.subr.mxu0 0.0
    %721 = vmatpush1.xpose.msra.mxu0 0.0
    %722 = vmatprep.subr.mxu0 0.0
    %723 = vmatpush1.xpose.msra.mxu0 0.0
    %724 = vmatprep.subr.mxu0 0.0
    %725 = vmatpush1.xpose.msra.mxu0 0.0
    %726 = vmatprep.subr.mxu0 0.0
    %727 = vmatpush1.xpose.msra.mxu0 0.0
    %728 = vmatprep.subr.mxu0 0.0
    %729 = vmatpush1.xpose.msra.mxu0 0.0
    %730 = vmatprep.subr.mxu0 0.0
    %731 = vmatpush1.xpose.msra.mxu0 0.0
    %732 = vmatprep.subr.mxu0 0.0
    %733 = vmatpush1.xpose.msra.mxu0 0.0
    %734 = vmatprep.subr.mxu0 0.0
    %735 = vmatpush1.xpose.msra.mxu0 0.0
    %736 = vmatprep.subr.mxu0 0.0
    %737 = vmatpush1.xpose.msra.mxu0 0.0
    %738 = vmatprep.subr.mxu0 0.0
    %739 = vmatpush1.xpose.msra.mxu0 0.0
    %740 = vmatprep.subr.mxu0 0.0
    %741 = vmatpush1.xpose.msra.mxu0 %v708
    %742 = vmatprep.subr.mxu0 0.0
    %743 = vmatpush2.xpose.msra.mxu0 0.0
    %744 = vmatprep.subr.mxu0 0.0
    %745 = vmatpush2.xpose.msra.mxu0 0.0
    %746 = vmatprep.subr.mxu0 0.0
    %747 = vmatpush2.xpose.msra.mxu0 0.0
    %748 = vmatprep.subr.mxu0 0.0
    %749 = vmatpush2.xpose.msra.mxu0 0.0
    %750 = vmatprep.subr.mxu0 0.0
    %751 = vmatpush2.xpose.msra.mxu0 0.0
    %752 = vmatprep.subr.mxu0 0.0
    %753 = vmatpush2.xpose.msra.mxu0 0.0
    %754 = vmatprep.subr.mxu0 0.0
    %755 = vmatpush2.xpose.msra.mxu0 0.0
    %756 = vmatprep.subr.mxu0 0.0
    %757 = vmatpush2.xpose.msra.mxu0 0.0
    %758 = vmatprep.subr.mxu0 0.0
    %759 = vmatpush2.xpose.msra.mxu0 0.0
    %760 = vmatprep.subr.mxu0 0.0
    %761 = vmatpush2.xpose.msra.mxu0 0.0
    %762 = vmatprep.subr.mxu0 0.0
    %763 = vmatpush2.xpose.msra.mxu0 0.0
    %764 = vmatprep.subr.mxu0 0.0
    %765 = vmatpush2.xpose.msra.mxu0 0.0
    %766 = vmatprep.subr.mxu0 0.0
    %767 = vmatpush2.xpose.msra.mxu0 0.0
    %768 = vmatprep.subr.mxu0 0.0
    %769 = vmatpush2.xpose.msra.mxu0 0.0
    %770 = vmatprep.subr.mxu0 0.0
    %771 = vmatpush2.xpose.msra.mxu0 0.0
    %772 = vmatprep.subr.mxu0 0.0
    %773 = vmatpush2.xpose.msra.mxu0 0.0
    %774 = vmatprep.mubr.f32.mxu0 0.0
    %775 = vmatmul.mubr.f32.gmra.mxu0 %v706
    %v776 = vpop.f32.mrf.mxu0
    %v777 = vadd.f32 %v361, %v776
    %v778 = vpop.f32.mrf.mxu0
    %779 = vdwg.mxu0
    %780 = vrot.lane.b32.xlu0 %v337, 124
    %v781 = vpop.permute.xlu0 %780
    %782 = vrot.lane.b32.xlu0 %v347, 92
    %v783 = vpop.permute.xlu0 %782
    %v784 = vsel %vm371, %v781, 0
    %v786 = vsel %vm371, %v783, 0
    %788 = vmatprep.subr.mxu0 0.0
    %789 = vmatpush1.xpose.msra.mxu0 0.0
    %790 = vmatprep.subr.mxu0 0.0
    %791 = vmatpush1.xpose.msra.mxu0 0.0
    %792 = vmatprep.subr.mxu0 0.0
    %793 = vmatpush1.xpose.msra.mxu0 0.0
    %794 = vmatprep.subr.mxu0 0.0
    %795 = vmatpush1.xpose.msra.mxu0 0.0
    %796 = vmatprep.subr.mxu0 0.0
    %797 = vmatpush1.xpose.msra.mxu0 0.0
    %798 = vmatprep.subr.mxu0 0.0
    %799 = vmatpush1.xpose.msra.mxu0 0.0
    %800 = vmatprep.subr.mxu0 0.0
    %801 = vmatpush1.xpose.msra.mxu0 0.0
    %802 = vmatprep.subr.mxu0 0.0
    %803 = vmatpush1.xpose.msra.mxu0 0.0
    %804 = vmatprep.subr.mxu0 0.0
    %805 = vmatpush1.xpose.msra.mxu0 0.0
    %806 = vmatprep.subr.mxu0 0.0
    %807 = vmatpush1.xpose.msra.mxu0 0.0
    %808 = vmatprep.subr.mxu0 0.0
    %809 = vmatpush1.xpose.msra.mxu0 0.0
    %810 = vmatprep.subr.mxu0 0.0
    %811 = vmatpush1.xpose.msra.mxu0 0.0
    %812 = vmatprep.subr.mxu0 0.0
    %813 = vmatpush1.xpose.msra.mxu0 0.0
    %814 = vmatprep.subr.mxu0 0.0
    %815 = vmatpush1.xpose.msra.mxu0 0.0
    %816 = vmatprep.subr.mxu0 0.0
    %817 = vmatpush1.xpose.msra.mxu0 0.0
    %818 = vmatprep.subr.mxu0 0.0
    %819 = vmatpush1.xpose.msra.mxu0 %v786
    %820 = vmatprep.subr.mxu0 0.0
    %821 = vmatpush2.xpose.msra.mxu0 0.0
    %822 = vmatprep.subr.mxu0 0.0
    %823 = vmatpush2.xpose.msra.mxu0 0.0
    %824 = vmatprep.subr.mxu0 0.0
    %825 = vmatpush2.xpose.msra.mxu0 0.0
    %826 = vmatprep.subr.mxu0 0.0
    %827 = vmatpush2.xpose.msra.mxu0 0.0
    %828 = vmatprep.subr.mxu0 0.0
    %829 = vmatpush2.xpose.msra.mxu0 0.0
    %830 = vmatprep.subr.mxu0 0.0
    %831 = vmatpush2.xpose.msra.mxu0 0.0
    %832 = vmatprep.subr.mxu0 0.0
    %833 = vmatpush2.xpose.msra.mxu0 0.0
    %834 = vmatprep.subr.mxu0 0.0
    %835 = vmatpush2.xpose.msra.mxu0 0.0
    %836 = vmatprep.subr.mxu0 0.0
    %837 = vmatpush2.xpose.msra.mxu0 0.0
    %838 = vmatprep.subr.mxu0 0.0
    %839 = vmatpush2.xpose.msra.mxu0 0.0
    %840 = vmatprep.subr.mxu0 0.0
    %841 = vmatpush2.xpose.msra.mxu0 0.0
    %842 = vmatprep.subr.mxu0 0.0
    %843 = vmatpush2.xpose.msra.mxu0 0.0
    %844 = vmatprep.subr.mxu0 0.0
    %845 = vmatpush2.xpose.msra.mxu0 0.0
    %846 = vmatprep.subr.mxu0 0.0
    %847 = vmatpush2.xpose.msra.mxu0 0.0
    %848 = vmatprep.subr.mxu0 0.0
    %849 = vmatpush2.xpose.msra.mxu0 0.0
    %850 = vmatprep.subr.mxu0 0.0
    %851 = vmatpush2.xpose.msra.mxu0 0.0
    %852 = vmatprep.mubr.f32.mxu0 0.0
    %853 = vmatmul.mubr.f32.gmra.mxu0 %v784
    %v854 = vpop.f32.mrf.mxu0
    %v855 = vadd.f32 %v365, %v854
    %v856 = vpop.f32.mrf.mxu0
    %857 = vdwg.mxu0
    %v858 = vsel %vm525, %v777, -inf
    %859 = vmax.xlane.f32.xlu0 %v858
    %v860 = vpop.xlane.xlu0 %859
    %v861 = vsel %vm525, %v855, -inf
    %862 = vmax.xlane.f32.xlu0 %v861
    %v863 = vpop.xlane.xlu0 %862
    %v864 = vsub.f32 %v777, %v860
    %v865 = vsub.f32 %v855, %v863
    %v866 = vmul.f32 %v864, 1.442695
    %v867 = vpow.pop %v866
    %v868 = vmul.f32 %v865, 1.442695
    %v869 = vpow.pop %v868
    %v870 = vsel %vm525, %v867, 0.0
    %871 = vadd.xlane.f32.xlu0 %v870
    %v872 = vpop.xlane.xlu0 %871
    %v873 = vsel %vm525, %v869, 0.0
    %874 = vadd.xlane.f32.xlu0 %v873
    %v875 = vpop.xlane.xlu0 %874
    %v876 = vrcp.pop %v872
    %v877 = vrcp.pop %v875
    %v878 = vmul.f32 %v867, %v876
    %v879 = vmul.f32 %v869, %v877
    %880 = vrot.lane.b32.xlu0 %v356, 60
    %v881 = vpop.permute.xlu0 %880
    %v884 = vsel %vm525, %v878, 0
    %886 = vmatprep.subr.mxu0 0.0
    %887 = vmatpush1.msra.mxu0 0.0
    %888 = vmatprep.subr.mxu0 0.0
    %889 = vmatpush1.msra.mxu0 0.0
    %890 = vmatprep.subr.mxu0 0.0
    %891 = vmatpush1.msra.mxu0 0.0
    %892 = vmatprep.subr.mxu0 0.0
    %893 = vmatpush1.msra.mxu0 0.0
    %894 = vmatprep.subr.mxu0 0.0
    %895 = vmatpush1.msra.mxu0 0.0
    %896 = vmatprep.subr.mxu0 0.0
    %897 = vmatpush1.msra.mxu0 0.0
    %898 = vmatprep.subr.mxu0 0.0
    %899 = vmatpush1.msra.mxu0 0.0
    %900 = vmatprep.subr.mxu0 0.0
    %901 = vmatpush1.msra.mxu0 0.0
    %902 = vmatprep.subr.mxu0 0.0
    %903 = vmatpush1.msra.mxu0 0.0
    %904 = vmatprep.subr.mxu0 0.0
    %905 = vmatpush1.msra.mxu0 0.0
    %906 = vmatprep.subr.mxu0 0.0
    %907 = vmatpush1.msra.mxu0 0.0
    %908 = vmatprep.subr.mxu0 0.0
    %909 = vmatpush1.msra.mxu0 0.0
    %910 = vmatprep.subr.mxu0 0.0
    %911 = vmatpush1.msra.mxu0 0.0
    %912 = vmatprep.subr.mxu0 0.0
    %913 = vmatpush1.msra.mxu0 0.0
    %914 = vmatprep.subr.mxu0 0.0
    %915 = vmatpush1.msra.mxu0 0.0
    %916 = vmatprep.subr.mxu0 0.0
    %917 = vmatpush1.msra.mxu0 %v881
    %918 = vmatprep.subr.mxu0 0.0
    %919 = vmatpush2.msra.mxu0 0.0
    %920 = vmatprep.subr.mxu0 0.0
    %921 = vmatpush2.msra.mxu0 0.0
    %922 = vmatprep.subr.mxu0 0.0
    %923 = vmatpush2.msra.mxu0 0.0
    %924 = vmatprep.subr.mxu0 0.0
    %925 = vmatpush2.msra.mxu0 0.0
    %926 = vmatprep.subr.mxu0 0.0
    %927 = vmatpush2.msra.mxu0 0.0
    %928 = vmatprep.subr.mxu0 0.0
    %929 = vmatpush2.msra.mxu0 0.0
    %930 = vmatprep.subr.mxu0 0.0
    %931 = vmatpush2.msra.mxu0 0.0
    %932 = vmatprep.subr.mxu0 0.0
    %933 = vmatpush2.msra.mxu0 0.0
    %934 = vmatprep.subr.mxu0 0.0
    %935 = vmatpush2.msra.mxu0 0.0
    %936 = vmatprep.subr.mxu0 0.0
    %937 = vmatpush2.msra.mxu0 0.0
    %938 = vmatprep.subr.mxu0 0.0
    %939 = vmatpush2.msra.mxu0 0.0
    %940 = vmatprep.subr.mxu0 0.0
    %941 = vmatpush2.msra.mxu0 0.0
    %942 = vmatprep.subr.mxu0 0.0
    %943 = vmatpush2.msra.mxu0 0.0
    %944 = vmatprep.subr.mxu0 0.0
    %945 = vmatpush2.msra.mxu0 0.0
    %946 = vmatprep.subr.mxu0 0.0
    %947 = vmatpush2.msra.mxu0 0.0
    %948 = vmatprep.subr.mxu0 0.0
    %949 = vmatpush2.msra.mxu0 0.0
    %950 = vmatprep.mubr.f32.mxu0 0.0
    %951 = vmatmul.mubr.f32.gmra.mxu0 %v884
    %v952 = vpop.f32.mrf.mxu0
    %v953 = vadd.f32 0.0, %v952
    %v954 = vpop.f32.mrf.mxu0
    %955 = vdwg.mxu0
    %956 = vrot.lane.b32.xlu0 %v357, 60
    %v957 = vpop.permute.xlu0 %956
    %v960 = vsel %vm525, %v879, 0
    %962 = vmatprep.subr.mxu0 0.0
    %963 = vmatpush1.msra.mxu0 0.0
    %964 = vmatprep.subr.mxu0 0.0
    %965 = vmatpush1.msra.mxu0 0.0
    %966 = vmatprep.subr.mxu0 0.0
    %967 = vmatpush1.msra.mxu0 0.0
    %968 = vmatprep.subr.mxu0 0.0
    %969 = vmatpush1.msra.mxu0 0.0
    %970 = vmatprep.subr.mxu0 0.0
    %971 = vmatpush1.msra.mxu0 0.0
    %972 = vmatprep.subr.mxu0 0.0
    %973 = vmatpush1.msra.mxu0 0.0
    %974 = vmatprep.subr.mxu0 0.0
    %975 = vmatpush1.msra.mxu0 0.0
    %976 = vmatprep.subr.mxu0 0.0
    %977 = vmatpush1.msra.mxu0 0.0
    %978 = vmatprep.subr.mxu0 0.0
    %979 = vmatpush1.msra.mxu0 0.0
    %980 = vmatprep.subr.mxu0 0.0
    %981 = vmatpush1.msra.mxu0 0.0
    %982 = vmatprep.subr.mxu0 0.0
    %983 = vmatpush1.msra.mxu0 0.0
    %984 = vmatprep.subr.mxu0 0.0
    %985 = vmatpush1.msra.mxu0 0.0
    %986 = vmatprep.subr.mxu0 0.0
    %987 = vmatpush1.msra.mxu0 0.0
    %988 = vmatprep.subr.mxu0 0.0
    %989 = vmatpush1.msra.mxu0 0.0
    %990 = vmatprep.subr.mxu0 0.0
    %991 = vmatpush1.msra.mxu0 0.0
    %992 = vmatprep.subr.mxu0 0.0
    %993 = vmatpush1.msra.mxu0 %v957
    %994 = vmatprep.subr.mxu0 0.0
    %995 = vmatpush2.msra.mxu0 0.0
    %996 = vmatprep.subr.mxu0 0.0
    %997 = vmatpush2.msra.mxu0 0.0
    %998 = vmatprep.subr.mxu0 0.0
    %999 = vmatpush2.msra.mxu0 0.0
    %1000 = vmatprep.subr.mxu0 0.0
    %1001 = vmatpush2.msra.mxu0 0.0
    %1002 = vmatprep.subr.mxu0 0.0
    %1003 = vmatpush2.msra.mxu0 0.0
    %1004 = vmatprep.subr.mxu0 0.0
    %1005 = vmatpush2.msra.mxu0 0.0
    %1006 = vmatprep.subr.mxu0 0.0
    %1007 = vmatpush2.msra.mxu0 0.0
    %1008 = vmatprep.subr.mxu0 0.0
    %1009 = vmatpush2.msra.mxu0 0.0
    %1010 = vmatprep.subr.mxu0 0.0
    %1011 = vmatpush2.msra.mxu0 0.0
    %1012 = vmatprep.subr.mxu0 0.0
    %1013 = vmatpush2.msra.mxu0 0.0
    %1014 = vmatprep.subr.mxu0 0.0
    %1015 = vmatpush2.msra.mxu0 0.0
    %1016 = vmatprep.subr.mxu0 0.0
    %1017 = vmatpush2.msra.mxu0 0.0
    %1018 = vmatprep.subr.mxu0 0.0
    %1019 = vmatpush2.msra.mxu0 0.0
    %1020 = vmatprep.subr.mxu0 0.0
    %1021 = vmatpush2.msra.mxu0 0.0
    %1022 = vmatprep.subr.mxu0 0.0
    %1023 = vmatpush2.msra.mxu0 0.0
    %1024 = vmatprep.subr.mxu0 0.0
    %1025 = vmatpush2.msra.mxu0 0.0
    %1026 = vmatprep.mubr.f32.mxu0 0.0
    %1027 = vmatmul.mubr.f32.gmra.mxu0 %v960
    %v1028 = vpop.f32.mrf.mxu0
    %v1029 = vadd.f32 0.0, %v1028
    %v1030 = vpop.f32.mrf.mxu0
    %1031 = vdwg.mxu0
    %1032 = vrot.lane.b32.xlu0 %v336, 120
    %v1033 = vpop.permute.xlu0 %1032
    %1034 = vrot.lane.b32.xlu0 %v346, 88
    %v1035 = vpop.permute.xlu0 %1034
    %v1036 = vsel %vm371, %v1033, 0
    %v1038 = vsel %vm371, %v1035, 0
    %1040 = vmatprep.subr.mxu0 0.0
    %1041 = vmatpush1.xpose.msra.mxu0 0.0
    %1042 = vmatprep.subr.mxu0 0.0
    %1043 = vmatpush1.xpose.msra.mxu0 0.0
    %1044 = vmatprep.subr.mxu0 0.0
    %1045 = vmatpush1.xpose.msra.mxu0 0.0
    %1046 = vmatprep.subr.mxu0 0.0
    %1047 = vmatpush1.xpose.msra.mxu0 0.0
    %1048 = vmatprep.subr.mxu0 0.0
    %1049 = vmatpush1.xpose.msra.mxu0 0.0
    %1050 = vmatprep.subr.mxu0 0.0
    %1051 = vmatpush1.xpose.msra.mxu0 0.0
    %1052 = vmatprep.subr.mxu0 0.0
    %1053 = vmatpush1.xpose.msra.mxu0 0.0
    %1054 = vmatprep.subr.mxu0 0.0
    %1055 = vmatpush1.xpose.msra.mxu0 0.0
    %1056 = vmatprep.subr.mxu0 0.0
    %1057 = vmatpush1.xpose.msra.mxu0 0.0
    %1058 = vmatprep.subr.mxu0 0.0
    %1059 = vmatpush1.xpose.msra.mxu0 0.0
    %1060 = vmatprep.subr.mxu0 0.0
    %1061 = vmatpush1.xpose.msra.mxu0 0.0
    %1062 = vmatprep.subr.mxu0 0.0
    %1063 = vmatpush1.xpose.msra.mxu0 0.0
    %1064 = vmatprep.subr.mxu0 0.0
    %1065 = vmatpush1.xpose.msra.mxu0 0.0
    %1066 = vmatprep.subr.mxu0 0.0
    %1067 = vmatpush1.xpose.msra.mxu0 0.0
    %1068 = vmatprep.subr.mxu0 0.0
    %1069 = vmatpush1.xpose.msra.mxu0 0.0
    %1070 = vmatprep.subr.mxu0 0.0
    %1071 = vmatpush1.xpose.msra.mxu0 %v1038
    %1072 = vmatprep.subr.mxu0 0.0
    %1073 = vmatpush2.xpose.msra.mxu0 0.0
    %1074 = vmatprep.subr.mxu0 0.0
    %1075 = vmatpush2.xpose.msra.mxu0 0.0
    %1076 = vmatprep.subr.mxu0 0.0
    %1077 = vmatpush2.xpose.msra.mxu0 0.0
    %1078 = vmatprep.subr.mxu0 0.0
    %1079 = vmatpush2.xpose.msra.mxu0 0.0
    %1080 = vmatprep.subr.mxu0 0.0
    %1081 = vmatpush2.xpose.msra.mxu0 0.0
    %1082 = vmatprep.subr.mxu0 0.0
    %1083 = vmatpush2.xpose.msra.mxu0 0.0
    %1084 = vmatprep.subr.mxu0 0.0
    %1085 = vmatpush2.xpose.msra.mxu0 0.0
    %1086 = vmatprep.subr.mxu0 0.0
    %1087 = vmatpush2.xpose.msra.mxu0 0.0
    %1088 = vmatprep.subr.mxu0 0.0
    %1089 = vmatpush2.xpose.msra.mxu0 0.0
    %1090 = vmatprep.subr.mxu0 0.0
    %1091 = vmatpush2.xpose.msra.mxu0 0.0
    %1092 = vmatprep.subr.mxu0 0.0
    %1093 = vmatpush2.xpose.msra.mxu0 0.0
    %1094 = vmatprep.subr.mxu0 0.0
    %1095 = vmatpush2.xpose.msra.mxu0 0.0
    %1096 = vmatprep.subr.mxu0 0.0
    %1097 = vmatpush2.xpose.msra.mxu0 0.0
    %1098 = vmatprep.subr.mxu0 0.0
    %1099 = vmatpush2.xpose.msra.mxu0 0.0
    %1100 = vmatprep.subr.mxu0 0.0
    %1101 = vmatpush2.xpose.msra.mxu0 0.0
    %1102 = vmatprep.subr.mxu0 0.0
    %1103 = vmatpush2.xpose.msra.mxu0 0.0
    %1104 = vmatprep.mubr.f32.mxu0 0.0
    %1105 = vmatmul.mubr.f32.gmra.mxu0 %v1036
    %v1106 = vpop.f32.mrf.mxu0
    %v1107 = vadd.f32 %v361, %v1106
    %v1108 = vpop.f32.mrf.mxu0
    %1109 = vdwg.mxu0
    %1110 = vrot.lane.b32.xlu0 %v337, 120
    %v1111 = vpop.permute.xlu0 %1110
    %1112 = vrot.lane.b32.xlu0 %v347, 88
    %v1113 = vpop.permute.xlu0 %1112
    %v1114 = vsel %vm371, %v1111, 0
    %v1116 = vsel %vm371, %v1113, 0
    %1118 = vmatprep.subr.mxu0 0.0
    %1119 = vmatpush1.xpose.msra.mxu0 0.0
    %1120 = vmatprep.subr.mxu0 0.0
    %1121 = vmatpush1.xpose.msra.mxu0 0.0
    %1122 = vmatprep.subr.mxu0 0.0
    %1123 = vmatpush1.xpose.msra.mxu0 0.0
    %1124 = vmatprep.subr.mxu0 0.0
    %1125 = vmatpush1.xpose.msra.mxu0 0.0
    %1126 = vmatprep.subr.mxu0 0.0
    %1127 = vmatpush1.xpose.msra.mxu0 0.0
    %1128 = vmatprep.subr.mxu0 0.0
    %1129 = vmatpush1.xpose.msra.mxu0 0.0
    %1130 = vmatprep.subr.mxu0 0.0
    %1131 = vmatpush1.xpose.msra.mxu0 0.0
    %1132 = vmatprep.subr.mxu0 0.0
    %1133 = vmatpush1.xpose.msra.mxu0 0.0
    %1134 = vmatprep.subr.mxu0 0.0
    %1135 = vmatpush1.xpose.msra.mxu0 0.0
    %1136 = vmatprep.subr.mxu0 0.0
    %1137 = vmatpush1.xpose.msra.mxu0 0.0
    %1138 = vmatprep.subr.mxu0 0.0
    %1139 = vmatpush1.xpose.msra.mxu0 0.0
    %1140 = vmatprep.subr.mxu0 0.0
    %1141 = vmatpush1.xpose.msra.mxu0 0.0
    %1142 = vmatprep.subr.mxu0 0.0
    %1143 = vmatpush1.xpose.msra.mxu0 0.0
    %1144 = vmatprep.subr.mxu0 0.0
    %1145 = vmatpush1.xpose.msra.mxu0 0.0
    %1146 = vmatprep.subr.mxu0 0.0
    %1147 = vmatpush1.xpose.msra.mxu0 0.0
    %1148 = vmatprep.subr.mxu0 0.0
    %1149 = vmatpush1.xpose.msra.mxu0 %v1116
    %1150 = vmatprep.subr.mxu0 0.0
    %1151 = vmatpush2.xpose.msra.mxu0 0.0
    %1152 = vmatprep.subr.mxu0 0.0
    %1153 = vmatpush2.xpose.msra.mxu0 0.0
    %1154 = vmatprep.subr.mxu0 0.0
    %1155 = vmatpush2.xpose.msra.mxu0 0.0
    %1156 = vmatprep.subr.mxu0 0.0
    %1157 = vmatpush2.xpose.msra.mxu0 0.0
    %1158 = vmatprep.subr.mxu0 0.0
    %1159 = vmatpush2.xpose.msra.mxu0 0.0
    %1160 = vmatprep.subr.mxu0 0.0
    %1161 = vmatpush2.xpose.msra.mxu0 0.0
    %1162 = vmatprep.subr.mxu0 0.0
    %1163 = vmatpush2.xpose.msra.mxu0 0.0
    %1164 = vmatprep.subr.mxu0 0.0
    %1165 = vmatpush2.xpose.msra.mxu0 0.0
    %1166 = vmatprep.subr.mxu0 0.0
    %1167 = vmatpush2.xpose.msra.mxu0 0.0
    %1168 = vmatprep.subr.mxu0 0.0
    %1169 = vmatpush2.xpose.msra.mxu0 0.0
    %1170 = vmatprep.subr.mxu0 0.0
    %1171 = vmatpush2.xpose.msra.mxu0 0.0
    %1172 = vmatprep.subr.mxu0 0.0
    %1173 = vmatpush2.xpose.msra.mxu0 0.0
    %1174 = vmatprep.subr.mxu0 0.0
    %1175 = vmatpush2.xpose.msra.mxu0 0.0
    %1176 = vmatprep.subr.mxu0 0.0
    %1177 = vmatpush2.xpose.msra.mxu0 0.0
    %1178 = vmatprep.subr.mxu0 0.0
    %1179 = vmatpush2.xpose.msra.mxu0 0.0
    %1180 = vmatprep.subr.mxu0 0.0
    %1181 = vmatpush2.xpose.msra.mxu0 0.0
    %1182 = vmatprep.mubr.f32.mxu0 0.0
    %1183 = vmatmul.mubr.f32.gmra.mxu0 %v1114
    %v1184 = vpop.f32.mrf.mxu0
    %v1185 = vadd.f32 %v365, %v1184
    %v1186 = vpop.f32.mrf.mxu0
    %1187 = vdwg.mxu0
    %v1188 = vsel %vm525, %v1107, -inf
    %1189 = vmax.xlane.f32.xlu0 %v1188
    %v1190 = vpop.xlane.xlu0 %1189
    %v1191 = vsel %vm525, %v1185, -inf
    %1192 = vmax.xlane.f32.xlu0 %v1191
    %v1193 = vpop.xlane.xlu0 %1192
    %v1194 = vsub.f32 %v1107, %v1190
    %v1195 = vsub.f32 %v1185, %v1193
    %v1196 = vmul.f32 %v1194, 1.442695
    %v1197 = vpow.pop %v1196
    %v1198 = vmul.f32 %v1195, 1.442695
    %v1199 = vpow.pop %v1198
    %v1200 = vsel %vm525, %v1197, 0.0
    %1201 = vadd.xlane.f32.xlu0 %v1200
    %v1202 = vpop.xlane.xlu0 %1201
    %v1203 = vsel %vm525, %v1199, 0.0
    %1204 = vadd.xlane.f32.xlu0 %v1203
    %v1205 = vpop.xlane.xlu0 %1204
    %v1206 = vrcp.pop %v1202
    %v1207 = vrcp.pop %v1205
    %v1208 = vmul.f32 %v1197, %v1206
    %v1209 = vmul.f32 %v1199, %v1207
    %1210 = vrot.lane.b32.xlu0 %v356, 56
    %v1211 = vpop.permute.xlu0 %1210
    %v1214 = vsel %vm525, %v1208, 0
    %1216 = vmatprep.subr.mxu0 0.0
    %1217 = vmatpush1.msra.mxu0 0.0
    %1218 = vmatprep.subr.mxu0 0.0
    %1219 = vmatpush1.msra.mxu0 0.0
    %1220 = vmatprep.subr.mxu0 0.0
    %1221 = vmatpush1.msra.mxu0 0.0
    %1222 = vmatprep.subr.mxu0 0.0
    %1223 = vmatpush1.msra.mxu0 0.0
    %1224 = vmatprep.subr.mxu0 0.0
    %1225 = vmatpush1.msra.mxu0 0.0
    %1226 = vmatprep.subr.mxu0 0.0
    %1227 = vmatpush1.msra.mxu0 0.0
    %1228 = vmatprep.subr.mxu0 0.0
    %1229 = vmatpush1.msra.mxu0 0.0
    %1230 = vmatprep.subr.mxu0 0.0
    %1231 = vmatpush1.msra.mxu0 0.0
    %1232 = vmatprep.subr.mxu0 0.0
    %1233 = vmatpush1.msra.mxu0 0.0
    %1234 = vmatprep.subr.mxu0 0.0
    %1235 = vmatpush1.msra.mxu0 0.0
    %1236 = vmatprep.subr.mxu0 0.0
    %1237 = vmatpush1.msra.mxu0 0.0
    %1238 = vmatprep.subr.mxu0 0.0
    %1239 = vmatpush1.msra.mxu0 0.0
    %1240 = vmatprep.subr.mxu0 0.0
    %1241 = vmatpush1.msra.mxu0 0.0
    %1242 = vmatprep.subr.mxu0 0.0
    %1243 = vmatpush1.msra.mxu0 0.0
    %1244 = vmatprep.subr.mxu0 0.0
    %1245 = vmatpush1.msra.mxu0 0.0
    %1246 = vmatprep.subr.mxu0 0.0
    %1247 = vmatpush1.msra.mxu0 %v1211
    %1248 = vmatprep.subr.mxu0 0.0
    %1249 = vmatpush2.msra.mxu0 0.0
    %1250 = vmatprep.subr.mxu0 0.0
    %1251 = vmatpush2.msra.mxu0 0.0
    %1252 = vmatprep.subr.mxu0 0.0
    %1253 = vmatpush2.msra.mxu0 0.0
    %1254 = vmatprep.subr.mxu0 0.0
    %1255 = vmatpush2.msra.mxu0 0.0
    %1256 = vmatprep.subr.mxu0 0.0
    %1257 = vmatpush2.msra.mxu0 0.0
    %1258 = vmatprep.subr.mxu0 0.0
    %1259 = vmatpush2.msra.mxu0 0.0
    %1260 = vmatprep.subr.mxu0 0.0
    %1261 = vmatpush2.msra.mxu0 0.0
    %1262 = vmatprep.subr.mxu0 0.0
    %1263 = vmatpush2.msra.mxu0 0.0
    %1264 = vmatprep.subr.mxu0 0.0
    %1265 = vmatpush2.msra.mxu0 0.0
    %1266 = vmatprep.subr.mxu0 0.0
    %1267 = vmatpush2.msra.mxu0 0.0
    %1268 = vmatprep.subr.mxu0 0.0
    %1269 = vmatpush2.msra.mxu0 0.0
    %1270 = vmatprep.subr.mxu0 0.0
    %1271 = vmatpush2.msra.mxu0 0.0
    %1272 = vmatprep.subr.mxu0 0.0
    %1273 = vmatpush2.msra.mxu0 0.0
    %1274 = vmatprep.subr.mxu0 0.0
    %1275 = vmatpush2.msra.mxu0 0.0
    %1276 = vmatprep.subr.mxu0 0.0
    %1277 = vmatpush2.msra.mxu0 0.0
    %1278 = vmatprep.subr.mxu0 0.0
    %1279 = vmatpush2.msra.mxu0 0.0
    %1280 = vmatprep.mubr.f32.mxu0 0.0
    %1281 = vmatmul.mubr.f32.gmra.mxu0 %v1214
    %v1282 = vpop.f32.mrf.mxu0
    %v1283 = vadd.f32 0.0, %v1282
    %v1284 = vpop.f32.mrf.mxu0
    %1285 = vdwg.mxu0
    %1286 = vrot.lane.b32.xlu0 %v357, 56
    %v1287 = vpop.permute.xlu0 %1286
    %v1290 = vsel %vm525, %v1209, 0
    %1292 = vmatprep.subr.mxu0 0.0
    %1293 = vmatpush1.msra.mxu0 0.0
    %1294 = vmatprep.subr.mxu0 0.0
    %1295 = vmatpush1.msra.mxu0 0.0
    %1296 = vmatprep.subr.mxu0 0.0
    %1297 = vmatpush1.msra.mxu0 0.0
    %1298 = vmatprep.subr.mxu0 0.0
    %1299 = vmatpush1.msra.mxu0 0.0
    %1300 = vmatprep.subr.mxu0 0.0
    %1301 = vmatpush1.msra.mxu0 0.0
    %1302 = vmatprep.subr.mxu0 0.0
    %1303 = vmatpush1.msra.mxu0 0.0
    %1304 = vmatprep.subr.mxu0 0.0
    %1305 = vmatpush1.msra.mxu0 0.0
    %1306 = vmatprep.subr.mxu0 0.0
    %1307 = vmatpush1.msra.mxu0 0.0
    %1308 = vmatprep.subr.mxu0 0.0
    %1309 = vmatpush1.msra.mxu0 0.0
    %1310 = vmatprep.subr.mxu0 0.0
    %1311 = vmatpush1.msra.mxu0 0.0
    %1312 = vmatprep.subr.mxu0 0.0
    %1313 = vmatpush1.msra.mxu0 0.0
    %1314 = vmatprep.subr.mxu0 0.0
    %1315 = vmatpush1.msra.mxu0 0.0
    %1316 = vmatprep.subr.mxu0 0.0
    %1317 = vmatpush1.msra.mxu0 0.0
    %1318 = vmatprep.subr.mxu0 0.0
    %1319 = vmatpush1.msra.mxu0 0.0
    %1320 = vmatprep.subr.mxu0 0.0
    %1321 = vmatpush1.msra.mxu0 0.0
    %1322 = vmatprep.subr.mxu0 0.0
    %1323 = vmatpush1.msra.mxu0 %v1287
    %1324 = vmatprep.subr.mxu0 0.0
    %1325 = vmatpush2.msra.mxu0 0.0
    %1326 = vmatprep.subr.mxu0 0.0
    %1327 = vmatpush2.msra.mxu0 0.0
    %1328 = vmatprep.subr.mxu0 0.0
    %1329 = vmatpush2.msra.mxu0 0.0
    %1330 = vmatprep.subr.mxu0 0.0
    %1331 = vmatpush2.msra.mxu0 0.0
    %1332 = vmatprep.subr.mxu0 0.0
    %1333 = vmatpush2.msra.mxu0 0.0
    %1334 = vmatprep.subr.mxu0 0.0
    %1335 = vmatpush2.msra.mxu0 0.0
    %1336 = vmatprep.subr.mxu0 0.0
    %1337 = vmatpush2.msra.mxu0 0.0
    %1338 = vmatprep.subr.mxu0 0.0
    %1339 = vmatpush2.msra.mxu0 0.0
    %1340 = vmatprep.subr.mxu0 0.0
    %1341 = vmatpush2.msra.mxu0 0.0
    %1342 = vmatprep.subr.mxu0 0.0
    %1343 = vmatpush2.msra.mxu0 0.0
    %1344 = vmatprep.subr.mxu0 0.0
    %1345 = vmatpush2.msra.mxu0 0.0
    %1346 = vmatprep.subr.mxu0 0.0
    %1347 = vmatpush2.msra.mxu0 0.0
    %1348 = vmatprep.subr.mxu0 0.0
    %1349 = vmatpush2.msra.mxu0 0.0
    %1350 = vmatprep.subr.mxu0 0.0
    %1351 = vmatpush2.msra.mxu0 0.0
    %1352 = vmatprep.subr.mxu0 0.0
    %1353 = vmatpush2.msra.mxu0 0.0
    %1354 = vmatprep.subr.mxu0 0.0
    %1355 = vmatpush2.msra.mxu0 0.0
    %1356 = vmatprep.mubr.f32.mxu0 0.0
    %1357 = vmatmul.mubr.f32.gmra.mxu0 %v1290
    %v1358 = vpop.f32.mrf.mxu0
    %v1359 = vadd.f32 0.0, %v1358
    %v1360 = vpop.f32.mrf.mxu0
    %1361 = vdwg.mxu0
    %1362 = vrot.lane.b32.xlu0 %v336, 116
    %v1363 = vpop.permute.xlu0 %1362
    %1364 = vrot.lane.b32.xlu0 %v346, 84
    %v1365 = vpop.permute.xlu0 %1364
    %v1366 = vsel %vm371, %v1363, 0
    %v1368 = vsel %vm371, %v1365, 0
    %1370 = vmatprep.subr.mxu0 0.0
    %1371 = vmatpush1.xpose.msra.mxu0 0.0
    %1372 = vmatprep.subr.mxu0 0.0
    %1373 = vmatpush1.xpose.msra.mxu0 0.0
    %1374 = vmatprep.subr.mxu0 0.0
    %1375 = vmatpush1.xpose.msra.mxu0 0.0
    %1376 = vmatprep.subr.mxu0 0.0
    %1377 = vmatpush1.xpose.msra.mxu0 0.0
    %1378 = vmatprep.subr.mxu0 0.0
    %1379 = vmatpush1.xpose.msra.mxu0 0.0
    %1380 = vmatprep.subr.mxu0 0.0
    %1381 = vmatpush1.xpose.msra.mxu0 0.0
    %1382 = vmatprep.subr.mxu0 0.0
    %1383 = vmatpush1.xpose.msra.mxu0 0.0
    %1384 = vmatprep.subr.mxu0 0.0
    %1385 = vmatpush1.xpose.msra.mxu0 0.0
    %1386 = vmatprep.subr.mxu0 0.0
    %1387 = vmatpush1.xpose.msra.mxu0 0.0
    %1388 = vmatprep.subr.mxu0 0.0
    %1389 = vmatpush1.xpose.msra.mxu0 0.0
    %1390 = vmatprep.subr.mxu0 0.0
    %1391 = vmatpush1.xpose.msra.mxu0 0.0
    %1392 = vmatprep.subr.mxu0 0.0
    %1393 = vmatpush1.xpose.msra.mxu0 0.0
    %1394 = vmatprep.subr.mxu0 0.0
    %1395 = vmatpush1.xpose.msra.mxu0 0.0
    %1396 = vmatprep.subr.mxu0 0.0
    %1397 = vmatpush1.xpose.msra.mxu0 0.0
    %1398 = vmatprep.subr.mxu0 0.0
    %1399 = vmatpush1.xpose.msra.mxu0 0.0
    %1400 = vmatprep.subr.mxu0 0.0
    %1401 = vmatpush1.xpose.msra.mxu0 %v1368
    %1402 = vmatprep.subr.mxu0 0.0
    %1403 = vmatpush2.xpose.msra.mxu0 0.0
    %1404 = vmatprep.subr.mxu0 0.0
    %1405 = vmatpush2.xpose.msra.mxu0 0.0
    %1406 = vmatprep.subr.mxu0 0.0
    %1407 = vmatpush2.xpose.msra.mxu0 0.0
    %1408 = vmatprep.subr.mxu0 0.0
    %1409 = vmatpush2.xpose.msra.mxu0 0.0
    %1410 = vmatprep.subr.mxu0 0.0
    %1411 = vmatpush2.xpose.msra.mxu0 0.0
    %1412 = vmatprep.subr.mxu0 0.0
    %1413 = vmatpush2.xpose.msra.mxu0 0.0
    %1414 = vmatprep.subr.mxu0 0.0
    %1415 = vmatpush2.xpose.msra.mxu0 0.0
    %1416 = vmatprep.subr.mxu0 0.0
    %1417 = vmatpush2.xpose.msra.mxu0 0.0
    %1418 = vmatprep.subr.mxu0 0.0
    %1419 = vmatpush2.xpose.msra.mxu0 0.0
    %1420 = vmatprep.subr.mxu0 0.0
    %1421 = vmatpush2.xpose.msra.mxu0 0.0
    %1422 = vmatprep.subr.mxu0 0.0
    %1423 = vmatpush2.xpose.msra.mxu0 0.0
    %1424 = vmatprep.subr.mxu0 0.0
    %1425 = vmatpush2.xpose.msra.mxu0 0.0
    %1426 = vmatprep.subr.mxu0 0.0
    %1427 = vmatpush2.xpose.msra.mxu0 0.0
    %1428 = vmatprep.subr.mxu0 0.0
    %1429 = vmatpush2.xpose.msra.mxu0 0.0
    %1430 = vmatprep.subr.mxu0 0.0
    %1431 = vmatpush2.xpose.msra.mxu0 0.0
    %1432 = vmatprep.subr.mxu0 0.0
    %1433 = vmatpush2.xpose.msra.mxu0 0.0
    %1434 = vmatprep.mubr.f32.mxu0 0.0
    %1435 = vmatmul.mubr.f32.gmra.mxu0 %v1366
    %v1436 = vpop.f32.mrf.mxu0
    %v1437 = vadd.f32 %v361, %v1436
    %v1438 = vpop.f32.mrf.mxu0
    %1439 = vdwg.mxu0
    %1440 = vrot.lane.b32.xlu0 %v337, 116
    %v1441 = vpop.permute.xlu0 %1440
    %1442 = vrot.lane.b32.xlu0 %v347, 84
    %v1443 = vpop.permute.xlu0 %1442
    %v1444 = vsel %vm371, %v1441, 0
    %v1446 = vsel %vm371, %v1443, 0
    %1448 = vmatprep.subr.mxu0 0.0
    %1449 = vmatpush1.xpose.msra.mxu0 0.0
    %1450 = vmatprep.subr.mxu0 0.0
    %1451 = vmatpush1.xpose.msra.mxu0 0.0
    %1452 = vmatprep.subr.mxu0 0.0
    %1453 = vmatpush1.xpose.msra.mxu0 0.0
    %1454 = vmatprep.subr.mxu0 0.0
    %1455 = vmatpush1.xpose.msra.mxu0 0.0
    %1456 = vmatprep.subr.mxu0 0.0
    %1457 = vmatpush1.xpose.msra.mxu0 0.0
    %1458 = vmatprep.subr.mxu0 0.0
    %1459 = vmatpush1.xpose.msra.mxu0 0.0
    %1460 = vmatprep.subr.mxu0 0.0
    %1461 = vmatpush1.xpose.msra.mxu0 0.0
    %1462 = vmatprep.subr.mxu0 0.0
    %1463 = vmatpush1.xpose.msra.mxu0 0.0
    %1464 = vmatprep.subr.mxu0 0.0
    %1465 = vmatpush1.xpose.msra.mxu0 0.0
    %1466 = vmatprep.subr.mxu0 0.0
    %1467 = vmatpush1.xpose.msra.mxu0 0.0
    %1468 = vmatprep.subr.mxu0 0.0
    %1469 = vmatpush1.xpose.msra.mxu0 0.0
    %1470 = vmatprep.subr.mxu0 0.0
    %1471 = vmatpush1.xpose.msra.mxu0 0.0
    %1472 = vmatprep.subr.mxu0 0.0
    %1473 = vmatpush1.xpose.msra.mxu0 0.0
    %1474 = vmatprep.subr.mxu0 0.0
    %1475 = vmatpush1.xpose.msra.mxu0 0.0
    %1476 = vmatprep.subr.mxu0 0.0
    %1477 = vmatpush1.xpose.msra.mxu0 0.0
    %1478 = vmatprep.subr.mxu0 0.0
    %1479 = vmatpush1.xpose.msra.mxu0 %v1446
    %1480 = vmatprep.subr.mxu0 0.0
    %1481 = vmatpush2.xpose.msra.mxu0 0.0
    %1482 = vmatprep.subr.mxu0 0.0
    %1483 = vmatpush2.xpose.msra.mxu0 0.0
    %1484 = vmatprep.subr.mxu0 0.0
    %1485 = vmatpush2.xpose.msra.mxu0 0.0
    %1486 = vmatprep.subr.mxu0 0.0
    %1487 = vmatpush2.xpose.msra.mxu0 0.0
    %1488 = vmatprep.subr.mxu0 0.0
    %1489 = vmatpush2.xpose.msra.mxu0 0.0
    %1490 = vmatprep.subr.mxu0 0.0
    %1491 = vmatpush2.xpose.msra.mxu0 0.0
    %1492 = vmatprep.subr.mxu0 0.0
    %1493 = vmatpush2.xpose.msra.mxu0 0.0
    %1494 = vmatprep.subr.mxu0 0.0
    %1495 = vmatpush2.xpose.msra.mxu0 0.0
    %1496 = vmatprep.subr.mxu0 0.0
    %1497 = vmatpush2.xpose.msra.mxu0 0.0
    %1498 = vmatprep.subr.mxu0 0.0
    %1499 = vmatpush2.xpose.msra.mxu0 0.0
    %1500 = vmatprep.subr.mxu0 0.0
    %1501 = vmatpush2.xpose.msra.mxu0 0.0
    %1502 = vmatprep.subr.mxu0 0.0
    %1503 = vmatpush2.xpose.msra.mxu0 0.0
    %1504 = vmatprep.subr.mxu0 0.0
    %1505 = vmatpush2.xpose.msra.mxu0 0.0
    %1506 = vmatprep.subr.mxu0 0.0
    %1507 = vmatpush2.xpose.msra.mxu0 0.0
    %1508 = vmatprep.subr.mxu0 0.0
    %1509 = vmatpush2.xpose.msra.mxu0 0.0
    %1510 = vmatprep.subr.mxu0 0.0
    %1511 = vmatpush2.xpose.msra.mxu0 0.0
    %1512 = vmatprep.mubr.f32.mxu0 0.0
    %1513 = vmatmul.mubr.f32.gmra.mxu0 %v1444
    %v1514 = vpop.f32.mrf.mxu0
    %v1515 = vadd.f32 %v365, %v1514
    %v1516 = vpop.f32.mrf.mxu0
    %1517 = vdwg.mxu0
    %v1518 = vsel %vm525, %v1437, -inf
    %1519 = vmax.xlane.f32.xlu0 %v1518
    %v1520 = vpop.xlane.xlu0 %1519
    %v1521 = vsel %vm525, %v1515, -inf
    %1522 = vmax.xlane.f32.xlu0 %v1521
    %v1523 = vpop.xlane.xlu0 %1522
    %v1524 = vsub.f32 %v1437, %v1520
    %v1525 = vsub.f32 %v1515, %v1523
    %v1526 = vmul.f32 %v1524, 1.442695
    %v1527 = vpow.pop %v1526
    %v1528 = vmul.f32 %v1525, 1.442695
    %v1529 = vpow.pop %v1528
    %v1530 = vsel %vm525, %v1527, 0.0
    %1531 = vadd.xlane.f32.xlu0 %v1530
    %v1532 = vpop.xlane.xlu0 %1531
    %v1533 = vsel %vm525, %v1529, 0.0
    %1534 = vadd.xlane.f32.xlu0 %v1533
    %v1535 = vpop.xlane.xlu0 %1534
    %v1536 = vrcp.pop %v1532
    %v1537 = vrcp.pop %v1535
    %v1538 = vmul.f32 %v1527, %v1536
    %v1539 = vmul.f32 %v1529, %v1537
    %1540 = vrot.lane.b32.xlu0 %v356, 52
    %v1541 = vpop.permute.xlu0 %1540
    %v1544 = vsel %vm525, %v1538, 0
    %1546 = vmatprep.subr.mxu0 0.0
    %1547 = vmatpush1.msra.mxu0 0.0
    %1548 = vmatprep.subr.mxu0 0.0
    %1549 = vmatpush1.msra.mxu0 0.0
    %1550 = vmatprep.subr.mxu0 0.0
    %1551 = vmatpush1.msra.mxu0 0.0
    %1552 = vmatprep.subr.mxu0 0.0
    %1553 = vmatpush1.msra.mxu0 0.0
    %1554 = vmatprep.subr.mxu0 0.0
    %1555 = vmatpush1.msra.mxu0 0.0
    %1556 = vmatprep.subr.mxu0 0.0
    %1557 = vmatpush1.msra.mxu0 0.0
    %1558 = vmatprep.subr.mxu0 0.0
    %1559 = vmatpush1.msra.mxu0 0.0
    %1560 = vmatprep.subr.mxu0 0.0
    %1561 = vmatpush1.msra.mxu0 0.0
    %1562 = vmatprep.subr.mxu0 0.0
    %1563 = vmatpush1.msra.mxu0 0.0
    %1564 = vmatprep.subr.mxu0 0.0
    %1565 = vmatpush1.msra.mxu0 0.0
    %1566 = vmatprep.subr.mxu0 0.0
    %1567 = vmatpush1.msra.mxu0 0.0
    %1568 = vmatprep.subr.mxu0 0.0
    %1569 = vmatpush1.msra.mxu0 0.0
    %1570 = vmatprep.subr.mxu0 0.0
    %1571 = vmatpush1.msra.mxu0 0.0
    %1572 = vmatprep.subr.mxu0 0.0
    %1573 = vmatpush1.msra.mxu0 0.0
    %1574 = vmatprep.subr.mxu0 0.0
    %1575 = vmatpush1.msra.mxu0 0.0
    %1576 = vmatprep.subr.mxu0 0.0
    %1577 = vmatpush1.msra.mxu0 %v1541
    %1578 = vmatprep.subr.mxu0 0.0
    %1579 = vmatpush2.msra.mxu0 0.0
    %1580 = vmatprep.subr.mxu0 0.0
    %1581 = vmatpush2.msra.mxu0 0.0
    %1582 = vmatprep.subr.mxu0 0.0
    %1583 = vmatpush2.msra.mxu0 0.0
    %1584 = vmatprep.subr.mxu0 0.0
    %1585 = vmatpush2.msra.mxu0 0.0
    %1586 = vmatprep.subr.mxu0 0.0
    %1587 = vmatpush2.msra.mxu0 0.0
    %1588 = vmatprep.subr.mxu0 0.0
    %1589 = vmatpush2.msra.mxu0 0.0
    %1590 = vmatprep.subr.mxu0 0.0
    %1591 = vmatpush2.msra.mxu0 0.0
    %1592 = vmatprep.subr.mxu0 0.0
    %1593 = vmatpush2.msra.mxu0 0.0
    %1594 = vmatprep.subr.mxu0 0.0
    %1595 = vmatpush2.msra.mxu0 0.0
    %1596 = vmatprep.subr.mxu0 0.0
    %1597 = vmatpush2.msra.mxu0 0.0
    %1598 = vmatprep.subr.mxu0 0.0
    %1599 = vmatpush2.msra.mxu0 0.0
    %1600 = vmatprep.subr.mxu0 0.0
    %1601 = vmatpush2.msra.mxu0 0.0
    %1602 = vmatprep.subr.mxu0 0.0
    %1603 = vmatpush2.msra.mxu0 0.0
    %1604 = vmatprep.subr.mxu0 0.0
    %1605 = vmatpush2.msra.mxu0 0.0
    %1606 = vmatprep.subr.mxu0 0.0
    %1607 = vmatpush2.msra.mxu0 0.0
    %1608 = vmatprep.subr.mxu0 0.0
    %1609 = vmatpush2.msra.mxu0 0.0
    %1610 = vmatprep.mubr.f32.mxu0 0.0
    %1611 = vmatmul.mubr.f32.gmra.mxu0 %v1544
    %v1612 = vpop.f32.mrf.mxu0
    %v1613 = vadd.f32 0.0, %v1612
    %v1614 = vpop.f32.mrf.mxu0
    %1615 = vdwg.mxu0
    %1616 = vrot.lane.b32.xlu0 %v357, 52
    %v1617 = vpop.permute.xlu0 %1616
    %v1620 = vsel %vm525, %v1539, 0
    %1622 = vmatprep.subr.mxu0 0.0
    %1623 = vmatpush1.msra.mxu0 0.0
    %1624 = vmatprep.subr.mxu0 0.0
    %1625 = vmatpush1.msra.mxu0 0.0
    %1626 = vmatprep.subr.mxu0 0.0
    %1627 = vmatpush1.msra.mxu0 0.0
    %1628 = vmatprep.subr.mxu0 0.0
    %1629 = vmatpush1.msra.mxu0 0.0
    %1630 = vmatprep.subr.mxu0 0.0
    %1631 = vmatpush1.msra.mxu0 0.0
    %1632 = vmatprep.subr.mxu0 0.0
    %1633 = vmatpush1.msra.mxu0 0.0
    %1634 = vmatprep.subr.mxu0 0.0
    %1635 = vmatpush1.msra.mxu0 0.0
    %1636 = vmatprep.subr.mxu0 0.0
    %1637 = vmatpush1.msra.mxu0 0.0
    %1638 = vmatprep.subr.mxu0 0.0
    %1639 = vmatpush1.msra.mxu0 0.0
    %1640 = vmatprep.subr.mxu0 0.0
    %1641 = vmatpush1.msra.mxu0 0.0
    %1642 = vmatprep.subr.mxu0 0.0
    %1643 = vmatpush1.msra.mxu0 0.0
    %1644 = vmatprep.subr.mxu0 0.0
    %1645 = vmatpush1.msra.mxu0 0.0
    %1646 = vmatprep.subr.mxu0 0.0
    %1647 = vmatpush1.msra.mxu0 0.0
    %1648 = vmatprep.subr.mxu0 0.0
    %1649 = vmatpush1.msra.mxu0 0.0
    %1650 = vmatprep.subr.mxu0 0.0
    %1651 = vmatpush1.msra.mxu0 0.0
    %1652 = vmatprep.subr.mxu0 0.0
    %1653 = vmatpush1.msra.mxu0 %v1617
    %1654 = vmatprep.subr.mxu0 0.0
    %1655 = vmatpush2.msra.mxu0 0.0
    %1656 = vmatprep.subr.mxu0 0.0
    %1657 = vmatpush2.msra.mxu0 0.0
    %1658 = vmatprep.subr.mxu0 0.0
    %1659 = vmatpush2.msra.mxu0 0.0
    %1660 = vmatprep.subr.mxu0 0.0
    %1661 = vmatpush2.msra.mxu0 0.0
    %1662 = vmatprep.subr.mxu0 0.0
    %1663 = vmatpush2.msra.mxu0 0.0
    %1664 = vmatprep.subr.mxu0 0.0
    %1665 = vmatpush2.msra.mxu0 0.0
    %1666 = vmatprep.subr.mxu0 0.0
    %1667 = vmatpush2.msra.mxu0 0.0
    %1668 = vmatprep.subr.mxu0 0.0
    %1669 = vmatpush2.msra.mxu0 0.0
    %1670 = vmatprep.subr.mxu0 0.0
    %1671 = vmatpush2.msra.mxu0 0.0
    %1672 = vmatprep.subr.mxu0 0.0
    %1673 = vmatpush2.msra.mxu0 0.0
    %1674 = vmatprep.subr.mxu0 0.0
    %1675 = vmatpush2.msra.mxu0 0.0
    %1676 = vmatprep.subr.mxu0 0.0
    %1677 = vmatpush2.msra.mxu0 0.0
    %1678 = vmatprep.subr.mxu0 0.0
    %1679 = vmatpush2.msra.mxu0 0.0
    %1680 = vmatprep.subr.mxu0 0.0
    %1681 = vmatpush2.msra.mxu0 0.0
    %1682 = vmatprep.subr.mxu0 0.0
    %1683 = vmatpush2.msra.mxu0 0.0
    %1684 = vmatprep.subr.mxu0 0.0
    %1685 = vmatpush2.msra.mxu0 0.0
    %1686 = vmatprep.mubr.f32.mxu0 0.0
    %1687 = vmatmul.mubr.f32.gmra.mxu0 %v1620
    %v1688 = vpop.f32.mrf.mxu0
    %v1689 = vadd.f32 0.0, %v1688
    %v1690 = vpop.f32.mrf.mxu0
    %1691 = vdwg.mxu0
    %1692 = vrot.lane.b32.xlu0 %v336, 112
    %v1693 = vpop.permute.xlu0 %1692
    %1694 = vrot.lane.b32.xlu0 %v346, 80
    %v1695 = vpop.permute.xlu0 %1694
    %v1696 = vsel %vm371, %v1693, 0
    %v1698 = vsel %vm371, %v1695, 0
    %1700 = vmatprep.subr.mxu0 0.0
    %1701 = vmatpush1.xpose.msra.mxu0 0.0
    %1702 = vmatprep.subr.mxu0 0.0
    %1703 = vmatpush1.xpose.msra.mxu0 0.0
    %1704 = vmatprep.subr.mxu0 0.0
    %1705 = vmatpush1.xpose.msra.mxu0 0.0
    %1706 = vmatprep.subr.mxu0 0.0
    %1707 = vmatpush1.xpose.msra.mxu0 0.0
    %1708 = vmatprep.subr.mxu0 0.0
    %1709 = vmatpush1.xpose.msra.mxu0 0.0
    %1710 = vmatprep.subr.mxu0 0.0
    %1711 = vmatpush1.xpose.msra.mxu0 0.0
    %1712 = vmatprep.subr.mxu0 0.0
    %1713 = vmatpush1.xpose.msra.mxu0 0.0
    %1714 = vmatprep.subr.mxu0 0.0
    %1715 = vmatpush1.xpose.msra.mxu0 0.0
    %1716 = vmatprep.subr.mxu0 0.0
    %1717 = vmatpush1.xpose.msra.mxu0 0.0
    %1718 = vmatprep.subr.mxu0 0.0
    %1719 = vmatpush1.xpose.msra.mxu0 0.0
    %1720 = vmatprep.subr.mxu0 0.0
    %1721 = vmatpush1.xpose.msra.mxu0 0.0
    %1722 = vmatprep.subr.mxu0 0.0
    %1723 = vmatpush1.xpose.msra.mxu0 0.0
    %1724 = vmatprep.subr.mxu0 0.0
    %1725 = vmatpush1.xpose.msra.mxu0 0.0
    %1726 = vmatprep.subr.mxu0 0.0
    %1727 = vmatpush1.xpose.msra.mxu0 0.0
    %1728 = vmatprep.subr.mxu0 0.0
    %1729 = vmatpush1.xpose.msra.mxu0 0.0
    %1730 = vmatprep.subr.mxu0 0.0
    %1731 = vmatpush1.xpose.msra.mxu0 %v1698
    %1732 = vmatprep.subr.mxu0 0.0
    %1733 = vmatpush2.xpose.msra.mxu0 0.0
    %1734 = vmatprep.subr.mxu0 0.0
    %1735 = vmatpush2.xpose.msra.mxu0 0.0
    %1736 = vmatprep.subr.mxu0 0.0
    %1737 = vmatpush2.xpose.msra.mxu0 0.0
    %1738 = vmatprep.subr.mxu0 0.0
    %1739 = vmatpush2.xpose.msra.mxu0 0.0
    %1740 = vmatprep.subr.mxu0 0.0
    %1741 = vmatpush2.xpose.msra.mxu0 0.0
    %1742 = vmatprep.subr.mxu0 0.0
    %1743 = vmatpush2.xpose.msra.mxu0 0.0
    %1744 = vmatprep.subr.mxu0 0.0
    %1745 = vmatpush2.xpose.msra.mxu0 0.0
    %1746 = vmatprep.subr.mxu0 0.0
    %1747 = vmatpush2.xpose.msra.mxu0 0.0
    %1748 = vmatprep.subr.mxu0 0.0
    %1749 = vmatpush2.xpose.msra.mxu0 0.0
    %1750 = vmatprep.subr.mxu0 0.0
    %1751 = vmatpush2.xpose.msra.mxu0 0.0
    %1752 = vmatprep.subr.mxu0 0.0
    %1753 = vmatpush2.xpose.msra.mxu0 0.0
    %1754 = vmatprep.subr.mxu0 0.0
    %1755 = vmatpush2.xpose.msra.mxu0 0.0
    %1756 = vmatprep.subr.mxu0 0.0
    %1757 = vmatpush2.xpose.msra.mxu0 0.0
    %1758 = vmatprep.subr.mxu0 0.0
    %1759 = vmatpush2.xpose.msra.mxu0 0.0
    %1760 = vmatprep.subr.mxu0 0.0
    %1761 = vmatpush2.xpose.msra.mxu0 0.0
    %1762 = vmatprep.subr.mxu0 0.0
    %1763 = vmatpush2.xpose.msra.mxu0 0.0
    %1764 = vmatprep.mubr.f32.mxu0 0.0
    %1765 = vmatmul.mubr.f32.gmra.mxu0 %v1696
    %v1766 = vpop.f32.mrf.mxu0
    %v1767 = vadd.f32 %v361, %v1766
    %v1768 = vpop.f32.mrf.mxu0
    %1769 = vdwg.mxu0
    %1770 = vrot.lane.b32.xlu0 %v337, 112
    %v1771 = vpop.permute.xlu0 %1770
    %1772 = vrot.lane.b32.xlu0 %v347, 80
    %v1773 = vpop.permute.xlu0 %1772
    %v1774 = vsel %vm371, %v1771, 0
    %v1776 = vsel %vm371, %v1773, 0
    %1778 = vmatprep.subr.mxu0 0.0
    %1779 = vmatpush1.xpose.msra.mxu0 0.0
    %1780 = vmatprep.subr.mxu0 0.0
    %1781 = vmatpush1.xpose.msra.mxu0 0.0
    %1782 = vmatprep.subr.mxu0 0.0
    %1783 = vmatpush1.xpose.msra.mxu0 0.0
    %1784 = vmatprep.subr.mxu0 0.0
    %1785 = vmatpush1.xpose.msra.mxu0 0.0
    %1786 = vmatprep.subr.mxu0 0.0
    %1787 = vmatpush1.xpose.msra.mxu0 0.0
    %1788 = vmatprep.subr.mxu0 0.0
    %1789 = vmatpush1.xpose.msra.mxu0 0.0
    %1790 = vmatprep.subr.mxu0 0.0
    %1791 = vmatpush1.xpose.msra.mxu0 0.0
    %1792 = vmatprep.subr.mxu0 0.0
    %1793 = vmatpush1.xpose.msra.mxu0 0.0
    %1794 = vmatprep.subr.mxu0 0.0
    %1795 = vmatpush1.xpose.msra.mxu0 0.0
    %1796 = vmatprep.subr.mxu0 0.0
    %1797 = vmatpush1.xpose.msra.mxu0 0.0
    %1798 = vmatprep.subr.mxu0 0.0
    %1799 = vmatpush1.xpose.msra.mxu0 0.0
    %1800 = vmatprep.subr.mxu0 0.0
    %1801 = vmatpush1.xpose.msra.mxu0 0.0
    %1802 = vmatprep.subr.mxu0 0.0
    %1803 = vmatpush1.xpose.msra.mxu0 0.0
    %1804 = vmatprep.subr.mxu0 0.0
    %1805 = vmatpush1.xpose.msra.mxu0 0.0
    %1806 = vmatprep.subr.mxu0 0.0
    %1807 = vmatpush1.xpose.msra.mxu0 0.0
    %1808 = vmatprep.subr.mxu0 0.0
    %1809 = vmatpush1.xpose.msra.mxu0 %v1776
    %1810 = vmatprep.subr.mxu0 0.0
    %1811 = vmatpush2.xpose.msra.mxu0 0.0
    %1812 = vmatprep.subr.mxu0 0.0
    %1813 = vmatpush2.xpose.msra.mxu0 0.0
    %1814 = vmatprep.subr.mxu0 0.0
    %1815 = vmatpush2.xpose.msra.mxu0 0.0
    %1816 = vmatprep.subr.mxu0 0.0
    %1817 = vmatpush2.xpose.msra.mxu0 0.0
    %1818 = vmatprep.subr.mxu0 0.0
    %1819 = vmatpush2.xpose.msra.mxu0 0.0
    %1820 = vmatprep.subr.mxu0 0.0
    %1821 = vmatpush2.xpose.msra.mxu0 0.0
    %1822 = vmatprep.subr.mxu0 0.0
    %1823 = vmatpush2.xpose.msra.mxu0 0.0
    %1824 = vmatprep.subr.mxu0 0.0
    %1825 = vmatpush2.xpose.msra.mxu0 0.0
    %1826 = vmatprep.subr.mxu0 0.0
    %1827 = vmatpush2.xpose.msra.mxu0 0.0
    %1828 = vmatprep.subr.mxu0 0.0
    %1829 = vmatpush2.xpose.msra.mxu0 0.0
    %1830 = vmatprep.subr.mxu0 0.0
    %1831 = vmatpush2.xpose.msra.mxu0 0.0
    %1832 = vmatprep.subr.mxu0 0.0
    %1833 = vmatpush2.xpose.msra.mxu0 0.0
    %1834 = vmatprep.subr.mxu0 0.0
    %1835 = vmatpush2.xpose.msra.mxu0 0.0
    %1836 = vmatprep.subr.mxu0 0.0
    %1837 = vmatpush2.xpose.msra.mxu0 0.0
    %1838 = vmatprep.subr.mxu0 0.0
    %1839 = vmatpush2.xpose.msra.mxu0 0.0
    %1840 = vmatprep.subr.mxu0 0.0
    %1841 = vmatpush2.xpose.msra.mxu0 0.0
    %1842 = vmatprep.mubr.f32.mxu0 0.0
    %1843 = vmatmul.mubr.f32.gmra.mxu0 %v1774
    %v1844 = vpop.f32.mrf.mxu0
    %v1845 = vadd.f32 %v365, %v1844
    %v1846 = vpop.f32.mrf.mxu0
    %1847 = vdwg.mxu0
    %v1848 = vsel %vm525, %v1767, -inf
    %1849 = vmax.xlane.f32.xlu0 %v1848
    %v1850 = vpop.xlane.xlu0 %1849
    %v1851 = vsel %vm525, %v1845, -inf
    %1852 = vmax.xlane.f32.xlu0 %v1851
    %v1853 = vpop.xlane.xlu0 %1852
    %v1854 = vsub.f32 %v1767, %v1850
    %v1855 = vsub.f32 %v1845, %v1853
    %v1856 = vmul.f32 %v1854, 1.442695
    %v1857 = vpow.pop %v1856
    %v1858 = vmul.f32 %v1855, 1.442695
    %v1859 = vpow.pop %v1858
    %v1860 = vsel %vm525, %v1857, 0.0
    %1861 = vadd.xlane.f32.xlu0 %v1860
    %v1862 = vpop.xlane.xlu0 %1861
    %v1863 = vsel %vm525, %v1859, 0.0
    %1864 = vadd.xlane.f32.xlu0 %v1863
    %v1865 = vpop.xlane.xlu0 %1864
    %v1866 = vrcp.pop %v1862
    %v1867 = vrcp.pop %v1865
    %v1868 = vmul.f32 %v1857, %v1866
    %v1869 = vmul.f32 %v1859, %v1867
    %1870 = vrot.lane.b32.xlu0 %v356, 48
    %v1871 = vpop.permute.xlu0 %1870
    %v1874 = vsel %vm525, %v1868, 0
    %1876 = vmatprep.subr.mxu0 0.0
    %1877 = vmatpush1.msra.mxu0 0.0
    %1878 = vmatprep.subr.mxu0 0.0
    %1879 = vmatpush1.msra.mxu0 0.0
    %1880 = vmatprep.subr.mxu0 0.0
    %1881 = vmatpush1.msra.mxu0 0.0
    %1882 = vmatprep.subr.mxu0 0.0
    %1883 = vmatpush1.msra.mxu0 0.0
    %1884 = vmatprep.subr.mxu0 0.0
    %1885 = vmatpush1.msra.mxu0 0.0
    %1886 = vmatprep.subr.mxu0 0.0
    %1887 = vmatpush1.msra.mxu0 0.0
    %1888 = vmatprep.subr.mxu0 0.0
    %1889 = vmatpush1.msra.mxu0 0.0
    %1890 = vmatprep.subr.mxu0 0.0
    %1891 = vmatpush1.msra.mxu0 0.0
    %1892 = vmatprep.subr.mxu0 0.0
    %1893 = vmatpush1.msra.mxu0 0.0
    %1894 = vmatprep.subr.mxu0 0.0
    %1895 = vmatpush1.msra.mxu0 0.0
    %1896 = vmatprep.subr.mxu0 0.0
    %1897 = vmatpush1.msra.mxu0 0.0
    %1898 = vmatprep.subr.mxu0 0.0
    %1899 = vmatpush1.msra.mxu0 0.0
    %1900 = vmatprep.subr.mxu0 0.0
    %1901 = vmatpush1.msra.mxu0 0.0
    %1902 = vmatprep.subr.mxu0 0.0
    %1903 = vmatpush1.msra.mxu0 0.0
    %1904 = vmatprep.subr.mxu0 0.0
    %1905 = vmatpush1.msra.mxu0 0.0
    %1906 = vmatprep.subr.mxu0 0.0
    %1907 = vmatpush1.msra.mxu0 %v1871
    %1908 = vmatprep.subr.mxu0 0.0
    %1909 = vmatpush2.msra.mxu0 0.0
    %1910 = vmatprep.subr.mxu0 0.0
    %1911 = vmatpush2.msra.mxu0 0.0
    %1912 = vmatprep.subr.mxu0 0.0
    %1913 = vmatpush2.msra.mxu0 0.0
    %1914 = vmatprep.subr.mxu0 0.0
    %1915 = vmatpush2.msra.mxu0 0.0
    %1916 = vmatprep.subr.mxu0 0.0
    %1917 = vmatpush2.msra.mxu0 0.0
    %1918 = vmatprep.subr.mxu0 0.0
    %1919 = vmatpush2.msra.mxu0 0.0
    %1920 = vmatprep.subr.mxu0 0.0
    %1921 = vmatpush2.msra.mxu0 0.0
    %1922 = vmatprep.subr.mxu0 0.0
    %1923 = vmatpush2.msra.mxu0 0.0
    %1924 = vmatprep.subr.mxu0 0.0
    %1925 = vmatpush2.msra.mxu0 0.0
    %1926 = vmatprep.subr.mxu0 0.0
    %1927 = vmatpush2.msra.mxu0 0.0
    %1928 = vmatprep.subr.mxu0 0.0
    %1929 = vmatpush2.msra.mxu0 0.0
    %1930 = vmatprep.subr.mxu0 0.0
    %1931 = vmatpush2.msra.mxu0 0.0
    %1932 = vmatprep.subr.mxu0 0.0
    %1933 = vmatpush2.msra.mxu0 0.0
    %1934 = vmatprep.subr.mxu0 0.0
    %1935 = vmatpush2.msra.mxu0 0.0
    %1936 = vmatprep.subr.mxu0 0.0
    %1937 = vmatpush2.msra.mxu0 0.0
    %1938 = vmatprep.subr.mxu0 0.0
    %1939 = vmatpush2.msra.mxu0 0.0
    %1940 = vmatprep.mubr.f32.mxu0 0.0
    %1941 = vmatmul.mubr.f32.gmra.mxu0 %v1874
    %v1942 = vpop.f32.mrf.mxu0
    %v1943 = vadd.f32 0.0, %v1942
    %v1944 = vpop.f32.mrf.mxu0
    %1945 = vdwg.mxu0
    %1946 = vrot.lane.b32.xlu0 %v357, 48
    %v1947 = vpop.permute.xlu0 %1946
    %v1950 = vsel %vm525, %v1869, 0
    %1952 = vmatprep.subr.mxu0 0.0
    %1953 = vmatpush1.msra.mxu0 0.0
    %1954 = vmatprep.subr.mxu0 0.0
    %1955 = vmatpush1.msra.mxu0 0.0
    %1956 = vmatprep.subr.mxu0 0.0
    %1957 = vmatpush1.msra.mxu0 0.0
    %1958 = vmatprep.subr.mxu0 0.0
    %1959 = vmatpush1.msra.mxu0 0.0
    %1960 = vmatprep.subr.mxu0 0.0
    %1961 = vmatpush1.msra.mxu0 0.0
    %1962 = vmatprep.subr.mxu0 0.0
    %1963 = vmatpush1.msra.mxu0 0.0
    %1964 = vmatprep.subr.mxu0 0.0
    %1965 = vmatpush1.msra.mxu0 0.0
    %1966 = vmatprep.subr.mxu0 0.0
    %1967 = vmatpush1.msra.mxu0 0.0
    %1968 = vmatprep.subr.mxu0 0.0
    %1969 = vmatpush1.msra.mxu0 0.0
    %1970 = vmatprep.subr.mxu0 0.0
    %1971 = vmatpush1.msra.mxu0 0.0
    %1972 = vmatprep.subr.mxu0 0.0
    %1973 = vmatpush1.msra.mxu0 0.0
    %1974 = vmatprep.subr.mxu0 0.0
    %1975 = vmatpush1.msra.mxu0 0.0
    %1976 = vmatprep.subr.mxu0 0.0
    %1977 = vmatpush1.msra.mxu0 0.0
    %1978 = vmatprep.subr.mxu0 0.0
    %1979 = vmatpush1.msra.mxu0 0.0
    %1980 = vmatprep.subr.mxu0 0.0
    %1981 = vmatpush1.msra.mxu0 0.0
    %1982 = vmatprep.subr.mxu0 0.0
    %1983 = vmatpush1.msra.mxu0 %v1947
    %1984 = vmatprep.subr.mxu0 0.0
    %1985 = vmatpush2.msra.mxu0 0.0
    %1986 = vmatprep.subr.mxu0 0.0
    %1987 = vmatpush2.msra.mxu0 0.0
    %1988 = vmatprep.subr.mxu0 0.0
    %1989 = vmatpush2.msra.mxu0 0.0
    %1990 = vmatprep.subr.mxu0 0.0
    %1991 = vmatpush2.msra.mxu0 0.0
    %1992 = vmatprep.subr.mxu0 0.0
    %1993 = vmatpush2.msra.mxu0 0.0
    %1994 = vmatprep.subr.mxu0 0.0
    %1995 = vmatpush2.msra.mxu0 0.0
    %1996 = vmatprep.subr.mxu0 0.0
    %1997 = vmatpush2.msra.mxu0 0.0
    %1998 = vmatprep.subr.mxu0 0.0
    %1999 = vmatpush2.msra.mxu0 0.0
    %2000 = vmatprep.subr.mxu0 0.0
    %2001 = vmatpush2.msra.mxu0 0.0
    %2002 = vmatprep.subr.mxu0 0.0
    %2003 = vmatpush2.msra.mxu0 0.0
    %2004 = vmatprep.subr.mxu0 0.0
    %2005 = vmatpush2.msra.mxu0 0.0
    %2006 = vmatprep.subr.mxu0 0.0
    %2007 = vmatpush2.msra.mxu0 0.0
    %2008 = vmatprep.subr.mxu0 0.0
    %2009 = vmatpush2.msra.mxu0 0.0
    %2010 = vmatprep.subr.mxu0 0.0
    %2011 = vmatpush2.msra.mxu0 0.0
    %2012 = vmatprep.subr.mxu0 0.0
    %2013 = vmatpush2.msra.mxu0 0.0
    %2014 = vmatprep.subr.mxu0 0.0
    %2015 = vmatpush2.msra.mxu0 0.0
    %2016 = vmatprep.mubr.f32.mxu0 0.0
    %2017 = vmatmul.mubr.f32.gmra.mxu0 %v1950
    %v2018 = vpop.f32.mrf.mxu0
    %v2019 = vadd.f32 0.0, %v2018
    %v2020 = vpop.f32.mrf.mxu0
    %2021 = vdwg.mxu0
    %2022 = vrot.lane.b32.xlu0 %v336, 108
    %v2023 = vpop.permute.xlu0 %2022
    %2024 = vrot.lane.b32.xlu0 %v346, 76
    %v2025 = vpop.permute.xlu0 %2024
    %v2026 = vsel %vm371, %v2023, 0
    %v2028 = vsel %vm371, %v2025, 0
    %2030 = vmatprep.subr.mxu0 0.0
    %2031 = vmatpush1.xpose.msra.mxu0 0.0
    %2032 = vmatprep.subr.mxu0 0.0
    %2033 = vmatpush1.xpose.msra.mxu0 0.0
    %2034 = vmatprep.subr.mxu0 0.0
    %2035 = vmatpush1.xpose.msra.mxu0 0.0
    %2036 = vmatprep.subr.mxu0 0.0
    %2037 = vmatpush1.xpose.msra.mxu0 0.0
    %2038 = vmatprep.subr.mxu0 0.0
    %2039 = vmatpush1.xpose.msra.mxu0 0.0
    %2040 = vmatprep.subr.mxu0 0.0
    %2041 = vmatpush1.xpose.msra.mxu0 0.0
    %2042 = vmatprep.subr.mxu0 0.0
    %2043 = vmatpush1.xpose.msra.mxu0 0.0
    %2044 = vmatprep.subr.mxu0 0.0
    %2045 = vmatpush1.xpose.msra.mxu0 0.0
    %2046 = vmatprep.subr.mxu0 0.0
    %2047 = vmatpush1.xpose.msra.mxu0 0.0
    %2048 = vmatprep.subr.mxu0 0.0
    %2049 = vmatpush1.xpose.msra.mxu0 0.0
    %2050 = vmatprep.subr.mxu0 0.0
    %2051 = vmatpush1.xpose.msra.mxu0 0.0
    %2052 = vmatprep.subr.mxu0 0.0
    %2053 = vmatpush1.xpose.msra.mxu0 0.0
    %2054 = vmatprep.subr.mxu0 0.0
    %2055 = vmatpush1.xpose.msra.mxu0 0.0
    %2056 = vmatprep.subr.mxu0 0.0
    %2057 = vmatpush1.xpose.msra.mxu0 0.0
    %2058 = vmatprep.subr.mxu0 0.0
    %2059 = vmatpush1.xpose.msra.mxu0 0.0
    %2060 = vmatprep.subr.mxu0 0.0
    %2061 = vmatpush1.xpose.msra.mxu0 %v2028
    %2062 = vmatprep.subr.mxu0 0.0
    %2063 = vmatpush2.xpose.msra.mxu0 0.0
    %2064 = vmatprep.subr.mxu0 0.0
    %2065 = vmatpush2.xpose.msra.mxu0 0.0
    %2066 = vmatprep.subr.mxu0 0.0
    %2067 = vmatpush2.xpose.msra.mxu0 0.0
    %2068 = vmatprep.subr.mxu0 0.0
    %2069 = vmatpush2.xpose.msra.mxu0 0.0
    %2070 = vmatprep.subr.mxu0 0.0
    %2071 = vmatpush2.xpose.msra.mxu0 0.0
    %2072 = vmatprep.subr.mxu0 0.0
    %2073 = vmatpush2.xpose.msra.mxu0 0.0
    %2074 = vmatprep.subr.mxu0 0.0
    %2075 = vmatpush2.xpose.msra.mxu0 0.0
    %2076 = vmatprep.subr.mxu0 0.0
    %2077 = vmatpush2.xpose.msra.mxu0 0.0
    %2078 = vmatprep.subr.mxu0 0.0
    %2079 = vmatpush2.xpose.msra.mxu0 0.0
    %2080 = vmatprep.subr.mxu0 0.0
    %2081 = vmatpush2.xpose.msra.mxu0 0.0
    %2082 = vmatprep.subr.mxu0 0.0
    %2083 = vmatpush2.xpose.msra.mxu0 0.0
    %2084 = vmatprep.subr.mxu0 0.0
    %2085 = vmatpush2.xpose.msra.mxu0 0.0
    %2086 = vmatprep.subr.mxu0 0.0
    %2087 = vmatpush2.xpose.msra.mxu0 0.0
    %2088 = vmatprep.subr.mxu0 0.0
    %2089 = vmatpush2.xpose.msra.mxu0 0.0
    %2090 = vmatprep.subr.mxu0 0.0
    %2091 = vmatpush2.xpose.msra.mxu0 0.0
    %2092 = vmatprep.subr.mxu0 0.0
    %2093 = vmatpush2.xpose.msra.mxu0 0.0
    %2094 = vmatprep.mubr.f32.mxu0 0.0
    %2095 = vmatmul.mubr.f32.gmra.mxu0 %v2026
    %v2096 = vpop.f32.mrf.mxu0
    %v2097 = vadd.f32 %v361, %v2096
    %v2098 = vpop.f32.mrf.mxu0
    %2099 = vdwg.mxu0
    %2100 = vrot.lane.b32.xlu0 %v337, 108
    %v2101 = vpop.permute.xlu0 %2100
    %2102 = vrot.lane.b32.xlu0 %v347, 76
    %v2103 = vpop.permute.xlu0 %2102
    %v2104 = vsel %vm371, %v2101, 0
    %v2106 = vsel %vm371, %v2103, 0
    %2108 = vmatprep.subr.mxu0 0.0
    %2109 = vmatpush1.xpose.msra.mxu0 0.0
    %2110 = vmatprep.subr.mxu0 0.0
    %2111 = vmatpush1.xpose.msra.mxu0 0.0
    %2112 = vmatprep.subr.mxu0 0.0
    %2113 = vmatpush1.xpose.msra.mxu0 0.0
    %2114 = vmatprep.subr.mxu0 0.0
    %2115 = vmatpush1.xpose.msra.mxu0 0.0
    %2116 = vmatprep.subr.mxu0 0.0
    %2117 = vmatpush1.xpose.msra.mxu0 0.0
    %2118 = vmatprep.subr.mxu0 0.0
    %2119 = vmatpush1.xpose.msra.mxu0 0.0
    %2120 = vmatprep.subr.mxu0 0.0
    %2121 = vmatpush1.xpose.msra.mxu0 0.0
    %2122 = vmatprep.subr.mxu0 0.0
    %2123 = vmatpush1.xpose.msra.mxu0 0.0
    %2124 = vmatprep.subr.mxu0 0.0
    %2125 = vmatpush1.xpose.msra.mxu0 0.0
    %2126 = vmatprep.subr.mxu0 0.0
    %2127 = vmatpush1.xpose.msra.mxu0 0.0
    %2128 = vmatprep.subr.mxu0 0.0
    %2129 = vmatpush1.xpose.msra.mxu0 0.0
    %2130 = vmatprep.subr.mxu0 0.0
    %2131 = vmatpush1.xpose.msra.mxu0 0.0
    %2132 = vmatprep.subr.mxu0 0.0
    %2133 = vmatpush1.xpose.msra.mxu0 0.0
    %2134 = vmatprep.subr.mxu0 0.0
    %2135 = vmatpush1.xpose.msra.mxu0 0.0
    %2136 = vmatprep.subr.mxu0 0.0
    %2137 = vmatpush1.xpose.msra.mxu0 0.0
    %2138 = vmatprep.subr.mxu0 0.0
    %2139 = vmatpush1.xpose.msra.mxu0 %v2106
    %2140 = vmatprep.subr.mxu0 0.0
    %2141 = vmatpush2.xpose.msra.mxu0 0.0
    %2142 = vmatprep.subr.mxu0 0.0
    %2143 = vmatpush2.xpose.msra.mxu0 0.0
    %2144 = vmatprep.subr.mxu0 0.0
    %2145 = vmatpush2.xpose.msra.mxu0 0.0
    %2146 = vmatprep.subr.mxu0 0.0
    %2147 = vmatpush2.xpose.msra.mxu0 0.0
    %2148 = vmatprep.subr.mxu0 0.0
    %2149 = vmatpush2.xpose.msra.mxu0 0.0
    %2150 = vmatprep.subr.mxu0 0.0
    %2151 = vmatpush2.xpose.msra.mxu0 0.0
    %2152 = vmatprep.subr.mxu0 0.0
    %2153 = vmatpush2.xpose.msra.mxu0 0.0
    %2154 = vmatprep.subr.mxu0 0.0
    %2155 = vmatpush2.xpose.msra.mxu0 0.0
    %2156 = vmatprep.subr.mxu0 0.0
    %2157 = vmatpush2.xpose.msra.mxu0 0.0
    %2158 = vmatprep.subr.mxu0 0.0
    %2159 = vmatpush2.xpose.msra.mxu0 0.0
    %2160 = vmatprep.subr.mxu0 0.0
    %2161 = vmatpush2.xpose.msra.mxu0 0.0
    %2162 = vmatprep.subr.mxu0 0.0
    %2163 = vmatpush2.xpose.msra.mxu0 0.0
    %2164 = vmatprep.subr.mxu0 0.0
    %2165 = vmatpush2.xpose.msra.mxu0 0.0
    %2166 = vmatprep.subr.mxu0 0.0
    %2167 = vmatpush2.xpose.msra.mxu0 0.0
    %2168 = vmatprep.subr.mxu0 0.0
    %2169 = vmatpush2.xpose.msra.mxu0 0.0
    %2170 = vmatprep.subr.mxu0 0.0
    %2171 = vmatpush2.xpose.msra.mxu0 0.0
    %2172 = vmatprep.mubr.f32.mxu0 0.0
    %2173 = vmatmul.mubr.f32.gmra.mxu0 %v2104
    %v2174 = vpop.f32.mrf.mxu0
    %v2175 = vadd.f32 %v365, %v2174
    %v2176 = vpop.f32.mrf.mxu0
    %2177 = vdwg.mxu0
    %v2178 = vsel %vm525, %v2097, -inf
    %2179 = vmax.xlane.f32.xlu0 %v2178
    %v2180 = vpop.xlane.xlu0 %2179
    %v2181 = vsel %vm525, %v2175, -inf
    %2182 = vmax.xlane.f32.xlu0 %v2181
    %v2183 = vpop.xlane.xlu0 %2182
    %v2184 = vsub.f32 %v2097, %v2180
    %v2185 = vsub.f32 %v2175, %v2183
    %v2186 = vmul.f32 %v2184, 1.442695
    %v2187 = vpow.pop %v2186
    %v2188 = vmul.f32 %v2185, 1.442695
    %v2189 = vpow.pop %v2188
    %v2190 = vsel %vm525, %v2187, 0.0
    %2191 = vadd.xlane.f32.xlu0 %v2190
    %v2192 = vpop.xlane.xlu0 %2191
    %v2193 = vsel %vm525, %v2189, 0.0
    %2194 = vadd.xlane.f32.xlu0 %v2193
    %v2195 = vpop.xlane.xlu0 %2194
    %v2196 = vrcp.pop %v2192
    %v2197 = vrcp.pop %v2195
    %v2198 = vmul.f32 %v2187, %v2196
    %v2199 = vmul.f32 %v2189, %v2197
    %2200 = vrot.lane.b32.xlu0 %v356, 44
    %v2201 = vpop.permute.xlu0 %2200
    %v2204 = vsel %vm525, %v2198, 0
    %2206 = vmatprep.subr.mxu0 0.0
    %2207 = vmatpush1.msra.mxu0 0.0
    %2208 = vmatprep.subr.mxu0 0.0
    %2209 = vmatpush1.msra.mxu0 0.0
    %2210 = vmatprep.subr.mxu0 0.0
    %2211 = vmatpush1.msra.mxu0 0.0
    %2212 = vmatprep.subr.mxu0 0.0
    %2213 = vmatpush1.msra.mxu0 0.0
    %2214 = vmatprep.subr.mxu0 0.0
    %2215 = vmatpush1.msra.mxu0 0.0
    %2216 = vmatprep.subr.mxu0 0.0
    %2217 = vmatpush1.msra.mxu0 0.0
    %2218 = vmatprep.subr.mxu0 0.0
    %2219 = vmatpush1.msra.mxu0 0.0
    %2220 = vmatprep.subr.mxu0 0.0
    %2221 = vmatpush1.msra.mxu0 0.0
    %2222 = vmatprep.subr.mxu0 0.0
    %2223 = vmatpush1.msra.mxu0 0.0
    %2224 = vmatprep.subr.mxu0 0.0
    %2225 = vmatpush1.msra.mxu0 0.0
    %2226 = vmatprep.subr.mxu0 0.0
    %2227 = vmatpush1.msra.mxu0 0.0
    %2228 = vmatprep.subr.mxu0 0.0
    %2229 = vmatpush1.msra.mxu0 0.0
    %2230 = vmatprep.subr.mxu0 0.0
    %2231 = vmatpush1.msra.mxu0 0.0
    %2232 = vmatprep.subr.mxu0 0.0
    %2233 = vmatpush1.msra.mxu0 0.0
    %2234 = vmatprep.subr.mxu0 0.0
    %2235 = vmatpush1.msra.mxu0 0.0
    %2236 = vmatprep.subr.mxu0 0.0
    %2237 = vmatpush1.msra.mxu0 %v2201
    %2238 = vmatprep.subr.mxu0 0.0
    %2239 = vmatpush2.msra.mxu0 0.0
    %2240 = vmatprep.subr.mxu0 0.0
    %2241 = vmatpush2.msra.mxu0 0.0
    %2242 = vmatprep.subr.mxu0 0.0
    %2243 = vmatpush2.msra.mxu0 0.0
    %2244 = vmatprep.subr.mxu0 0.0
    %2245 = vmatpush2.msra.mxu0 0.0
    %2246 = vmatprep.subr.mxu0 0.0
    %2247 = vmatpush2.msra.mxu0 0.0
    %2248 = vmatprep.subr.mxu0 0.0
    %2249 = vmatpush2.msra.mxu0 0.0
    %2250 = vmatprep.subr.mxu0 0.0
    %2251 = vmatpush2.msra.mxu0 0.0
    %2252 = vmatprep.subr.mxu0 0.0
    %2253 = vmatpush2.msra.mxu0 0.0
    %2254 = vmatprep.subr.mxu0 0.0
    %2255 = vmatpush2.msra.mxu0 0.0
    %2256 = vmatprep.subr.mxu0 0.0
    %2257 = vmatpush2.msra.mxu0 0.0
    %2258 = vmatprep.subr.mxu0 0.0
    %2259 = vmatpush2.msra.mxu0 0.0
    %2260 = vmatprep.subr.mxu0 0.0
    %2261 = vmatpush2.msra.mxu0 0.0
    %2262 = vmatprep.subr.mxu0 0.0
    %2263 = vmatpush2.msra.mxu0 0.0
    %2264 = vmatprep.subr.mxu0 0.0
    %2265 = vmatpush2.msra.mxu0 0.0
    %2266 = vmatprep.subr.mxu0 0.0
    %2267 = vmatpush2.msra.mxu0 0.0
    %2268 = vmatprep.subr.mxu0 0.0
    %2269 = vmatpush2.msra.mxu0 0.0
    %2270 = vmatprep.mubr.f32.mxu0 0.0
    %2271 = vmatmul.mubr.f32.gmra.mxu0 %v2204
    %v2272 = vpop.f32.mrf.mxu0
    %v2273 = vadd.f32 0.0, %v2272
    %v2274 = vpop.f32.mrf.mxu0
    %2275 = vdwg.mxu0
    %2276 = vrot.lane.b32.xlu0 %v357, 44
    %v2277 = vpop.permute.xlu0 %2276
    %v2280 = vsel %vm525, %v2199, 0
    %2282 = vmatprep.subr.mxu0 0.0
    %2283 = vmatpush1.msra.mxu0 0.0
    %2284 = vmatprep.subr.mxu0 0.0
    %2285 = vmatpush1.msra.mxu0 0.0
    %2286 = vmatprep.subr.mxu0 0.0
    %2287 = vmatpush1.msra.mxu0 0.0
    %2288 = vmatprep.subr.mxu0 0.0
    %2289 = vmatpush1.msra.mxu0 0.0
    %2290 = vmatprep.subr.mxu0 0.0
    %2291 = vmatpush1.msra.mxu0 0.0
    %2292 = vmatprep.subr.mxu0 0.0
    %2293 = vmatpush1.msra.mxu0 0.0
    %2294 = vmatprep.subr.mxu0 0.0
    %2295 = vmatpush1.msra.mxu0 0.0
    %2296 = vmatprep.subr.mxu0 0.0
    %2297 = vmatpush1.msra.mxu0 0.0
    %2298 = vmatprep.subr.mxu0 0.0
    %2299 = vmatpush1.msra.mxu0 0.0
    %2300 = vmatprep.subr.mxu0 0.0
    %2301 = vmatpush1.msra.mxu0 0.0
    %2302 = vmatprep.subr.mxu0 0.0
    %2303 = vmatpush1.msra.mxu0 0.0
    %2304 = vmatprep.subr.mxu0 0.0
    %2305 = vmatpush1.msra.mxu0 0.0
    %2306 = vmatprep.subr.mxu0 0.0
    %2307 = vmatpush1.msra.mxu0 0.0
    %2308 = vmatprep.subr.mxu0 0.0
    %2309 = vmatpush1.msra.mxu0 0.0
    %2310 = vmatprep.subr.mxu0 0.0
    %2311 = vmatpush1.msra.mxu0 0.0
    %2312 = vmatprep.subr.mxu0 0.0
    %2313 = vmatpush1.msra.mxu0 %v2277
    %2314 = vmatprep.subr.mxu0 0.0
    %2315 = vmatpush2.msra.mxu0 0.0
    %2316 = vmatprep.subr.mxu0 0.0
    %2317 = vmatpush2.msra.mxu0 0.0
    %2318 = vmatprep.subr.mxu0 0.0
    %2319 = vmatpush2.msra.mxu0 0.0
    %2320 = vmatprep.subr.mxu0 0.0
    %2321 = vmatpush2.msra.mxu0 0.0
    %2322 = vmatprep.subr.mxu0 0.0
    %2323 = vmatpush2.msra.mxu0 0.0
    %2324 = vmatprep.subr.mxu0 0.0
    %2325 = vmatpush2.msra.mxu0 0.0
    %2326 = vmatprep.subr.mxu0 0.0
    %2327 = vmatpush2.msra.mxu0 0.0
    %2328 = vmatprep.subr.mxu0 0.0
    %2329 = vmatpush2.msra.mxu0 0.0
    %2330 = vmatprep.subr.mxu0 0.0
    %2331 = vmatpush2.msra.mxu0 0.0
    %2332 = vmatprep.subr.mxu0 0.0
    %2333 = vmatpush2.msra.mxu0 0.0
    %2334 = vmatprep.subr.mxu0 0.0
    %2335 = vmatpush2.msra.mxu0 0.0
    %2336 = vmatprep.subr.mxu0 0.0
    %2337 = vmatpush2.msra.mxu0 0.0
    %2338 = vmatprep.subr.mxu0 0.0
    %2339 = vmatpush2.msra.mxu0 0.0
    %2340 = vmatprep.subr.mxu0 0.0
    %2341 = vmatpush2.msra.mxu0 0.0
    %2342 = vmatprep.subr.mxu0 0.0
    %2343 = vmatpush2.msra.mxu0 0.0
    %2344 = vmatprep.subr.mxu0 0.0
    %2345 = vmatpush2.msra.mxu0 0.0
    %2346 = vmatprep.mubr.f32.mxu0 0.0
    %2347 = vmatmul.mubr.f32.gmra.mxu0 %v2280
    %v2348 = vpop.f32.mrf.mxu0
    %v2349 = vadd.f32 0.0, %v2348
    %v2350 = vpop.f32.mrf.mxu0
    %2351 = vdwg.mxu0
    %2352 = vrot.lane.b32.xlu0 %v336, 104
    %v2353 = vpop.permute.xlu0 %2352
    %2354 = vrot.lane.b32.xlu0 %v346, 72
    %v2355 = vpop.permute.xlu0 %2354
    %v2356 = vsel %vm371, %v2353, 0
    %v2358 = vsel %vm371, %v2355, 0
    %2360 = vmatprep.subr.mxu0 0.0
    %2361 = vmatpush1.xpose.msra.mxu0 0.0
    %2362 = vmatprep.subr.mxu0 0.0
    %2363 = vmatpush1.xpose.msra.mxu0 0.0
    %2364 = vmatprep.subr.mxu0 0.0
    %2365 = vmatpush1.xpose.msra.mxu0 0.0
    %2366 = vmatprep.subr.mxu0 0.0
    %2367 = vmatpush1.xpose.msra.mxu0 0.0
    %2368 = vmatprep.subr.mxu0 0.0
    %2369 = vmatpush1.xpose.msra.mxu0 0.0
    %2370 = vmatprep.subr.mxu0 0.0
    %2371 = vmatpush1.xpose.msra.mxu0 0.0
    %2372 = vmatprep.subr.mxu0 0.0
    %2373 = vmatpush1.xpose.msra.mxu0 0.0
    %2374 = vmatprep.subr.mxu0 0.0
    %2375 = vmatpush1.xpose.msra.mxu0 0.0
    %2376 = vmatprep.subr.mxu0 0.0
    %2377 = vmatpush1.xpose.msra.mxu0 0.0
    %2378 = vmatprep.subr.mxu0 0.0
    %2379 = vmatpush1.xpose.msra.mxu0 0.0
    %2380 = vmatprep.subr.mxu0 0.0
    %2381 = vmatpush1.xpose.msra.mxu0 0.0
    %2382 = vmatprep.subr.mxu0 0.0
    %2383 = vmatpush1.xpose.msra.mxu0 0.0
    %2384 = vmatprep.subr.mxu0 0.0
    %2385 = vmatpush1.xpose.msra.mxu0 0.0
    %2386 = vmatprep.subr.mxu0 0.0
    %2387 = vmatpush1.xpose.msra.mxu0 0.0
    %2388 = vmatprep.subr.mxu0 0.0
    %2389 = vmatpush1.xpose.msra.mxu0 0.0
    %2390 = vmatprep.subr.mxu0 0.0
    %2391 = vmatpush1.xpose.msra.mxu0 %v2358
    %2392 = vmatprep.subr.mxu0 0.0
    %2393 = vmatpush2.xpose.msra.mxu0 0.0
    %2394 = vmatprep.subr.mxu0 0.0
    %2395 = vmatpush2.xpose.msra.mxu0 0.0
    %2396 = vmatprep.subr.mxu0 0.0
    %2397 = vmatpush2.xpose.msra.mxu0 0.0
    %2398 = vmatprep.subr.mxu0 0.0
    %2399 = vmatpush2.xpose.msra.mxu0 0.0
    %2400 = vmatprep.subr.mxu0 0.0
    %2401 = vmatpush2.xpose.msra.mxu0 0.0
    %2402 = vmatprep.subr.mxu0 0.0
    %2403 = vmatpush2.xpose.msra.mxu0 0.0
    %2404 = vmatprep.subr.mxu0 0.0
    %2405 = vmatpush2.xpose.msra.mxu0 0.0
    %2406 = vmatprep.subr.mxu0 0.0
    %2407 = vmatpush2.xpose.msra.mxu0 0.0
    %2408 = vmatprep.subr.mxu0 0.0
    %2409 = vmatpush2.xpose.msra.mxu0 0.0
    %2410 = vmatprep.subr.mxu0 0.0
    %2411 = vmatpush2.xpose.msra.mxu0 0.0
    %2412 = vmatprep.subr.mxu0 0.0
    %2413 = vmatpush2.xpose.msra.mxu0 0.0
    %2414 = vmatprep.subr.mxu0 0.0
    %2415 = vmatpush2.xpose.msra.mxu0 0.0
    %2416 = vmatprep.subr.mxu0 0.0
    %2417 = vmatpush2.xpose.msra.mxu0 0.0
    %2418 = vmatprep.subr.mxu0 0.0
    %2419 = vmatpush2.xpose.msra.mxu0 0.0
    %2420 = vmatprep.subr.mxu0 0.0
    %2421 = vmatpush2.xpose.msra.mxu0 0.0
    %2422 = vmatprep.subr.mxu0 0.0
    %2423 = vmatpush2.xpose.msra.mxu0 0.0
    %2424 = vmatprep.mubr.f32.mxu0 0.0
    %2425 = vmatmul.mubr.f32.gmra.mxu0 %v2356
    %v2426 = vpop.f32.mrf.mxu0
    %v2427 = vadd.f32 %v361, %v2426
    %v2428 = vpop.f32.mrf.mxu0
    %2429 = vdwg.mxu0
    %2430 = vrot.lane.b32.xlu0 %v337, 104
    %v2431 = vpop.permute.xlu0 %2430
    %2432 = vrot.lane.b32.xlu0 %v347, 72
    %v2433 = vpop.permute.xlu0 %2432
    %v2434 = vsel %vm371, %v2431, 0
    %v2436 = vsel %vm371, %v2433, 0
    %2438 = vmatprep.subr.mxu0 0.0
    %2439 = vmatpush1.xpose.msra.mxu0 0.0
    %2440 = vmatprep.subr.mxu0 0.0
    %2441 = vmatpush1.xpose.msra.mxu0 0.0
    %2442 = vmatprep.subr.mxu0 0.0
    %2443 = vmatpush1.xpose.msra.mxu0 0.0
    %2444 = vmatprep.subr.mxu0 0.0
    %2445 = vmatpush1.xpose.msra.mxu0 0.0
    %2446 = vmatprep.subr.mxu0 0.0
    %2447 = vmatpush1.xpose.msra.mxu0 0.0
    %2448 = vmatprep.subr.mxu0 0.0
    %2449 = vmatpush1.xpose.msra.mxu0 0.0
    %2450 = vmatprep.subr.mxu0 0.0
    %2451 = vmatpush1.xpose.msra.mxu0 0.0
    %2452 = vmatprep.subr.mxu0 0.0
    %2453 = vmatpush1.xpose.msra.mxu0 0.0
    %2454 = vmatprep.subr.mxu0 0.0
    %2455 = vmatpush1.xpose.msra.mxu0 0.0
    %2456 = vmatprep.subr.mxu0 0.0
    %2457 = vmatpush1.xpose.msra.mxu0 0.0
    %2458 = vmatprep.subr.mxu0 0.0
    %2459 = vmatpush1.xpose.msra.mxu0 0.0
    %2460 = vmatprep.subr.mxu0 0.0
    %2461 = vmatpush1.xpose.msra.mxu0 0.0
    %2462 = vmatprep.subr.mxu0 0.0
    %2463 = vmatpush1.xpose.msra.mxu0 0.0
    %2464 = vmatprep.subr.mxu0 0.0
    %2465 = vmatpush1.xpose.msra.mxu0 0.0
    %2466 = vmatprep.subr.mxu0 0.0
    %2467 = vmatpush1.xpose.msra.mxu0 0.0
    %2468 = vmatprep.subr.mxu0 0.0
    %2469 = vmatpush1.xpose.msra.mxu0 %v2436
    %2470 = vmatprep.subr.mxu0 0.0
    %2471 = vmatpush2.xpose.msra.mxu0 0.0
    %2472 = vmatprep.subr.mxu0 0.0
    %2473 = vmatpush2.xpose.msra.mxu0 0.0
    %2474 = vmatprep.subr.mxu0 0.0
    %2475 = vmatpush2.xpose.msra.mxu0 0.0
    %2476 = vmatprep.subr.mxu0 0.0
    %2477 = vmatpush2.xpose.msra.mxu0 0.0
    %2478 = vmatprep.subr.mxu0 0.0
    %2479 = vmatpush2.xpose.msra.mxu0 0.0
    %2480 = vmatprep.subr.mxu0 0.0
    %2481 = vmatpush2.xpose.msra.mxu0 0.0
    %2482 = vmatprep.subr.mxu0 0.0
    %2483 = vmatpush2.xpose.msra.mxu0 0.0
    %2484 = vmatprep.subr.mxu0 0.0
    %2485 = vmatpush2.xpose.msra.mxu0 0.0
    %2486 = vmatprep.subr.mxu0 0.0
    %2487 = vmatpush2.xpose.msra.mxu0 0.0
    %2488 = vmatprep.subr.mxu0 0.0
    %2489 = vmatpush2.xpose.msra.mxu0 0.0
    %2490 = vmatprep.subr.mxu0 0.0
    %2491 = vmatpush2.xpose.msra.mxu0 0.0
    %2492 = vmatprep.subr.mxu0 0.0
    %2493 = vmatpush2.xpose.msra.mxu0 0.0
    %2494 = vmatprep.subr.mxu0 0.0
    %2495 = vmatpush2.xpose.msra.mxu0 0.0
    %2496 = vmatprep.subr.mxu0 0.0
    %2497 = vmatpush2.xpose.msra.mxu0 0.0
    %2498 = vmatprep.subr.mxu0 0.0
    %2499 = vmatpush2.xpose.msra.mxu0 0.0
    %2500 = vmatprep.subr.mxu0 0.0
    %2501 = vmatpush2.xpose.msra.mxu0 0.0
    %2502 = vmatprep.mubr.f32.mxu0 0.0
    %2503 = vmatmul.mubr.f32.gmra.mxu0 %v2434
    %v2504 = vpop.f32.mrf.mxu0
    %v2505 = vadd.f32 %v365, %v2504
    %v2506 = vpop.f32.mrf.mxu0
    %2507 = vdwg.mxu0
    %v2508 = vsel %vm525, %v2427, -inf
    %2509 = vmax.xlane.f32.xlu0 %v2508
    %v2510 = vpop.xlane.xlu0 %2509
    %v2511 = vsel %vm525, %v2505, -inf
    %2512 = vmax.xlane.f32.xlu0 %v2511
    %v2513 = vpop.xlane.xlu0 %2512
    %v2514 = vsub.f32 %v2427, %v2510
    %v2515 = vsub.f32 %v2505, %v2513
    %v2516 = vmul.f32 %v2514, 1.442695
    %v2517 = vpow.pop %v2516
    %v2518 = vmul.f32 %v2515, 1.442695
    %v2519 = vpow.pop %v2518
    %v2520 = vsel %vm525, %v2517, 0.0
    %2521 = vadd.xlane.f32.xlu0 %v2520
    %v2522 = vpop.xlane.xlu0 %2521
    %v2523 = vsel %vm525, %v2519, 0.0
    %2524 = vadd.xlane.f32.xlu0 %v2523
    %v2525 = vpop.xlane.xlu0 %2524
    %v2526 = vrcp.pop %v2522
    %v2527 = vrcp.pop %v2525
    %v2528 = vmul.f32 %v2517, %v2526
    %v2529 = vmul.f32 %v2519, %v2527
    %2530 = vrot.lane.b32.xlu0 %v356, 40
    %v2531 = vpop.permute.xlu0 %2530
    %v2534 = vsel %vm525, %v2528, 0
    %2536 = vmatprep.subr.mxu0 0.0
    %2537 = vmatpush1.msra.mxu0 0.0
    %2538 = vmatprep.subr.mxu0 0.0
    %2539 = vmatpush1.msra.mxu0 0.0
    %2540 = vmatprep.subr.mxu0 0.0
    %2541 = vmatpush1.msra.mxu0 0.0
    %2542 = vmatprep.subr.mxu0 0.0
    %2543 = vmatpush1.msra.mxu0 0.0
    %2544 = vmatprep.subr.mxu0 0.0
    %2545 = vmatpush1.msra.mxu0 0.0
    %2546 = vmatprep.subr.mxu0 0.0
    %2547 = vmatpush1.msra.mxu0 0.0
    %2548 = vmatprep.subr.mxu0 0.0
    %2549 = vmatpush1.msra.mxu0 0.0
    %2550 = vmatprep.subr.mxu0 0.0
    %2551 = vmatpush1.msra.mxu0 0.0
    %2552 = vmatprep.subr.mxu0 0.0
    %2553 = vmatpush1.msra.mxu0 0.0
    %2554 = vmatprep.subr.mxu0 0.0
    %2555 = vmatpush1.msra.mxu0 0.0
    %2556 = vmatprep.subr.mxu0 0.0
    %2557 = vmatpush1.msra.mxu0 0.0
    %2558 = vmatprep.subr.mxu0 0.0
    %2559 = vmatpush1.msra.mxu0 0.0
    %2560 = vmatprep.subr.mxu0 0.0
    %2561 = vmatpush1.msra.mxu0 0.0
    %2562 = vmatprep.subr.mxu0 0.0
    %2563 = vmatpush1.msra.mxu0 0.0
    %2564 = vmatprep.subr.mxu0 0.0
    %2565 = vmatpush1.msra.mxu0 0.0
    %2566 = vmatprep.subr.mxu0 0.0
    %2567 = vmatpush1.msra.mxu0 %v2531
    %2568 = vmatprep.subr.mxu0 0.0
    %2569 = vmatpush2.msra.mxu0 0.0
    %2570 = vmatprep.subr.mxu0 0.0
    %2571 = vmatpush2.msra.mxu0 0.0
    %2572 = vmatprep.subr.mxu0 0.0
    %2573 = vmatpush2.msra.mxu0 0.0
    %2574 = vmatprep.subr.mxu0 0.0
    %2575 = vmatpush2.msra.mxu0 0.0
    %2576 = vmatprep.subr.mxu0 0.0
    %2577 = vmatpush2.msra.mxu0 0.0
    %2578 = vmatprep.subr.mxu0 0.0
    %2579 = vmatpush2.msra.mxu0 0.0
    %2580 = vmatprep.subr.mxu0 0.0
    %2581 = vmatpush2.msra.mxu0 0.0
    %2582 = vmatprep.subr.mxu0 0.0
    %2583 = vmatpush2.msra.mxu0 0.0
    %2584 = vmatprep.subr.mxu0 0.0
    %2585 = vmatpush2.msra.mxu0 0.0
    %2586 = vmatprep.subr.mxu0 0.0
    %2587 = vmatpush2.msra.mxu0 0.0
    %2588 = vmatprep.subr.mxu0 0.0
    %2589 = vmatpush2.msra.mxu0 0.0
    %2590 = vmatprep.subr.mxu0 0.0
    %2591 = vmatpush2.msra.mxu0 0.0
    %2592 = vmatprep.subr.mxu0 0.0
    %2593 = vmatpush2.msra.mxu0 0.0
    %2594 = vmatprep.subr.mxu0 0.0
    %2595 = vmatpush2.msra.mxu0 0.0
    %2596 = vmatprep.subr.mxu0 0.0
    %2597 = vmatpush2.msra.mxu0 0.0
    %2598 = vmatprep.subr.mxu0 0.0
    %2599 = vmatpush2.msra.mxu0 0.0
    %2600 = vmatprep.mubr.f32.mxu0 0.0
    %2601 = vmatmul.mubr.f32.gmra.mxu0 %v2534
    %v2602 = vpop.f32.mrf.mxu0
    %v2603 = vadd.f32 0.0, %v2602
    %v2604 = vpop.f32.mrf.mxu0
    %2605 = vdwg.mxu0
    %2606 = vrot.lane.b32.xlu0 %v357, 40
    %v2607 = vpop.permute.xlu0 %2606
    %v2610 = vsel %vm525, %v2529, 0
    %2612 = vmatprep.subr.mxu0 0.0
    %2613 = vmatpush1.msra.mxu0 0.0
    %2614 = vmatprep.subr.mxu0 0.0
    %2615 = vmatpush1.msra.mxu0 0.0
    %2616 = vmatprep.subr.mxu0 0.0
    %2617 = vmatpush1.msra.mxu0 0.0
    %2618 = vmatprep.subr.mxu0 0.0
    %2619 = vmatpush1.msra.mxu0 0.0
    %2620 = vmatprep.subr.mxu0 0.0
    %2621 = vmatpush1.msra.mxu0 0.0
    %2622 = vmatprep.subr.mxu0 0.0
    %2623 = vmatpush1.msra.mxu0 0.0
    %2624 = vmatprep.subr.mxu0 0.0
    %2625 = vmatpush1.msra.mxu0 0.0
    %2626 = vmatprep.subr.mxu0 0.0
    %2627 = vmatpush1.msra.mxu0 0.0
    %2628 = vmatprep.subr.mxu0 0.0
    %2629 = vmatpush1.msra.mxu0 0.0
    %2630 = vmatprep.subr.mxu0 0.0
    %2631 = vmatpush1.msra.mxu0 0.0
    %2632 = vmatprep.subr.mxu0 0.0
    %2633 = vmatpush1.msra.mxu0 0.0
    %2634 = vmatprep.subr.mxu0 0.0
    %2635 = vmatpush1.msra.mxu0 0.0
    %2636 = vmatprep.subr.mxu0 0.0
    %2637 = vmatpush1.msra.mxu0 0.0
    %2638 = vmatprep.subr.mxu0 0.0
    %2639 = vmatpush1.msra.mxu0 0.0
    %2640 = vmatprep.subr.mxu0 0.0
    %2641 = vmatpush1.msra.mxu0 0.0
    %2642 = vmatprep.subr.mxu0 0.0
    %2643 = vmatpush1.msra.mxu0 %v2607
    %2644 = vmatprep.subr.mxu0 0.0
    %2645 = vmatpush2.msra.mxu0 0.0
    %2646 = vmatprep.subr.mxu0 0.0
    %2647 = vmatpush2.msra.mxu0 0.0
    %2648 = vmatprep.subr.mxu0 0.0
    %2649 = vmatpush2.msra.mxu0 0.0
    %2650 = vmatprep.subr.mxu0 0.0
    %2651 = vmatpush2.msra.mxu0 0.0
    %2652 = vmatprep.subr.mxu0 0.0
    %2653 = vmatpush2.msra.mxu0 0.0
    %2654 = vmatprep.subr.mxu0 0.0
    %2655 = vmatpush2.msra.mxu0 0.0
    %2656 = vmatprep.subr.mxu0 0.0
    %2657 = vmatpush2.msra.mxu0 0.0
    %2658 = vmatprep.subr.mxu0 0.0
    %2659 = vmatpush2.msra.mxu0 0.0
    %2660 = vmatprep.subr.mxu0 0.0
    %2661 = vmatpush2.msra.mxu0 0.0
    %2662 = vmatprep.subr.mxu0 0.0
    %2663 = vmatpush2.msra.mxu0 0.0
    %2664 = vmatprep.subr.mxu0 0.0
    %2665 = vmatpush2.msra.mxu0 0.0
    %2666 = vmatprep.subr.mxu0 0.0
    %2667 = vmatpush2.msra.mxu0 0.0
    %2668 = vmatprep.subr.mxu0 0.0
    %2669 = vmatpush2.msra.mxu0 0.0
    %2670 = vmatprep.subr.mxu0 0.0
    %2671 = vmatpush2.msra.mxu0 0.0
    %2672 = vmatprep.subr.mxu0 0.0
    %2673 = vmatpush2.msra.mxu0 0.0
    %2674 = vmatprep.subr.mxu0 0.0
    %2675 = vmatpush2.msra.mxu0 0.0
    %2676 = vmatprep.mubr.f32.mxu0 0.0
    %2677 = vmatmul.mubr.f32.gmra.mxu0 %v2610
    %v2678 = vpop.f32.mrf.mxu0
    %v2679 = vadd.f32 0.0, %v2678
    %v2680 = vpop.f32.mrf.mxu0
    %2681 = vdwg.mxu0
    %2682 = vrot.lane.b32.xlu0 %v336, 100
    %v2683 = vpop.permute.xlu0 %2682
    %2684 = vrot.lane.b32.xlu0 %v346, 68
    %v2685 = vpop.permute.xlu0 %2684
    %v2686 = vsel %vm371, %v2683, 0
    %v2688 = vsel %vm371, %v2685, 0
    %2690 = vmatprep.subr.mxu0 0.0
    %2691 = vmatpush1.xpose.msra.mxu0 0.0
    %2692 = vmatprep.subr.mxu0 0.0
    %2693 = vmatpush1.xpose.msra.mxu0 0.0
    %2694 = vmatprep.subr.mxu0 0.0
    %2695 = vmatpush1.xpose.msra.mxu0 0.0
    %2696 = vmatprep.subr.mxu0 0.0
    %2697 = vmatpush1.xpose.msra.mxu0 0.0
    %2698 = vmatprep.subr.mxu0 0.0
    %2699 = vmatpush1.xpose.msra.mxu0 0.0
    %2700 = vmatprep.subr.mxu0 0.0
    %2701 = vmatpush1.xpose.msra.mxu0 0.0
    %2702 = vmatprep.subr.mxu0 0.0
    %2703 = vmatpush1.xpose.msra.mxu0 0.0
    %2704 = vmatprep.subr.mxu0 0.0
    %2705 = vmatpush1.xpose.msra.mxu0 0.0
    %2706 = vmatprep.subr.mxu0 0.0
    %2707 = vmatpush1.xpose.msra.mxu0 0.0
    %2708 = vmatprep.subr.mxu0 0.0
    %2709 = vmatpush1.xpose.msra.mxu0 0.0
    %2710 = vmatprep.subr.mxu0 0.0
    %2711 = vmatpush1.xpose.msra.mxu0 0.0
    %2712 = vmatprep.subr.mxu0 0.0
    %2713 = vmatpush1.xpose.msra.mxu0 0.0
    %2714 = vmatprep.subr.mxu0 0.0
    %2715 = vmatpush1.xpose.msra.mxu0 0.0
    %2716 = vmatprep.subr.mxu0 0.0
    %2717 = vmatpush1.xpose.msra.mxu0 0.0
    %2718 = vmatprep.subr.mxu0 0.0
    %2719 = vmatpush1.xpose.msra.mxu0 0.0
    %2720 = vmatprep.subr.mxu0 0.0
    %2721 = vmatpush1.xpose.msra.mxu0 %v2688
    %2722 = vmatprep.subr.mxu0 0.0
    %2723 = vmatpush2.xpose.msra.mxu0 0.0
    %2724 = vmatprep.subr.mxu0 0.0
    %2725 = vmatpush2.xpose.msra.mxu0 0.0
    %2726 = vmatprep.subr.mxu0 0.0
    %2727 = vmatpush2.xpose.msra.mxu0 0.0
    %2728 = vmatprep.subr.mxu0 0.0
    %2729 = vmatpush2.xpose.msra.mxu0 0.0
    %2730 = vmatprep.subr.mxu0 0.0
    %2731 = vmatpush2.xpose.msra.mxu0 0.0
    %2732 = vmatprep.subr.mxu0 0.0
    %2733 = vmatpush2.xpose.msra.mxu0 0.0
    %2734 = vmatprep.subr.mxu0 0.0
    %2735 = vmatpush2.xpose.msra.mxu0 0.0
    %2736 = vmatprep.subr.mxu0 0.0
    %2737 = vmatpush2.xpose.msra.mxu0 0.0
    %2738 = vmatprep.subr.mxu0 0.0
    %2739 = vmatpush2.xpose.msra.mxu0 0.0
    %2740 = vmatprep.subr.mxu0 0.0
    %2741 = vmatpush2.xpose.msra.mxu0 0.0
    %2742 = vmatprep.subr.mxu0 0.0
    %2743 = vmatpush2.xpose.msra.mxu0 0.0
    %2744 = vmatprep.subr.mxu0 0.0
    %2745 = vmatpush2.xpose.msra.mxu0 0.0
    %2746 = vmatprep.subr.mxu0 0.0
    %2747 = vmatpush2.xpose.msra.mxu0 0.0
    %2748 = vmatprep.subr.mxu0 0.0
    %2749 = vmatpush2.xpose.msra.mxu0 0.0
    %2750 = vmatprep.subr.mxu0 0.0
    %2751 = vmatpush2.xpose.msra.mxu0 0.0
    %2752 = vmatprep.subr.mxu0 0.0
    %2753 = vmatpush2.xpose.msra.mxu0 0.0
    %2754 = vmatprep.mubr.f32.mxu0 0.0
    %2755 = vmatmul.mubr.f32.gmra.mxu0 %v2686
    %v2756 = vpop.f32.mrf.mxu0
    %v2757 = vadd.f32 %v361, %v2756
    %v2758 = vpop.f32.mrf.mxu0
    %2759 = vdwg.mxu0
    %2760 = vrot.lane.b32.xlu0 %v337, 100
    %v2761 = vpop.permute.xlu0 %2760
    %2762 = vrot.lane.b32.xlu0 %v347, 68
    %v2763 = vpop.permute.xlu0 %2762
    %v2764 = vsel %vm371, %v2761, 0
    %v2766 = vsel %vm371, %v2763, 0
    %2768 = vmatprep.subr.mxu0 0.0
    %2769 = vmatpush1.xpose.msra.mxu0 0.0
    %2770 = vmatprep.subr.mxu0 0.0
    %2771 = vmatpush1.xpose.msra.mxu0 0.0
    %2772 = vmatprep.subr.mxu0 0.0
    %2773 = vmatpush1.xpose.msra.mxu0 0.0
    %2774 = vmatprep.subr.mxu0 0.0
    %2775 = vmatpush1.xpose.msra.mxu0 0.0
    %2776 = vmatprep.subr.mxu0 0.0
    %2777 = vmatpush1.xpose.msra.mxu0 0.0
    %2778 = vmatprep.subr.mxu0 0.0
    %2779 = vmatpush1.xpose.msra.mxu0 0.0
    %2780 = vmatprep.subr.mxu0 0.0
    %2781 = vmatpush1.xpose.msra.mxu0 0.0
    %2782 = vmatprep.subr.mxu0 0.0
    %2783 = vmatpush1.xpose.msra.mxu0 0.0
    %2784 = vmatprep.subr.mxu0 0.0
    %2785 = vmatpush1.xpose.msra.mxu0 0.0
    %2786 = vmatprep.subr.mxu0 0.0
    %2787 = vmatpush1.xpose.msra.mxu0 0.0
    %2788 = vmatprep.subr.mxu0 0.0
    %2789 = vmatpush1.xpose.msra.mxu0 0.0
    %2790 = vmatprep.subr.mxu0 0.0
    %2791 = vmatpush1.xpose.msra.mxu0 0.0
    %2792 = vmatprep.subr.mxu0 0.0
    %2793 = vmatpush1.xpose.msra.mxu0 0.0
    %2794 = vmatprep.subr.mxu0 0.0
    %2795 = vmatpush1.xpose.msra.mxu0 0.0
    %2796 = vmatprep.subr.mxu0 0.0
    %2797 = vmatpush1.xpose.msra.mxu0 0.0
    %2798 = vmatprep.subr.mxu0 0.0
    %2799 = vmatpush1.xpose.msra.mxu0 %v2766
    %2800 = vmatprep.subr.mxu0 0.0
    %2801 = vmatpush2.xpose.msra.mxu0 0.0
    %2802 = vmatprep.subr.mxu0 0.0
    %2803 = vmatpush2.xpose.msra.mxu0 0.0
    %2804 = vmatprep.subr.mxu0 0.0
    %2805 = vmatpush2.xpose.msra.mxu0 0.0
    %2806 = vmatprep.subr.mxu0 0.0
    %2807 = vmatpush2.xpose.msra.mxu0 0.0
    %2808 = vmatprep.subr.mxu0 0.0
    %2809 = vmatpush2.xpose.msra.mxu0 0.0
    %2810 = vmatprep.subr.mxu0 0.0
    %2811 = vmatpush2.xpose.msra.mxu0 0.0
    %2812 = vmatprep.subr.mxu0 0.0
    %2813 = vmatpush2.xpose.msra.mxu0 0.0
    %2814 = vmatprep.subr.mxu0 0.0
    %2815 = vmatpush2.xpose.msra.mxu0 0.0
    %2816 = vmatprep.subr.mxu0 0.0
    %2817 = vmatpush2.xpose.msra.mxu0 0.0
    %2818 = vmatprep.subr.mxu0 0.0
    %2819 = vmatpush2.xpose.msra.mxu0 0.0
    %2820 = vmatprep.subr.mxu0 0.0
    %2821 = vmatpush2.xpose.msra.mxu0 0.0
    %2822 = vmatprep.subr.mxu0 0.0
    %2823 = vmatpush2.xpose.msra.mxu0 0.0
    %2824 = vmatprep.subr.mxu0 0.0
    %2825 = vmatpush2.xpose.msra.mxu0 0.0
    %2826 = vmatprep.subr.mxu0 0.0
    %2827 = vmatpush2.xpose.msra.mxu0 0.0
    %2828 = vmatprep.subr.mxu0 0.0
    %2829 = vmatpush2.xpose.msra.mxu0 0.0
    %2830 = vmatprep.subr.mxu0 0.0
    %2831 = vmatpush2.xpose.msra.mxu0 0.0
    %2832 = vmatprep.mubr.f32.mxu0 0.0
    %2833 = vmatmul.mubr.f32.gmra.mxu0 %v2764
    %v2834 = vpop.f32.mrf.mxu0
    %v2835 = vadd.f32 %v365, %v2834
    %v2836 = vpop.f32.mrf.mxu0
    %2837 = vdwg.mxu0
    %v2838 = vsel %vm525, %v2757, -inf
    %2839 = vmax.xlane.f32.xlu0 %v2838
    %v2840 = vpop.xlane.xlu0 %2839
    %v2841 = vsel %vm525, %v2835, -inf
    %2842 = vmax.xlane.f32.xlu0 %v2841
    %v2843 = vpop.xlane.xlu0 %2842
    %v2844 = vsub.f32 %v2757, %v2840
    %v2845 = vsub.f32 %v2835, %v2843
    %v2846 = vmul.f32 %v2844, 1.442695
    %v2847 = vpow.pop %v2846
    %v2848 = vmul.f32 %v2845, 1.442695
    %v2849 = vpow.pop %v2848
    %v2850 = vsel %vm525, %v2847, 0.0
    %2851 = vadd.xlane.f32.xlu0 %v2850
    %v2852 = vpop.xlane.xlu0 %2851
    %v2853 = vsel %vm525, %v2849, 0.0
    %2854 = vadd.xlane.f32.xlu0 %v2853
    %v2855 = vpop.xlane.xlu0 %2854
    %v2856 = vrcp.pop %v2852
    %v2857 = vrcp.pop %v2855
    %v2858 = vmul.f32 %v2847, %v2856
    %v2859 = vmul.f32 %v2849, %v2857
    %2860 = vrot.lane.b32.xlu0 %v356, 36
    %v2861 = vpop.permute.xlu0 %2860
    %v2864 = vsel %vm525, %v2858, 0
    %2866 = vmatprep.subr.mxu0 0.0
    %2867 = vmatpush1.msra.mxu0 0.0
    %2868 = vmatprep.subr.mxu0 0.0
    %2869 = vmatpush1.msra.mxu0 0.0
    %2870 = vmatprep.subr.mxu0 0.0
    %2871 = vmatpush1.msra.mxu0 0.0
    %2872 = vmatprep.subr.mxu0 0.0
    %2873 = vmatpush1.msra.mxu0 0.0
    %2874 = vmatprep.subr.mxu0 0.0
    %2875 = vmatpush1.msra.mxu0 0.0
    %2876 = vmatprep.subr.mxu0 0.0
    %2877 = vmatpush1.msra.mxu0 0.0
    %2878 = vmatprep.subr.mxu0 0.0
    %2879 = vmatpush1.msra.mxu0 0.0
    %2880 = vmatprep.subr.mxu0 0.0
    %2881 = vmatpush1.msra.mxu0 0.0
    %2882 = vmatprep.subr.mxu0 0.0
    %2883 = vmatpush1.msra.mxu0 0.0
    %2884 = vmatprep.subr.mxu0 0.0
    %2885 = vmatpush1.msra.mxu0 0.0
    %2886 = vmatprep.subr.mxu0 0.0
    %2887 = vmatpush1.msra.mxu0 0.0
    %2888 = vmatprep.subr.mxu0 0.0
    %2889 = vmatpush1.msra.mxu0 0.0
    %2890 = vmatprep.subr.mxu0 0.0
    %2891 = vmatpush1.msra.mxu0 0.0
    %2892 = vmatprep.subr.mxu0 0.0
    %2893 = vmatpush1.msra.mxu0 0.0
    %2894 = vmatprep.subr.mxu0 0.0
    %2895 = vmatpush1.msra.mxu0 0.0
    %2896 = vmatprep.subr.mxu0 0.0
    %2897 = vmatpush1.msra.mxu0 %v2861
    %2898 = vmatprep.subr.mxu0 0.0
    %2899 = vmatpush2.msra.mxu0 0.0
    %2900 = vmatprep.subr.mxu0 0.0
    %2901 = vmatpush2.msra.mxu0 0.0
    %2902 = vmatprep.subr.mxu0 0.0
    %2903 = vmatpush2.msra.mxu0 0.0
    %2904 = vmatprep.subr.mxu0 0.0
    %2905 = vmatpush2.msra.mxu0 0.0
    %2906 = vmatprep.subr.mxu0 0.0
    %2907 = vmatpush2.msra.mxu0 0.0
    %2908 = vmatprep.subr.mxu0 0.0
    %2909 = vmatpush2.msra.mxu0 0.0
    %2910 = vmatprep.subr.mxu0 0.0
    %2911 = vmatpush2.msra.mxu0 0.0
    %2912 = vmatprep.subr.mxu0 0.0
    %2913 = vmatpush2.msra.mxu0 0.0
    %2914 = vmatprep.subr.mxu0 0.0
    %2915 = vmatpush2.msra.mxu0 0.0
    %2916 = vmatprep.subr.mxu0 0.0
    %2917 = vmatpush2.msra.mxu0 0.0
    %2918 = vmatprep.subr.mxu0 0.0
    %2919 = vmatpush2.msra.mxu0 0.0
    %2920 = vmatprep.subr.mxu0 0.0
    %2921 = vmatpush2.msra.mxu0 0.0
    %2922 = vmatprep.subr.mxu0 0.0
    %2923 = vmatpush2.msra.mxu0 0.0
    %2924 = vmatprep.subr.mxu0 0.0
    %2925 = vmatpush2.msra.mxu0 0.0
    %2926 = vmatprep.subr.mxu0 0.0
    %2927 = vmatpush2.msra.mxu0 0.0
    %2928 = vmatprep.subr.mxu0 0.0
    %2929 = vmatpush2.msra.mxu0 0.0
    %2930 = vmatprep.mubr.f32.mxu0 0.0
    %2931 = vmatmul.mubr.f32.gmra.mxu0 %v2864
    %v2932 = vpop.f32.mrf.mxu0
    %v2933 = vadd.f32 0.0, %v2932
    %v2934 = vpop.f32.mrf.mxu0
    %2935 = vdwg.mxu0
    %2936 = vrot.lane.b32.xlu0 %v357, 36
    %v2937 = vpop.permute.xlu0 %2936
    %v2940 = vsel %vm525, %v2859, 0
    %2942 = vmatprep.subr.mxu0 0.0
    %2943 = vmatpush1.msra.mxu0 0.0
    %2944 = vmatprep.subr.mxu0 0.0
    %2945 = vmatpush1.msra.mxu0 0.0
    %2946 = vmatprep.subr.mxu0 0.0
    %2947 = vmatpush1.msra.mxu0 0.0
    %2948 = vmatprep.subr.mxu0 0.0
    %2949 = vmatpush1.msra.mxu0 0.0
    %2950 = vmatprep.subr.mxu0 0.0
    %2951 = vmatpush1.msra.mxu0 0.0
    %2952 = vmatprep.subr.mxu0 0.0
    %2953 = vmatpush1.msra.mxu0 0.0
    %2954 = vmatprep.subr.mxu0 0.0
    %2955 = vmatpush1.msra.mxu0 0.0
    %2956 = vmatprep.subr.mxu0 0.0
    %2957 = vmatpush1.msra.mxu0 0.0
    %2958 = vmatprep.subr.mxu0 0.0
    %2959 = vmatpush1.msra.mxu0 0.0
    %2960 = vmatprep.subr.mxu0 0.0
    %2961 = vmatpush1.msra.mxu0 0.0
    %2962 = vmatprep.subr.mxu0 0.0
    %2963 = vmatpush1.msra.mxu0 0.0
    %2964 = vmatprep.subr.mxu0 0.0
    %2965 = vmatpush1.msra.mxu0 0.0
    %2966 = vmatprep.subr.mxu0 0.0
    %2967 = vmatpush1.msra.mxu0 0.0
    %2968 = vmatprep.subr.mxu0 0.0
    %2969 = vmatpush1.msra.mxu0 0.0
    %2970 = vmatprep.subr.mxu0 0.0
    %2971 = vmatpush1.msra.mxu0 0.0
    %2972 = vmatprep.subr.mxu0 0.0
    %2973 = vmatpush1.msra.mxu0 %v2937
    %2974 = vmatprep.subr.mxu0 0.0
    %2975 = vmatpush2.msra.mxu0 0.0
    %2976 = vmatprep.subr.mxu0 0.0
    %2977 = vmatpush2.msra.mxu0 0.0
    %2978 = vmatprep.subr.mxu0 0.0
    %2979 = vmatpush2.msra.mxu0 0.0
    %2980 = vmatprep.subr.mxu0 0.0
    %2981 = vmatpush2.msra.mxu0 0.0
    %2982 = vmatprep.subr.mxu0 0.0
    %2983 = vmatpush2.msra.mxu0 0.0
    %2984 = vmatprep.subr.mxu0 0.0
    %2985 = vmatpush2.msra.mxu0 0.0
    %2986 = vmatprep.subr.mxu0 0.0
    %2987 = vmatpush2.msra.mxu0 0.0
    %2988 = vmatprep.subr.mxu0 0.0
    %2989 = vmatpush2.msra.mxu0 0.0
    %2990 = vmatprep.subr.mxu0 0.0
    %2991 = vmatpush2.msra.mxu0 0.0
    %2992 = vmatprep.subr.mxu0 0.0
    %2993 = vmatpush2.msra.mxu0 0.0
    %2994 = vmatprep.subr.mxu0 0.0
    %2995 = vmatpush2.msra.mxu0 0.0
    %2996 = vmatprep.subr.mxu0 0.0
    %2997 = vmatpush2.msra.mxu0 0.0
    %2998 = vmatprep.subr.mxu0 0.0
    %2999 = vmatpush2.msra.mxu0 0.0
    %3000 = vmatprep.subr.mxu0 0.0
    %3001 = vmatpush2.msra.mxu0 0.0
    %3002 = vmatprep.subr.mxu0 0.0
    %3003 = vmatpush2.msra.mxu0 0.0
    %3004 = vmatprep.subr.mxu0 0.0
    %3005 = vmatpush2.msra.mxu0 0.0
    %3006 = vmatprep.mubr.f32.mxu0 0.0
    %3007 = vmatmul.mubr.f32.gmra.mxu0 %v2940
    %v3008 = vpop.f32.mrf.mxu0
    %v3009 = vadd.f32 0.0, %v3008
    %v3010 = vpop.f32.mrf.mxu0
    %3011 = vdwg.mxu0
    %3014 = vrot.lane.b32.xlu0 %v953, 4
    %v3015 = vpop.permute.xlu0 %3014
    %3016 = vrot.lane.b32.xlu0 %v1029, 4
    %v3017 = vpop.permute.xlu0 %3016
    %3022 = vrot.lane.b32.xlu0 %v1283, 8
    %v3023 = vpop.permute.xlu0 %3022
    %3024 = vrot.lane.b32.xlu0 %v1359, 8
    %v3025 = vpop.permute.xlu0 %3024
    %3030 = vrot.lane.b32.xlu0 %v1613, 12
    %v3031 = vpop.permute.xlu0 %3030
    %3032 = vrot.lane.b32.xlu0 %v1689, 12
    %v3033 = vpop.permute.xlu0 %3032
    %3038 = vrot.lane.b32.xlu0 %v1943, 16
    %v3039 = vpop.permute.xlu0 %3038
    %3040 = vrot.lane.b32.xlu0 %v2019, 16
    %v3041 = vpop.permute.xlu0 %3040
    %3046 = vrot.lane.b32.xlu0 %v2273, 20
    %v3047 = vpop.permute.xlu0 %3046
    %3048 = vrot.lane.b32.xlu0 %v2349, 20
    %v3049 = vpop.permute.xlu0 %3048
    %3054 = vrot.lane.b32.xlu0 %v2603, 24
    %v3055 = vpop.permute.xlu0 %3054
    %3056 = vrot.lane.b32.xlu0 %v2679, 24
    %v3057 = vpop.permute.xlu0 %3056
    %3062 = vrot.lane.b32.xlu0 %v2933, 28
    %v3063 = vpop.permute.xlu0 %3062
    %3064 = vrot.lane.b32.xlu0 %v3009, 28
    %v3065 = vpop.permute.xlu0 %3064
    %v3068 = vsel %vm371, %v622, %v3015
    %v3069 = vsel %vm371, %v699, %v3017
    %v3070 = vsel %vm525, %v3068, %v3023
    %v3071 = vsel %vm525, %v3069, %v3025
    %vm3072 = vcmask 97280
    %v3073 = vsel %vm3072, %v3070, %v3031
    %v3074 = vsel %vm3072, %v3071, %v3033
    %vm3075 = vcmask 130048
    %v3076 = vsel %vm3075, %v3073, %v3039
    %v3077 = vsel %vm3075, %v3074, %v3041
    %vm3078 = vcmask 162816
    %v3079 = vsel %vm3078, %v3076, %v3047
    %v3080 = vsel %vm3078, %v3077, %v3049
    %vm3081 = vcmask 195584
    %v3082 = vsel %vm3081, %v3079, %v3055
    %v3083 = vsel %vm3081, %v3080, %v3057
    %vm3084 = vcmask 228352
    %v3085 = vsel %vm3084, %v3082, %v3063
    %v3086 = vsel %vm3084, %v3083, %v3065
    %v3087 = vld [vmem:[#allocation9] sm:$0xff]
    %v3088 = vld [vmem:[#allocation9 + $0x8] sm:$0xff]
    %v3089 = vld [vmem:[#allocation9 + $0x10] sm:$0xff]
    %v3090 = vld [vmem:[#allocation9 + $0x18] sm:$0xff]
    %v3091 = vlaneseq
    %v3092 = vshrl.u32 %v3091, 7
    %v3093 = vsub.s32 3, %v3092
    %v3094 = vrot.slane %v244, %v3093
    %v3096 = vsel %vm250, %v3085, 0
    %v3099 = vsel %vm250, %v3086, 0
    %3101 = vmatprep.subr.mxu0 0.0
    %3102 = vmatpush1.msra.mxu0 0.0
    %3103 = vmatprep.subr.mxu0 0.0
    %3104 = vmatpush1.msra.mxu0 0.0
    %3105 = vmatprep.subr.mxu0 0.0
    %3106 = vmatpush1.msra.mxu0 0.0
    %3107 = vmatprep.subr.mxu0 0.0
    %3108 = vmatpush1.msra.mxu0 0.0
    %3109 = vmatprep.subr.mxu0 0.0
    %3110 = vmatpush1.msra.mxu0 0.0
    %3111 = vmatprep.subr.mxu0 0.0
    %3112 = vmatpush1.msra.mxu0 0.0
    %3113 = vmatprep.subr.mxu0 0.0
    %3114 = vmatpush1.msra.mxu0 0.0
    %3115 = vmatprep.subr.mxu0 0.0
    %3116 = vmatpush1.msra.mxu0 0.0
    %3117 = vmatprep.subr.mxu0 0.0
    %3118 = vmatpush1.msra.mxu0 0.0
    %3119 = vmatprep.subr.mxu0 0.0
    %3120 = vmatpush1.msra.mxu0 0.0
    %3121 = vmatprep.subr.mxu0 0.0
    %3122 = vmatpush1.msra.mxu0 0.0
    %3123 = vmatprep.subr.mxu0 0.0
    %3124 = vmatpush1.msra.mxu0 0.0
    %3125 = vmatprep.subr.mxu0 0.0
    %3126 = vmatpush1.msra.mxu0 %v3090
    %3127 = vmatprep.subr.mxu0 0.0
    %3128 = vmatpush1.msra.mxu0 %v3089
    %3129 = vmatprep.subr.mxu0 0.0
    %3130 = vmatpush1.msra.mxu0 %v3088
    %3131 = vmatprep.subr.mxu0 0.0
    %3132 = vmatpush1.msra.mxu0 %v3087
    %3133 = vmatprep.subr.mxu0 0.0
    %3134 = vmatpush2.msra.mxu0 0.0
    %3135 = vmatprep.subr.mxu0 0.0
    %3136 = vmatpush2.msra.mxu0 0.0
    %3137 = vmatprep.subr.mxu0 0.0
    %3138 = vmatpush2.msra.mxu0 0.0
    %3139 = vmatprep.subr.mxu0 0.0
    %3140 = vmatpush2.msra.mxu0 0.0
    %3141 = vmatprep.subr.mxu0 0.0
    %3142 = vmatpush2.msra.mxu0 0.0
    %3143 = vmatprep.subr.mxu0 0.0
    %3144 = vmatpush2.msra.mxu0 0.0
    %3145 = vmatprep.subr.mxu0 0.0
    %3146 = vmatpush2.msra.mxu0 0.0
    %3147 = vmatprep.subr.mxu0 0.0
    %3148 = vmatpush2.msra.mxu0 0.0
    %3149 = vmatprep.subr.mxu0 0.0
    %3150 = vmatpush2.msra.mxu0 0.0
    %3151 = vmatprep.subr.mxu0 0.0
    %3152 = vmatpush2.msra.mxu0 0.0
    %3153 = vmatprep.subr.mxu0 0.0
    %3154 = vmatpush2.msra.mxu0 0.0
    %3155 = vmatprep.subr.mxu0 0.0
    %3156 = vmatpush2.msra.mxu0 0.0
    %3157 = vmatprep.subr.mxu0 0.0
    %3158 = vmatpush2.msra.mxu0 0.0
    %3159 = vmatprep.subr.mxu0 0.0
    %3160 = vmatpush2.msra.mxu0 0.0
    %3161 = vmatprep.subr.mxu0 0.0
    %3162 = vmatpush2.msra.mxu0 0.0
    %3163 = vmatprep.subr.mxu0 0.0
    %3164 = vmatpush2.msra.mxu0 0.0
    %3165 = vmatprep.mubr.f32.mxu0 0.0
    %3166 = vmatmul.mubr.f32.gmra.mxu0 %v3096
    %v3167 = vpop.f32.mrf.mxu0
    %v3168 = vadd.f32 %v3094, %v3167
    %v3169 = vpop.f32.mrf.mxu0
    %3170 = vmatprep.mubr.f32.mxu0 0.0
    %3171 = vmatmul.mubr.f32.gmra.mxu0 %v3099
    %v3172 = vpop.f32.mrf.mxu0
    %v3173 = vadd.f32 %v3094, %v3172
    %v3174 = vpop.f32.mrf.mxu0
    %3175 = vdwg.mxu0
    %v3176 = vadd.f32 %v216, %v3168
    %v3177 = vadd.f32 %v217, %v3173
    %v3178 = vsel %vm250, %v3176, 0.0
    %3179 = vadd.xlane.f32.xlu0 %v3178
    %v3180 = vpop.xlane.xlu0 %3179
    %v3181 = vsel %vm250, %v3177, 0.0
    %3182 = vadd.xlane.f32.xlu0 %v3181
    %v3183 = vpop.xlane.xlu0 %3182
    %v3184 = vrcp.pop 32.0
    %v3185 = vmul.f32 %v3180, %v3184
    %v3186 = vmul.f32 %v3183, %v3184
    %v3187 = vsub.f32 %v3176, %v3185
    %v3188 = vsub.f32 %v3177, %v3186
    %v3189 = vmul.f32 %v3187, %v3187
    %v3190 = vmul.f32 %v3188, %v3188
    %v3191 = vsel %vm250, %v3189, 0.0
    %3192 = vadd.xlane.f32.xlu0 %v3191
    %v3193 = vpop.xlane.xlu0 %3192
    %v3194 = vsel %vm250, %v3190, 0.0
    %3195 = vadd.xlane.f32.xlu0 %v3194
    %v3196 = vpop.xlane.xlu0 %3195
    %v3197 = vmul.f32 %v3193, %v3184
    %v3198 = vmul.f32 %v3196, %v3184
    %v3199 = vadd.f32 %v3197, 1e-05
    %v3200 = vadd.f32 %v3198, 1e-05
    %v3201 = vrsqrt.pop %v3199
    %v3202 = vrsqrt.pop %v3200
    %v3203 = vmul.f32 %v3187, %v3201
    %v3204 = vmul.f32 %v3188, %v3202
    %v3205 = vlaneseq
    %v3206 = vshrl.u32 %v3205, 7
    %v3207 = vsub.s32 5, %v3206
    %v3208 = vrot.slane %v244, %v3207
    %v3209 = vmul.f32 %v3203, %v3208
    %v3210 = vmul.f32 %v3204, %v3208
    %v3211 = vlaneseq
    %v3212 = vshrl.u32 %v3211, 7
    %v3213 = vsub.s32 6, %v3212
    %v3214 = vrot.slane %v244, %v3213
    %v3215 = vadd.f32 %v3209, %v3214
    %v3216 = vadd.f32 %v3210, %v3214
    %v3217 = vld [vmem:[#allocation10] sm:$0xff]
    %v3218 = vld [vmem:[#allocation10 + $0x8] sm:$0xff]
    %v3219 = vld [vmem:[#allocation10 + $0x10] sm:$0xff]
    %v3220 = vld [vmem:[#allocation10 + $0x18] sm:$0xff]
    %v3221 = vld [vmem:[%s8] sm:$0x1]
    %v3223 = vlaneseq
    %v3224 = vshrl.u32 %v3223, 7
    %v3225 = vsub.s32 0, %v3224
    %v3226 = vrot.slane %v3221, %v3225
    %v3229 = vsel %vm250, %v3215, 0
    %v3232 = vsel %vm250, %v3216, 0
    %3234 = vmatprep.subr.mxu0 0.0
    %3235 = vmatpush1.msra.mxu0 0.0
    %3236 = vmatprep.subr.mxu0 0.0
    %3237 = vmatpush1.msra.mxu0 0.0
    %3238 = vmatprep.subr.mxu0 0.0
    %3239 = vmatpush1.msra.mxu0 0.0
    %3240 = vmatprep.subr.mxu0 0.0
    %3241 = vmatpush1.msra.mxu0 0.0
    %3242 = vmatprep.subr.mxu0 0.0
    %3243 = vmatpush1.msra.mxu0 0.0
    %3244 = vmatprep.subr.mxu0 0.0
    %3245 = vmatpush1.msra.mxu0 0.0
    %3246 = vmatprep.subr.mxu0 0.0
    %3247 = vmatpush1.msra.mxu0 0.0
    %3248 = vmatprep.subr.mxu0 0.0
    %3249 = vmatpush1.msra.mxu0 0.0
    %3250 = vmatprep.subr.mxu0 0.0
    %3251 = vmatpush1.msra.mxu0 0.0
    %3252 = vmatprep.subr.mxu0 0.0
    %3253 = vmatpush1.msra.mxu0 0.0
    %3254 = vmatprep.subr.mxu0 0.0
    %3255 = vmatpush1.msra.mxu0 0.0
    %3256 = vmatprep.subr.mxu0 0.0
    %3257 = vmatpush1.msra.mxu0 0.0
    %3258 = vmatprep.subr.mxu0 0.0
    %3259 = vmatpush1.msra.mxu0 %v3220
    %3260 = vmatprep.subr.mxu0 0.0
    %3261 = vmatpush1.msra.mxu0 %v3219
    %3262 = vmatprep.subr.mxu0 0.0
    %3263 = vmatpush1.msra.mxu0 %v3218
    %3264 = vmatprep.subr.mxu0 0.0
    %3265 = vmatpush1.msra.mxu0 %v3217
    %3266 = vmatprep.subr.mxu0 0.0
    %3267 = vmatpush2.msra.mxu0 0.0
    %3268 = vmatprep.subr.mxu0 0.0
    %3269 = vmatpush2.msra.mxu0 0.0
    %3270 = vmatprep.subr.mxu0 0.0
    %3271 = vmatpush2.msra.mxu0 0.0
    %3272 = vmatprep.subr.mxu0 0.0
    %3273 = vmatpush2.msra.mxu0 0.0
    %3274 = vmatprep.subr.mxu0 0.0
    %3275 = vmatpush2.msra.mxu0 0.0
    %3276 = vmatprep.subr.mxu0 0.0
    %3277 = vmatpush2.msra.mxu0 0.0
    %3278 = vmatprep.subr.mxu0 0.0
    %3279 = vmatpush2.msra.mxu0 0.0
    %3280 = vmatprep.subr.mxu0 0.0
    %3281 = vmatpush2.msra.mxu0 0.0
    %3282 = vmatprep.subr.mxu0 0.0
    %3283 = vmatpush2.msra.mxu0 0.0
    %3284 = vmatprep.subr.mxu0 0.0
    %3285 = vmatpush2.msra.mxu0 0.0
    %3286 = vmatprep.subr.mxu0 0.0
    %3287 = vmatpush2.msra.mxu0 0.0
    %3288 = vmatprep.subr.mxu0 0.0
    %3289 = vmatpush2.msra.mxu0 0.0
    %3290 = vmatprep.subr.mxu0 0.0
    %3291 = vmatpush2.msra.mxu0 0.0
    %3292 = vmatprep.subr.mxu0 0.0
    %3293 = vmatpush2.msra.mxu0 0.0
    %3294 = vmatprep.subr.mxu0 0.0
    %3295 = vmatpush2.msra.mxu0 0.0
    %3296 = vmatprep.subr.mxu0 0.0
    %3297 = vmatpush2.msra.mxu0 0.0
    %3298 = vmatprep.mubr.f32.mxu0 0.0
    %3299 = vmatmul.mubr.f32.gmra.mxu0 %v3229
    %v3300 = vpop.f32.mrf.mxu0
    %v3301 = vadd.f32 %v3226, %v3300
    %v3302 = vpop.f32.mrf.mxu0
    %3303 = vmatprep.mubr.f32.mxu0 0.0
    %3304 = vmatmul.mubr.f32.gmra.mxu0 %v3232
    %v3305 = vpop.f32.mrf.mxu0
    %v3306 = vadd.f32 %v3226, %v3305
    %v3307 = vpop.f32.mrf.mxu0
    %3308 = vdwg.mxu0
    %v3309 = vmax.f32 %v3301, 0.0
    %v3310 = vmax.f32 %v3306, 0.0
    %v3311 = vld [vmem:[#allocation12] sm:$0xff]
    %v3312 = vld [vmem:[#allocation12 + $0x8] sm:$0xff]
    %v3313 = vld [vmem:[#allocation12 + $0x10] sm:$0xff]
    %v3314 = vld [vmem:[#allocation12 + $0x18] sm:$0xff]
    %v3315 = vlaneseq
    %v3316 = vshrl.u32 %v3315, 7
    %v3317 = vsub.s32 4, %v3316
    %v3318 = vrot.slane %v244, %v3317
    %v3320 = vsel %vm250, %v3309, 0
    %v3323 = vsel %vm250, %v3310, 0
    %3325 = vmatprep.subr.mxu0 0.0
    %3326 = vmatpush1.msra.mxu0 0.0
    %3327 = vmatprep.subr.mxu0 0.0
    %3328 = vmatpush1.msra.mxu0 0.0
    %3329 = vmatprep.subr.mxu0 0.0
    %3330 = vmatpush1.msra.mxu0 0.0
    %3331 = vmatprep.subr.mxu0 0.0
    %3332 = vmatpush1.msra.mxu0 0.0
    %3333 = vmatprep.subr.mxu0 0.0
    %3334 = vmatpush1.msra.mxu0 0.0
    %3335 = vmatprep.subr.mxu0 0.0
    %3336 = vmatpush1.msra.mxu0 0.0
    %3337 = vmatprep.subr.mxu0 0.0
    %3338 = vmatpush1.msra.mxu0 0.0
    %3339 = vmatprep.subr.mxu0 0.0
    %3340 = vmatpush1.msra.mxu0 0.0
    %3341 = vmatprep.subr.mxu0 0.0
    %3342 = vmatpush1.msra.mxu0 0.0
    %3343 = vmatprep.subr.mxu0 0.0
    %3344 = vmatpush1.msra.mxu0 0.0
    %3345 = vmatprep.subr.mxu0 0.0
    %3346 = vmatpush1.msra.mxu0 0.0
    %3347 = vmatprep.subr.mxu0 0.0
    %3348 = vmatpush1.msra.mxu0 0.0
    %3349 = vmatprep.subr.mxu0 0.0
    %3350 = vmatpush1.msra.mxu0 %v3314
    %3351 = vmatprep.subr.mxu0 0.0
    %3352 = vmatpush1.msra.mxu0 %v3313
    %3353 = vmatprep.subr.mxu0 0.0
    %3354 = vmatpush1.msra.mxu0 %v3312
    %3355 = vmatprep.subr.mxu0 0.0
    %3356 = vmatpush1.msra.mxu0 %v3311
    %3357 = vmatprep.subr.mxu0 0.0
    %3358 = vmatpush2.msra.mxu0 0.0
    %3359 = vmatprep.subr.mxu0 0.0
    %3360 = vmatpush2.msra.mxu0 0.0
    %3361 = vmatprep.subr.mxu0 0.0
    %3362 = vmatpush2.msra.mxu0 0.0
    %3363 = vmatprep.subr.mxu0 0.0
    %3364 = vmatpush2.msra.mxu0 0.0
    %3365 = vmatprep.subr.mxu0 0.0
    %3366 = vmatpush2.msra.mxu0 0.0
    %3367 = vmatprep.subr.mxu0 0.0
    %3368 = vmatpush2.msra.mxu0 0.0
    %3369 = vmatprep.subr.mxu0 0.0
    %3370 = vmatpush2.msra.mxu0 0.0
    %3371 = vmatprep.subr.mxu0 0.0
    %3372 = vmatpush2.msra.mxu0 0.0
    %3373 = vmatprep.subr.mxu0 0.0
    %3374 = vmatpush2.msra.mxu0 0.0
    %3375 = vmatprep.subr.mxu0 0.0
    %3376 = vmatpush2.msra.mxu0 0.0
    %3377 = vmatprep.subr.mxu0 0.0
    %3378 = vmatpush2.msra.mxu0 0.0
    %3379 = vmatprep.subr.mxu0 0.0
    %3380 = vmatpush2.msra.mxu0 0.0
    %3381 = vmatprep.subr.mxu0 0.0
    %3382 = vmatpush2.msra.mxu0 0.0
    %3383 = vmatprep.subr.mxu0 0.0
    %3384 = vmatpush2.msra.mxu0 0.0
    %3385 = vmatprep.subr.mxu0 0.0
    %3386 = vmatpush2.msra.mxu0 0.0
    %3387 = vmatprep.subr.mxu0 0.0
    %3388 = vmatpush2.msra.mxu0 0.0
    %3389 = vmatprep.mubr.f32.mxu0 0.0
    %3390 = vmatmul.mubr.f32.gmra.mxu0 %v3320
    %v3391 = vpop.f32.mrf.mxu0
    %v3392 = vadd.f32 %v3318, %v3391
    %v3393 = vpop.f32.mrf.mxu0
    %3394 = vmatprep.mubr.f32.mxu0 0.0
    %3395 = vmatmul.mubr.f32.gmra.mxu0 %v3323
    %v3396 = vpop.f32.mrf.mxu0
    %v3397 = vadd.f32 %v3318, %v3396
    %v3398 = vpop.f32.mrf.mxu0
    %3399 = vdwg.mxu0
    %v3400 = vadd.f32 %v3215, %v3392
    %v3401 = vadd.f32 %v3216, %v3397
    %v3402 = vsel %vm250, %v3400, 0.0
    %3403 = vadd.xlane.f32.xlu0 %v3402
    %v3404 = vpop.xlane.xlu0 %3403
    %v3405 = vsel %vm250, %v3401, 0.0
    %3406 = vadd.xlane.f32.xlu0 %v3405
    %v3407 = vpop.xlane.xlu0 %3406
    %v3408 = vmul.f32 %v3404, %v3184
    %v3409 = vmul.f32 %v3407, %v3184
    %v3410 = vsub.f32 %v3400, %v3408
    %v3411 = vsub.f32 %v3401, %v3409
    %v3412 = vmul.f32 %v3410, %v3410
    %v3413 = vmul.f32 %v3411, %v3411
    %v3414 = vsel %vm250, %v3412, 0.0
    %3415 = vadd.xlane.f32.xlu0 %v3414
    %v3416 = vpop.xlane.xlu0 %3415
    %v3417 = vsel %vm250, %v3413, 0.0
    %3418 = vadd.xlane.f32.xlu0 %v3417
    %v3419 = vpop.xlane.xlu0 %3418
    %v3420 = vmul.f32 %v3416, %v3184
    %v3421 = vmul.f32 %v3419, %v3184
    %v3422 = vadd.f32 %v3420, 1e-05
    %v3423 = vadd.f32 %v3421, 1e-05
    %v3424 = vrsqrt.pop %v3422
    %v3425 = vrsqrt.pop %v3423
    %v3426 = vmul.f32 %v3410, %v3424
    %v3427 = vmul.f32 %v3411, %v3425
    %v3428 = vlaneseq
    %v3429 = vshrl.u32 %v3428, 7
    %v3430 = vsub.s32 7, %v3429
    %v3431 = vrot.slane %v244, %v3430
    %v3432 = vmul.f32 %v3426, %v3431
    %v3433 = vmul.f32 %v3427, %v3431
    %v3434 = vlaneseq
    %v3435 = vshrl.u32 %v3434, 7
    %v3436 = vsub.s32 0, %v3435
    %v3437 = vrot.slane %v245, %v3436
    %v3438 = vadd.f32 %v3432, %v3437
    %v3439 = vadd.f32 %v3433, %v3437
    %s3440 = scalar_lea.vmem [#allocation13], 16
    %v3441 = vld [vmem:[%s3440] sm:$0xff]
    %v3442 = vld [vmem:[%s3440 + $0x8] sm:$0x1]
    %s3443 = scalar_lea.vmem [#allocation7], 32
    %v3444 = vld [vmem:[%s3443] sm:$0xff]
    %v3445 = vld [vmem:[%s3443 + $0x8] sm:$0xff]
    %v3446 = vld [vmem:[%s3443 + $0x10] sm:$0xff]
    %v3447 = vld [vmem:[%s3443 + $0x18] sm:$0xff]
    %v3449 = vsel %vm250, %v3438, 0
    %v3452 = vsel %vm250, %v3439, 0
    %3454 = vmatprep.subr.mxu0 0.0
    %3455 = vmatpush1.msra.mxu0 0.0
    %3456 = vmatprep.subr.mxu0 0.0
    %3457 = vmatpush1.msra.mxu0 0.0
    %3458 = vmatprep.subr.mxu0 0.0
    %3459 = vmatpush1.msra.mxu0 0.0
    %3460 = vmatprep.subr.mxu0 0.0
    %3461 = vmatpush1.msra.mxu0 0.0
    %3462 = vmatprep.subr.mxu0 0.0
    %3463 = vmatpush1.msra.mxu0 0.0
    %3464 = vmatprep.subr.mxu0 0.0
    %3465 = vmatpush1.msra.mxu0 0.0
    %3466 = vmatprep.subr.mxu0 0.0
    %3467 = vmatpush1.msra.mxu0 0.0
    %3468 = vmatprep.subr.mxu0 0.0
    %3469 = vmatpush1.msra.mxu0 0.0
    %3470 = vmatprep.subr.mxu0 0.0
    %3471 = vmatpush1.msra.mxu0 0.0
    %3472 = vmatprep.subr.mxu0 0.0
    %3473 = vmatpush1.msra.mxu0 0.0
    %3474 = vmatprep.subr.mxu0 0.0
    %3475 = vmatpush1.msra.mxu0 0.0
    %3476 = vmatprep.subr.mxu0 0.0
    %3477 = vmatpush1.msra.mxu0 0.0
    %3478 = vmatprep.subr.mxu0 0.0
    %3479 = vmatpush1.msra.mxu0 %v3447
    %3480 = vmatprep.subr.mxu0 0.0
    %3481 = vmatpush1.msra.mxu0 %v3446
    %3482 = vmatprep.subr.mxu0 0.0
    %3483 = vmatpush1.msra.mxu0 %v3445
    %3484 = vmatprep.subr.mxu0 0.0
    %3485 = vmatpush1.msra.mxu0 %v3444
    %3486 = vmatprep.subr.mxu0 0.0
    %3487 = vmatpush2.msra.mxu0 0.0
    %3488 = vmatprep.subr.mxu0 0.0
    %3489 = vmatpush2.msra.mxu0 0.0
    %3490 = vmatprep.subr.mxu0 0.0
    %3491 = vmatpush2.msra.mxu0 0.0
    %3492 = vmatprep.subr.mxu0 0.0
    %3493 = vmatpush2.msra.mxu0 0.0
    %3494 = vmatprep.subr.mxu0 0.0
    %3495 = vmatpush2.msra.mxu0 0.0
    %3496 = vmatprep.subr.mxu0 0.0
    %3497 = vmatpush2.msra.mxu0 0.0
    %3498 = vmatprep.subr.mxu0 0.0
    %3499 = vmatpush2.msra.mxu0 0.0
    %3500 = vmatprep.subr.mxu0 0.0
    %3501 = vmatpush2.msra.mxu0 0.0
    %3502 = vmatprep.subr.mxu0 0.0
    %3503 = vmatpush2.msra.mxu0 0.0
    %3504 = vmatprep.subr.mxu0 0.0
    %3505 = vmatpush2.msra.mxu0 0.0
    %3506 = vmatprep.subr.mxu0 0.0
    %3507 = vmatpush2.msra.mxu0 0.0
    %3508 = vmatprep.subr.mxu0 0.0
    %3509 = vmatpush2.msra.mxu0 0.0
    %3510 = vmatprep.subr.mxu0 0.0
    %3511 = vmatpush2.msra.mxu0 0.0
    %3512 = vmatprep.subr.mxu0 0.0
    %3513 = vmatpush2.msra.mxu0 0.0
    %3514 = vmatprep.subr.mxu0 0.0
    %3515 = vmatpush2.msra.mxu0 0.0
    %3516 = vmatprep.subr.mxu0 0.0
    %3517 = vmatpush2.msra.mxu0 0.0
    %3518 = vmatprep.mubr.f32.mxu0 0.0
    %3519 = vmatmul.mubr.f32.gmra.mxu0 %v3449
    %v3520 = vpop.f32.mrf.mxu0
    %v3521 = vadd.f32 0.0, %v3520
    %v3522 = vpop.f32.mrf.mxu0
    %3523 = vmatprep.mubr.f32.mxu0 0.0
    %3524 = vmatmul.mubr.f32.gmra.mxu0 %v3452
    %v3525 = vpop.f32.mrf.mxu0
    %v3526 = vadd.f32 0.0, %v3525
    %v3527 = vpop.f32.mrf.mxu0
    %3528 = vdwg.mxu0
    %v3529 = vlaneseq
    %v3530 = vshrl.u32 %v3529, 7
    %v3531 = vsub.s32 0, %v3530
    %v3532 = vrot.slane %v3441, %v3531
    %v3533 = vadd.f32 %v3521, %v3532
    %v3534 = vadd.f32 %v3526, %v3532
    %v3535 = vlaneseq
    %v3536 = vshrl.u32 %v3535, 7
    %v3537 = vsub.s32 1, %v3536
    %v3538 = vrot.slane %v3441, %v3537
    %3540 = vrot.lane.b32.xlu0 %v3538, 32
    %v3541 = vpop.permute.xlu0 %3540
    %v3543 = vadd.f32 %v3521, %v3541
    %v3544 = vadd.f32 %v3526, %v3541
    %v3545 = vlaneseq
    %v3546 = vshrl.u32 %v3545, 7
    %v3547 = vsub.s32 2, %v3546
    %v3548 = vrot.slane %v3441, %v3547
    %3550 = vrot.lane.b32.xlu0 %v3548, 64
    %v3551 = vpop.permute.xlu0 %3550
    %v3553 = vadd.f32 %v3521, %v3551
    %v3554 = vadd.f32 %v3526, %v3551
    %3556 = vrot.lane.b32.xlu0 %v3543, 96
    %v3557 = vpop.permute.xlu0 %3556
    %v3559 = vsel %vm371, %v3533, 0
    %v3561 = vsel %vm371, %v3557, 0
    %3563 = vmatprep.subr.mxu0 0.0
    %3564 = vmatpush1.xpose.msra.mxu0 0.0
    %3565 = vmatprep.subr.mxu0 0.0
    %3566 = vmatpush1.xpose.msra.mxu0 0.0
    %3567 = vmatprep.subr.mxu0 0.0
    %3568 = vmatpush1.xpose.msra.mxu0 0.0
    %3569 = vmatprep.subr.mxu0 0.0
    %3570 = vmatpush1.xpose.msra.mxu0 0.0
    %3571 = vmatprep.subr.mxu0 0.0
    %3572 = vmatpush1.xpose.msra.mxu0 0.0
    %3573 = vmatprep.subr.mxu0 0.0
    %3574 = vmatpush1.xpose.msra.mxu0 0.0
    %3575 = vmatprep.subr.mxu0 0.0
    %3576 = vmatpush1.xpose.msra.mxu0 0.0
    %3577 = vmatprep.subr.mxu0 0.0
    %3578 = vmatpush1.xpose.msra.mxu0 0.0
    %3579 = vmatprep.subr.mxu0 0.0
    %3580 = vmatpush1.xpose.msra.mxu0 0.0
    %3581 = vmatprep.subr.mxu0 0.0
    %3582 = vmatpush1.xpose.msra.mxu0 0.0
    %3583 = vmatprep.subr.mxu0 0.0
    %3584 = vmatpush1.xpose.msra.mxu0 0.0
    %3585 = vmatprep.subr.mxu0 0.0
    %3586 = vmatpush1.xpose.msra.mxu0 0.0
    %3587 = vmatprep.subr.mxu0 0.0
    %3588 = vmatpush1.xpose.msra.mxu0 0.0
    %3589 = vmatprep.subr.mxu0 0.0
    %3590 = vmatpush1.xpose.msra.mxu0 0.0
    %3591 = vmatprep.subr.mxu0 0.0
    %3592 = vmatpush1.xpose.msra.mxu0 0.0
    %3593 = vmatprep.subr.mxu0 0.0
    %3594 = vmatpush1.xpose.msra.mxu0 %v3561
    %3595 = vmatprep.subr.mxu0 0.0
    %3596 = vmatpush2.xpose.msra.mxu0 0.0
    %3597 = vmatprep.subr.mxu0 0.0
    %3598 = vmatpush2.xpose.msra.mxu0 0.0
    %3599 = vmatprep.subr.mxu0 0.0
    %3600 = vmatpush2.xpose.msra.mxu0 0.0
    %3601 = vmatprep.subr.mxu0 0.0
    %3602 = vmatpush2.xpose.msra.mxu0 0.0
    %3603 = vmatprep.subr.mxu0 0.0
    %3604 = vmatpush2.xpose.msra.mxu0 0.0
    %3605 = vmatprep.subr.mxu0 0.0
    %3606 = vmatpush2.xpose.msra.mxu0 0.0
    %3607 = vmatprep.subr.mxu0 0.0
    %3608 = vmatpush2.xpose.msra.mxu0 0.0
    %3609 = vmatprep.subr.mxu0 0.0
    %3610 = vmatpush2.xpose.msra.mxu0 0.0
    %3611 = vmatprep.subr.mxu0 0.0
    %3612 = vmatpush2.xpose.msra.mxu0 0.0
    %3613 = vmatprep.subr.mxu0 0.0
    %3614 = vmatpush2.xpose.msra.mxu0 0.0
    %3615 = vmatprep.subr.mxu0 0.0
    %3616 = vmatpush2.xpose.msra.mxu0 0.0
    %3617 = vmatprep.subr.mxu0 0.0
    %3618 = vmatpush2.xpose.msra.mxu0 0.0
    %3619 = vmatprep.subr.mxu0 0.0
    %3620 = vmatpush2.xpose.msra.mxu0 0.0
    %3621 = vmatprep.subr.mxu0 0.0
    %3622 = vmatpush2.xpose.msra.mxu0 0.0
    %3623 = vmatprep.subr.mxu0 0.0
    %3624 = vmatpush2.xpose.msra.mxu0 0.0
    %3625 = vmatprep.subr.mxu0 0.0
    %3626 = vmatpush2.xpose.msra.mxu0 0.0
    %3627 = vmatprep.mubr.f32.mxu0 0.0
    %3628 = vmatmul.mubr.f32.gmra.mxu0 %v3559
    %v3629 = vpop.f32.mrf.mxu0
    %v3630 = vadd.f32 %v361, %v3629
    %v3631 = vpop.f32.mrf.mxu0
    %3632 = vdwg.mxu0
    %3634 = vrot.lane.b32.xlu0 %v3544, 96
    %v3635 = vpop.permute.xlu0 %3634
    %v3637 = vsel %vm371, %v3534, 0
    %v3639 = vsel %vm371, %v3635, 0
    %3641 = vmatprep.subr.mxu0 0.0
    %3642 = vmatpush1.xpose.msra.mxu0 0.0
    %3643 = vmatprep.subr.mxu0 0.0
    %3644 = vmatpush1.xpose.msra.mxu0 0.0
    %3645 = vmatprep.subr.mxu0 0.0
    %3646 = vmatpush1.xpose.msra.mxu0 0.0
    %3647 = vmatprep.subr.mxu0 0.0
    %3648 = vmatpush1.xpose.msra.mxu0 0.0
    %3649 = vmatprep.subr.mxu0 0.0
    %3650 = vmatpush1.xpose.msra.mxu0 0.0
    %3651 = vmatprep.subr.mxu0 0.0
    %3652 = vmatpush1.xpose.msra.mxu0 0.0
    %3653 = vmatprep.subr.mxu0 0.0
    %3654 = vmatpush1.xpose.msra.mxu0 0.0
    %3655 = vmatprep.subr.mxu0 0.0
    %3656 = vmatpush1.xpose.msra.mxu0 0.0
    %3657 = vmatprep.subr.mxu0 0.0
    %3658 = vmatpush1.xpose.msra.mxu0 0.0
    %3659 = vmatprep.subr.mxu0 0.0
    %3660 = vmatpush1.xpose.msra.mxu0 0.0
    %3661 = vmatprep.subr.mxu0 0.0
    %3662 = vmatpush1.xpose.msra.mxu0 0.0
    %3663 = vmatprep.subr.mxu0 0.0
    %3664 = vmatpush1.xpose.msra.mxu0 0.0
    %3665 = vmatprep.subr.mxu0 0.0
    %3666 = vmatpush1.xpose.msra.mxu0 0.0
    %3667 = vmatprep.subr.mxu0 0.0
    %3668 = vmatpush1.xpose.msra.mxu0 0.0
    %3669 = vmatprep.subr.mxu0 0.0
    %3670 = vmatpush1.xpose.msra.mxu0 0.0
    %3671 = vmatprep.subr.mxu0 0.0
    %3672 = vmatpush1.xpose.msra.mxu0 %v3639
    %3673 = vmatprep.subr.mxu0 0.0
    %3674 = vmatpush2.xpose.msra.mxu0 0.0
    %3675 = vmatprep.subr.mxu0 0.0
    %3676 = vmatpush2.xpose.msra.mxu0 0.0
    %3677 = vmatprep.subr.mxu0 0.0
    %3678 = vmatpush2.xpose.msra.mxu0 0.0
    %3679 = vmatprep.subr.mxu0 0.0
    %3680 = vmatpush2.xpose.msra.mxu0 0.0
    %3681 = vmatprep.subr.mxu0 0.0
    %3682 = vmatpush2.xpose.msra.mxu0 0.0
    %3683 = vmatprep.subr.mxu0 0.0
    %3684 = vmatpush2.xpose.msra.mxu0 0.0
    %3685 = vmatprep.subr.mxu0 0.0
    %3686 = vmatpush2.xpose.msra.mxu0 0.0
    %3687 = vmatprep.subr.mxu0 0.0
    %3688 = vmatpush2.xpose.msra.mxu0 0.0
    %3689 = vmatprep.subr.mxu0 0.0
    %3690 = vmatpush2.xpose.msra.mxu0 0.0
    %3691 = vmatprep.subr.mxu0 0.0
    %3692 = vmatpush2.xpose.msra.mxu0 0.0
    %3693 = vmatprep.subr.mxu0 0.0
    %3694 = vmatpush2.xpose.msra.mxu0 0.0
    %3695 = vmatprep.subr.mxu0 0.0
    %3696 = vmatpush2.xpose.msra.mxu0 0.0
    %3697 = vmatprep.subr.mxu0 0.0
    %3698 = vmatpush2.xpose.msra.mxu0 0.0
    %3699 = vmatprep.subr.mxu0 0.0
    %3700 = vmatpush2.xpose.msra.mxu0 0.0
    %3701 = vmatprep.subr.mxu0 0.0
    %3702 = vmatpush2.xpose.msra.mxu0 0.0
    %3703 = vmatprep.subr.mxu0 0.0
    %3704 = vmatpush2.xpose.msra.mxu0 0.0
    %3705 = vmatprep.mubr.f32.mxu0 0.0
    %3706 = vmatmul.mubr.f32.gmra.mxu0 %v3637
    %v3707 = vpop.f32.mrf.mxu0
    %v3708 = vadd.f32 %v365, %v3707
    %v3709 = vpop.f32.mrf.mxu0
    %3710 = vdwg.mxu0
    %v3711 = vsel %vm525, %v3630, -inf
    %3712 = vmax.xlane.f32.xlu0 %v3711
    %v3713 = vpop.xlane.xlu0 %3712
    %v3714 = vsel %vm525, %v3708, -inf
    %3715 = vmax.xlane.f32.xlu0 %v3714
    %v3716 = vpop.xlane.xlu0 %3715
    %v3717 = vsub.f32 %v3630, %v3713
    %v3718 = vsub.f32 %v3708, %v3716
    %v3719 = vmul.f32 %v3717, 1.442695
    %v3720 = vpow.pop %v3719
    %v3721 = vmul.f32 %v3718, 1.442695
    %v3722 = vpow.pop %v3721
    %v3723 = vsel %vm525, %v3720, 0.0
    %3724 = vadd.xlane.f32.xlu0 %v3723
    %v3725 = vpop.xlane.xlu0 %3724
    %v3726 = vsel %vm525, %v3722, 0.0
    %3727 = vadd.xlane.f32.xlu0 %v3726
    %v3728 = vpop.xlane.xlu0 %3727
    %v3729 = vrcp.pop %v3725
    %v3730 = vrcp.pop %v3728
    %v3731 = vmul.f32 %v3720, %v3729
    %v3732 = vmul.f32 %v3722, %v3730
    %3734 = vrot.lane.b32.xlu0 %v3553, 64
    %v3735 = vpop.permute.xlu0 %3734
    %v3738 = vsel %vm525, %v3731, 0
    %3740 = vmatprep.subr.mxu0 0.0
    %3741 = vmatpush1.msra.mxu0 0.0
    %3742 = vmatprep.subr.mxu0 0.0
    %3743 = vmatpush1.msra.mxu0 0.0
    %3744 = vmatprep.subr.mxu0 0.0
    %3745 = vmatpush1.msra.mxu0 0.0
    %3746 = vmatprep.subr.mxu0 0.0
    %3747 = vmatpush1.msra.mxu0 0.0
    %3748 = vmatprep.subr.mxu0 0.0
    %3749 = vmatpush1.msra.mxu0 0.0
    %3750 = vmatprep.subr.mxu0 0.0
    %3751 = vmatpush1.msra.mxu0 0.0
    %3752 = vmatprep.subr.mxu0 0.0
    %3753 = vmatpush1.msra.mxu0 0.0
    %3754 = vmatprep.subr.mxu0 0.0
    %3755 = vmatpush1.msra.mxu0 0.0
    %3756 = vmatprep.subr.mxu0 0.0
    %3757 = vmatpush1.msra.mxu0 0.0
    %3758 = vmatprep.subr.mxu0 0.0
    %3759 = vmatpush1.msra.mxu0 0.0
    %3760 = vmatprep.subr.mxu0 0.0
    %3761 = vmatpush1.msra.mxu0 0.0
    %3762 = vmatprep.subr.mxu0 0.0
    %3763 = vmatpush1.msra.mxu0 0.0
    %3764 = vmatprep.subr.mxu0 0.0
    %3765 = vmatpush1.msra.mxu0 0.0
    %3766 = vmatprep.subr.mxu0 0.0
    %3767 = vmatpush1.msra.mxu0 0.0
    %3768 = vmatprep.subr.mxu0 0.0
    %3769 = vmatpush1.msra.mxu0 0.0
    %3770 = vmatprep.subr.mxu0 0.0
    %3771 = vmatpush1.msra.mxu0 %v3735
    %3772 = vmatprep.subr.mxu0 0.0
    %3773 = vmatpush2.msra.mxu0 0.0
    %3774 = vmatprep.subr.mxu0 0.0
    %3775 = vmatpush2.msra.mxu0 0.0
    %3776 = vmatprep.subr.mxu0 0.0
    %3777 = vmatpush2.msra.mxu0 0.0
    %3778 = vmatprep.subr.mxu0 0.0
    %3779 = vmatpush2.msra.mxu0 0.0
    %3780 = vmatprep.subr.mxu0 0.0
    %3781 = vmatpush2.msra.mxu0 0.0
    %3782 = vmatprep.subr.mxu0 0.0
    %3783 = vmatpush2.msra.mxu0 0.0
    %3784 = vmatprep.subr.mxu0 0.0
    %3785 = vmatpush2.msra.mxu0 0.0
    %3786 = vmatprep.subr.mxu0 0.0
    %3787 = vmatpush2.msra.mxu0 0.0
    %3788 = vmatprep.subr.mxu0 0.0
    %3789 = vmatpush2.msra.mxu0 0.0
    %3790 = vmatprep.subr.mxu0 0.0
    %3791 = vmatpush2.msra.mxu0 0.0
    %3792 = vmatprep.subr.mxu0 0.0
    %3793 = vmatpush2.msra.mxu0 0.0
    %3794 = vmatprep.subr.mxu0 0.0
    %3795 = vmatpush2.msra.mxu0 0.0
    %3796 = vmatprep.subr.mxu0 0.0
    %3797 = vmatpush2.msra.mxu0 0.0
    %3798 = vmatprep.subr.mxu0 0.0
    %3799 = vmatpush2.msra.mxu0 0.0
    %3800 = vmatprep.subr.mxu0 0.0
    %3801 = vmatpush2.msra.mxu0 0.0
    %3802 = vmatprep.subr.mxu0 0.0
    %3803 = vmatpush2.msra.mxu0 0.0
    %3804 = vmatprep.mubr.f32.mxu0 0.0
    %3805 = vmatmul.mubr.f32.gmra.mxu0 %v3738
    %v3806 = vpop.f32.mrf.mxu0
    %v3807 = vadd.f32 0.0, %v3806
    %v3808 = vpop.f32.mrf.mxu0
    %3809 = vdwg.mxu0
    %3811 = vrot.lane.b32.xlu0 %v3554, 64
    %v3812 = vpop.permute.xlu0 %3811
    %v3815 = vsel %vm525, %v3732, 0
    %3817 = vmatprep.subr.mxu0 0.0
    %3818 = vmatpush1.msra.mxu0 0.0
    %3819 = vmatprep.subr.mxu0 0.0
    %3820 = vmatpush1.msra.mxu0 0.0
    %3821 = vmatprep.subr.mxu0 0.0
    %3822 = vmatpush1.msra.mxu0 0.0
    %3823 = vmatprep.subr.mxu0 0.0
    %3824 = vmatpush1.msra.mxu0 0.0
    %3825 = vmatprep.subr.mxu0 0.0
    %3826 = vmatpush1.msra.mxu0 0.0
    %3827 = vmatprep.subr.mxu0 0.0
    %3828 = vmatpush1.msra.mxu0 0.0
    %3829 = vmatprep.subr.mxu0 0.0
    %3830 = vmatpush1.msra.mxu0 0.0
    %3831 = vmatprep.subr.mxu0 0.0
    %3832 = vmatpush1.msra.mxu0 0.0
    %3833 = vmatprep.subr.mxu0 0.0
    %3834 = vmatpush1.msra.mxu0 0.0
    %3835 = vmatprep.subr.mxu0 0.0
    %3836 = vmatpush1.msra.mxu0 0.0
    %3837 = vmatprep.subr.mxu0 0.0
    %3838 = vmatpush1.msra.mxu0 0.0
    %3839 = vmatprep.subr.mxu0 0.0
    %3840 = vmatpush1.msra.mxu0 0.0
    %3841 = vmatprep.subr.mxu0 0.0
    %3842 = vmatpush1.msra.mxu0 0.0
    %3843 = vmatprep.subr.mxu0 0.0
    %3844 = vmatpush1.msra.mxu0 0.0
    %3845 = vmatprep.subr.mxu0 0.0
    %3846 = vmatpush1.msra.mxu0 0.0
    %3847 = vmatprep.subr.mxu0 0.0
    %3848 = vmatpush1.msra.mxu0 %v3812
    %3849 = vmatprep.subr.mxu0 0.0
    %3850 = vmatpush2.msra.mxu0 0.0
    %3851 = vmatprep.subr.mxu0 0.0
    %3852 = vmatpush2.msra.mxu0 0.0
    %3853 = vmatprep.subr.mxu0 0.0
    %3854 = vmatpush2.msra.mxu0 0.0
    %3855 = vmatprep.subr.mxu0 0.0
    %3856 = vmatpush2.msra.mxu0 0.0
    %3857 = vmatprep.subr.mxu0 0.0
    %3858 = vmatpush2.msra.mxu0 0.0
    %3859 = vmatprep.subr.mxu0 0.0
    %3860 = vmatpush2.msra.mxu0 0.0
    %3861 = vmatprep.subr.mxu0 0.0
    %3862 = vmatpush2.msra.mxu0 0.0
    %3863 = vmatprep.subr.mxu0 0.0
    %3864 = vmatpush2.msra.mxu0 0.0
    %3865 = vmatprep.subr.mxu0 0.0
    %3866 = vmatpush2.msra.mxu0 0.0
    %3867 = vmatprep.subr.mxu0 0.0
    %3868 = vmatpush2.msra.mxu0 0.0
    %3869 = vmatprep.subr.mxu0 0.0
    %3870 = vmatpush2.msra.mxu0 0.0
    %3871 = vmatprep.subr.mxu0 0.0
    %3872 = vmatpush2.msra.mxu0 0.0
    %3873 = vmatprep.subr.mxu0 0.0
    %3874 = vmatpush2.msra.mxu0 0.0
    %3875 = vmatprep.subr.mxu0 0.0
    %3876 = vmatpush2.msra.mxu0 0.0
    %3877 = vmatprep.subr.mxu0 0.0
    %3878 = vmatpush2.msra.mxu0 0.0
    %3879 = vmatprep.subr.mxu0 0.0
    %3880 = vmatpush2.msra.mxu0 0.0
    %3881 = vmatprep.mubr.f32.mxu0 0.0
    %3882 = vmatmul.mubr.f32.gmra.mxu0 %v3815
    %v3883 = vpop.f32.mrf.mxu0
    %v3884 = vadd.f32 0.0, %v3883
    %v3885 = vpop.f32.mrf.mxu0
    %3886 = vdwg.mxu0
    %3887 = vrot.lane.b32.xlu0 %v3533, 124
    %v3888 = vpop.permute.xlu0 %3887
    %3889 = vrot.lane.b32.xlu0 %v3543, 92
    %v3890 = vpop.permute.xlu0 %3889
    %v3891 = vsel %vm371, %v3888, 0
    %v3893 = vsel %vm371, %v3890, 0
    %3895 = vmatprep.subr.mxu0 0.0
    %3896 = vmatpush1.xpose.msra.mxu0 0.0
    %3897 = vmatprep.subr.mxu0 0.0
    %3898 = vmatpush1.xpose.msra.mxu0 0.0
    %3899 = vmatprep.subr.mxu0 0.0
    %3900 = vmatpush1.xpose.msra.mxu0 0.0
    %3901 = vmatprep.subr.mxu0 0.0
    %3902 = vmatpush1.xpose.msra.mxu0 0.0
    %3903 = vmatprep.subr.mxu0 0.0
    %3904 = vmatpush1.xpose.msra.mxu0 0.0
    %3905 = vmatprep.subr.mxu0 0.0
    %3906 = vmatpush1.xpose.msra.mxu0 0.0
    %3907 = vmatprep.subr.mxu0 0.0
    %3908 = vmatpush1.xpose.msra.mxu0 0.0
    %3909 = vmatprep.subr.mxu0 0.0
    %3910 = vmatpush1.xpose.msra.mxu0 0.0
    %3911 = vmatprep.subr.mxu0 0.0
    %3912 = vmatpush1.xpose.msra.mxu0 0.0
    %3913 = vmatprep.subr.mxu0 0.0
    %3914 = vmatpush1.xpose.msra.mxu0 0.0
    %3915 = vmatprep.subr.mxu0 0.0
    %3916 = vmatpush1.xpose.msra.mxu0 0.0
    %3917 = vmatprep.subr.mxu0 0.0
    %3918 = vmatpush1.xpose.msra.mxu0 0.0
    %3919 = vmatprep.subr.mxu0 0.0
    %3920 = vmatpush1.xpose.msra.mxu0 0.0
    %3921 = vmatprep.subr.mxu0 0.0
    %3922 = vmatpush1.xpose.msra.mxu0 0.0
    %3923 = vmatprep.subr.mxu0 0.0
    %3924 = vmatpush1.xpose.msra.mxu0 0.0
    %3925 = vmatprep.subr.mxu0 0.0
    %3926 = vmatpush1.xpose.msra.mxu0 %v3893
    %3927 = vmatprep.subr.mxu0 0.0
    %3928 = vmatpush2.xpose.msra.mxu0 0.0
    %3929 = vmatprep.subr.mxu0 0.0
    %3930 = vmatpush2.xpose.msra.mxu0 0.0
    %3931 = vmatprep.subr.mxu0 0.0
    %3932 = vmatpush2.xpose.msra.mxu0 0.0
    %3933 = vmatprep.subr.mxu0 0.0
    %3934 = vmatpush2.xpose.msra.mxu0 0.0
    %3935 = vmatprep.subr.mxu0 0.0
    %3936 = vmatpush2.xpose.msra.mxu0 0.0
    %3937 = vmatprep.subr.mxu0 0.0
    %3938 = vmatpush2.xpose.msra.mxu0 0.0
    %3939 = vmatprep.subr.mxu0 0.0
    %3940 = vmatpush2.xpose.msra.mxu0 0.0
    %3941 = vmatprep.subr.mxu0 0.0
    %3942 = vmatpush2.xpose.msra.mxu0 0.0
    %3943 = vmatprep.subr.mxu0 0.0
    %3944 = vmatpush2.xpose.msra.mxu0 0.0
    %3945 = vmatprep.subr.mxu0 0.0
    %3946 = vmatpush2.xpose.msra.mxu0 0.0
    %3947 = vmatprep.subr.mxu0 0.0
    %3948 = vmatpush2.xpose.msra.mxu0 0.0
    %3949 = vmatprep.subr.mxu0 0.0
    %3950 = vmatpush2.xpose.msra.mxu0 0.0
    %3951 = vmatprep.subr.mxu0 0.0
    %3952 = vmatpush2.xpose.msra.mxu0 0.0
    %3953 = vmatprep.subr.mxu0 0.0
    %3954 = vmatpush2.xpose.msra.mxu0 0.0
    %3955 = vmatprep.subr.mxu0 0.0
    %3956 = vmatpush2.xpose.msra.mxu0 0.0
    %3957 = vmatprep.subr.mxu0 0.0
    %3958 = vmatpush2.xpose.msra.mxu0 0.0
    %3959 = vmatprep.mubr.f32.mxu0 0.0
    %3960 = vmatmul.mubr.f32.gmra.mxu0 %v3891
    %v3961 = vpop.f32.mrf.mxu0
    %v3962 = vadd.f32 %v361, %v3961
    %v3963 = vpop.f32.mrf.mxu0
    %3964 = vdwg.mxu0
    %3965 = vrot.lane.b32.xlu0 %v3534, 124
    %v3966 = vpop.permute.xlu0 %3965
    %3967 = vrot.lane.b32.xlu0 %v3544, 92
    %v3968 = vpop.permute.xlu0 %3967
    %v3969 = vsel %vm371, %v3966, 0
    %v3971 = vsel %vm371, %v3968, 0
    %3973 = vmatprep.subr.mxu0 0.0
    %3974 = vmatpush1.xpose.msra.mxu0 0.0
    %3975 = vmatprep.subr.mxu0 0.0
    %3976 = vmatpush1.xpose.msra.mxu0 0.0
    %3977 = vmatprep.subr.mxu0 0.0
    %3978 = vmatpush1.xpose.msra.mxu0 0.0
    %3979 = vmatprep.subr.mxu0 0.0
    %3980 = vmatpush1.xpose.msra.mxu0 0.0
    %3981 = vmatprep.subr.mxu0 0.0
    %3982 = vmatpush1.xpose.msra.mxu0 0.0
    %3983 = vmatprep.subr.mxu0 0.0
    %3984 = vmatpush1.xpose.msra.mxu0 0.0
    %3985 = vmatprep.subr.mxu0 0.0
    %3986 = vmatpush1.xpose.msra.mxu0 0.0
    %3987 = vmatprep.subr.mxu0 0.0
    %3988 = vmatpush1.xpose.msra.mxu0 0.0
    %3989 = vmatprep.subr.mxu0 0.0
    %3990 = vmatpush1.xpose.msra.mxu0 0.0
    %3991 = vmatprep.subr.mxu0 0.0
    %3992 = vmatpush1.xpose.msra.mxu0 0.0
    %3993 = vmatprep.subr.mxu0 0.0
    %3994 = vmatpush1.xpose.msra.mxu0 0.0
    %3995 = vmatprep.subr.mxu0 0.0
    %3996 = vmatpush1.xpose.msra.mxu0 0.0
    %3997 = vmatprep.subr.mxu0 0.0
    %3998 = vmatpush1.xpose.msra.mxu0 0.0
    %3999 = vmatprep.subr.mxu0 0.0
    %4000 = vmatpush1.xpose.msra.mxu0 0.0
    %4001 = vmatprep.subr.mxu0 0.0
    %4002 = vmatpush1.xpose.msra.mxu0 0.0
    %4003 = vmatprep.subr.mxu0 0.0
    %4004 = vmatpush1.xpose.msra.mxu0 %v3971
    %4005 = vmatprep.subr.mxu0 0.0
    %4006 = vmatpush2.xpose.msra.mxu0 0.0
    %4007 = vmatprep.subr.mxu0 0.0
    %4008 = vmatpush2.xpose.msra.mxu0 0.0
    %4009 = vmatprep.subr.mxu0 0.0
    %4010 = vmatpush2.xpose.msra.mxu0 0.0
    %4011 = vmatprep.subr.mxu0 0.0
    %4012 = vmatpush2.xpose.msra.mxu0 0.0
    %4013 = vmatprep.subr.mxu0 0.0
    %4014 = vmatpush2.xpose.msra.mxu0 0.0
    %4015 = vmatprep.subr.mxu0 0.0
    %4016 = vmatpush2.xpose.msra.mxu0 0.0
    %4017 = vmatprep.subr.mxu0 0.0
    %4018 = vmatpush2.xpose.msra.mxu0 0.0
    %4019 = vmatprep.subr.mxu0 0.0
    %4020 = vmatpush2.xpose.msra.mxu0 0.0
    %4021 = vmatprep.subr.mxu0 0.0
    %4022 = vmatpush2.xpose.msra.mxu0 0.0
    %4023 = vmatprep.subr.mxu0 0.0
    %4024 = vmatpush2.xpose.msra.mxu0 0.0
    %4025 = vmatprep.subr.mxu0 0.0
    %4026 = vmatpush2.xpose.msra.mxu0 0.0
    %4027 = vmatprep.subr.mxu0 0.0
    %4028 = vmatpush2.xpose.msra.mxu0 0.0
    %4029 = vmatprep.subr.mxu0 0.0
    %4030 = vmatpush2.xpose.msra.mxu0 0.0
    %4031 = vmatprep.subr.mxu0 0.0
    %4032 = vmatpush2.xpose.msra.mxu0 0.0
    %4033 = vmatprep.subr.mxu0 0.0
    %4034 = vmatpush2.xpose.msra.mxu0 0.0
    %4035 = vmatprep.subr.mxu0 0.0
    %4036 = vmatpush2.xpose.msra.mxu0 0.0
    %4037 = vmatprep.mubr.f32.mxu0 0.0
    %4038 = vmatmul.mubr.f32.gmra.mxu0 %v3969
    %v4039 = vpop.f32.mrf.mxu0
    %v4040 = vadd.f32 %v365, %v4039
    %v4041 = vpop.f32.mrf.mxu0
    %4042 = vdwg.mxu0
    %v4043 = vsel %vm525, %v3962, -inf
    %4044 = vmax.xlane.f32.xlu0 %v4043
    %v4045 = vpop.xlane.xlu0 %4044
    %v4046 = vsel %vm525, %v4040, -inf
    %4047 = vmax.xlane.f32.xlu0 %v4046
    %v4048 = vpop.xlane.xlu0 %4047
    %v4049 = vsub.f32 %v3962, %v4045
    %v4050 = vsub.f32 %v4040, %v4048
    %v4051 = vmul.f32 %v4049, 1.442695
    %v4052 = vpow.pop %v4051
    %v4053 = vmul.f32 %v4050, 1.442695
    %v4054 = vpow.pop %v4053
    %v4055 = vsel %vm525, %v4052, 0.0
    %4056 = vadd.xlane.f32.xlu0 %v4055
    %v4057 = vpop.xlane.xlu0 %4056
    %v4058 = vsel %vm525, %v4054, 0.0
    %4059 = vadd.xlane.f32.xlu0 %v4058
    %v4060 = vpop.xlane.xlu0 %4059
    %v4061 = vrcp.pop %v4057
    %v4062 = vrcp.pop %v4060
    %v4063 = vmul.f32 %v4052, %v4061
    %v4064 = vmul.f32 %v4054, %v4062
    %4065 = vrot.lane.b32.xlu0 %v3553, 60
    %v4066 = vpop.permute.xlu0 %4065
    %v4069 = vsel %vm525, %v4063, 0
    %4071 = vmatprep.subr.mxu0 0.0
    %4072 = vmatpush1.msra.mxu0 0.0
    %4073 = vmatprep.subr.mxu0 0.0
    %4074 = vmatpush1.msra.mxu0 0.0
    %4075 = vmatprep.subr.mxu0 0.0
    %4076 = vmatpush1.msra.mxu0 0.0
    %4077 = vmatprep.subr.mxu0 0.0
    %4078 = vmatpush1.msra.mxu0 0.0
    %4079 = vmatprep.subr.mxu0 0.0
    %4080 = vmatpush1.msra.mxu0 0.0
    %4081 = vmatprep.subr.mxu0 0.0
    %4082 = vmatpush1.msra.mxu0 0.0
    %4083 = vmatprep.subr.mxu0 0.0
    %4084 = vmatpush1.msra.mxu0 0.0
    %4085 = vmatprep.subr.mxu0 0.0
    %4086 = vmatpush1.msra.mxu0 0.0
    %4087 = vmatprep.subr.mxu0 0.0
    %4088 = vmatpush1.msra.mxu0 0.0
    %4089 = vmatprep.subr.mxu0 0.0
    %4090 = vmatpush1.msra.mxu0 0.0
    %4091 = vmatprep.subr.mxu0 0.0
    %4092 = vmatpush1.msra.mxu0 0.0
    %4093 = vmatprep.subr.mxu0 0.0
    %4094 = vmatpush1.msra.mxu0 0.0
    %4095 = vmatprep.subr.mxu0 0.0
    %4096 = vmatpush1.msra.mxu0 0.0
    %4097 = vmatprep.subr.mxu0 0.0
    %4098 = vmatpush1.msra.mxu0 0.0
    %4099 = vmatprep.subr.mxu0 0.0
    %4100 = vmatpush1.msra.mxu0 0.0
    %4101 = vmatprep.subr.mxu0 0.0
    %4102 = vmatpush1.msra.mxu0 %v4066
    %4103 = vmatprep.subr.mxu0 0.0
    %4104 = vmatpush2.msra.mxu0 0.0
    %4105 = vmatprep.subr.mxu0 0.0
    %4106 = vmatpush2.msra.mxu0 0.0
    %4107 = vmatprep.subr.mxu0 0.0
    %4108 = vmatpush2.msra.mxu0 0.0
    %4109 = vmatprep.subr.mxu0 0.0
    %4110 = vmatpush2.msra.mxu0 0.0
    %4111 = vmatprep.subr.mxu0 0.0
    %4112 = vmatpush2.msra.mxu0 0.0
    %4113 = vmatprep.subr.mxu0 0.0
    %4114 = vmatpush2.msra.mxu0 0.0
    %4115 = vmatprep.subr.mxu0 0.0
    %4116 = vmatpush2.msra.mxu0 0.0
    %4117 = vmatprep.subr.mxu0 0.0
    %4118 = vmatpush2.msra.mxu0 0.0
    %4119 = vmatprep.subr.mxu0 0.0
    %4120 = vmatpush2.msra.mxu0 0.0
    %4121 = vmatprep.subr.mxu0 0.0
    %4122 = vmatpush2.msra.mxu0 0.0
    %4123 = vmatprep.subr.mxu0 0.0
    %4124 = vmatpush2.msra.mxu0 0.0
    %4125 = vmatprep.subr.mxu0 0.0
    %4126 = vmatpush2.msra.mxu0 0.0
    %4127 = vmatprep.subr.mxu0 0.0
    %4128 = vmatpush2.msra.mxu0 0.0
    %4129 = vmatprep.subr.mxu0 0.0
    %4130 = vmatpush2.msra.mxu0 0.0
    %4131 = vmatprep.subr.mxu0 0.0
    %4132 = vmatpush2.msra.mxu0 0.0
    %4133 = vmatprep.subr.mxu0 0.0
    %4134 = vmatpush2.msra.mxu0 0.0
    %4135 = vmatprep.mubr.f32.mxu0 0.0
    %4136 = vmatmul.mubr.f32.gmra.mxu0 %v4069
    %v4137 = vpop.f32.mrf.mxu0
    %v4138 = vadd.f32 0.0, %v4137
    %v4139 = vpop.f32.mrf.mxu0
    %4140 = vdwg.mxu0
    %4141 = vrot.lane.b32.xlu0 %v3554, 60
    %v4142 = vpop.permute.xlu0 %4141
    %v4145 = vsel %vm525, %v4064, 0
    %4147 = vmatprep.subr.mxu0 0.0
    %4148 = vmatpush1.msra.mxu0 0.0
    %4149 = vmatprep.subr.mxu0 0.0
    %4150 = vmatpush1.msra.mxu0 0.0
    %4151 = vmatprep.subr.mxu0 0.0
    %4152 = vmatpush1.msra.mxu0 0.0
    %4153 = vmatprep.subr.mxu0 0.0
    %4154 = vmatpush1.msra.mxu0 0.0
    %4155 = vmatprep.subr.mxu0 0.0
    %4156 = vmatpush1.msra.mxu0 0.0
    %4157 = vmatprep.subr.mxu0 0.0
    %4158 = vmatpush1.msra.mxu0 0.0
    %4159 = vmatprep.subr.mxu0 0.0
    %4160 = vmatpush1.msra.mxu0 0.0
    %4161 = vmatprep.subr.mxu0 0.0
    %4162 = vmatpush1.msra.mxu0 0.0
    %4163 = vmatprep.subr.mxu0 0.0
    %4164 = vmatpush1.msra.mxu0 0.0
    %4165 = vmatprep.subr.mxu0 0.0
    %4166 = vmatpush1.msra.mxu0 0.0
    %4167 = vmatprep.subr.mxu0 0.0
    %4168 = vmatpush1.msra.mxu0 0.0
    %4169 = vmatprep.subr.mxu0 0.0
    %4170 = vmatpush1.msra.mxu0 0.0
    %4171 = vmatprep.subr.mxu0 0.0
    %4172 = vmatpush1.msra.mxu0 0.0
    %4173 = vmatprep.subr.mxu0 0.0
    %4174 = vmatpush1.msra.mxu0 0.0
    %4175 = vmatprep.subr.mxu0 0.0
    %4176 = vmatpush1.msra.mxu0 0.0
    %4177 = vmatprep.subr.mxu0 0.0
    %4178 = vmatpush1.msra.mxu0 %v4142
    %4179 = vmatprep.subr.mxu0 0.0
    %4180 = vmatpush2.msra.mxu0 0.0
    %4181 = vmatprep.subr.mxu0 0.0
    %4182 = vmatpush2.msra.mxu0 0.0
    %4183 = vmatprep.subr.mxu0 0.0
    %4184 = vmatpush2.msra.mxu0 0.0
    %4185 = vmatprep.subr.mxu0 0.0
    %4186 = vmatpush2.msra.mxu0 0.0
    %4187 = vmatprep.subr.mxu0 0.0
    %4188 = vmatpush2.msra.mxu0 0.0
    %4189 = vmatprep.subr.mxu0 0.0
    %4190 = vmatpush2.msra.mxu0 0.0
    %4191 = vmatprep.subr.mxu0 0.0
    %4192 = vmatpush2.msra.mxu0 0.0
    %4193 = vmatprep.subr.mxu0 0.0
    %4194 = vmatpush2.msra.mxu0 0.0
    %4195 = vmatprep.subr.mxu0 0.0
    %4196 = vmatpush2.msra.mxu0 0.0
    %4197 = vmatprep.subr.mxu0 0.0
    %4198 = vmatpush2.msra.mxu0 0.0
    %4199 = vmatprep.subr.mxu0 0.0
    %4200 = vmatpush2.msra.mxu0 0.0
    %4201 = vmatprep.subr.mxu0 0.0
    %4202 = vmatpush2.msra.mxu0 0.0
    %4203 = vmatprep.subr.mxu0 0.0
    %4204 = vmatpush2.msra.mxu0 0.0
    %4205 = vmatprep.subr.mxu0 0.0
    %4206 = vmatpush2.msra.mxu0 0.0
    %4207 = vmatprep.subr.mxu0 0.0
    %4208 = vmatpush2.msra.mxu0 0.0
    %4209 = vmatprep.subr.mxu0 0.0
    %4210 = vmatpush2.msra.mxu0 0.0
    %4211 = vmatprep.mubr.f32.mxu0 0.0
    %4212 = vmatmul.mubr.f32.gmra.mxu0 %v4145
    %v4213 = vpop.f32.mrf.mxu0
    %v4214 = vadd.f32 0.0, %v4213
    %v4215 = vpop.f32.mrf.mxu0
    %4216 = vdwg.mxu0
    %4217 = vrot.lane.b32.xlu0 %v3533, 120
    %v4218 = vpop.permute.xlu0 %4217
    %4219 = vrot.lane.b32.xlu0 %v3543, 88
    %v4220 = vpop.permute.xlu0 %4219
    %v4221 = vsel %vm371, %v4218, 0
    %v4223 = vsel %vm371, %v4220, 0
    %4225 = vmatprep.subr.mxu0 0.0
    %4226 = vmatpush1.xpose.msra.mxu0 0.0
    %4227 = vmatprep.subr.mxu0 0.0
    %4228 = vmatpush1.xpose.msra.mxu0 0.0
    %4229 = vmatprep.subr.mxu0 0.0
    %4230 = vmatpush1.xpose.msra.mxu0 0.0
    %4231 = vmatprep.subr.mxu0 0.0
    %4232 = vmatpush1.xpose.msra.mxu0 0.0
    %4233 = vmatprep.subr.mxu0 0.0
    %4234 = vmatpush1.xpose.msra.mxu0 0.0
    %4235 = vmatprep.subr.mxu0 0.0
    %4236 = vmatpush1.xpose.msra.mxu0 0.0
    %4237 = vmatprep.subr.mxu0 0.0
    %4238 = vmatpush1.xpose.msra.mxu0 0.0
    %4239 = vmatprep.subr.mxu0 0.0
    %4240 = vmatpush1.xpose.msra.mxu0 0.0
    %4241 = vmatprep.subr.mxu0 0.0
    %4242 = vmatpush1.xpose.msra.mxu0 0.0
    %4243 = vmatprep.subr.mxu0 0.0
    %4244 = vmatpush1.xpose.msra.mxu0 0.0
    %4245 = vmatprep.subr.mxu0 0.0
    %4246 = vmatpush1.xpose.msra.mxu0 0.0
    %4247 = vmatprep.subr.mxu0 0.0
    %4248 = vmatpush1.xpose.msra.mxu0 0.0
    %4249 = vmatprep.subr.mxu0 0.0
    %4250 = vmatpush1.xpose.msra.mxu0 0.0
    %4251 = vmatprep.subr.mxu0 0.0
    %4252 = vmatpush1.xpose.msra.mxu0 0.0
    %4253 = vmatprep.subr.mxu0 0.0
    %4254 = vmatpush1.xpose.msra.mxu0 0.0
    %4255 = vmatprep.subr.mxu0 0.0
    %4256 = vmatpush1.xpose.msra.mxu0 %v4223
    %4257 = vmatprep.subr.mxu0 0.0
    %4258 = vmatpush2.xpose.msra.mxu0 0.0
    %4259 = vmatprep.subr.mxu0 0.0
    %4260 = vmatpush2.xpose.msra.mxu0 0.0
    %4261 = vmatprep.subr.mxu0 0.0
    %4262 = vmatpush2.xpose.msra.mxu0 0.0
    %4263 = vmatprep.subr.mxu0 0.0
    %4264 = vmatpush2.xpose.msra.mxu0 0.0
    %4265 = vmatprep.subr.mxu0 0.0
    %4266 = vmatpush2.xpose.msra.mxu0 0.0
    %4267 = vmatprep.subr.mxu0 0.0
    %4268 = vmatpush2.xpose.msra.mxu0 0.0
    %4269 = vmatprep.subr.mxu0 0.0
    %4270 = vmatpush2.xpose.msra.mxu0 0.0
    %4271 = vmatprep.subr.mxu0 0.0
    %4272 = vmatpush2.xpose.msra.mxu0 0.0
    %4273 = vmatprep.subr.mxu0 0.0
    %4274 = vmatpush2.xpose.msra.mxu0 0.0
    %4275 = vmatprep.subr.mxu0 0.0
    %4276 = vmatpush2.xpose.msra.mxu0 0.0
    %4277 = vmatprep.subr.mxu0 0.0
    %4278 = vmatpush2.xpose.msra.mxu0 0.0
    %4279 = vmatprep.subr.mxu0 0.0
    %4280 = vmatpush2.xpose.msra.mxu0 0.0
    %4281 = vmatprep.subr.mxu0 0.0
    %4282 = vmatpush2.xpose.msra.mxu0 0.0
    %4283 = vmatprep.subr.mxu0 0.0
    %4284 = vmatpush2.xpose.msra.mxu0 0.0
    %4285 = vmatprep.subr.mxu0 0.0
    %4286 = vmatpush2.xpose.msra.mxu0 0.0
    %4287 = vmatprep.subr.mxu0 0.0
    %4288 = vmatpush2.xpose.msra.mxu0 0.0
    %4289 = vmatprep.mubr.f32.mxu0 0.0
    %4290 = vmatmul.mubr.f32.gmra.mxu0 %v4221
    %v4291 = vpop.f32.mrf.mxu0
    %v4292 = vadd.f32 %v361, %v4291
    %v4293 = vpop.f32.mrf.mxu0
    %4294 = vdwg.mxu0
    %4295 = vrot.lane.b32.xlu0 %v3534, 120
    %v4296 = vpop.permute.xlu0 %4295
    %4297 = vrot.lane.b32.xlu0 %v3544, 88
    %v4298 = vpop.permute.xlu0 %4297
    %v4299 = vsel %vm371, %v4296, 0
    %v4301 = vsel %vm371, %v4298, 0
    %4303 = vmatprep.subr.mxu0 0.0
    %4304 = vmatpush1.xpose.msra.mxu0 0.0
    %4305 = vmatprep.subr.mxu0 0.0
    %4306 = vmatpush1.xpose.msra.mxu0 0.0
    %4307 = vmatprep.subr.mxu0 0.0
    %4308 = vmatpush1.xpose.msra.mxu0 0.0
    %4309 = vmatprep.subr.mxu0 0.0
    %4310 = vmatpush1.xpose.msra.mxu0 0.0
    %4311 = vmatprep.subr.mxu0 0.0
    %4312 = vmatpush1.xpose.msra.mxu0 0.0
    %4313 = vmatprep.subr.mxu0 0.0
    %4314 = vmatpush1.xpose.msra.mxu0 0.0
    %4315 = vmatprep.subr.mxu0 0.0
    %4316 = vmatpush1.xpose.msra.mxu0 0.0
    %4317 = vmatprep.subr.mxu0 0.0
    %4318 = vmatpush1.xpose.msra.mxu0 0.0
    %4319 = vmatprep.subr.mxu0 0.0
    %4320 = vmatpush1.xpose.msra.mxu0 0.0
    %4321 = vmatprep.subr.mxu0 0.0
    %4322 = vmatpush1.xpose.msra.mxu0 0.0
    %4323 = vmatprep.subr.mxu0 0.0
    %4324 = vmatpush1.xpose.msra.mxu0 0.0
    %4325 = vmatprep.subr.mxu0 0.0
    %4326 = vmatpush1.xpose.msra.mxu0 0.0
    %4327 = vmatprep.subr.mxu0 0.0
    %4328 = vmatpush1.xpose.msra.mxu0 0.0
    %4329 = vmatprep.subr.mxu0 0.0
    %4330 = vmatpush1.xpose.msra.mxu0 0.0
    %4331 = vmatprep.subr.mxu0 0.0
    %4332 = vmatpush1.xpose.msra.mxu0 0.0
    %4333 = vmatprep.subr.mxu0 0.0
    %4334 = vmatpush1.xpose.msra.mxu0 %v4301
    %4335 = vmatprep.subr.mxu0 0.0
    %4336 = vmatpush2.xpose.msra.mxu0 0.0
    %4337 = vmatprep.subr.mxu0 0.0
    %4338 = vmatpush2.xpose.msra.mxu0 0.0
    %4339 = vmatprep.subr.mxu0 0.0
    %4340 = vmatpush2.xpose.msra.mxu0 0.0
    %4341 = vmatprep.subr.mxu0 0.0
    %4342 = vmatpush2.xpose.msra.mxu0 0.0
    %4343 = vmatprep.subr.mxu0 0.0
    %4344 = vmatpush2.xpose.msra.mxu0 0.0
    %4345 = vmatprep.subr.mxu0 0.0
    %4346 = vmatpush2.xpose.msra.mxu0 0.0
    %4347 = vmatprep.subr.mxu0 0.0
    %4348 = vmatpush2.xpose.msra.mxu0 0.0
    %4349 = vmatprep.subr.mxu0 0.0
    %4350 = vmatpush2.xpose.msra.mxu0 0.0
    %4351 = vmatprep.subr.mxu0 0.0
    %4352 = vmatpush2.xpose.msra.mxu0 0.0
    %4353 = vmatprep.subr.mxu0 0.0
    %4354 = vmatpush2.xpose.msra.mxu0 0.0
    %4355 = vmatprep.subr.mxu0 0.0
    %4356 = vmatpush2.xpose.msra.mxu0 0.0
    %4357 = vmatprep.subr.mxu0 0.0
    %4358 = vmatpush2.xpose.msra.mxu0 0.0
    %4359 = vmatprep.subr.mxu0 0.0
    %4360 = vmatpush2.xpose.msra.mxu0 0.0
    %4361 = vmatprep.subr.mxu0 0.0
    %4362 = vmatpush2.xpose.msra.mxu0 0.0
    %4363 = vmatprep.subr.mxu0 0.0
    %4364 = vmatpush2.xpose.msra.mxu0 0.0
    %4365 = vmatprep.subr.mxu0 0.0
    %4366 = vmatpush2.xpose.msra.mxu0 0.0
    %4367 = vmatprep.mubr.f32.mxu0 0.0
    %4368 = vmatmul.mubr.f32.gmra.mxu0 %v4299
    %v4369 = vpop.f32.mrf.mxu0
    %v4370 = vadd.f32 %v365, %v4369
    %v4371 = vpop.f32.mrf.mxu0
    %4372 = vdwg.mxu0
    %v4373 = vsel %vm525, %v4292, -inf
    %4374 = vmax.xlane.f32.xlu0 %v4373
    %v4375 = vpop.xlane.xlu0 %4374
    %v4376 = vsel %vm525, %v4370, -inf
    %4377 = vmax.xlane.f32.xlu0 %v4376
    %v4378 = vpop.xlane.xlu0 %4377
    %v4379 = vsub.f32 %v4292, %v4375
    %v4380 = vsub.f32 %v4370, %v4378
    %v4381 = vmul.f32 %v4379, 1.442695
    %v4382 = vpow.pop %v4381
    %v4383 = vmul.f32 %v4380, 1.442695
    %v4384 = vpow.pop %v4383
    %v4385 = vsel %vm525, %v4382, 0.0
    %4386 = vadd.xlane.f32.xlu0 %v4385
    %v4387 = vpop.xlane.xlu0 %4386
    %v4388 = vsel %vm525, %v4384, 0.0
    %4389 = vadd.xlane.f32.xlu0 %v4388
    %v4390 = vpop.xlane.xlu0 %4389
    %v4391 = vrcp.pop %v4387
    %v4392 = vrcp.pop %v4390
    %v4393 = vmul.f32 %v4382, %v4391
    %v4394 = vmul.f32 %v4384, %v4392
    %4395 = vrot.lane.b32.xlu0 %v3553, 56
    %v4396 = vpop.permute.xlu0 %4395
    %v4399 = vsel %vm525, %v4393, 0
    %4401 = vmatprep.subr.mxu0 0.0
    %4402 = vmatpush1.msra.mxu0 0.0
    %4403 = vmatprep.subr.mxu0 0.0
    %4404 = vmatpush1.msra.mxu0 0.0
    %4405 = vmatprep.subr.mxu0 0.0
    %4406 = vmatpush1.msra.mxu0 0.0
    %4407 = vmatprep.subr.mxu0 0.0
    %4408 = vmatpush1.msra.mxu0 0.0
    %4409 = vmatprep.subr.mxu0 0.0
    %4410 = vmatpush1.msra.mxu0 0.0
    %4411 = vmatprep.subr.mxu0 0.0
    %4412 = vmatpush1.msra.mxu0 0.0
    %4413 = vmatprep.subr.mxu0 0.0
    %4414 = vmatpush1.msra.mxu0 0.0
    %4415 = vmatprep.subr.mxu0 0.0
    %4416 = vmatpush1.msra.mxu0 0.0
    %4417 = vmatprep.subr.mxu0 0.0
    %4418 = vmatpush1.msra.mxu0 0.0
    %4419 = vmatprep.subr.mxu0 0.0
    %4420 = vmatpush1.msra.mxu0 0.0
    %4421 = vmatprep.subr.mxu0 0.0
    %4422 = vmatpush1.msra.mxu0 0.0
    %4423 = vmatprep.subr.mxu0 0.0
    %4424 = vmatpush1.msra.mxu0 0.0
    %4425 = vmatprep.subr.mxu0 0.0
    %4426 = vmatpush1.msra.mxu0 0.0
    %4427 = vmatprep.subr.mxu0 0.0
    %4428 = vmatpush1.msra.mxu0 0.0
    %4429 = vmatprep.subr.mxu0 0.0
    %4430 = vmatpush1.msra.mxu0 0.0
    %4431 = vmatprep.subr.mxu0 0.0
    %4432 = vmatpush1.msra.mxu0 %v4396
    %4433 = vmatprep.subr.mxu0 0.0
    %4434 = vmatpush2.msra.mxu0 0.0
    %4435 = vmatprep.subr.mxu0 0.0
    %4436 = vmatpush2.msra.mxu0 0.0
    %4437 = vmatprep.subr.mxu0 0.0
    %4438 = vmatpush2.msra.mxu0 0.0
    %4439 = vmatprep.subr.mxu0 0.0
    %4440 = vmatpush2.msra.mxu0 0.0
    %4441 = vmatprep.subr.mxu0 0.0
    %4442 = vmatpush2.msra.mxu0 0.0
    %4443 = vmatprep.subr.mxu0 0.0
    %4444 = vmatpush2.msra.mxu0 0.0
    %4445 = vmatprep.subr.mxu0 0.0
    %4446 = vmatpush2.msra.mxu0 0.0
    %4447 = vmatprep.subr.mxu0 0.0
    %4448 = vmatpush2.msra.mxu0 0.0
    %4449 = vmatprep.subr.mxu0 0.0
    %4450 = vmatpush2.msra.mxu0 0.0
    %4451 = vmatprep.subr.mxu0 0.0
    %4452 = vmatpush2.msra.mxu0 0.0
    %4453 = vmatprep.subr.mxu0 0.0
    %4454 = vmatpush2.msra.mxu0 0.0
    %4455 = vmatprep.subr.mxu0 0.0
    %4456 = vmatpush2.msra.mxu0 0.0
    %4457 = vmatprep.subr.mxu0 0.0
    %4458 = vmatpush2.msra.mxu0 0.0
    %4459 = vmatprep.subr.mxu0 0.0
    %4460 = vmatpush2.msra.mxu0 0.0
    %4461 = vmatprep.subr.mxu0 0.0
    %4462 = vmatpush2.msra.mxu0 0.0
    %4463 = vmatprep.subr.mxu0 0.0
    %4464 = vmatpush2.msra.mxu0 0.0
    %4465 = vmatprep.mubr.f32.mxu0 0.0
    %4466 = vmatmul.mubr.f32.gmra.mxu0 %v4399
    %v4467 = vpop.f32.mrf.mxu0
    %v4468 = vadd.f32 0.0, %v4467
    %v4469 = vpop.f32.mrf.mxu0
    %4470 = vdwg.mxu0
    %4471 = vrot.lane.b32.xlu0 %v3554, 56
    %v4472 = vpop.permute.xlu0 %4471
    %v4475 = vsel %vm525, %v4394, 0
    %4477 = vmatprep.subr.mxu0 0.0
    %4478 = vmatpush1.msra.mxu0 0.0
    %4479 = vmatprep.subr.mxu0 0.0
    %4480 = vmatpush1.msra.mxu0 0.0
    %4481 = vmatprep.subr.mxu0 0.0
    %4482 = vmatpush1.msra.mxu0 0.0
    %4483 = vmatprep.subr.mxu0 0.0
    %4484 = vmatpush1.msra.mxu0 0.0
    %4485 = vmatprep.subr.mxu0 0.0
    %4486 = vmatpush1.msra.mxu0 0.0
    %4487 = vmatprep.subr.mxu0 0.0
    %4488 = vmatpush1.msra.mxu0 0.0
    %4489 = vmatprep.subr.mxu0 0.0
    %4490 = vmatpush1.msra.mxu0 0.0
    %4491 = vmatprep.subr.mxu0 0.0
    %4492 = vmatpush1.msra.mxu0 0.0
    %4493 = vmatprep.subr.mxu0 0.0
    %4494 = vmatpush1.msra.mxu0 0.0
    %4495 = vmatprep.subr.mxu0 0.0
    %4496 = vmatpush1.msra.mxu0 0.0
    %4497 = vmatprep.subr.mxu0 0.0
    %4498 = vmatpush1.msra.mxu0 0.0
    %4499 = vmatprep.subr.mxu0 0.0
    %4500 = vmatpush1.msra.mxu0 0.0
    %4501 = vmatprep.subr.mxu0 0.0
    %4502 = vmatpush1.msra.mxu0 0.0
    %4503 = vmatprep.subr.mxu0 0.0
    %4504 = vmatpush1.msra.mxu0 0.0
    %4505 = vmatprep.subr.mxu0 0.0
    %4506 = vmatpush1.msra.mxu0 0.0
    %4507 = vmatprep.subr.mxu0 0.0
    %4508 = vmatpush1.msra.mxu0 %v4472
    %4509 = vmatprep.subr.mxu0 0.0
    %4510 = vmatpush2.msra.mxu0 0.0
    %4511 = vmatprep.subr.mxu0 0.0
    %4512 = vmatpush2.msra.mxu0 0.0
    %4513 = vmatprep.subr.mxu0 0.0
    %4514 = vmatpush2.msra.mxu0 0.0
    %4515 = vmatprep.subr.mxu0 0.0
    %4516 = vmatpush2.msra.mxu0 0.0
    %4517 = vmatprep.subr.mxu0 0.0
    %4518 = vmatpush2.msra.mxu0 0.0
    %4519 = vmatprep.subr.mxu0 0.0
    %4520 = vmatpush2.msra.mxu0 0.0
    %4521 = vmatprep.subr.mxu0 0.0
    %4522 = vmatpush2.msra.mxu0 0.0
    %4523 = vmatprep.subr.mxu0 0.0
    %4524 = vmatpush2.msra.mxu0 0.0
    %4525 = vmatprep.subr.mxu0 0.0
    %4526 = vmatpush2.msra.mxu0 0.0
    %4527 = vmatprep.subr.mxu0 0.0
    %4528 = vmatpush2.msra.mxu0 0.0
    %4529 = vmatprep.subr.mxu0 0.0
    %4530 = vmatpush2.msra.mxu0 0.0
    %4531 = vmatprep.subr.mxu0 0.0
    %4532 = vmatpush2.msra.mxu0 0.0
    %4533 = vmatprep.subr.mxu0 0.0
    %4534 = vmatpush2.msra.mxu0 0.0
    %4535 = vmatprep.subr.mxu0 0.0
    %4536 = vmatpush2.msra.mxu0 0.0
    %4537 = vmatprep.subr.mxu0 0.0
    %4538 = vmatpush2.msra.mxu0 0.0
    %4539 = vmatprep.subr.mxu0 0.0
    %4540 = vmatpush2.msra.mxu0 0.0
    %4541 = vmatprep.mubr.f32.mxu0 0.0
    %4542 = vmatmul.mubr.f32.gmra.mxu0 %v4475
    %v4543 = vpop.f32.mrf.mxu0
    %v4544 = vadd.f32 0.0, %v4543
    %v4545 = vpop.f32.mrf.mxu0
    %4546 = vdwg.mxu0
    %4547 = vrot.lane.b32.xlu0 %v3533, 116
    %v4548 = vpop.permute.xlu0 %4547
    %4549 = vrot.lane.b32.xlu0 %v3543, 84
    %v4550 = vpop.permute.xlu0 %4549
    %v4551 = vsel %vm371, %v4548, 0
    %v4553 = vsel %vm371, %v4550, 0
    %4555 = vmatprep.subr.mxu0 0.0
    %4556 = vmatpush1.xpose.msra.mxu0 0.0
    %4557 = vmatprep.subr.mxu0 0.0
    %4558 = vmatpush1.xpose.msra.mxu0 0.0
    %4559 = vmatprep.subr.mxu0 0.0
    %4560 = vmatpush1.xpose.msra.mxu0 0.0
    %4561 = vmatprep.subr.mxu0 0.0
    %4562 = vmatpush1.xpose.msra.mxu0 0.0
    %4563 = vmatprep.subr.mxu0 0.0
    %4564 = vmatpush1.xpose.msra.mxu0 0.0
    %4565 = vmatprep.subr.mxu0 0.0
    %4566 = vmatpush1.xpose.msra.mxu0 0.0
    %4567 = vmatprep.subr.mxu0 0.0
    %4568 = vmatpush1.xpose.msra.mxu0 0.0
    %4569 = vmatprep.subr.mxu0 0.0
    %4570 = vmatpush1.xpose.msra.mxu0 0.0
    %4571 = vmatprep.subr.mxu0 0.0
    %4572 = vmatpush1.xpose.msra.mxu0 0.0
    %4573 = vmatprep.subr.mxu0 0.0
    %4574 = vmatpush1.xpose.msra.mxu0 0.0
    %4575 = vmatprep.subr.mxu0 0.0
    %4576 = vmatpush1.xpose.msra.mxu0 0.0
    %4577 = vmatprep.subr.mxu0 0.0
    %4578 = vmatpush1.xpose.msra.mxu0 0.0
    %4579 = vmatprep.subr.mxu0 0.0
    %4580 = vmatpush1.xpose.msra.mxu0 0.0
    %4581 = vmatprep.subr.mxu0 0.0
    %4582 = vmatpush1.xpose.msra.mxu0 0.0
    %4583 = vmatprep.subr.mxu0 0.0
    %4584 = vmatpush1.xpose.msra.mxu0 0.0
    %4585 = vmatprep.subr.mxu0 0.0
    %4586 = vmatpush1.xpose.msra.mxu0 %v4553
    %4587 = vmatprep.subr.mxu0 0.0
    %4588 = vmatpush2.xpose.msra.mxu0 0.0
    %4589 = vmatprep.subr.mxu0 0.0
    %4590 = vmatpush2.xpose.msra.mxu0 0.0
    %4591 = vmatprep.subr.mxu0 0.0
    %4592 = vmatpush2.xpose.msra.mxu0 0.0
    %4593 = vmatprep.subr.mxu0 0.0
    %4594 = vmatpush2.xpose.msra.mxu0 0.0
    %4595 = vmatprep.subr.mxu0 0.0
    %4596 = vmatpush2.xpose.msra.mxu0 0.0
    %4597 = vmatprep.subr.mxu0 0.0
    %4598 = vmatpush2.xpose.msra.mxu0 0.0
    %4599 = vmatprep.subr.mxu0 0.0
    %4600 = vmatpush2.xpose.msra.mxu0 0.0
    %4601 = vmatprep.subr.mxu0 0.0
    %4602 = vmatpush2.xpose.msra.mxu0 0.0
    %4603 = vmatprep.subr.mxu0 0.0
    %4604 = vmatpush2.xpose.msra.mxu0 0.0
    %4605 = vmatprep.subr.mxu0 0.0
    %4606 = vmatpush2.xpose.msra.mxu0 0.0
    %4607 = vmatprep.subr.mxu0 0.0
    %4608 = vmatpush2.xpose.msra.mxu0 0.0
    %4609 = vmatprep.subr.mxu0 0.0
    %4610 = vmatpush2.xpose.msra.mxu0 0.0
    %4611 = vmatprep.subr.mxu0 0.0
    %4612 = vmatpush2.xpose.msra.mxu0 0.0
    %4613 = vmatprep.subr.mxu0 0.0
    %4614 = vmatpush2.xpose.msra.mxu0 0.0
    %4615 = vmatprep.subr.mxu0 0.0
    %4616 = vmatpush2.xpose.msra.mxu0 0.0
    %4617 = vmatprep.subr.mxu0 0.0
    %4618 = vmatpush2.xpose.msra.mxu0 0.0
    %4619 = vmatprep.mubr.f32.mxu0 0.0
    %4620 = vmatmul.mubr.f32.gmra.mxu0 %v4551
    %v4621 = vpop.f32.mrf.mxu0
    %v4622 = vadd.f32 %v361, %v4621
    %v4623 = vpop.f32.mrf.mxu0
    %4624 = vdwg.mxu0
    %4625 = vrot.lane.b32.xlu0 %v3534, 116
    %v4626 = vpop.permute.xlu0 %4625
    %4627 = vrot.lane.b32.xlu0 %v3544, 84
    %v4628 = vpop.permute.xlu0 %4627
    %v4629 = vsel %vm371, %v4626, 0
    %v4631 = vsel %vm371, %v4628, 0
    %4633 = vmatprep.subr.mxu0 0.0
    %4634 = vmatpush1.xpose.msra.mxu0 0.0
    %4635 = vmatprep.subr.mxu0 0.0
    %4636 = vmatpush1.xpose.msra.mxu0 0.0
    %4637 = vmatprep.subr.mxu0 0.0
    %4638 = vmatpush1.xpose.msra.mxu0 0.0
    %4639 = vmatprep.subr.mxu0 0.0
    %4640 = vmatpush1.xpose.msra.mxu0 0.0
    %4641 = vmatprep.subr.mxu0 0.0
    %4642 = vmatpush1.xpose.msra.mxu0 0.0
    %4643 = vmatprep.subr.mxu0 0.0
    %4644 = vmatpush1.xpose.msra.mxu0 0.0
    %4645 = vmatprep.subr.mxu0 0.0
    %4646 = vmatpush1.xpose.msra.mxu0 0.0
    %4647 = vmatprep.subr.mxu0 0.0
    %4648 = vmatpush1.xpose.msra.mxu0 0.0
    %4649 = vmatprep.subr.mxu0 0.0
    %4650 = vmatpush1.xpose.msra.mxu0 0.0
    %4651 = vmatprep.subr.mxu0 0.0
    %4652 = vmatpush1.xpose.msra.mxu0 0.0
    %4653 = vmatprep.subr.mxu0 0.0
    %4654 = vmatpush1.xpose.msra.mxu0 0.0
    %4655 = vmatprep.subr.mxu0 0.0
    %4656 = vmatpush1.xpose.msra.mxu0 0.0
    %4657 = vmatprep.subr.mxu0 0.0
    %4658 = vmatpush1.xpose.msra.mxu0 0.0
    %4659 = vmatprep.subr.mxu0 0.0
    %4660 = vmatpush1.xpose.msra.mxu0 0.0
    %4661 = vmatprep.subr.mxu0 0.0
    %4662 = vmatpush1.xpose.msra.mxu0 0.0
    %4663 = vmatprep.subr.mxu0 0.0
    %4664 = vmatpush1.xpose.msra.mxu0 %v4631
    %4665 = vmatprep.subr.mxu0 0.0
    %4666 = vmatpush2.xpose.msra.mxu0 0.0
    %4667 = vmatprep.subr.mxu0 0.0
    %4668 = vmatpush2.xpose.msra.mxu0 0.0
    %4669 = vmatprep.subr.mxu0 0.0
    %4670 = vmatpush2.xpose.msra.mxu0 0.0
    %4671 = vmatprep.subr.mxu0 0.0
    %4672 = vmatpush2.xpose.msra.mxu0 0.0
    %4673 = vmatprep.subr.mxu0 0.0
    %4674 = vmatpush2.xpose.msra.mxu0 0.0
    %4675 = vmatprep.subr.mxu0 0.0
    %4676 = vmatpush2.xpose.msra.mxu0 0.0
    %4677 = vmatprep.subr.mxu0 0.0
    %4678 = vmatpush2.xpose.msra.mxu0 0.0
    %4679 = vmatprep.subr.mxu0 0.0
    %4680 = vmatpush2.xpose.msra.mxu0 0.0
    %4681 = vmatprep.subr.mxu0 0.0
    %4682 = vmatpush2.xpose.msra.mxu0 0.0
    %4683 = vmatprep.subr.mxu0 0.0
    %4684 = vmatpush2.xpose.msra.mxu0 0.0
    %4685 = vmatprep.subr.mxu0 0.0
    %4686 = vmatpush2.xpose.msra.mxu0 0.0
    %4687 = vmatprep.subr.mxu0 0.0
    %4688 = vmatpush2.xpose.msra.mxu0 0.0
    %4689 = vmatprep.subr.mxu0 0.0
    %4690 = vmatpush2.xpose.msra.mxu0 0.0
    %4691 = vmatprep.subr.mxu0 0.0
    %4692 = vmatpush2.xpose.msra.mxu0 0.0
    %4693 = vmatprep.subr.mxu0 0.0
    %4694 = vmatpush2.xpose.msra.mxu0 0.0
    %4695 = vmatprep.subr.mxu0 0.0
    %4696 = vmatpush2.xpose.msra.mxu0 0.0
    %4697 = vmatprep.mubr.f32.mxu0 0.0
    %4698 = vmatmul.mubr.f32.gmra.mxu0 %v4629
    %v4699 = vpop.f32.mrf.mxu0
    %v4700 = vadd.f32 %v365, %v4699
    %v4701 = vpop.f32.mrf.mxu0
    %4702 = vdwg.mxu0
    %v4703 = vsel %vm525, %v4622, -inf
    %4704 = vmax.xlane.f32.xlu0 %v4703
    %v4705 = vpop.xlane.xlu0 %4704
    %v4706 = vsel %vm525, %v4700, -inf
    %4707 = vmax.xlane.f32.xlu0 %v4706
    %v4708 = vpop.xlane.xlu0 %4707
    %v4709 = vsub.f32 %v4622, %v4705
    %v4710 = vsub.f32 %v4700, %v4708
    %v4711 = vmul.f32 %v4709, 1.442695
    %v4712 = vpow.pop %v4711
    %v4713 = vmul.f32 %v4710, 1.442695
    %v4714 = vpow.pop %v4713
    %v4715 = vsel %vm525, %v4712, 0.0
    %4716 = vadd.xlane.f32.xlu0 %v4715
    %v4717 = vpop.xlane.xlu0 %4716
    %v4718 = vsel %vm525, %v4714, 0.0
    %4719 = vadd.xlane.f32.xlu0 %v4718
    %v4720 = vpop.xlane.xlu0 %4719
    %v4721 = vrcp.pop %v4717
    %v4722 = vrcp.pop %v4720
    %v4723 = vmul.f32 %v4712, %v4721
    %v4724 = vmul.f32 %v4714, %v4722
    %4725 = vrot.lane.b32.xlu0 %v3553, 52
    %v4726 = vpop.permute.xlu0 %4725
    %v4729 = vsel %vm525, %v4723, 0
    %4731 = vmatprep.subr.mxu0 0.0
    %4732 = vmatpush1.msra.mxu0 0.0
    %4733 = vmatprep.subr.mxu0 0.0
    %4734 = vmatpush1.msra.mxu0 0.0
    %4735 = vmatprep.subr.mxu0 0.0
    %4736 = vmatpush1.msra.mxu0 0.0
    %4737 = vmatprep.subr.mxu0 0.0
    %4738 = vmatpush1.msra.mxu0 0.0
    %4739 = vmatprep.subr.mxu0 0.0
    %4740 = vmatpush1.msra.mxu0 0.0
    %4741 = vmatprep.subr.mxu0 0.0
    %4742 = vmatpush1.msra.mxu0 0.0
    %4743 = vmatprep.subr.mxu0 0.0
    %4744 = vmatpush1.msra.mxu0 0.0
    %4745 = vmatprep.subr.mxu0 0.0
    %4746 = vmatpush1.msra.mxu0 0.0
    %4747 = vmatprep.subr.mxu0 0.0
    %4748 = vmatpush1.msra.mxu0 0.0
    %4749 = vmatprep.subr.mxu0 0.0
    %4750 = vmatpush1.msra.mxu0 0.0
    %4751 = vmatprep.subr.mxu0 0.0
    %4752 = vmatpush1.msra.mxu0 0.0
    %4753 = vmatprep.subr.mxu0 0.0
    %4754 = vmatpush1.msra.mxu0 0.0
    %4755 = vmatprep.subr.mxu0 0.0
    %4756 = vmatpush1.msra.mxu0 0.0
    %4757 = vmatprep.subr.mxu0 0.0
    %4758 = vmatpush1.msra.mxu0 0.0
    %4759 = vmatprep.subr.mxu0 0.0
    %4760 = vmatpush1.msra.mxu0 0.0
    %4761 = vmatprep.subr.mxu0 0.0
    %4762 = vmatpush1.msra.mxu0 %v4726
    %4763 = vmatprep.subr.mxu0 0.0
    %4764 = vmatpush2.msra.mxu0 0.0
    %4765 = vmatprep.subr.mxu0 0.0
    %4766 = vmatpush2.msra.mxu0 0.0
    %4767 = vmatprep.subr.mxu0 0.0
    %4768 = vmatpush2.msra.mxu0 0.0
    %4769 = vmatprep.subr.mxu0 0.0
    %4770 = vmatpush2.msra.mxu0 0.0
    %4771 = vmatprep.subr.mxu0 0.0
    %4772 = vmatpush2.msra.mxu0 0.0
    %4773 = vmatprep.subr.mxu0 0.0
    %4774 = vmatpush2.msra.mxu0 0.0
    %4775 = vmatprep.subr.mxu0 0.0
    %4776 = vmatpush2.msra.mxu0 0.0
    %4777 = vmatprep.subr.mxu0 0.0
    %4778 = vmatpush2.msra.mxu0 0.0
    %4779 = vmatprep.subr.mxu0 0.0
    %4780 = vmatpush2.msra.mxu0 0.0
    %4781 = vmatprep.subr.mxu0 0.0
    %4782 = vmatpush2.msra.mxu0 0.0
    %4783 = vmatprep.subr.mxu0 0.0
    %4784 = vmatpush2.msra.mxu0 0.0
    %4785 = vmatprep.subr.mxu0 0.0
    %4786 = vmatpush2.msra.mxu0 0.0
    %4787 = vmatprep.subr.mxu0 0.0
    %4788 = vmatpush2.msra.mxu0 0.0
    %4789 = vmatprep.subr.mxu0 0.0
    %4790 = vmatpush2.msra.mxu0 0.0
    %4791 = vmatprep.subr.mxu0 0.0
    %4792 = vmatpush2.msra.mxu0 0.0
    %4793 = vmatprep.subr.mxu0 0.0
    %4794 = vmatpush2.msra.mxu0 0.0
    %4795 = vmatprep.mubr.f32.mxu0 0.0
    %4796 = vmatmul.mubr.f32.gmra.mxu0 %v4729
    %v4797 = vpop.f32.mrf.mxu0
    %v4798 = vadd.f32 0.0, %v4797
    %v4799 = vpop.f32.mrf.mxu0
    %4800 = vdwg.mxu0
    %4801 = vrot.lane.b32.xlu0 %v3554, 52
    %v4802 = vpop.permute.xlu0 %4801
    %v4805 = vsel %vm525, %v4724, 0
    %4807 = vmatprep.subr.mxu0 0.0
    %4808 = vmatpush1.msra.mxu0 0.0
    %4809 = vmatprep.subr.mxu0 0.0
    %4810 = vmatpush1.msra.mxu0 0.0
    %4811 = vmatprep.subr.mxu0 0.0
    %4812 = vmatpush1.msra.mxu0 0.0
    %4813 = vmatprep.subr.mxu0 0.0
    %4814 = vmatpush1.msra.mxu0 0.0
    %4815 = vmatprep.subr.mxu0 0.0
    %4816 = vmatpush1.msra.mxu0 0.0
    %4817 = vmatprep.subr.mxu0 0.0
    %4818 = vmatpush1.msra.mxu0 0.0
    %4819 = vmatprep.subr.mxu0 0.0
    %4820 = vmatpush1.msra.mxu0 0.0
    %4821 = vmatprep.subr.mxu0 0.0
    %4822 = vmatpush1.msra.mxu0 0.0
    %4823 = vmatprep.subr.mxu0 0.0
    %4824 = vmatpush1.msra.mxu0 0.0
    %4825 = vmatprep.subr.mxu0 0.0
    %4826 = vmatpush1.msra.mxu0 0.0
    %4827 = vmatprep.subr.mxu0 0.0
    %4828 = vmatpush1.msra.mxu0 0.0
    %4829 = vmatprep.subr.mxu0 0.0
    %4830 = vmatpush1.msra.mxu0 0.0
    %4831 = vmatprep.subr.mxu0 0.0
    %4832 = vmatpush1.msra.mxu0 0.0
    %4833 = vmatprep.subr.mxu0 0.0
    %4834 = vmatpush1.msra.mxu0 0.0
    %4835 = vmatprep.subr.mxu0 0.0
    %4836 = vmatpush1.msra.mxu0 0.0
    %4837 = vmatprep.subr.mxu0 0.0
    %4838 = vmatpush1.msra.mxu0 %v4802
    %4839 = vmatprep.subr.mxu0 0.0
    %4840 = vmatpush2.msra.mxu0 0.0
    %4841 = vmatprep.subr.mxu0 0.0
    %4842 = vmatpush2.msra.mxu0 0.0
    %4843 = vmatprep.subr.mxu0 0.0
    %4844 = vmatpush2.msra.mxu0 0.0
    %4845 = vmatprep.subr.mxu0 0.0
    %4846 = vmatpush2.msra.mxu0 0.0
    %4847 = vmatprep.subr.mxu0 0.0
    %4848 = vmatpush2.msra.mxu0 0.0
    %4849 = vmatprep.subr.mxu0 0.0
    %4850 = vmatpush2.msra.mxu0 0.0
    %4851 = vmatprep.subr.mxu0 0.0
    %4852 = vmatpush2.msra.mxu0 0.0
    %4853 = vmatprep.subr.mxu0 0.0
    %4854 = vmatpush2.msra.mxu0 0.0
    %4855 = vmatprep.subr.mxu0 0.0
    %4856 = vmatpush2.msra.mxu0 0.0
    %4857 = vmatprep.subr.mxu0 0.0
    %4858 = vmatpush2.msra.mxu0 0.0
    %4859 = vmatprep.subr.mxu0 0.0
    %4860 = vmatpush2.msra.mxu0 0.0
    %4861 = vmatprep.subr.mxu0 0.0
    %4862 = vmatpush2.msra.mxu0 0.0
    %4863 = vmatprep.subr.mxu0 0.0
    %4864 = vmatpush2.msra.mxu0 0.0
    %4865 = vmatprep.subr.mxu0 0.0
    %4866 = vmatpush2.msra.mxu0 0.0
    %4867 = vmatprep.subr.mxu0 0.0
    %4868 = vmatpush2.msra.mxu0 0.0
    %4869 = vmatprep.subr.mxu0 0.0
    %4870 = vmatpush2.msra.mxu0 0.0
    %4871 = vmatprep.mubr.f32.mxu0 0.0
    %4872 = vmatmul.mubr.f32.gmra.mxu0 %v4805
    %v4873 = vpop.f32.mrf.mxu0
    %v4874 = vadd.f32 0.0, %v4873
    %v4875 = vpop.f32.mrf.mxu0
    %4876 = vdwg.mxu0
    %4877 = vrot.lane.b32.xlu0 %v3533, 112
    %v4878 = vpop.permute.xlu0 %4877
    %4879 = vrot.lane.b32.xlu0 %v3543, 80
    %v4880 = vpop.permute.xlu0 %4879
    %v4881 = vsel %vm371, %v4878, 0
    %v4883 = vsel %vm371, %v4880, 0
    %4885 = vmatprep.subr.mxu0 0.0
    %4886 = vmatpush1.xpose.msra.mxu0 0.0
    %4887 = vmatprep.subr.mxu0 0.0
    %4888 = vmatpush1.xpose.msra.mxu0 0.0
    %4889 = vmatprep.subr.mxu0 0.0
    %4890 = vmatpush1.xpose.msra.mxu0 0.0
    %4891 = vmatprep.subr.mxu0 0.0
    %4892 = vmatpush1.xpose.msra.mxu0 0.0
    %4893 = vmatprep.subr.mxu0 0.0
    %4894 = vmatpush1.xpose.msra.mxu0 0.0
    %4895 = vmatprep.subr.mxu0 0.0
    %4896 = vmatpush1.xpose.msra.mxu0 0.0
    %4897 = vmatprep.subr.mxu0 0.0
    %4898 = vmatpush1.xpose.msra.mxu0 0.0
    %4899 = vmatprep.subr.mxu0 0.0
    %4900 = vmatpush1.xpose.msra.mxu0 0.0
    %4901 = vmatprep.subr.mxu0 0.0
    %4902 = vmatpush1.xpose.msra.mxu0 0.0
    %4903 = vmatprep.subr.mxu0 0.0
    %4904 = vmatpush1.xpose.msra.mxu0 0.0
    %4905 = vmatprep.subr.mxu0 0.0
    %4906 = vmatpush1.xpose.msra.mxu0 0.0
    %4907 = vmatprep.subr.mxu0 0.0
    %4908 = vmatpush1.xpose.msra.mxu0 0.0
    %4909 = vmatprep.subr.mxu0 0.0
    %4910 = vmatpush1.xpose.msra.mxu0 0.0
    %4911 = vmatprep.subr.mxu0 0.0
    %4912 = vmatpush1.xpose.msra.mxu0 0.0
    %4913 = vmatprep.subr.mxu0 0.0
    %4914 = vmatpush1.xpose.msra.mxu0 0.0
    %4915 = vmatprep.subr.mxu0 0.0
    %4916 = vmatpush1.xpose.msra.mxu0 %v4883
    %4917 = vmatprep.subr.mxu0 0.0
    %4918 = vmatpush2.xpose.msra.mxu0 0.0
    %4919 = vmatprep.subr.mxu0 0.0
    %4920 = vmatpush2.xpose.msra.mxu0 0.0
    %4921 = vmatprep.subr.mxu0 0.0
    %4922 = vmatpush2.xpose.msra.mxu0 0.0
    %4923 = vmatprep.subr.mxu0 0.0
    %4924 = vmatpush2.xpose.msra.mxu0 0.0
    %4925 = vmatprep.subr.mxu0 0.0
    %4926 = vmatpush2.xpose.msra.mxu0 0.0
    %4927 = vmatprep.subr.mxu0 0.0
    %4928 = vmatpush2.xpose.msra.mxu0 0.0
    %4929 = vmatprep.subr.mxu0 0.0
    %4930 = vmatpush2.xpose.msra.mxu0 0.0
    %4931 = vmatprep.subr.mxu0 0.0
    %4932 = vmatpush2.xpose.msra.mxu0 0.0
    %4933 = vmatprep.subr.mxu0 0.0
    %4934 = vmatpush2.xpose.msra.mxu0 0.0
    %4935 = vmatprep.subr.mxu0 0.0
    %4936 = vmatpush2.xpose.msra.mxu0 0.0
    %4937 = vmatprep.subr.mxu0 0.0
    %4938 = vmatpush2.xpose.msra.mxu0 0.0
    %4939 = vmatprep.subr.mxu0 0.0
    %4940 = vmatpush2.xpose.msra.mxu0 0.0
    %4941 = vmatprep.subr.mxu0 0.0
    %4942 = vmatpush2.xpose.msra.mxu0 0.0
    %4943 = vmatprep.subr.mxu0 0.0
    %4944 = vmatpush2.xpose.msra.mxu0 0.0
    %4945 = vmatprep.subr.mxu0 0.0
    %4946 = vmatpush2.xpose.msra.mxu0 0.0
    %4947 = vmatprep.subr.mxu0 0.0
    %4948 = vmatpush2.xpose.msra.mxu0 0.0
    %4949 = vmatprep.mubr.f32.mxu0 0.0
    %4950 = vmatmul.mubr.f32.gmra.mxu0 %v4881
    %v4951 = vpop.f32.mrf.mxu0
    %v4952 = vadd.f32 %v361, %v4951
    %v4953 = vpop.f32.mrf.mxu0
    %4954 = vdwg.mxu0
    %4955 = vrot.lane.b32.xlu0 %v3534, 112
    %v4956 = vpop.permute.xlu0 %4955
    %4957 = vrot.lane.b32.xlu0 %v3544, 80
    %v4958 = vpop.permute.xlu0 %4957
    %v4959 = vsel %vm371, %v4956, 0
    %v4961 = vsel %vm371, %v4958, 0
    %4963 = vmatprep.subr.mxu0 0.0
    %4964 = vmatpush1.xpose.msra.mxu0 0.0
    %4965 = vmatprep.subr.mxu0 0.0
    %4966 = vmatpush1.xpose.msra.mxu0 0.0
    %4967 = vmatprep.subr.mxu0 0.0
    %4968 = vmatpush1.xpose.msra.mxu0 0.0
    %4969 = vmatprep.subr.mxu0 0.0
    %4970 = vmatpush1.xpose.msra.mxu0 0.0
    %4971 = vmatprep.subr.mxu0 0.0
    %4972 = vmatpush1.xpose.msra.mxu0 0.0
    %4973 = vmatprep.subr.mxu0 0.0
    %4974 = vmatpush1.xpose.msra.mxu0 0.0
    %4975 = vmatprep.subr.mxu0 0.0
    %4976 = vmatpush1.xpose.msra.mxu0 0.0
    %4977 = vmatprep.subr.mxu0 0.0
    %4978 = vmatpush1.xpose.msra.mxu0 0.0
    %4979 = vmatprep.subr.mxu0 0.0
    %4980 = vmatpush1.xpose.msra.mxu0 0.0
    %4981 = vmatprep.subr.mxu0 0.0
    %4982 = vmatpush1.xpose.msra.mxu0 0.0
    %4983 = vmatprep.subr.mxu0 0.0
    %4984 = vmatpush1.xpose.msra.mxu0 0.0
    %4985 = vmatprep.subr.mxu0 0.0
    %4986 = vmatpush1.xpose.msra.mxu0 0.0
    %4987 = vmatprep.subr.mxu0 0.0
    %4988 = vmatpush1.xpose.msra.mxu0 0.0
    %4989 = vmatprep.subr.mxu0 0.0
    %4990 = vmatpush1.xpose.msra.mxu0 0.0
    %4991 = vmatprep.subr.mxu0 0.0
    %4992 = vmatpush1.xpose.msra.mxu0 0.0
    %4993 = vmatprep.subr.mxu0 0.0
    %4994 = vmatpush1.xpose.msra.mxu0 %v4961
    %4995 = vmatprep.subr.mxu0 0.0
    %4996 = vmatpush2.xpose.msra.mxu0 0.0
    %4997 = vmatprep.subr.mxu0 0.0
    %4998 = vmatpush2.xpose.msra.mxu0 0.0
    %4999 = vmatprep.subr.mxu0 0.0
    %5000 = vmatpush2.xpose.msra.mxu0 0.0
    %5001 = vmatprep.subr.mxu0 0.0
    %5002 = vmatpush2.xpose.msra.mxu0 0.0
    %5003 = vmatprep.subr.mxu0 0.0
    %5004 = vmatpush2.xpose.msra.mxu0 0.0
    %5005 = vmatprep.subr.mxu0 0.0
    %5006 = vmatpush2.xpose.msra.mxu0 0.0
    %5007 = vmatprep.subr.mxu0 0.0
    %5008 = vmatpush2.xpose.msra.mxu0 0.0
    %5009 = vmatprep.subr.mxu0 0.0
    %5010 = vmatpush2.xpose.msra.mxu0 0.0
    %5011 = vmatprep.subr.mxu0 0.0
    %5012 = vmatpush2.xpose.msra.mxu0 0.0
    %5013 = vmatprep.subr.mxu0 0.0
    %5014 = vmatpush2.xpose.msra.mxu0 0.0
    %5015 = vmatprep.subr.mxu0 0.0
    %5016 = vmatpush2.xpose.msra.mxu0 0.0
    %5017 = vmatprep.subr.mxu0 0.0
    %5018 = vmatpush2.xpose.msra.mxu0 0.0
    %5019 = vmatprep.subr.mxu0 0.0
    %5020 = vmatpush2.xpose.msra.mxu0 0.0
    %5021 = vmatprep.subr.mxu0 0.0
    %5022 = vmatpush2.xpose.msra.mxu0 0.0
    %5023 = vmatprep.subr.mxu0 0.0
    %5024 = vmatpush2.xpose.msra.mxu0 0.0
    %5025 = vmatprep.subr.mxu0 0.0
    %5026 = vmatpush2.xpose.msra.mxu0 0.0
    %5027 = vmatprep.mubr.f32.mxu0 0.0
    %5028 = vmatmul.mubr.f32.gmra.mxu0 %v4959
    %v5029 = vpop.f32.mrf.mxu0
    %v5030 = vadd.f32 %v365, %v5029
    %v5031 = vpop.f32.mrf.mxu0
    %5032 = vdwg.mxu0
    %v5033 = vsel %vm525, %v4952, -inf
    %5034 = vmax.xlane.f32.xlu0 %v5033
    %v5035 = vpop.xlane.xlu0 %5034
    %v5036 = vsel %vm525, %v5030, -inf
    %5037 = vmax.xlane.f32.xlu0 %v5036
    %v5038 = vpop.xlane.xlu0 %5037
    %v5039 = vsub.f32 %v4952, %v5035
    %v5040 = vsub.f32 %v5030, %v5038
    %v5041 = vmul.f32 %v5039, 1.442695
    %v5042 = vpow.pop %v5041
    %v5043 = vmul.f32 %v5040, 1.442695
    %v5044 = vpow.pop %v5043
    %v5045 = vsel %vm525, %v5042, 0.0
    %5046 = vadd.xlane.f32.xlu0 %v5045
    %v5047 = vpop.xlane.xlu0 %5046
    %v5048 = vsel %vm525, %v5044, 0.0
    %5049 = vadd.xlane.f32.xlu0 %v5048
    %v5050 = vpop.xlane.xlu0 %5049
    %v5051 = vrcp.pop %v5047
    %v5052 = vrcp.pop %v5050
    %v5053 = vmul.f32 %v5042, %v5051
    %v5054 = vmul.f32 %v5044, %v5052
    %5055 = vrot.lane.b32.xlu0 %v3553, 48
    %v5056 = vpop.permute.xlu0 %5055
    %v5059 = vsel %vm525, %v5053, 0
    %5061 = vmatprep.subr.mxu0 0.0
    %5062 = vmatpush1.msra.mxu0 0.0
    %5063 = vmatprep.subr.mxu0 0.0
    %5064 = vmatpush1.msra.mxu0 0.0
    %5065 = vmatprep.subr.mxu0 0.0
    %5066 = vmatpush1.msra.mxu0 0.0
    %5067 = vmatprep.subr.mxu0 0.0
    %5068 = vmatpush1.msra.mxu0 0.0
    %5069 = vmatprep.subr.mxu0 0.0
    %5070 = vmatpush1.msra.mxu0 0.0
    %5071 = vmatprep.subr.mxu0 0.0
    %5072 = vmatpush1.msra.mxu0 0.0
    %5073 = vmatprep.subr.mxu0 0.0
    %5074 = vmatpush1.msra.mxu0 0.0
    %5075 = vmatprep.subr.mxu0 0.0
    %5076 = vmatpush1.msra.mxu0 0.0
    %5077 = vmatprep.subr.mxu0 0.0
    %5078 = vmatpush1.msra.mxu0 0.0
    %5079 = vmatprep.subr.mxu0 0.0
    %5080 = vmatpush1.msra.mxu0 0.0
    %5081 = vmatprep.subr.mxu0 0.0
    %5082 = vmatpush1.msra.mxu0 0.0
    %5083 = vmatprep.subr.mxu0 0.0
    %5084 = vmatpush1.msra.mxu0 0.0
    %5085 = vmatprep.subr.mxu0 0.0
    %5086 = vmatpush1.msra.mxu0 0.0
    %5087 = vmatprep.subr.mxu0 0.0
    %5088 = vmatpush1.msra.mxu0 0.0
    %5089 = vmatprep.subr.mxu0 0.0
    %5090 = vmatpush1.msra.mxu0 0.0
    %5091 = vmatprep.subr.mxu0 0.0
    %5092 = vmatpush1.msra.mxu0 %v5056
    %5093 = vmatprep.subr.mxu0 0.0
    %5094 = vmatpush2.msra.mxu0 0.0
    %5095 = vmatprep.subr.mxu0 0.0
    %5096 = vmatpush2.msra.mxu0 0.0
    %5097 = vmatprep.subr.mxu0 0.0
    %5098 = vmatpush2.msra.mxu0 0.0
    %5099 = vmatprep.subr.mxu0 0.0
    %5100 = vmatpush2.msra.mxu0 0.0
    %5101 = vmatprep.subr.mxu0 0.0
    %5102 = vmatpush2.msra.mxu0 0.0
    %5103 = vmatprep.subr.mxu0 0.0
    %5104 = vmatpush2.msra.mxu0 0.0
    %5105 = vmatprep.subr.mxu0 0.0
    %5106 = vmatpush2.msra.mxu0 0.0
    %5107 = vmatprep.subr.mxu0 0.0
    %5108 = vmatpush2.msra.mxu0 0.0
    %5109 = vmatprep.subr.mxu0 0.0
    %5110 = vmatpush2.msra.mxu0 0.0
    %5111 = vmatprep.subr.mxu0 0.0
    %5112 = vmatpush2.msra.mxu0 0.0
    %5113 = vmatprep.subr.mxu0 0.0
    %5114 = vmatpush2.msra.mxu0 0.0
    %5115 = vmatprep.subr.mxu0 0.0
    %5116 = vmatpush2.msra.mxu0 0.0
    %5117 = vmatprep.subr.mxu0 0.0
    %5118 = vmatpush2.msra.mxu0 0.0
    %5119 = vmatprep.subr.mxu0 0.0
    %5120 = vmatpush2.msra.mxu0 0.0
    %5121 = vmatprep.subr.mxu0 0.0
    %5122 = vmatpush2.msra.mxu0 0.0
    %5123 = vmatprep.subr.mxu0 0.0
    %5124 = vmatpush2.msra.mxu0 0.0
    %5125 = vmatprep.mubr.f32.mxu0 0.0
    %5126 = vmatmul.mubr.f32.gmra.mxu0 %v5059
    %v5127 = vpop.f32.mrf.mxu0
    %v5128 = vadd.f32 0.0, %v5127
    %v5129 = vpop.f32.mrf.mxu0
    %5130 = vdwg.mxu0
    %5131 = vrot.lane.b32.xlu0 %v3554, 48
    %v5132 = vpop.permute.xlu0 %5131
    %v5135 = vsel %vm525, %v5054, 0
    %5137 = vmatprep.subr.mxu0 0.0
    %5138 = vmatpush1.msra.mxu0 0.0
    %5139 = vmatprep.subr.mxu0 0.0
    %5140 = vmatpush1.msra.mxu0 0.0
    %5141 = vmatprep.subr.mxu0 0.0
    %5142 = vmatpush1.msra.mxu0 0.0
    %5143 = vmatprep.subr.mxu0 0.0
    %5144 = vmatpush1.msra.mxu0 0.0
    %5145 = vmatprep.subr.mxu0 0.0
    %5146 = vmatpush1.msra.mxu0 0.0
    %5147 = vmatprep.subr.mxu0 0.0
    %5148 = vmatpush1.msra.mxu0 0.0
    %5149 = vmatprep.subr.mxu0 0.0
    %5150 = vmatpush1.msra.mxu0 0.0
    %5151 = vmatprep.subr.mxu0 0.0
    %5152 = vmatpush1.msra.mxu0 0.0
    %5153 = vmatprep.subr.mxu0 0.0
    %5154 = vmatpush1.msra.mxu0 0.0
    %5155 = vmatprep.subr.mxu0 0.0
    %5156 = vmatpush1.msra.mxu0 0.0
    %5157 = vmatprep.subr.mxu0 0.0
    %5158 = vmatpush1.msra.mxu0 0.0
    %5159 = vmatprep.subr.mxu0 0.0
    %5160 = vmatpush1.msra.mxu0 0.0
    %5161 = vmatprep.subr.mxu0 0.0
    %5162 = vmatpush1.msra.mxu0 0.0
    %5163 = vmatprep.subr.mxu0 0.0
    %5164 = vmatpush1.msra.mxu0 0.0
    %5165 = vmatprep.subr.mxu0 0.0
    %5166 = vmatpush1.msra.mxu0 0.0
    %5167 = vmatprep.subr.mxu0 0.0
    %5168 = vmatpush1.msra.mxu0 %v5132
    %5169 = vmatprep.subr.mxu0 0.0
    %5170 = vmatpush2.msra.mxu0 0.0
    %5171 = vmatprep.subr.mxu0 0.0
    %5172 = vmatpush2.msra.mxu0 0.0
    %5173 = vmatprep.subr.mxu0 0.0
    %5174 = vmatpush2.msra.mxu0 0.0
    %5175 = vmatprep.subr.mxu0 0.0
    %5176 = vmatpush2.msra.mxu0 0.0
    %5177 = vmatprep.subr.mxu0 0.0
    %5178 = vmatpush2.msra.mxu0 0.0
    %5179 = vmatprep.subr.mxu0 0.0
    %5180 = vmatpush2.msra.mxu0 0.0
    %5181 = vmatprep.subr.mxu0 0.0
    %5182 = vmatpush2.msra.mxu0 0.0
    %5183 = vmatprep.subr.mxu0 0.0
    %5184 = vmatpush2.msra.mxu0 0.0
    %5185 = vmatprep.subr.mxu0 0.0
    %5186 = vmatpush2.msra.mxu0 0.0
    %5187 = vmatprep.subr.mxu0 0.0
    %5188 = vmatpush2.msra.mxu0 0.0
    %5189 = vmatprep.subr.mxu0 0.0
    %5190 = vmatpush2.msra.mxu0 0.0
    %5191 = vmatprep.subr.mxu0 0.0
    %5192 = vmatpush2.msra.mxu0 0.0
    %5193 = vmatprep.subr.mxu0 0.0
    %5194 = vmatpush2.msra.mxu0 0.0
    %5195 = vmatprep.subr.mxu0 0.0
    %5196 = vmatpush2.msra.mxu0 0.0
    %5197 = vmatprep.subr.mxu0 0.0
    %5198 = vmatpush2.msra.mxu0 0.0
    %5199 = vmatprep.subr.mxu0 0.0
    %5200 = vmatpush2.msra.mxu0 0.0
    %5201 = vmatprep.mubr.f32.mxu0 0.0
    %5202 = vmatmul.mubr.f32.gmra.mxu0 %v5135
    %v5203 = vpop.f32.mrf.mxu0
    %v5204 = vadd.f32 0.0, %v5203
    %v5205 = vpop.f32.mrf.mxu0
    %5206 = vdwg.mxu0
    %5207 = vrot.lane.b32.xlu0 %v3533, 108
    %v5208 = vpop.permute.xlu0 %5207
    %5209 = vrot.lane.b32.xlu0 %v3543, 76
    %v5210 = vpop.permute.xlu0 %5209
    %v5211 = vsel %vm371, %v5208, 0
    %v5213 = vsel %vm371, %v5210, 0
    %5215 = vmatprep.subr.mxu0 0.0
    %5216 = vmatpush1.xpose.msra.mxu0 0.0
    %5217 = vmatprep.subr.mxu0 0.0
    %5218 = vmatpush1.xpose.msra.mxu0 0.0
    %5219 = vmatprep.subr.mxu0 0.0
    %5220 = vmatpush1.xpose.msra.mxu0 0.0
    %5221 = vmatprep.subr.mxu0 0.0
    %5222 = vmatpush1.xpose.msra.mxu0 0.0
    %5223 = vmatprep.subr.mxu0 0.0
    %5224 = vmatpush1.xpose.msra.mxu0 0.0
    %5225 = vmatprep.subr.mxu0 0.0
    %5226 = vmatpush1.xpose.msra.mxu0 0.0
    %5227 = vmatprep.subr.mxu0 0.0
    %5228 = vmatpush1.xpose.msra.mxu0 0.0
    %5229 = vmatprep.subr.mxu0 0.0
    %5230 = vmatpush1.xpose.msra.mxu0 0.0
    %5231 = vmatprep.subr.mxu0 0.0
    %5232 = vmatpush1.xpose.msra.mxu0 0.0
    %5233 = vmatprep.subr.mxu0 0.0
    %5234 = vmatpush1.xpose.msra.mxu0 0.0
    %5235 = vmatprep.subr.mxu0 0.0
    %5236 = vmatpush1.xpose.msra.mxu0 0.0
    %5237 = vmatprep.subr.mxu0 0.0
    %5238 = vmatpush1.xpose.msra.mxu0 0.0
    %5239 = vmatprep.subr.mxu0 0.0
    %5240 = vmatpush1.xpose.msra.mxu0 0.0
    %5241 = vmatprep.subr.mxu0 0.0
    %5242 = vmatpush1.xpose.msra.mxu0 0.0
    %5243 = vmatprep.subr.mxu0 0.0
    %5244 = vmatpush1.xpose.msra.mxu0 0.0
    %5245 = vmatprep.subr.mxu0 0.0
    %5246 = vmatpush1.xpose.msra.mxu0 %v5213
    %5247 = vmatprep.subr.mxu0 0.0
    %5248 = vmatpush2.xpose.msra.mxu0 0.0
    %5249 = vmatprep.subr.mxu0 0.0
    %5250 = vmatpush2.xpose.msra.mxu0 0.0
    %5251 = vmatprep.subr.mxu0 0.0
    %5252 = vmatpush2.xpose.msra.mxu0 0.0
    %5253 = vmatprep.subr.mxu0 0.0
    %5254 = vmatpush2.xpose.msra.mxu0 0.0
    %5255 = vmatprep.subr.mxu0 0.0
    %5256 = vmatpush2.xpose.msra.mxu0 0.0
    %5257 = vmatprep.subr.mxu0 0.0
    %5258 = vmatpush2.xpose.msra.mxu0 0.0
    %5259 = vmatprep.subr.mxu0 0.0
    %5260 = vmatpush2.xpose.msra.mxu0 0.0
    %5261 = vmatprep.subr.mxu0 0.0
    %5262 = vmatpush2.xpose.msra.mxu0 0.0
    %5263 = vmatprep.subr.mxu0 0.0
    %5264 = vmatpush2.xpose.msra.mxu0 0.0
    %5265 = vmatprep.subr.mxu0 0.0
    %5266 = vmatpush2.xpose.msra.mxu0 0.0
    %5267 = vmatprep.subr.mxu0 0.0
    %5268 = vmatpush2.xpose.msra.mxu0 0.0
    %5269 = vmatprep.subr.mxu0 0.0
    %5270 = vmatpush2.xpose.msra.mxu0 0.0
    %5271 = vmatprep.subr.mxu0 0.0
    %5272 = vmatpush2.xpose.msra.mxu0 0.0
    %5273 = vmatprep.subr.mxu0 0.0
    %5274 = vmatpush2.xpose.msra.mxu0 0.0
    %5275 = vmatprep.subr.mxu0 0.0
    %5276 = vmatpush2.xpose.msra.mxu0 0.0
    %5277 = vmatprep.subr.mxu0 0.0
    %5278 = vmatpush2.xpose.msra.mxu0 0.0
    %5279 = vmatprep.mubr.f32.mxu0 0.0
    %5280 = vmatmul.mubr.f32.gmra.mxu0 %v5211
    %v5281 = vpop.f32.mrf.mxu0
    %v5282 = vadd.f32 %v361, %v5281
    %v5283 = vpop.f32.mrf.mxu0
    %5284 = vdwg.mxu0
    %5285 = vrot.lane.b32.xlu0 %v3534, 108
    %v5286 = vpop.permute.xlu0 %5285
    %5287 = vrot.lane.b32.xlu0 %v3544, 76
    %v5288 = vpop.permute.xlu0 %5287
    %v5289 = vsel %vm371, %v5286, 0
    %v5291 = vsel %vm371, %v5288, 0
    %5293 = vmatprep.subr.mxu0 0.0
    %5294 = vmatpush1.xpose.msra.mxu0 0.0
    %5295 = vmatprep.subr.mxu0 0.0
    %5296 = vmatpush1.xpose.msra.mxu0 0.0
    %5297 = vmatprep.subr.mxu0 0.0
    %5298 = vmatpush1.xpose.msra.mxu0 0.0
    %5299 = vmatprep.subr.mxu0 0.0
    %5300 = vmatpush1.xpose.msra.mxu0 0.0
    %5301 = vmatprep.subr.mxu0 0.0
    %5302 = vmatpush1.xpose.msra.mxu0 0.0
    %5303 = vmatprep.subr.mxu0 0.0
    %5304 = vmatpush1.xpose.msra.mxu0 0.0
    %5305 = vmatprep.subr.mxu0 0.0
    %5306 = vmatpush1.xpose.msra.mxu0 0.0
    %5307 = vmatprep.subr.mxu0 0.0
    %5308 = vmatpush1.xpose.msra.mxu0 0.0
    %5309 = vmatprep.subr.mxu0 0.0
    %5310 = vmatpush1.xpose.msra.mxu0 0.0
    %5311 = vmatprep.subr.mxu0 0.0
    %5312 = vmatpush1.xpose.msra.mxu0 0.0
    %5313 = vmatprep.subr.mxu0 0.0
    %5314 = vmatpush1.xpose.msra.mxu0 0.0
    %5315 = vmatprep.subr.mxu0 0.0
    %5316 = vmatpush1.xpose.msra.mxu0 0.0
    %5317 = vmatprep.subr.mxu0 0.0
    %5318 = vmatpush1.xpose.msra.mxu0 0.0
    %5319 = vmatprep.subr.mxu0 0.0
    %5320 = vmatpush1.xpose.msra.mxu0 0.0
    %5321 = vmatprep.subr.mxu0 0.0
    %5322 = vmatpush1.xpose.msra.mxu0 0.0
    %5323 = vmatprep.subr.mxu0 0.0
    %5324 = vmatpush1.xpose.msra.mxu0 %v5291
    %5325 = vmatprep.subr.mxu0 0.0
    %5326 = vmatpush2.xpose.msra.mxu0 0.0
    %5327 = vmatprep.subr.mxu0 0.0
    %5328 = vmatpush2.xpose.msra.mxu0 0.0
    %5329 = vmatprep.subr.mxu0 0.0
    %5330 = vmatpush2.xpose.msra.mxu0 0.0
    %5331 = vmatprep.subr.mxu0 0.0
    %5332 = vmatpush2.xpose.msra.mxu0 0.0
    %5333 = vmatprep.subr.mxu0 0.0
    %5334 = vmatpush2.xpose.msra.mxu0 0.0
    %5335 = vmatprep.subr.mxu0 0.0
    %5336 = vmatpush2.xpose.msra.mxu0 0.0
    %5337 = vmatprep.subr.mxu0 0.0
    %5338 = vmatpush2.xpose.msra.mxu0 0.0
    %5339 = vmatprep.subr.mxu0 0.0
    %5340 = vmatpush2.xpose.msra.mxu0 0.0
    %5341 = vmatprep.subr.mxu0 0.0
    %5342 = vmatpush2.xpose.msra.mxu0 0.0
    %5343 = vmatprep.subr.mxu0 0.0
    %5344 = vmatpush2.xpose.msra.mxu0 0.0
    %5345 = vmatprep.subr.mxu0 0.0
    %5346 = vmatpush2.xpose.msra.mxu0 0.0
    %5347 = vmatprep.subr.mxu0 0.0
    %5348 = vmatpush2.xpose.msra.mxu0 0.0
    %5349 = vmatprep.subr.mxu0 0.0
    %5350 = vmatpush2.xpose.msra.mxu0 0.0
    %5351 = vmatprep.subr.mxu0 0.0
    %5352 = vmatpush2.xpose.msra.mxu0 0.0
    %5353 = vmatprep.subr.mxu0 0.0
    %5354 = vmatpush2.xpose.msra.mxu0 0.0
    %5355 = vmatprep.subr.mxu0 0.0
    %5356 = vmatpush2.xpose.msra.mxu0 0.0
    %5357 = vmatprep.mubr.f32.mxu0 0.0
    %5358 = vmatmul.mubr.f32.gmra.mxu0 %v5289
    %v5359 = vpop.f32.mrf.mxu0
    %v5360 = vadd.f32 %v365, %v5359
    %v5361 = vpop.f32.mrf.mxu0
    %5362 = vdwg.mxu0
    %v5363 = vsel %vm525, %v5282, -inf
    %5364 = vmax.xlane.f32.xlu0 %v5363
    %v5365 = vpop.xlane.xlu0 %5364
    %v5366 = vsel %vm525, %v5360, -inf
    %5367 = vmax.xlane.f32.xlu0 %v5366
    %v5368 = vpop.xlane.xlu0 %5367
    %v5369 = vsub.f32 %v5282, %v5365
    %v5370 = vsub.f32 %v5360, %v5368
    %v5371 = vmul.f32 %v5369, 1.442695
    %v5372 = vpow.pop %v5371
    %v5373 = vmul.f32 %v5370, 1.442695
    %v5374 = vpow.pop %v5373
    %v5375 = vsel %vm525, %v5372, 0.0
    %5376 = vadd.xlane.f32.xlu0 %v5375
    %v5377 = vpop.xlane.xlu0 %5376
    %v5378 = vsel %vm525, %v5374, 0.0
    %5379 = vadd.xlane.f32.xlu0 %v5378
    %v5380 = vpop.xlane.xlu0 %5379
    %v5381 = vrcp.pop %v5377
    %v5382 = vrcp.pop %v5380
    %v5383 = vmul.f32 %v5372, %v5381
    %v5384 = vmul.f32 %v5374, %v5382
    %5385 = vrot.lane.b32.xlu0 %v3553, 44
    %v5386 = vpop.permute.xlu0 %5385
    %v5389 = vsel %vm525, %v5383, 0
    %5391 = vmatprep.subr.mxu0 0.0
    %5392 = vmatpush1.msra.mxu0 0.0
    %5393 = vmatprep.subr.mxu0 0.0
    %5394 = vmatpush1.msra.mxu0 0.0
    %5395 = vmatprep.subr.mxu0 0.0
    %5396 = vmatpush1.msra.mxu0 0.0
    %5397 = vmatprep.subr.mxu0 0.0
    %5398 = vmatpush1.msra.mxu0 0.0
    %5399 = vmatprep.subr.mxu0 0.0
    %5400 = vmatpush1.msra.mxu0 0.0
    %5401 = vmatprep.subr.mxu0 0.0
    %5402 = vmatpush1.msra.mxu0 0.0
    %5403 = vmatprep.subr.mxu0 0.0
    %5404 = vmatpush1.msra.mxu0 0.0
    %5405 = vmatprep.subr.mxu0 0.0
    %5406 = vmatpush1.msra.mxu0 0.0
    %5407 = vmatprep.subr.mxu0 0.0
    %5408 = vmatpush1.msra.mxu0 0.0
    %5409 = vmatprep.subr.mxu0 0.0
    %5410 = vmatpush1.msra.mxu0 0.0
    %5411 = vmatprep.subr.mxu0 0.0
    %5412 = vmatpush1.msra.mxu0 0.0
    %5413 = vmatprep.subr.mxu0 0.0
    %5414 = vmatpush1.msra.mxu0 0.0
    %5415 = vmatprep.subr.mxu0 0.0
    %5416 = vmatpush1.msra.mxu0 0.0
    %5417 = vmatprep.subr.mxu0 0.0
    %5418 = vmatpush1.msra.mxu0 0.0
    %5419 = vmatprep.subr.mxu0 0.0
    %5420 = vmatpush1.msra.mxu0 0.0
    %5421 = vmatprep.subr.mxu0 0.0
    %5422 = vmatpush1.msra.mxu0 %v5386
    %5423 = vmatprep.subr.mxu0 0.0
    %5424 = vmatpush2.msra.mxu0 0.0
    %5425 = vmatprep.subr.mxu0 0.0
    %5426 = vmatpush2.msra.mxu0 0.0
    %5427 = vmatprep.subr.mxu0 0.0
    %5428 = vmatpush2.msra.mxu0 0.0
    %5429 = vmatprep.subr.mxu0 0.0
    %5430 = vmatpush2.msra.mxu0 0.0
    %5431 = vmatprep.subr.mxu0 0.0
    %5432 = vmatpush2.msra.mxu0 0.0
    %5433 = vmatprep.subr.mxu0 0.0
    %5434 = vmatpush2.msra.mxu0 0.0
    %5435 = vmatprep.subr.mxu0 0.0
    %5436 = vmatpush2.msra.mxu0 0.0
    %5437 = vmatprep.subr.mxu0 0.0
    %5438 = vmatpush2.msra.mxu0 0.0
    %5439 = vmatprep.subr.mxu0 0.0
    %5440 = vmatpush2.msra.mxu0 0.0
    %5441 = vmatprep.subr.mxu0 0.0
    %5442 = vmatpush2.msra.mxu0 0.0
    %5443 = vmatprep.subr.mxu0 0.0
    %5444 = vmatpush2.msra.mxu0 0.0
    %5445 = vmatprep.subr.mxu0 0.0
    %5446 = vmatpush2.msra.mxu0 0.0
    %5447 = vmatprep.subr.mxu0 0.0
    %5448 = vmatpush2.msra.mxu0 0.0
    %5449 = vmatprep.subr.mxu0 0.0
    %5450 = vmatpush2.msra.mxu0 0.0
    %5451 = vmatprep.subr.mxu0 0.0
    %5452 = vmatpush2.msra.mxu0 0.0
    %5453 = vmatprep.subr.mxu0 0.0
    %5454 = vmatpush2.msra.mxu0 0.0
    %5455 = vmatprep.mubr.f32.mxu0 0.0
    %5456 = vmatmul.mubr.f32.gmra.mxu0 %v5389
    %v5457 = vpop.f32.mrf.mxu0
    %v5458 = vadd.f32 0.0, %v5457
    %v5459 = vpop.f32.mrf.mxu0
    %5460 = vdwg.mxu0
    %5461 = vrot.lane.b32.xlu0 %v3554, 44
    %v5462 = vpop.permute.xlu0 %5461
    %v5465 = vsel %vm525, %v5384, 0
    %5467 = vmatprep.subr.mxu0 0.0
    %5468 = vmatpush1.msra.mxu0 0.0
    %5469 = vmatprep.subr.mxu0 0.0
    %5470 = vmatpush1.msra.mxu0 0.0
    %5471 = vmatprep.subr.mxu0 0.0
    %5472 = vmatpush1.msra.mxu0 0.0
    %5473 = vmatprep.subr.mxu0 0.0
    %5474 = vmatpush1.msra.mxu0 0.0
    %5475 = vmatprep.subr.mxu0 0.0
    %5476 = vmatpush1.msra.mxu0 0.0
    %5477 = vmatprep.subr.mxu0 0.0
    %5478 = vmatpush1.msra.mxu0 0.0
    %5479 = vmatprep.subr.mxu0 0.0
    %5480 = vmatpush1.msra.mxu0 0.0
    %5481 = vmatprep.subr.mxu0 0.0
    %5482 = vmatpush1.msra.mxu0 0.0
    %5483 = vmatprep.subr.mxu0 0.0
    %5484 = vmatpush1.msra.mxu0 0.0
    %5485 = vmatprep.subr.mxu0 0.0
    %5486 = vmatpush1.msra.mxu0 0.0
    %5487 = vmatprep.subr.mxu0 0.0
    %5488 = vmatpush1.msra.mxu0 0.0
    %5489 = vmatprep.subr.mxu0 0.0
    %5490 = vmatpush1.msra.mxu0 0.0
    %5491 = vmatprep.subr.mxu0 0.0
    %5492 = vmatpush1.msra.mxu0 0.0
    %5493 = vmatprep.subr.mxu0 0.0
    %5494 = vmatpush1.msra.mxu0 0.0
    %5495 = vmatprep.subr.mxu0 0.0
    %5496 = vmatpush1.msra.mxu0 0.0
    %5497 = vmatprep.subr.mxu0 0.0
    %5498 = vmatpush1.msra.mxu0 %v5462
    %5499 = vmatprep.subr.mxu0 0.0
    %5500 = vmatpush2.msra.mxu0 0.0
    %5501 = vmatprep.subr.mxu0 0.0
    %5502 = vmatpush2.msra.mxu0 0.0
    %5503 = vmatprep.subr.mxu0 0.0
    %5504 = vmatpush2.msra.mxu0 0.0
    %5505 = vmatprep.subr.mxu0 0.0
    %5506 = vmatpush2.msra.mxu0 0.0
    %5507 = vmatprep.subr.mxu0 0.0
    %5508 = vmatpush2.msra.mxu0 0.0
    %5509 = vmatprep.subr.mxu0 0.0
    %5510 = vmatpush2.msra.mxu0 0.0
    %5511 = vmatprep.subr.mxu0 0.0
    %5512 = vmatpush2.msra.mxu0 0.0
    %5513 = vmatprep.subr.mxu0 0.0
    %5514 = vmatpush2.msra.mxu0 0.0
    %5515 = vmatprep.subr.mxu0 0.0
    %5516 = vmatpush2.msra.mxu0 0.0
    %5517 = vmatprep.subr.mxu0 0.0
    %5518 = vmatpush2.msra.mxu0 0.0
    %5519 = vmatprep.subr.mxu0 0.0
    %5520 = vmatpush2.msra.mxu0 0.0
    %5521 = vmatprep.subr.mxu0 0.0
    %5522 = vmatpush2.msra.mxu0 0.0
    %5523 = vmatprep.subr.mxu0 0.0
    %5524 = vmatpush2.msra.mxu0 0.0
    %5525 = vmatprep.subr.mxu0 0.0
    %5526 = vmatpush2.msra.mxu0 0.0
    %5527 = vmatprep.subr.mxu0 0.0
    %5528 = vmatpush2.msra.mxu0 0.0
    %5529 = vmatprep.subr.mxu0 0.0
    %5530 = vmatpush2.msra.mxu0 0.0
    %5531 = vmatprep.mubr.f32.mxu0 0.0
    %5532 = vmatmul.mubr.f32.gmra.mxu0 %v5465
    %v5533 = vpop.f32.mrf.mxu0
    %v5534 = vadd.f32 0.0, %v5533
    %v5535 = vpop.f32.mrf.mxu0
    %5536 = vdwg.mxu0
    %5537 = vrot.lane.b32.xlu0 %v3533, 104
    %v5538 = vpop.permute.xlu0 %5537
    %5539 = vrot.lane.b32.xlu0 %v3543, 72
    %v5540 = vpop.permute.xlu0 %5539
    %v5541 = vsel %vm371, %v5538, 0
    %v5543 = vsel %vm371, %v5540, 0
    %5545 = vmatprep.subr.mxu0 0.0
    %5546 = vmatpush1.xpose.msra.mxu0 0.0
    %5547 = vmatprep.subr.mxu0 0.0
    %5548 = vmatpush1.xpose.msra.mxu0 0.0
    %5549 = vmatprep.subr.mxu0 0.0
    %5550 = vmatpush1.xpose.msra.mxu0 0.0
    %5551 = vmatprep.subr.mxu0 0.0
    %5552 = vmatpush1.xpose.msra.mxu0 0.0
    %5553 = vmatprep.subr.mxu0 0.0
    %5554 = vmatpush1.xpose.msra.mxu0 0.0
    %5555 = vmatprep.subr.mxu0 0.0
    %5556 = vmatpush1.xpose.msra.mxu0 0.0
    %5557 = vmatprep.subr.mxu0 0.0
    %5558 = vmatpush1.xpose.msra.mxu0 0.0
    %5559 = vmatprep.subr.mxu0 0.0
    %5560 = vmatpush1.xpose.msra.mxu0 0.0
    %5561 = vmatprep.subr.mxu0 0.0
    %5562 = vmatpush1.xpose.msra.mxu0 0.0
    %5563 = vmatprep.subr.mxu0 0.0
    %5564 = vmatpush1.xpose.msra.mxu0 0.0
    %5565 = vmatprep.subr.mxu0 0.0
    %5566 = vmatpush1.xpose.msra.mxu0 0.0
    %5567 = vmatprep.subr.mxu0 0.0
    %5568 = vmatpush1.xpose.msra.mxu0 0.0
    %5569 = vmatprep.subr.mxu0 0.0
    %5570 = vmatpush1.xpose.msra.mxu0 0.0
    %5571 = vmatprep.subr.mxu0 0.0
    %5572 = vmatpush1.xpose.msra.mxu0 0.0
    %5573 = vmatprep.subr.mxu0 0.0
    %5574 = vmatpush1.xpose.msra.mxu0 0.0
    %5575 = vmatprep.subr.mxu0 0.0
    %5576 = vmatpush1.xpose.msra.mxu0 %v5543
    %5577 = vmatprep.subr.mxu0 0.0
    %5578 = vmatpush2.xpose.msra.mxu0 0.0
    %5579 = vmatprep.subr.mxu0 0.0
    %5580 = vmatpush2.xpose.msra.mxu0 0.0
    %5581 = vmatprep.subr.mxu0 0.0
    %5582 = vmatpush2.xpose.msra.mxu0 0.0
    %5583 = vmatprep.subr.mxu0 0.0
    %5584 = vmatpush2.xpose.msra.mxu0 0.0
    %5585 = vmatprep.subr.mxu0 0.0
    %5586 = vmatpush2.xpose.msra.mxu0 0.0
    %5587 = vmatprep.subr.mxu0 0.0
    %5588 = vmatpush2.xpose.msra.mxu0 0.0
    %5589 = vmatprep.subr.mxu0 0.0
    %5590 = vmatpush2.xpose.msra.mxu0 0.0
    %5591 = vmatprep.subr.mxu0 0.0
    %5592 = vmatpush2.xpose.msra.mxu0 0.0
    %5593 = vmatprep.subr.mxu0 0.0
    %5594 = vmatpush2.xpose.msra.mxu0 0.0
    %5595 = vmatprep.subr.mxu0 0.0
    %5596 = vmatpush2.xpose.msra.mxu0 0.0
    %5597 = vmatprep.subr.mxu0 0.0
    %5598 = vmatpush2.xpose.msra.mxu0 0.0
    %5599 = vmatprep.subr.mxu0 0.0
    %5600 = vmatpush2.xpose.msra.mxu0 0.0
    %5601 = vmatprep.subr.mxu0 0.0
    %5602 = vmatpush2.xpose.msra.mxu0 0.0
    %5603 = vmatprep.subr.mxu0 0.0
    %5604 = vmatpush2.xpose.msra.mxu0 0.0
    %5605 = vmatprep.subr.mxu0 0.0
    %5606 = vmatpush2.xpose.msra.mxu0 0.0
    %5607 = vmatprep.subr.mxu0 0.0
    %5608 = vmatpush2.xpose.msra.mxu0 0.0
    %5609 = vmatprep.mubr.f32.mxu0 0.0
    %5610 = vmatmul.mubr.f32.gmra.mxu0 %v5541
    %v5611 = vpop.f32.mrf.mxu0
    %v5612 = vadd.f32 %v361, %v5611
    %v5613 = vpop.f32.mrf.mxu0
    %5614 = vdwg.mxu0
    %5615 = vrot.lane.b32.xlu0 %v3534, 104
    %v5616 = vpop.permute.xlu0 %5615
    %5617 = vrot.lane.b32.xlu0 %v3544, 72
    %v5618 = vpop.permute.xlu0 %5617
    %v5619 = vsel %vm371, %v5616, 0
    %v5621 = vsel %vm371, %v5618, 0
    %5623 = vmatprep.subr.mxu0 0.0
    %5624 = vmatpush1.xpose.msra.mxu0 0.0
    %5625 = vmatprep.subr.mxu0 0.0
    %5626 = vmatpush1.xpose.msra.mxu0 0.0
    %5627 = vmatprep.subr.mxu0 0.0
    %5628 = vmatpush1.xpose.msra.mxu0 0.0
    %5629 = vmatprep.subr.mxu0 0.0
    %5630 = vmatpush1.xpose.msra.mxu0 0.0
    %5631 = vmatprep.subr.mxu0 0.0
    %5632 = vmatpush1.xpose.msra.mxu0 0.0
    %5633 = vmatprep.subr.mxu0 0.0
    %5634 = vmatpush1.xpose.msra.mxu0 0.0
    %5635 = vmatprep.subr.mxu0 0.0
    %5636 = vmatpush1.xpose.msra.mxu0 0.0
    %5637 = vmatprep.subr.mxu0 0.0
    %5638 = vmatpush1.xpose.msra.mxu0 0.0
    %5639 = vmatprep.subr.mxu0 0.0
    %5640 = vmatpush1.xpose.msra.mxu0 0.0
    %5641 = vmatprep.subr.mxu0 0.0
    %5642 = vmatpush1.xpose.msra.mxu0 0.0
    %5643 = vmatprep.subr.mxu0 0.0
    %5644 = vmatpush1.xpose.msra.mxu0 0.0
    %5645 = vmatprep.subr.mxu0 0.0
    %5646 = vmatpush1.xpose.msra.mxu0 0.0
    %5647 = vmatprep.subr.mxu0 0.0
    %5648 = vmatpush1.xpose.msra.mxu0 0.0
    %5649 = vmatprep.subr.mxu0 0.0
    %5650 = vmatpush1.xpose.msra.mxu0 0.0
    %5651 = vmatprep.subr.mxu0 0.0
    %5652 = vmatpush1.xpose.msra.mxu0 0.0
    %5653 = vmatprep.subr.mxu0 0.0
    %5654 = vmatpush1.xpose.msra.mxu0 %v5621
    %5655 = vmatprep.subr.mxu0 0.0
    %5656 = vmatpush2.xpose.msra.mxu0 0.0
    %5657 = vmatprep.subr.mxu0 0.0
    %5658 = vmatpush2.xpose.msra.mxu0 0.0
    %5659 = vmatprep.subr.mxu0 0.0
    %5660 = vmatpush2.xpose.msra.mxu0 0.0
    %5661 = vmatprep.subr.mxu0 0.0
    %5662 = vmatpush2.xpose.msra.mxu0 0.0
    %5663 = vmatprep.subr.mxu0 0.0
    %5664 = vmatpush2.xpose.msra.mxu0 0.0
    %5665 = vmatprep.subr.mxu0 0.0
    %5666 = vmatpush2.xpose.msra.mxu0 0.0
    %5667 = vmatprep.subr.mxu0 0.0
    %5668 = vmatpush2.xpose.msra.mxu0 0.0
    %5669 = vmatprep.subr.mxu0 0.0
    %5670 = vmatpush2.xpose.msra.mxu0 0.0
    %5671 = vmatprep.subr.mxu0 0.0
    %5672 = vmatpush2.xpose.msra.mxu0 0.0
    %5673 = vmatprep.subr.mxu0 0.0
    %5674 = vmatpush2.xpose.msra.mxu0 0.0
    %5675 = vmatprep.subr.mxu0 0.0
    %5676 = vmatpush2.xpose.msra.mxu0 0.0
    %5677 = vmatprep.subr.mxu0 0.0
    %5678 = vmatpush2.xpose.msra.mxu0 0.0
    %5679 = vmatprep.subr.mxu0 0.0
    %5680 = vmatpush2.xpose.msra.mxu0 0.0
    %5681 = vmatprep.subr.mxu0 0.0
    %5682 = vmatpush2.xpose.msra.mxu0 0.0
    %5683 = vmatprep.subr.mxu0 0.0
    %5684 = vmatpush2.xpose.msra.mxu0 0.0
    %5685 = vmatprep.subr.mxu0 0.0
    %5686 = vmatpush2.xpose.msra.mxu0 0.0
    %5687 = vmatprep.mubr.f32.mxu0 0.0
    %5688 = vmatmul.mubr.f32.gmra.mxu0 %v5619
    %v5689 = vpop.f32.mrf.mxu0
    %v5690 = vadd.f32 %v365, %v5689
    %v5691 = vpop.f32.mrf.mxu0
    %5692 = vdwg.mxu0
    %v5693 = vsel %vm525, %v5612, -inf
    %5694 = vmax.xlane.f32.xlu0 %v5693
    %v5695 = vpop.xlane.xlu0 %5694
    %v5696 = vsel %vm525, %v5690, -inf
    %5697 = vmax.xlane.f32.xlu0 %v5696
    %v5698 = vpop.xlane.xlu0 %5697
    %v5699 = vsub.f32 %v5612, %v5695
    %v5700 = vsub.f32 %v5690, %v5698
    %v5701 = vmul.f32 %v5699, 1.442695
    %v5702 = vpow.pop %v5701
    %v5703 = vmul.f32 %v5700, 1.442695
    %v5704 = vpow.pop %v5703
    %v5705 = vsel %vm525, %v5702, 0.0
    %5706 = vadd.xlane.f32.xlu0 %v5705
    %v5707 = vpop.xlane.xlu0 %5706
    %v5708 = vsel %vm525, %v5704, 0.0
    %5709 = vadd.xlane.f32.xlu0 %v5708
    %v5710 = vpop.xlane.xlu0 %5709
    %v5711 = vrcp.pop %v5707
    %v5712 = vrcp.pop %v5710
    %v5713 = vmul.f32 %v5702, %v5711
    %v5714 = vmul.f32 %v5704, %v5712
    %5715 = vrot.lane.b32.xlu0 %v3553, 40
    %v5716 = vpop.permute.xlu0 %5715
    %v5719 = vsel %vm525, %v5713, 0
    %5721 = vmatprep.subr.mxu0 0.0
    %5722 = vmatpush1.msra.mxu0 0.0
    %5723 = vmatprep.subr.mxu0 0.0
    %5724 = vmatpush1.msra.mxu0 0.0
    %5725 = vmatprep.subr.mxu0 0.0
    %5726 = vmatpush1.msra.mxu0 0.0
    %5727 = vmatprep.subr.mxu0 0.0
    %5728 = vmatpush1.msra.mxu0 0.0
    %5729 = vmatprep.subr.mxu0 0.0
    %5730 = vmatpush1.msra.mxu0 0.0
    %5731 = vmatprep.subr.mxu0 0.0
    %5732 = vmatpush1.msra.mxu0 0.0
    %5733 = vmatprep.subr.mxu0 0.0
    %5734 = vmatpush1.msra.mxu0 0.0
    %5735 = vmatprep.subr.mxu0 0.0
    %5736 = vmatpush1.msra.mxu0 0.0
    %5737 = vmatprep.subr.mxu0 0.0
    %5738 = vmatpush1.msra.mxu0 0.0
    %5739 = vmatprep.subr.mxu0 0.0
    %5740 = vmatpush1.msra.mxu0 0.0
    %5741 = vmatprep.subr.mxu0 0.0
    %5742 = vmatpush1.msra.mxu0 0.0
    %5743 = vmatprep.subr.mxu0 0.0
    %5744 = vmatpush1.msra.mxu0 0.0
    %5745 = vmatprep.subr.mxu0 0.0
    %5746 = vmatpush1.msra.mxu0 0.0
    %5747 = vmatprep.subr.mxu0 0.0
    %5748 = vmatpush1.msra.mxu0 0.0
    %5749 = vmatprep.subr.mxu0 0.0
    %5750 = vmatpush1.msra.mxu0 0.0
    %5751 = vmatprep.subr.mxu0 0.0
    %5752 = vmatpush1.msra.mxu0 %v5716
    %5753 = vmatprep.subr.mxu0 0.0
    %5754 = vmatpush2.msra.mxu0 0.0
    %5755 = vmatprep.subr.mxu0 0.0
    %5756 = vmatpush2.msra.mxu0 0.0
    %5757 = vmatprep.subr.mxu0 0.0
    %5758 = vmatpush2.msra.mxu0 0.0
    %5759 = vmatprep.subr.mxu0 0.0
    %5760 = vmatpush2.msra.mxu0 0.0
    %5761 = vmatprep.subr.mxu0 0.0
    %5762 = vmatpush2.msra.mxu0 0.0
    %5763 = vmatprep.subr.mxu0 0.0
    %5764 = vmatpush2.msra.mxu0 0.0
    %5765 = vmatprep.subr.mxu0 0.0
    %5766 = vmatpush2.msra.mxu0 0.0
    %5767 = vmatprep.subr.mxu0 0.0
    %5768 = vmatpush2.msra.mxu0 0.0
    %5769 = vmatprep.subr.mxu0 0.0
    %5770 = vmatpush2.msra.mxu0 0.0
    %5771 = vmatprep.subr.mxu0 0.0
    %5772 = vmatpush2.msra.mxu0 0.0
    %5773 = vmatprep.subr.mxu0 0.0
    %5774 = vmatpush2.msra.mxu0 0.0
    %5775 = vmatprep.subr.mxu0 0.0
    %5776 = vmatpush2.msra.mxu0 0.0
    %5777 = vmatprep.subr.mxu0 0.0
    %5778 = vmatpush2.msra.mxu0 0.0
    %5779 = vmatprep.subr.mxu0 0.0
    %5780 = vmatpush2.msra.mxu0 0.0
    %5781 = vmatprep.subr.mxu0 0.0
    %5782 = vmatpush2.msra.mxu0 0.0
    %5783 = vmatprep.subr.mxu0 0.0
    %5784 = vmatpush2.msra.mxu0 0.0
    %5785 = vmatprep.mubr.f32.mxu0 0.0
    %5786 = vmatmul.mubr.f32.gmra.mxu0 %v5719
    %v5787 = vpop.f32.mrf.mxu0
    %v5788 = vadd.f32 0.0, %v5787
    %v5789 = vpop.f32.mrf.mxu0
    %5790 = vdwg.mxu0
    %5791 = vrot.lane.b32.xlu0 %v3554, 40
    %v5792 = vpop.permute.xlu0 %5791
    %v5795 = vsel %vm525, %v5714, 0
    %5797 = vmatprep.subr.mxu0 0.0
    %5798 = vmatpush1.msra.mxu0 0.0
    %5799 = vmatprep.subr.mxu0 0.0
    %5800 = vmatpush1.msra.mxu0 0.0
    %5801 = vmatprep.subr.mxu0 0.0
    %5802 = vmatpush1.msra.mxu0 0.0
    %5803 = vmatprep.subr.mxu0 0.0
    %5804 = vmatpush1.msra.mxu0 0.0
    %5805 = vmatprep.subr.mxu0 0.0
    %5806 = vmatpush1.msra.mxu0 0.0
    %5807 = vmatprep.subr.mxu0 0.0
    %5808 = vmatpush1.msra.mxu0 0.0
    %5809 = vmatprep.subr.mxu0 0.0
    %5810 = vmatpush1.msra.mxu0 0.0
    %5811 = vmatprep.subr.mxu0 0.0
    %5812 = vmatpush1.msra.mxu0 0.0
    %5813 = vmatprep.subr.mxu0 0.0
    %5814 = vmatpush1.msra.mxu0 0.0
    %5815 = vmatprep.subr.mxu0 0.0
    %5816 = vmatpush1.msra.mxu0 0.0
    %5817 = vmatprep.subr.mxu0 0.0
    %5818 = vmatpush1.msra.mxu0 0.0
    %5819 = vmatprep.subr.mxu0 0.0
    %5820 = vmatpush1.msra.mxu0 0.0
    %5821 = vmatprep.subr.mxu0 0.0
    %5822 = vmatpush1.msra.mxu0 0.0
    %5823 = vmatprep.subr.mxu0 0.0
    %5824 = vmatpush1.msra.mxu0 0.0
    %5825 = vmatprep.subr.mxu0 0.0
    %5826 = vmatpush1.msra.mxu0 0.0
    %5827 = vmatprep.subr.mxu0 0.0
    %5828 = vmatpush1.msra.mxu0 %v5792
    %5829 = vmatprep.subr.mxu0 0.0
    %5830 = vmatpush2.msra.mxu0 0.0
    %5831 = vmatprep.subr.mxu0 0.0
    %5832 = vmatpush2.msra.mxu0 0.0
    %5833 = vmatprep.subr.mxu0 0.0
    %5834 = vmatpush2.msra.mxu0 0.0
    %5835 = vmatprep.subr.mxu0 0.0
    %5836 = vmatpush2.msra.mxu0 0.0
    %5837 = vmatprep.subr.mxu0 0.0
    %5838 = vmatpush2.msra.mxu0 0.0
    %5839 = vmatprep.subr.mxu0 0.0
    %5840 = vmatpush2.msra.mxu0 0.0
    %5841 = vmatprep.subr.mxu0 0.0
    %5842 = vmatpush2.msra.mxu0 0.0
    %5843 = vmatprep.subr.mxu0 0.0
    %5844 = vmatpush2.msra.mxu0 0.0
    %5845 = vmatprep.subr.mxu0 0.0
    %5846 = vmatpush2.msra.mxu0 0.0
    %5847 = vmatprep.subr.mxu0 0.0
    %5848 = vmatpush2.msra.mxu0 0.0
    %5849 = vmatprep.subr.mxu0 0.0
    %5850 = vmatpush2.msra.mxu0 0.0
    %5851 = vmatprep.subr.mxu0 0.0
    %5852 = vmatpush2.msra.mxu0 0.0
    %5853 = vmatprep.subr.mxu0 0.0
    %5854 = vmatpush2.msra.mxu0 0.0
    %5855 = vmatprep.subr.mxu0 0.0
    %5856 = vmatpush2.msra.mxu0 0.0
    %5857 = vmatprep.subr.mxu0 0.0
    %5858 = vmatpush2.msra.mxu0 0.0
    %5859 = vmatprep.subr.mxu0 0.0
    %5860 = vmatpush2.msra.mxu0 0.0
    %5861 = vmatprep.mubr.f32.mxu0 0.0
    %5862 = vmatmul.mubr.f32.gmra.mxu0 %v5795
    %v5863 = vpop.f32.mrf.mxu0
    %v5864 = vadd.f32 0.0, %v5863
    %v5865 = vpop.f32.mrf.mxu0
    %5866 = vdwg.mxu0
    %5867 = vrot.lane.b32.xlu0 %v3533, 100
    %v5868 = vpop.permute.xlu0 %5867
    %5869 = vrot.lane.b32.xlu0 %v3543, 68
    %v5870 = vpop.permute.xlu0 %5869
    %v5871 = vsel %vm371, %v5868, 0
    %v5873 = vsel %vm371, %v5870, 0
    %5875 = vmatprep.subr.mxu0 0.0
    %5876 = vmatpush1.xpose.msra.mxu0 0.0
    %5877 = vmatprep.subr.mxu0 0.0
    %5878 = vmatpush1.xpose.msra.mxu0 0.0
    %5879 = vmatprep.subr.mxu0 0.0
    %5880 = vmatpush1.xpose.msra.mxu0 0.0
    %5881 = vmatprep.subr.mxu0 0.0
    %5882 = vmatpush1.xpose.msra.mxu0 0.0
    %5883 = vmatprep.subr.mxu0 0.0
    %5884 = vmatpush1.xpose.msra.mxu0 0.0
    %5885 = vmatprep.subr.mxu0 0.0
    %5886 = vmatpush1.xpose.msra.mxu0 0.0
    %5887 = vmatprep.subr.mxu0 0.0
    %5888 = vmatpush1.xpose.msra.mxu0 0.0
    %5889 = vmatprep.subr.mxu0 0.0
    %5890 = vmatpush1.xpose.msra.mxu0 0.0
    %5891 = vmatprep.subr.mxu0 0.0
    %5892 = vmatpush1.xpose.msra.mxu0 0.0
    %5893 = vmatprep.subr.mxu0 0.0
    %5894 = vmatpush1.xpose.msra.mxu0 0.0
    %5895 = vmatprep.subr.mxu0 0.0
    %5896 = vmatpush1.xpose.msra.mxu0 0.0
    %5897 = vmatprep.subr.mxu0 0.0
    %5898 = vmatpush1.xpose.msra.mxu0 0.0
    %5899 = vmatprep.subr.mxu0 0.0
    %5900 = vmatpush1.xpose.msra.mxu0 0.0
    %5901 = vmatprep.subr.mxu0 0.0
    %5902 = vmatpush1.xpose.msra.mxu0 0.0
    %5903 = vmatprep.subr.mxu0 0.0
    %5904 = vmatpush1.xpose.msra.mxu0 0.0
    %5905 = vmatprep.subr.mxu0 0.0
    %5906 = vmatpush1.xpose.msra.mxu0 %v5873
    %5907 = vmatprep.subr.mxu0 0.0
    %5908 = vmatpush2.xpose.msra.mxu0 0.0
    %5909 = vmatprep.subr.mxu0 0.0
    %5910 = vmatpush2.xpose.msra.mxu0 0.0
    %5911 = vmatprep.subr.mxu0 0.0
    %5912 = vmatpush2.xpose.msra.mxu0 0.0
    %5913 = vmatprep.subr.mxu0 0.0
    %5914 = vmatpush2.xpose.msra.mxu0 0.0
    %5915 = vmatprep.subr.mxu0 0.0
    %5916 = vmatpush2.xpose.msra.mxu0 0.0
    %5917 = vmatprep.subr.mxu0 0.0
    %5918 = vmatpush2.xpose.msra.mxu0 0.0
    %5919 = vmatprep.subr.mxu0 0.0
    %5920 = vmatpush2.xpose.msra.mxu0 0.0
    %5921 = vmatprep.subr.mxu0 0.0
    %5922 = vmatpush2.xpose.msra.mxu0 0.0
    %5923 = vmatprep.subr.mxu0 0.0
    %5924 = vmatpush2.xpose.msra.mxu0 0.0
    %5925 = vmatprep.subr.mxu0 0.0
    %5926 = vmatpush2.xpose.msra.mxu0 0.0
    %5927 = vmatprep.subr.mxu0 0.0
    %5928 = vmatpush2.xpose.msra.mxu0 0.0
    %5929 = vmatprep.subr.mxu0 0.0
    %5930 = vmatpush2.xpose.msra.mxu0 0.0
    %5931 = vmatprep.subr.mxu0 0.0
    %5932 = vmatpush2.xpose.msra.mxu0 0.0
    %5933 = vmatprep.subr.mxu0 0.0
    %5934 = vmatpush2.xpose.msra.mxu0 0.0
    %5935 = vmatprep.subr.mxu0 0.0
    %5936 = vmatpush2.xpose.msra.mxu0 0.0
    %5937 = vmatprep.subr.mxu0 0.0
    %5938 = vmatpush2.xpose.msra.mxu0 0.0
    %5939 = vmatprep.mubr.f32.mxu0 0.0
    %5940 = vmatmul.mubr.f32.gmra.mxu0 %v5871
    %v5941 = vpop.f32.mrf.mxu0
    %v5942 = vadd.f32 %v361, %v5941
    %v5943 = vpop.f32.mrf.mxu0
    %5944 = vdwg.mxu0
    %5945 = vrot.lane.b32.xlu0 %v3534, 100
    %v5946 = vpop.permute.xlu0 %5945
    %5947 = vrot.lane.b32.xlu0 %v3544, 68
    %v5948 = vpop.permute.xlu0 %5947
    %v5949 = vsel %vm371, %v5946, 0
    %v5951 = vsel %vm371, %v5948, 0
    %5953 = vmatprep.subr.mxu0 0.0
    %5954 = vmatpush1.xpose.msra.mxu0 0.0
    %5955 = vmatprep.subr.mxu0 0.0
    %5956 = vmatpush1.xpose.msra.mxu0 0.0
    %5957 = vmatprep.subr.mxu0 0.0
    %5958 = vmatpush1.xpose.msra.mxu0 0.0
    %5959 = vmatprep.subr.mxu0 0.0
    %5960 = vmatpush1.xpose.msra.mxu0 0.0
    %5961 = vmatprep.subr.mxu0 0.0
    %5962 = vmatpush1.xpose.msra.mxu0 0.0
    %5963 = vmatprep.subr.mxu0 0.0
    %5964 = vmatpush1.xpose.msra.mxu0 0.0
    %5965 = vmatprep.subr.mxu0 0.0
    %5966 = vmatpush1.xpose.msra.mxu0 0.0
    %5967 = vmatprep.subr.mxu0 0.0
    %5968 = vmatpush1.xpose.msra.mxu0 0.0
    %5969 = vmatprep.subr.mxu0 0.0
    %5970 = vmatpush1.xpose.msra.mxu0 0.0
    %5971 = vmatprep.subr.mxu0 0.0
    %5972 = vmatpush1.xpose.msra.mxu0 0.0
    %5973 = vmatprep.subr.mxu0 0.0
    %5974 = vmatpush1.xpose.msra.mxu0 0.0
    %5975 = vmatprep.subr.mxu0 0.0
    %5976 = vmatpush1.xpose.msra.mxu0 0.0
    %5977 = vmatprep.subr.mxu0 0.0
    %5978 = vmatpush1.xpose.msra.mxu0 0.0
    %5979 = vmatprep.subr.mxu0 0.0
    %5980 = vmatpush1.xpose.msra.mxu0 0.0
    %5981 = vmatprep.subr.mxu0 0.0
    %5982 = vmatpush1.xpose.msra.mxu0 0.0
    %5983 = vmatprep.subr.mxu0 0.0
    %5984 = vmatpush1.xpose.msra.mxu0 %v5951
    %5985 = vmatprep.subr.mxu0 0.0
    %5986 = vmatpush2.xpose.msra.mxu0 0.0
    %5987 = vmatprep.subr.mxu0 0.0
    %5988 = vmatpush2.xpose.msra.mxu0 0.0
    %5989 = vmatprep.subr.mxu0 0.0
    %5990 = vmatpush2.xpose.msra.mxu0 0.0
    %5991 = vmatprep.subr.mxu0 0.0
    %5992 = vmatpush2.xpose.msra.mxu0 0.0
    %5993 = vmatprep.subr.mxu0 0.0
    %5994 = vmatpush2.xpose.msra.mxu0 0.0
    %5995 = vmatprep.subr.mxu0 0.0
    %5996 = vmatpush2.xpose.msra.mxu0 0.0
    %5997 = vmatprep.subr.mxu0 0.0
    %5998 = vmatpush2.xpose.msra.mxu0 0.0
    %5999 = vmatprep.subr.mxu0 0.0
    %6000 = vmatpush2.xpose.msra.mxu0 0.0
    %6001 = vmatprep.subr.mxu0 0.0
    %6002 = vmatpush2.xpose.msra.mxu0 0.0
    %6003 = vmatprep.subr.mxu0 0.0
    %6004 = vmatpush2.xpose.msra.mxu0 0.0
    %6005 = vmatprep.subr.mxu0 0.0
    %6006 = vmatpush2.xpose.msra.mxu0 0.0
    %6007 = vmatprep.subr.mxu0 0.0
    %6008 = vmatpush2.xpose.msra.mxu0 0.0
    %6009 = vmatprep.subr.mxu0 0.0
    %6010 = vmatpush2.xpose.msra.mxu0 0.0
    %6011 = vmatprep.subr.mxu0 0.0
    %6012 = vmatpush2.xpose.msra.mxu0 0.0
    %6013 = vmatprep.subr.mxu0 0.0
    %6014 = vmatpush2.xpose.msra.mxu0 0.0
    %6015 = vmatprep.subr.mxu0 0.0
    %6016 = vmatpush2.xpose.msra.mxu0 0.0
    %6017 = vmatprep.mubr.f32.mxu0 0.0
    %6018 = vmatmul.mubr.f32.gmra.mxu0 %v5949
    %v6019 = vpop.f32.mrf.mxu0
    %v6020 = vadd.f32 %v365, %v6019
    %v6021 = vpop.f32.mrf.mxu0
    %6022 = vdwg.mxu0
    %v6023 = vsel %vm525, %v5942, -inf
    %6024 = vmax.xlane.f32.xlu0 %v6023
    %v6025 = vpop.xlane.xlu0 %6024
    %v6026 = vsel %vm525, %v6020, -inf
    %6027 = vmax.xlane.f32.xlu0 %v6026
    %v6028 = vpop.xlane.xlu0 %6027
    %v6029 = vsub.f32 %v5942, %v6025
    %v6030 = vsub.f32 %v6020, %v6028
    %v6031 = vmul.f32 %v6029, 1.442695
    %v6032 = vpow.pop %v6031
    %v6033 = vmul.f32 %v6030, 1.442695
    %v6034 = vpow.pop %v6033
    %v6035 = vsel %vm525, %v6032, 0.0
    %6036 = vadd.xlane.f32.xlu0 %v6035
    %v6037 = vpop.xlane.xlu0 %6036
    %v6038 = vsel %vm525, %v6034, 0.0
    %6039 = vadd.xlane.f32.xlu0 %v6038
    %v6040 = vpop.xlane.xlu0 %6039
    %v6041 = vrcp.pop %v6037
    %v6042 = vrcp.pop %v6040
    %v6043 = vmul.f32 %v6032, %v6041
    %v6044 = vmul.f32 %v6034, %v6042
    %6045 = vrot.lane.b32.xlu0 %v3553, 36
    %v6046 = vpop.permute.xlu0 %6045
    %v6049 = vsel %vm525, %v6043, 0
    %6051 = vmatprep.subr.mxu0 0.0
    %6052 = vmatpush1.msra.mxu0 0.0
    %6053 = vmatprep.subr.mxu0 0.0
    %6054 = vmatpush1.msra.mxu0 0.0
    %6055 = vmatprep.subr.mxu0 0.0
    %6056 = vmatpush1.msra.mxu0 0.0
    %6057 = vmatprep.subr.mxu0 0.0
    %6058 = vmatpush1.msra.mxu0 0.0
    %6059 = vmatprep.subr.mxu0 0.0
    %6060 = vmatpush1.msra.mxu0 0.0
    %6061 = vmatprep.subr.mxu0 0.0
    %6062 = vmatpush1.msra.mxu0 0.0
    %6063 = vmatprep.subr.mxu0 0.0
    %6064 = vmatpush1.msra.mxu0 0.0
    %6065 = vmatprep.subr.mxu0 0.0
    %6066 = vmatpush1.msra.mxu0 0.0
    %6067 = vmatprep.subr.mxu0 0.0
    %6068 = vmatpush1.msra.mxu0 0.0
    %6069 = vmatprep.subr.mxu0 0.0
    %6070 = vmatpush1.msra.mxu0 0.0
    %6071 = vmatprep.subr.mxu0 0.0
    %6072 = vmatpush1.msra.mxu0 0.0
    %6073 = vmatprep.subr.mxu0 0.0
    %6074 = vmatpush1.msra.mxu0 0.0
    %6075 = vmatprep.subr.mxu0 0.0
    %6076 = vmatpush1.msra.mxu0 0.0
    %6077 = vmatprep.subr.mxu0 0.0
    %6078 = vmatpush1.msra.mxu0 0.0
    %6079 = vmatprep.subr.mxu0 0.0
    %6080 = vmatpush1.msra.mxu0 0.0
    %6081 = vmatprep.subr.mxu0 0.0
    %6082 = vmatpush1.msra.mxu0 %v6046
    %6083 = vmatprep.subr.mxu0 0.0
    %6084 = vmatpush2.msra.mxu0 0.0
    %6085 = vmatprep.subr.mxu0 0.0
    %6086 = vmatpush2.msra.mxu0 0.0
    %6087 = vmatprep.subr.mxu0 0.0
    %6088 = vmatpush2.msra.mxu0 0.0
    %6089 = vmatprep.subr.mxu0 0.0
    %6090 = vmatpush2.msra.mxu0 0.0
    %6091 = vmatprep.subr.mxu0 0.0
    %6092 = vmatpush2.msra.mxu0 0.0
    %6093 = vmatprep.subr.mxu0 0.0
    %6094 = vmatpush2.msra.mxu0 0.0
    %6095 = vmatprep.subr.mxu0 0.0
    %6096 = vmatpush2.msra.mxu0 0.0
    %6097 = vmatprep.subr.mxu0 0.0
    %6098 = vmatpush2.msra.mxu0 0.0
    %6099 = vmatprep.subr.mxu0 0.0
    %6100 = vmatpush2.msra.mxu0 0.0
    %6101 = vmatprep.subr.mxu0 0.0
    %6102 = vmatpush2.msra.mxu0 0.0
    %6103 = vmatprep.subr.mxu0 0.0
    %6104 = vmatpush2.msra.mxu0 0.0
    %6105 = vmatprep.subr.mxu0 0.0
    %6106 = vmatpush2.msra.mxu0 0.0
    %6107 = vmatprep.subr.mxu0 0.0
    %6108 = vmatpush2.msra.mxu0 0.0
    %6109 = vmatprep.subr.mxu0 0.0
    %6110 = vmatpush2.msra.mxu0 0.0
    %6111 = vmatprep.subr.mxu0 0.0
    %6112 = vmatpush2.msra.mxu0 0.0
    %6113 = vmatprep.subr.mxu0 0.0
    %6114 = vmatpush2.msra.mxu0 0.0
    %6115 = vmatprep.mubr.f32.mxu0 0.0
    %6116 = vmatmul.mubr.f32.gmra.mxu0 %v6049
    %v6117 = vpop.f32.mrf.mxu0
    %v6118 = vadd.f32 0.0, %v6117
    %v6119 = vpop.f32.mrf.mxu0
    %6120 = vdwg.mxu0
    %6121 = vrot.lane.b32.xlu0 %v3554, 36
    %v6122 = vpop.permute.xlu0 %6121
    %v6125 = vsel %vm525, %v6044, 0
    %6127 = vmatprep.subr.mxu0 0.0
    %6128 = vmatpush1.msra.mxu0 0.0
    %6129 = vmatprep.subr.mxu0 0.0
    %6130 = vmatpush1.msra.mxu0 0.0
    %6131 = vmatprep.subr.mxu0 0.0
    %6132 = vmatpush1.msra.mxu0 0.0
    %6133 = vmatprep.subr.mxu0 0.0
    %6134 = vmatpush1.msra.mxu0 0.0
    %6135 = vmatprep.subr.mxu0 0.0
    %6136 = vmatpush1.msra.mxu0 0.0
    %6137 = vmatprep.subr.mxu0 0.0
    %6138 = vmatpush1.msra.mxu0 0.0
    %6139 = vmatprep.subr.mxu0 0.0
    %6140 = vmatpush1.msra.mxu0 0.0
    %6141 = vmatprep.subr.mxu0 0.0
    %6142 = vmatpush1.msra.mxu0 0.0
    %6143 = vmatprep.subr.mxu0 0.0
    %6144 = vmatpush1.msra.mxu0 0.0
    %6145 = vmatprep.subr.mxu0 0.0
    %6146 = vmatpush1.msra.mxu0 0.0
    %6147 = vmatprep.subr.mxu0 0.0
    %6148 = vmatpush1.msra.mxu0 0.0
    %6149 = vmatprep.subr.mxu0 0.0
    %6150 = vmatpush1.msra.mxu0 0.0
    %6151 = vmatprep.subr.mxu0 0.0
    %6152 = vmatpush1.msra.mxu0 0.0
    %6153 = vmatprep.subr.mxu0 0.0
    %6154 = vmatpush1.msra.mxu0 0.0
    %6155 = vmatprep.subr.mxu0 0.0
    %6156 = vmatpush1.msra.mxu0 0.0
    %6157 = vmatprep.subr.mxu0 0.0
    %6158 = vmatpush1.msra.mxu0 %v6122
    %6159 = vmatprep.subr.mxu0 0.0
    %6160 = vmatpush2.msra.mxu0 0.0
    %6161 = vmatprep.subr.mxu0 0.0
    %6162 = vmatpush2.msra.mxu0 0.0
    %6163 = vmatprep.subr.mxu0 0.0
    %6164 = vmatpush2.msra.mxu0 0.0
    %6165 = vmatprep.subr.mxu0 0.0
    %6166 = vmatpush2.msra.mxu0 0.0
    %6167 = vmatprep.subr.mxu0 0.0
    %6168 = vmatpush2.msra.mxu0 0.0
    %6169 = vmatprep.subr.mxu0 0.0
    %6170 = vmatpush2.msra.mxu0 0.0
    %6171 = vmatprep.subr.mxu0 0.0
    %6172 = vmatpush2.msra.mxu0 0.0
    %6173 = vmatprep.subr.mxu0 0.0
    %6174 = vmatpush2.msra.mxu0 0.0
    %6175 = vmatprep.subr.mxu0 0.0
    %6176 = vmatpush2.msra.mxu0 0.0
    %6177 = vmatprep.subr.mxu0 0.0
    %6178 = vmatpush2.msra.mxu0 0.0
    %6179 = vmatprep.subr.mxu0 0.0
    %6180 = vmatpush2.msra.mxu0 0.0
    %6181 = vmatprep.subr.mxu0 0.0
    %6182 = vmatpush2.msra.mxu0 0.0
    %6183 = vmatprep.subr.mxu0 0.0
    %6184 = vmatpush2.msra.mxu0 0.0
    %6185 = vmatprep.subr.mxu0 0.0
    %6186 = vmatpush2.msra.mxu0 0.0
    %6187 = vmatprep.subr.mxu0 0.0
    %6188 = vmatpush2.msra.mxu0 0.0
    %6189 = vmatprep.subr.mxu0 0.0
    %6190 = vmatpush2.msra.mxu0 0.0
    %6191 = vmatprep.mubr.f32.mxu0 0.0
    %6192 = vmatmul.mubr.f32.gmra.mxu0 %v6125
    %v6193 = vpop.f32.mrf.mxu0
    %v6194 = vadd.f32 0.0, %v6193
    %v6195 = vpop.f32.mrf.mxu0
    %6196 = vdwg.mxu0
    %6199 = vrot.lane.b32.xlu0 %v4138, 4
    %v6200 = vpop.permute.xlu0 %6199
    %6201 = vrot.lane.b32.xlu0 %v4214, 4
    %v6202 = vpop.permute.xlu0 %6201
    %6207 = vrot.lane.b32.xlu0 %v4468, 8
    %v6208 = vpop.permute.xlu0 %6207
    %6209 = vrot.lane.b32.xlu0 %v4544, 8
    %v6210 = vpop.permute.xlu0 %6209
    %6215 = vrot.lane.b32.xlu0 %v4798, 12
    %v6216 = vpop.permute.xlu0 %6215
    %6217 = vrot.lane.b32.xlu0 %v4874, 12
    %v6218 = vpop.permute.xlu0 %6217
    %6223 = vrot.lane.b32.xlu0 %v5128, 16
    %v6224 = vpop.permute.xlu0 %6223
    %6225 = vrot.lane.b32.xlu0 %v5204, 16
    %v6226 = vpop.permute.xlu0 %6225
    %6231 = vrot.lane.b32.xlu0 %v5458, 20
    %v6232 = vpop.permute.xlu0 %6231
    %6233 = vrot.lane.b32.xlu0 %v5534, 20
    %v6234 = vpop.permute.xlu0 %6233
    %6239 = vrot.lane.b32.xlu0 %v5788, 24
    %v6240 = vpop.permute.xlu0 %6239
    %6241 = vrot.lane.b32.xlu0 %v5864, 24
    %v6242 = vpop.permute.xlu0 %6241
    %6247 = vrot.lane.b32.xlu0 %v6118, 28
    %v6248 = vpop.permute.xlu0 %6247
    %6249 = vrot.lane.b32.xlu0 %v6194, 28
    %v6250 = vpop.permute.xlu0 %6249
    %v6253 = vsel %vm371, %v3807, %v6200
    %v6254 = vsel %vm371, %v3884, %v6202
    %v6255 = vsel %vm525, %v6253, %v6208
    %v6256 = vsel %vm525, %v6254, %v6210
    %v6257 = vsel %vm3072, %v6255, %v6216
    %v6258 = vsel %vm3072, %v6256, %v6218
    %v6259 = vsel %vm3075, %v6257, %v6224
    %v6260 = vsel %vm3075, %v6258, %v6226
    %v6261 = vsel %vm3078, %v6259, %v6232
    %v6262 = vsel %vm3078, %v6260, %v6234
    %v6263 = vsel %vm3081, %v6261, %v6240
    %v6264 = vsel %vm3081, %v6262, %v6242
    %v6265 = vsel %vm3084, %v6263, %v6248
    %v6266 = vsel %vm3084, %v6264, %v6250
    %s6267 = scalar_lea.vmem [#allocation9], 32
    %v6268 = vld [vmem:[%s6267] sm:$0xff]
    %v6269 = vld [vmem:[%s6267 + $0x8] sm:$0xff]
    %v6270 = vld [vmem:[%s6267 + $0x10] sm:$0xff]
    %v6271 = vld [vmem:[%s6267 + $0x18] sm:$0xff]
    %v6272 = vlaneseq
    %v6273 = vshrl.u32 %v6272, 7
    %v6274 = vsub.s32 3, %v6273
    %v6275 = vrot.slane %v3441, %v6274
    %v6277 = vsel %vm250, %v6265, 0
    %v6280 = vsel %vm250, %v6266, 0
    %6282 = vmatprep.subr.mxu0 0.0
    %6283 = vmatpush1.msra.mxu0 0.0
    %6284 = vmatprep.subr.mxu0 0.0
    %6285 = vmatpush1.msra.mxu0 0.0
    %6286 = vmatprep.subr.mxu0 0.0
    %6287 = vmatpush1.msra.mxu0 0.0
    %6288 = vmatprep.subr.mxu0 0.0
    %6289 = vmatpush1.msra.mxu0 0.0
    %6290 = vmatprep.subr.mxu0 0.0
    %6291 = vmatpush1.msra.mxu0 0.0
    %6292 = vmatprep.subr.mxu0 0.0
    %6293 = vmatpush1.msra.mxu0 0.0
    %6294 = vmatprep.subr.mxu0 0.0
    %6295 = vmatpush1.msra.mxu0 0.0
    %6296 = vmatprep.subr.mxu0 0.0
    %6297 = vmatpush1.msra.mxu0 0.0
    %6298 = vmatprep.subr.mxu0 0.0
    %6299 = vmatpush1.msra.mxu0 0.0
    %6300 = vmatprep.subr.mxu0 0.0
    %6301 = vmatpush1.msra.mxu0 0.0
    %6302 = vmatprep.subr.mxu0 0.0
    %6303 = vmatpush1.msra.mxu0 0.0
    %6304 = vmatprep.subr.mxu0 0.0
    %6305 = vmatpush1.msra.mxu0 0.0
    %6306 = vmatprep.subr.mxu0 0.0
    %6307 = vmatpush1.msra.mxu0 %v6271
    %6308 = vmatprep.subr.mxu0 0.0
    %6309 = vmatpush1.msra.mxu0 %v6270
    %6310 = vmatprep.subr.mxu0 0.0
    %6311 = vmatpush1.msra.mxu0 %v6269
    %6312 = vmatprep.subr.mxu0 0.0
    %6313 = vmatpush1.msra.mxu0 %v6268
    %6314 = vmatprep.subr.mxu0 0.0
    %6315 = vmatpush2.msra.mxu0 0.0
    %6316 = vmatprep.subr.mxu0 0.0
    %6317 = vmatpush2.msra.mxu0 0.0
    %6318 = vmatprep.subr.mxu0 0.0
    %6319 = vmatpush2.msra.mxu0 0.0
    %6320 = vmatprep.subr.mxu0 0.0
    %6321 = vmatpush2.msra.mxu0 0.0
    %6322 = vmatprep.subr.mxu0 0.0
    %6323 = vmatpush2.msra.mxu0 0.0
    %6324 = vmatprep.subr.mxu0 0.0
    %6325 = vmatpush2.msra.mxu0 0.0
    %6326 = vmatprep.subr.mxu0 0.0
    %6327 = vmatpush2.msra.mxu0 0.0
    %6328 = vmatprep.subr.mxu0 0.0
    %6329 = vmatpush2.msra.mxu0 0.0
    %6330 = vmatprep.subr.mxu0 0.0
    %6331 = vmatpush2.msra.mxu0 0.0
    %6332 = vmatprep.subr.mxu0 0.0
    %6333 = vmatpush2.msra.mxu0 0.0
    %6334 = vmatprep.subr.mxu0 0.0
    %6335 = vmatpush2.msra.mxu0 0.0
    %6336 = vmatprep.subr.mxu0 0.0
    %6337 = vmatpush2.msra.mxu0 0.0
    %6338 = vmatprep.subr.mxu0 0.0
    %6339 = vmatpush2.msra.mxu0 0.0
    %6340 = vmatprep.subr.mxu0 0.0
    %6341 = vmatpush2.msra.mxu0 0.0
    %6342 = vmatprep.subr.mxu0 0.0
    %6343 = vmatpush2.msra.mxu0 0.0
    %6344 = vmatprep.subr.mxu0 0.0
    %6345 = vmatpush2.msra.mxu0 0.0
    %6346 = vmatprep.mubr.f32.mxu0 0.0
    %6347 = vmatmul.mubr.f32.gmra.mxu0 %v6277
    %v6348 = vpop.f32.mrf.mxu0
    %v6349 = vadd.f32 %v6275, %v6348
    %v6350 = vpop.f32.mrf.mxu0
    %6351 = vmatprep.mubr.f32.mxu0 0.0
    %6352 = vmatmul.mubr.f32.gmra.mxu0 %v6280
    %v6353 = vpop.f32.mrf.mxu0
    %v6354 = vadd.f32 %v6275, %v6353
    %v6355 = vpop.f32.mrf.mxu0
    %6356 = vdwg.mxu0
    %v6357 = vadd.f32 %v3438, %v6349
    %v6358 = vadd.f32 %v3439, %v6354
    %v6359 = vsel %vm250, %v6357, 0.0
    %6360 = vadd.xlane.f32.xlu0 %v6359
    %v6361 = vpop.xlane.xlu0 %6360
    %v6362 = vsel %vm250, %v6358, 0.0
    %6363 = vadd.xlane.f32.xlu0 %v6362
    %v6364 = vpop.xlane.xlu0 %6363
    %v6365 = vmul.f32 %v6361, %v3184
    %v6366 = vmul.f32 %v6364, %v3184
    %v6367 = vsub.f32 %v6357, %v6365
    %v6368 = vsub.f32 %v6358, %v6366
    %v6369 = vmul.f32 %v6367, %v6367
    %v6370 = vmul.f32 %v6368, %v6368
    %v6371 = vsel %vm250, %v6369, 0.0
    %6372 = vadd.xlane.f32.xlu0 %v6371
    %v6373 = vpop.xlane.xlu0 %6372
    %v6374 = vsel %vm250, %v6370, 0.0
    %6375 = vadd.xlane.f32.xlu0 %v6374
    %v6376 = vpop.xlane.xlu0 %6375
    %v6377 = vmul.f32 %v6373, %v3184
    %v6378 = vmul.f32 %v6376, %v3184
    %v6379 = vadd.f32 %v6377, 1e-05
    %v6380 = vadd.f32 %v6378, 1e-05
    %v6381 = vrsqrt.pop %v6379
    %v6382 = vrsqrt.pop %v6380
    %v6383 = vmul.f32 %v6367, %v6381
    %v6384 = vmul.f32 %v6368, %v6382
    %v6385 = vlaneseq
    %v6386 = vshrl.u32 %v6385, 7
    %v6387 = vsub.s32 5, %v6386
    %v6388 = vrot.slane %v3441, %v6387
    %v6389 = vmul.f32 %v6383, %v6388
    %v6390 = vmul.f32 %v6384, %v6388
    %v6391 = vlaneseq
    %v6392 = vshrl.u32 %v6391, 7
    %v6393 = vsub.s32 6, %v6392
    %v6394 = vrot.slane %v3441, %v6393
    %v6395 = vadd.f32 %v6389, %v6394
    %v6396 = vadd.f32 %v6390, %v6394
    %s6397 = scalar_lea.vmem [#allocation10], 32
    %v6398 = vld [vmem:[%s6397] sm:$0xff]
    %v6399 = vld [vmem:[%s6397 + $0x8] sm:$0xff]
    %v6400 = vld [vmem:[%s6397 + $0x10] sm:$0xff]
    %v6401 = vld [vmem:[%s6397 + $0x18] sm:$0xff]
    %s6402 = scalar_lea.vmem %s8, 1
    %v6403 = vld [vmem:[%s6402] sm:$0x1]
    %v6405 = vlaneseq
    %v6406 = vshrl.u32 %v6405, 7
    %v6407 = vsub.s32 0, %v6406
    %v6408 = vrot.slane %v6403, %v6407
    %v6411 = vsel %vm250, %v6395, 0
    %v6414 = vsel %vm250, %v6396, 0
    %6416 = vmatprep.subr.mxu0 0.0
    %6417 = vmatpush1.msra.mxu0 0.0
    %6418 = vmatprep.subr.mxu0 0.0
    %6419 = vmatpush1.msra.mxu0 0.0
    %6420 = vmatprep.subr.mxu0 0.0
    %6421 = vmatpush1.msra.mxu0 0.0
    %6422 = vmatprep.subr.mxu0 0.0
    %6423 = vmatpush1.msra.mxu0 0.0
    %6424 = vmatprep.subr.mxu0 0.0
    %6425 = vmatpush1.msra.mxu0 0.0
    %6426 = vmatprep.subr.mxu0 0.0
    %6427 = vmatpush1.msra.mxu0 0.0
    %6428 = vmatprep.subr.mxu0 0.0
    %6429 = vmatpush1.msra.mxu0 0.0
    %6430 = vmatprep.subr.mxu0 0.0
    %6431 = vmatpush1.msra.mxu0 0.0
    %6432 = vmatprep.subr.mxu0 0.0
    %6433 = vmatpush1.msra.mxu0 0.0
    %6434 = vmatprep.subr.mxu0 0.0
    %6435 = vmatpush1.msra.mxu0 0.0
    %6436 = vmatprep.subr.mxu0 0.0
    %6437 = vmatpush1.msra.mxu0 0.0
    %6438 = vmatprep.subr.mxu0 0.0
    %6439 = vmatpush1.msra.mxu0 0.0
    %6440 = vmatprep.subr.mxu0 0.0
    %6441 = vmatpush1.msra.mxu0 %v6401
    %6442 = vmatprep.subr.mxu0 0.0
    %6443 = vmatpush1.msra.mxu0 %v6400
    %6444 = vmatprep.subr.mxu0 0.0
    %6445 = vmatpush1.msra.mxu0 %v6399
    %6446 = vmatprep.subr.mxu0 0.0
    %6447 = vmatpush1.msra.mxu0 %v6398
    %6448 = vmatprep.subr.mxu0 0.0
    %6449 = vmatpush2.msra.mxu0 0.0
    %6450 = vmatprep.subr.mxu0 0.0
    %6451 = vmatpush2.msra.mxu0 0.0
    %6452 = vmatprep.subr.mxu0 0.0
    %6453 = vmatpush2.msra.mxu0 0.0
    %6454 = vmatprep.subr.mxu0 0.0
    %6455 = vmatpush2.msra.mxu0 0.0
    %6456 = vmatprep.subr.mxu0 0.0
    %6457 = vmatpush2.msra.mxu0 0.0
    %6458 = vmatprep.subr.mxu0 0.0
    %6459 = vmatpush2.msra.mxu0 0.0
    %6460 = vmatprep.subr.mxu0 0.0
    %6461 = vmatpush2.msra.mxu0 0.0
    %6462 = vmatprep.subr.mxu0 0.0
    %6463 = vmatpush2.msra.mxu0 0.0
    %6464 = vmatprep.subr.mxu0 0.0
    %6465 = vmatpush2.msra.mxu0 0.0
    %6466 = vmatprep.subr.mxu0 0.0
    %6467 = vmatpush2.msra.mxu0 0.0
    %6468 = vmatprep.subr.mxu0 0.0
    %6469 = vmatpush2.msra.mxu0 0.0
    %6470 = vmatprep.subr.mxu0 0.0
    %6471 = vmatpush2.msra.mxu0 0.0
    %6472 = vmatprep.subr.mxu0 0.0
    %6473 = vmatpush2.msra.mxu0 0.0
    %6474 = vmatprep.subr.mxu0 0.0
    %6475 = vmatpush2.msra.mxu0 0.0
    %6476 = vmatprep.subr.mxu0 0.0
    %6477 = vmatpush2.msra.mxu0 0.0
    %6478 = vmatprep.subr.mxu0 0.0
    %6479 = vmatpush2.msra.mxu0 0.0
    %6480 = vmatprep.mubr.f32.mxu0 0.0
    %6481 = vmatmul.mubr.f32.gmra.mxu0 %v6411
    %v6482 = vpop.f32.mrf.mxu0
    %v6483 = vadd.f32 %v6408, %v6482
    %v6484 = vpop.f32.mrf.mxu0
    %6485 = vmatprep.mubr.f32.mxu0 0.0
    %6486 = vmatmul.mubr.f32.gmra.mxu0 %v6414
    %v6487 = vpop.f32.mrf.mxu0
    %v6488 = vadd.f32 %v6408, %v6487
    %v6489 = vpop.f32.mrf.mxu0
    %6490 = vdwg.mxu0
    %v6491 = vmax.f32 %v6483, 0.0
    %v6492 = vmax.f32 %v6488, 0.0
    %s6493 = scalar_lea.vmem [#allocation12], 32
    %v6494 = vld [vmem:[%s6493] sm:$0xff]
    %v6495 = vld [vmem:[%s6493 + $0x8] sm:$0xff]
    %v6496 = vld [vmem:[%s6493 + $0x10] sm:$0xff]
    %v6497 = vld [vmem:[%s6493 + $0x18] sm:$0xff]
    %v6498 = vlaneseq
    %v6499 = vshrl.u32 %v6498, 7
    %v6500 = vsub.s32 4, %v6499
    %v6501 = vrot.slane %v3441, %v6500
    %v6503 = vsel %vm250, %v6491, 0
    %v6506 = vsel %vm250, %v6492, 0
    %6508 = vmatprep.subr.mxu0 0.0
    %6509 = vmatpush1.msra.mxu0 0.0
    %6510 = vmatprep.subr.mxu0 0.0
    %6511 = vmatpush1.msra.mxu0 0.0
    %6512 = vmatprep.subr.mxu0 0.0
    %6513 = vmatpush1.msra.mxu0 0.0
    %6514 = vmatprep.subr.mxu0 0.0
    %6515 = vmatpush1.msra.mxu0 0.0
    %6516 = vmatprep.subr.mxu0 0.0
    %6517 = vmatpush1.msra.mxu0 0.0
    %6518 = vmatprep.subr.mxu0 0.0
    %6519 = vmatpush1.msra.mxu0 0.0
    %6520 = vmatprep.subr.mxu0 0.0
    %6521 = vmatpush1.msra.mxu0 0.0
    %6522 = vmatprep.subr.mxu0 0.0
    %6523 = vmatpush1.msra.mxu0 0.0
    %6524 = vmatprep.subr.mxu0 0.0
    %6525 = vmatpush1.msra.mxu0 0.0
    %6526 = vmatprep.subr.mxu0 0.0
    %6527 = vmatpush1.msra.mxu0 0.0
    %6528 = vmatprep.subr.mxu0 0.0
    %6529 = vmatpush1.msra.mxu0 0.0
    %6530 = vmatprep.subr.mxu0 0.0
    %6531 = vmatpush1.msra.mxu0 0.0
    %6532 = vmatprep.subr.mxu0 0.0
    %6533 = vmatpush1.msra.mxu0 %v6497
    %6534 = vmatprep.subr.mxu0 0.0
    %6535 = vmatpush1.msra.mxu0 %v6496
    %6536 = vmatprep.subr.mxu0 0.0
    %6537 = vmatpush1.msra.mxu0 %v6495
    %6538 = vmatprep.subr.mxu0 0.0
    %6539 = vmatpush1.msra.mxu0 %v6494
    %6540 = vmatprep.subr.mxu0 0.0
    %6541 = vmatpush2.msra.mxu0 0.0
    %6542 = vmatprep.subr.mxu0 0.0
    %6543 = vmatpush2.msra.mxu0 0.0
    %6544 = vmatprep.subr.mxu0 0.0
    %6545 = vmatpush2.msra.mxu0 0.0
    %6546 = vmatprep.subr.mxu0 0.0
    %6547 = vmatpush2.msra.mxu0 0.0
    %6548 = vmatprep.subr.mxu0 0.0
    %6549 = vmatpush2.msra.mxu0 0.0
    %6550 = vmatprep.subr.mxu0 0.0
    %6551 = vmatpush2.msra.mxu0 0.0
    %6552 = vmatprep.subr.mxu0 0.0
    %6553 = vmatpush2.msra.mxu0 0.0
    %6554 = vmatprep.subr.mxu0 0.0
    %6555 = vmatpush2.msra.mxu0 0.0
    %6556 = vmatprep.subr.mxu0 0.0
    %6557 = vmatpush2.msra.mxu0 0.0
    %6558 = vmatprep.subr.mxu0 0.0
    %6559 = vmatpush2.msra.mxu0 0.0
    %6560 = vmatprep.subr.mxu0 0.0
    %6561 = vmatpush2.msra.mxu0 0.0
    %6562 = vmatprep.subr.mxu0 0.0
    %6563 = vmatpush2.msra.mxu0 0.0
    %6564 = vmatprep.subr.mxu0 0.0
    %6565 = vmatpush2.msra.mxu0 0.0
    %6566 = vmatprep.subr.mxu0 0.0
    %6567 = vmatpush2.msra.mxu0 0.0
    %6568 = vmatprep.subr.mxu0 0.0
    %6569 = vmatpush2.msra.mxu0 0.0
    %6570 = vmatprep.subr.mxu0 0.0
    %6571 = vmatpush2.msra.mxu0 0.0
    %6572 = vmatprep.mubr.f32.mxu0 0.0
    %6573 = vmatmul.mubr.f32.gmra.mxu0 %v6503
    %v6574 = vpop.f32.mrf.mxu0
    %v6575 = vadd.f32 %v6501, %v6574
    %v6576 = vpop.f32.mrf.mxu0
    %6577 = vmatprep.mubr.f32.mxu0 0.0
    %6578 = vmatmul.mubr.f32.gmra.mxu0 %v6506
    %v6579 = vpop.f32.mrf.mxu0
    %v6580 = vadd.f32 %v6501, %v6579
    %v6581 = vpop.f32.mrf.mxu0
    %6582 = vdwg.mxu0
    %v6583 = vadd.f32 %v6395, %v6575
    %v6584 = vadd.f32 %v6396, %v6580
    %v6585 = vsel %vm250, %v6583, 0.0
    %6586 = vadd.xlane.f32.xlu0 %v6585
    %v6587 = vpop.xlane.xlu0 %6586
    %v6588 = vsel %vm250, %v6584, 0.0
    %6589 = vadd.xlane.f32.xlu0 %v6588
    %v6590 = vpop.xlane.xlu0 %6589
    %v6591 = vmul.f32 %v6587, %v3184
    %v6592 = vmul.f32 %v6590, %v3184
    %v6593 = vsub.f32 %v6583, %v6591
    %v6594 = vsub.f32 %v6584, %v6592
    %v6595 = vmul.f32 %v6593, %v6593
    %v6596 = vmul.f32 %v6594, %v6594
    %v6597 = vsel %vm250, %v6595, 0.0
    %6598 = vadd.xlane.f32.xlu0 %v6597
    %v6599 = vpop.xlane.xlu0 %6598
    %v6600 = vsel %vm250, %v6596, 0.0
    %6601 = vadd.xlane.f32.xlu0 %v6600
    %v6602 = vpop.xlane.xlu0 %6601
    %v6603 = vmul.f32 %v6599, %v3184
    %v6604 = vmul.f32 %v6602, %v3184
    %v6605 = vadd.f32 %v6603, 1e-05
    %v6606 = vadd.f32 %v6604, 1e-05
    %v6607 = vrsqrt.pop %v6605
    %v6608 = vrsqrt.pop %v6606
    %v6609 = vmul.f32 %v6593, %v6607
    %v6610 = vmul.f32 %v6594, %v6608
    %v6611 = vlaneseq
    %v6612 = vshrl.u32 %v6611, 7
    %v6613 = vsub.s32 7, %v6612
    %v6614 = vrot.slane %v3441, %v6613
    %v6615 = vmul.f32 %v6609, %v6614
    %v6616 = vmul.f32 %v6610, %v6614
    %v6617 = vlaneseq
    %v6618 = vshrl.u32 %v6617, 7
    %v6619 = vsub.s32 0, %v6618
    %v6620 = vrot.slane %v3442, %v6619
    %v6621 = vadd.f32 %v6615, %v6620
    %v6622 = vadd.f32 %v6616, %v6620
    %vm6623 = vcmask 58368
    %v6624 = vsel %vm6623, %v218, 0.0
    %6625 = vadd.xlane.f32.xlu0 %v6624
    %v6626 = vpop.xlane.xlu0 %6625
    %v6627 = vrcp.pop %v6626
    %v6628 = vmul.f32 %v218, %v6627
    %v6629 = vlaneseq
    %v6630 = vshrl.u32 %v6629, 7
    %v6631 = vsub.s32 0, %v6630
    %v6632 = vrot.slane %v6628, %v6631
    %6634 = vbcast.lane.b32.xlu0 %v6632, 256
    %v6635 = vpop.permute.xlu0 %6634
    %v6636 = vlaneseq
    %v6637 = vshrl.u32 %v6636, 7
    %v6638 = vsub.s32 1, %v6637
    %v6639 = vrot.slane %v6628, %v6638
    %6641 = vbcast.lane.b32.xlu0 %v6639, 256
    %v6642 = vpop.permute.xlu0 %6641
    %v6643 = vmul.f32 %v6621, %v6635
    %v6644 = vmul.f32 %v6622, %v6642
    %v6645 = vsel %vm250, %v6643, 0.0
    %v6646 = vrot.slane %v6645, 4
    %v6647 = vadd.f32 %v6645, %v6646
    %v6648 = vrot.slane %v6647, 2
    %v6649 = vadd.f32 %v6647, %v6648
    %v6650 = vrot.slane %v6649, 1
    %v6651 = vadd.f32 %v6649, %v6650
    %v6652 = vsel %vm250, %v6644, 0.0
    %v6653 = vrot.slane %v6652, 4
    %v6654 = vadd.f32 %v6652, %v6653
    %v6655 = vrot.slane %v6654, 2
    %v6656 = vadd.f32 %v6654, %v6655
    %v6657 = vrot.slane %v6656, 1
    %v6658 = vadd.f32 %v6656, %v6657
    %v6659 = vld [vmem:[#allocation15] sm:$0xff]
    %v6660 = vld [vmem:[#allocation15 + $0x8] sm:$0xff]
    %v6661 = vld [vmem:[#allocation15 + $0x10] sm:$0xff]
    %v6662 = vld [vmem:[#allocation15 + $0x18] sm:$0xff]
    %v6663 = vld [vmem:[#allocation15 + $0x20] sm:$0x1]
    %v6664 = vld [vmem:[#allocation16] sm:$0xff]
    %v6665 = vld [vmem:[#allocation16 + $0x8] sm:$0xff]
    %v6666 = vld [vmem:[#allocation16 + $0x10] sm:$0xff]
    %v6667 = vld [vmem:[#allocation16 + $0x18] sm:$0xff]
    %v6668 = vld [vmem:[#allocation16 + $0x20] sm:$0x1]
    %v6669 = vlaneseq
    %v6670 = vshrl.u32 %v6669, 7
    %v6671 = vsub.s32 0, %v6670
    %v6672 = vrot.slane %v6663, %v6671
    %vm6675 = vcmask 1041409
    %v6676 = vsel %vm6675, %v6658, %v6651
    %v6677 = vsel %vm250, %v6676, 0
    %6679 = vmatprep.subr.mxu0 0.0
    %6680 = vmatpush1.msra.mxu0 0.0
    %6681 = vmatprep.subr.mxu0 0.0
    %6682 = vmatpush1.msra.mxu0 0.0
    %6683 = vmatprep.subr.mxu0 0.0
    %6684 = vmatpush1.msra.mxu0 0.0
    %6685 = vmatprep.subr.mxu0 0.0
    %6686 = vmatpush1.msra.mxu0 0.0
    %6687 = vmatprep.subr.mxu0 0.0
    %6688 = vmatpush1.msra.mxu0 0.0
    %6689 = vmatprep.subr.mxu0 0.0
    %6690 = vmatpush1.msra.mxu0 0.0
    %6691 = vmatprep.subr.mxu0 0.0
    %6692 = vmatpush1.msra.mxu0 0.0
    %6693 = vmatprep.subr.mxu0 0.0
    %6694 = vmatpush1.msra.mxu0 0.0
    %6695 = vmatprep.subr.mxu0 0.0
    %6696 = vmatpush1.msra.mxu0 0.0
    %6697 = vmatprep.subr.mxu0 0.0
    %6698 = vmatpush1.msra.mxu0 0.0
    %6699 = vmatprep.subr.mxu0 0.0
    %6700 = vmatpush1.msra.mxu0 0.0
    %6701 = vmatprep.subr.mxu0 0.0
    %6702 = vmatpush1.msra.mxu0 0.0
    %6703 = vmatprep.subr.mxu0 0.0
    %6704 = vmatpush1.msra.mxu0 %v6662
    %6705 = vmatprep.subr.mxu0 0.0
    %6706 = vmatpush1.msra.mxu0 %v6661
    %6707 = vmatprep.subr.mxu0 0.0
    %6708 = vmatpush1.msra.mxu0 %v6660
    %6709 = vmatprep.subr.mxu0 0.0
    %6710 = vmatpush1.msra.mxu0 %v6659
    %6711 = vmatprep.subr.mxu0 0.0
    %6712 = vmatpush2.msra.mxu0 0.0
    %6713 = vmatprep.subr.mxu0 0.0
    %6714 = vmatpush2.msra.mxu0 0.0
    %6715 = vmatprep.subr.mxu0 0.0
    %6716 = vmatpush2.msra.mxu0 0.0
    %6717 = vmatprep.subr.mxu0 0.0
    %6718 = vmatpush2.msra.mxu0 0.0
    %6719 = vmatprep.subr.mxu0 0.0
    %6720 = vmatpush2.msra.mxu0 0.0
    %6721 = vmatprep.subr.mxu0 0.0
    %6722 = vmatpush2.msra.mxu0 0.0
    %6723 = vmatprep.subr.mxu0 0.0
    %6724 = vmatpush2.msra.mxu0 0.0
    %6725 = vmatprep.subr.mxu0 0.0
    %6726 = vmatpush2.msra.mxu0 0.0
    %6727 = vmatprep.subr.mxu0 0.0
    %6728 = vmatpush2.msra.mxu0 0.0
    %6729 = vmatprep.subr.mxu0 0.0
    %6730 = vmatpush2.msra.mxu0 0.0
    %6731 = vmatprep.subr.mxu0 0.0
    %6732 = vmatpush2.msra.mxu0 0.0
    %6733 = vmatprep.subr.mxu0 0.0
    %6734 = vmatpush2.msra.mxu0 0.0
    %6735 = vmatprep.subr.mxu0 0.0
    %6736 = vmatpush2.msra.mxu0 0.0
    %6737 = vmatprep.subr.mxu0 0.0
    %6738 = vmatpush2.msra.mxu0 0.0
    %6739 = vmatprep.subr.mxu0 0.0
    %6740 = vmatpush2.msra.mxu0 0.0
    %6741 = vmatprep.subr.mxu0 0.0
    %6742 = vmatpush2.msra.mxu0 0.0
    %6743 = vmatprep.mubr.f32.mxu0 0.0
    %6744 = vmatmul.mubr.f32.gmra.mxu0 %v6677
    %v6745 = vpop.f32.mrf.mxu0
    %v6746 = vadd.f32 %v6672, %v6745
    %v6747 = vpop.f32.mrf.mxu0
    %6748 = vdwg.mxu0
    %v6749 = vmax.f32 %v6746, 0.0
    %v6750 = vlaneseq
    %v6751 = vshrl.u32 %v6750, 7
    %v6752 = vsub.s32 0, %v6751
    %v6753 = vrot.slane %v6668, %v6752
    %v6755 = vsel %vm250, %v6749, 0
    %6757 = vmatprep.subr.mxu0 0.0
    %6758 = vmatpush1.msra.mxu0 0.0
    %6759 = vmatprep.subr.mxu0 0.0
    %6760 = vmatpush1.msra.mxu0 0.0
    %6761 = vmatprep.subr.mxu0 0.0
    %6762 = vmatpush1.msra.mxu0 0.0
    %6763 = vmatprep.subr.mxu0 0.0
    %6764 = vmatpush1.msra.mxu0 0.0
    %6765 = vmatprep.subr.mxu0 0.0
    %6766 = vmatpush1.msra.mxu0 0.0
    %6767 = vmatprep.subr.mxu0 0.0
    %6768 = vmatpush1.msra.mxu0 0.0
    %6769 = vmatprep.subr.mxu0 0.0
    %6770 = vmatpush1.msra.mxu0 0.0
    %6771 = vmatprep.subr.mxu0 0.0
    %6772 = vmatpush1.msra.mxu0 0.0
    %6773 = vmatprep.subr.mxu0 0.0
    %6774 = vmatpush1.msra.mxu0 0.0
    %6775 = vmatprep.subr.mxu0 0.0
    %6776 = vmatpush1.msra.mxu0 0.0
    %6777 = vmatprep.subr.mxu0 0.0
    %6778 = vmatpush1.msra.mxu0 0.0
    %6779 = vmatprep.subr.mxu0 0.0
    %6780 = vmatpush1.msra.mxu0 0.0
    %6781 = vmatprep.subr.mxu0 0.0
    %6782 = vmatpush1.msra.mxu0 %v6667
    %6783 = vmatprep.subr.mxu0 0.0
    %6784 = vmatpush1.msra.mxu0 %v6666
    %6785 = vmatprep.subr.mxu0 0.0
    %6786 = vmatpush1.msra.mxu0 %v6665
    %6787 = vmatprep.subr.mxu0 0.0
    %6788 = vmatpush1.msra.mxu0 %v6664
    %6789 = vmatprep.subr.mxu0 0.0
    %6790 = vmatpush2.msra.mxu0 0.0
    %6791 = vmatprep.subr.mxu0 0.0
    %6792 = vmatpush2.msra.mxu0 0.0
    %6793 = vmatprep.subr.mxu0 0.0
    %6794 = vmatpush2.msra.mxu0 0.0
    %6795 = vmatprep.subr.mxu0 0.0
    %6796 = vmatpush2.msra.mxu0 0.0
    %6797 = vmatprep.subr.mxu0 0.0
    %6798 = vmatpush2.msra.mxu0 0.0
    %6799 = vmatprep.subr.mxu0 0.0
    %6800 = vmatpush2.msra.mxu0 0.0
    %6801 = vmatprep.subr.mxu0 0.0
    %6802 = vmatpush2.msra.mxu0 0.0
    %6803 = vmatprep.subr.mxu0 0.0
    %6804 = vmatpush2.msra.mxu0 0.0
    %6805 = vmatprep.subr.mxu0 0.0
    %6806 = vmatpush2.msra.mxu0 0.0
    %6807 = vmatprep.subr.mxu0 0.0
    %6808 = vmatpush2.msra.mxu0 0.0
    %6809 = vmatprep.subr.mxu0 0.0
    %6810 = vmatpush2.msra.mxu0 0.0
    %6811 = vmatprep.subr.mxu0 0.0
    %6812 = vmatpush2.msra.mxu0 0.0
    %6813 = vmatprep.subr.mxu0 0.0
    %6814 = vmatpush2.msra.mxu0 0.0
    %6815 = vmatprep.subr.mxu0 0.0
    %6816 = vmatpush2.msra.mxu0 0.0
    %6817 = vmatprep.subr.mxu0 0.0
    %6818 = vmatpush2.msra.mxu0 0.0
    %6819 = vmatprep.subr.mxu0 0.0
    %6820 = vmatpush2.msra.mxu0 0.0
    %6821 = vmatprep.mubr.f32.mxu0 0.0
    %6822 = vmatmul.mubr.f32.gmra.mxu0 %v6755
    %v6823 = vpop.f32.mrf.mxu0
    %v6824 = vadd.f32 %v6753, %v6823
    %v6825 = vpop.f32.mrf.mxu0
    %6826 = vdwg.mxu0
    %vm6827 = vcmask 1024
    %6828 = vst.msk [vmem:[%s11] sm:$0x3] %vm6827, %v6824
    // Predicated region
    $region74: #{transformer_forward.1} parent=1 // pred_check
      _
    $region75: #{transformer_forward.1} parent=1 // pred_check_branch
      %6830 = sbr.rel (0) target = $region77
    $region76: #{transformer_forward.1} parent=1 // pred_region
      _
    $region77: #{transformer_forward.1} parent=1 // pred_fallthru
      _
    // Predicated region
    $region78: #{transformer_forward.1} parent=1 // pred_check
      _
    $region79: #{transformer_forward.1} parent=1 // pred_check_branch
      %6832 = sbr.rel (0) target = $region81
    $region80: #{transformer_forward.1} parent=1 // pred_region
      _
    $region81: #{transformer_forward.1} parent=1 // pred_fallthru
      _
    %6833 = vsyncpa [#allocation6], 1
    %6834 = vsyncpa [#allocation8], 1
    %6835 = vsyncpa [#allocation11], 1
    %6836 = vsyncpa [#allocation14], 1
    %6837 = vsyncpa [#allocation17], 1

</llo_original>
